<compile_context>
chip_gen: v6e
topology: v6e:2x2x1
jax: 0.10.0
libtpu: 0.0.40
codegen_flags: <defaults>
</compile_context>

<pallas_src>
import functools
import math

import jax
import jax.numpy as jnp
from jax.experimental import pallas as pl
from jax.experimental.pallas import tpu as pltpu

EPS = 1e-5       # nn.LayerNorm default layer_norm_eps
DEC_PAD = 128    # decoder output padded to a full 128-lane store


def _layernorm(x, gamma, beta, eps):
    mu = jnp.mean(x, axis=-1, keepdims=True)
    var = jnp.mean((x - mu) ** 2, axis=-1, keepdims=True)
    return (x - mu) * jax.lax.rsqrt(var + eps) * gamma + beta


def _fused_forward_kernel(x_ref,
                          enc_w_ref, enc_b_ref,
                          wqkv_ref, bqkv_ref,
                          woh_ref, bo_ref,
                          w1_ref, b1_ref, w2_ref, b2_ref,
                          g1_ref, be1_ref, g2_ref, be2_ref,
                          dec_w_ref, dec_b_ref,
                          o_ref,
                          *, nhead, num_layers):
    tb, seq, fin = x_ref.shape          # static block shape: (TB, S, Fin)
    m = tb * seq                        # batch folded into the matmul M dim
    d = enc_w_ref.shape[1]
    hd = d // nhead
    scale = 1.0 / math.sqrt(hd)

    # encoder Linear + ReLU on the whole (TB*S, Fin) block (one MXU pass).
    x2 = x_ref[...].reshape(m, fin)
    h = jnp.dot(x2, enc_w_ref[...], preferred_element_type=jnp.float32) + enc_b_ref[...]
    h = jnp.maximum(h, 0.0)                                          # (M, D)

    # L is small -> static unroll is fine (see TODO(synk) above for deep stacks).
    for l in range(num_layers):
        # --- multi-head self-attention -----------------------------------
        # ONE fused QKV matmul (N = 3*D output lanes) instead of 3*nhead tiny ones.
        qkv = jnp.dot(h, wqkv_ref[l], preferred_element_type=jnp.float32) + bqkv_ref[l]
        qkv3 = qkv.reshape(tb, seq, 3 * d)        # sublane split only; lane dim kept

        attn = None
        for hh in range(nhead):
            # Static lane slices of the fused QKV result; values stay in vregs.
            q_h = qkv3[:, :, hh * hd:(hh + 1) * hd]                      # (TB, S, hd)
            k_h = qkv3[:, :, d + hh * hd:d + (hh + 1) * hd]
            v_h = qkv3[:, :, 2 * d + hh * hd:2 * d + (hh + 1) * hd]

            s = jnp.einsum("bqd,bkd->bqk", q_h, k_h,
                           preferred_element_type=jnp.float32) * scale  # (TB, S, S)
            s = s - jnp.max(s, axis=-1, keepdims=True)
            p = jnp.exp(s)
            p = p * pl.reciprocal(jnp.sum(p, axis=-1, keepdims=True), approx=True)
            ctx = jnp.einsum("bqk,bkd->bqd", p, v_h,
                             preferred_element_type=jnp.float32)        # (TB, S, hd)

            # Output projection as a sum over heads (Wo rows pre-split per head):
            # equivalent to concat(heads) @ Wo with zero relayout traffic.
            c = jnp.dot(ctx.reshape(m, hd), woh_ref[l, hh],
                        preferred_element_type=jnp.float32)             # (M, D)
            attn = c if attn is None else attn + c
        attn = attn + bo_ref[l]

        # residual + LayerNorm (post-norm); dropout is identity in eval mode
        h = _layernorm(h + attn, g1_ref[l], be1_ref[l], EPS)

        # --- feed-forward: linear1 -> ReLU -> linear2 ---------------------
        # LHS cast to the FFN weight dtype (no-op for f32, bf16 on v6e/v7x);
        # accumulation is always f32, elementwise math stays f32.
        hid = jnp.dot(h.astype(w1_ref.dtype), w1_ref[l],
                      preferred_element_type=jnp.float32) + b1_ref[l]
        hid = jnp.maximum(hid, 0.0)
        ff = jnp.dot(hid.astype(w2_ref.dtype), w2_ref[l],
                     preferred_element_type=jnp.float32) + b2_ref[l]
        h = _layernorm(h + ff, g2_ref[l], be2_ref[l], EPS)

    # decoder Linear, padded to 128 output lanes -> lane-dense store.
    out = jnp.dot(h, dec_w_ref[...], preferred_element_type=jnp.float32) + dec_b_ref[...]
    o_ref[...] = out.reshape(tb, seq, DEC_PAD).astype(o_ref.dtype)


def transformer_forecaster_forward(x, params, *, num_batch_blocks=1,
                                   ffn_weights_dtype=jnp.float32):
    B, S, Fin = x.shape
    nhead = params["nhead"]
    D = params["enc_w"].shape[1]
    L = params["WQ"].shape[0]
    hd = D // nhead
    assert B % num_batch_blocks == 0, "batch must divide evenly into blocks"
    TB = B // num_batch_blocks          # sequences folded into M per grid step

    # Fused QKV weights (one (D, 3D) matmul per layer) and per-head-split Wo,
    # prepared in pure XLA outside the kernel.
    Wqkv = jnp.concatenate([params["WQ"], params["WK"], params["WV"]], axis=-1)  # (L, D, 3D)
    Bqkv = jnp.concatenate([params["BQ"], params["BK"], params["BV"]], axis=-1)  # (L, 1, 3D)
    WOh = params["WO"].reshape(L, nhead, hd, D)                                  # (L, H, hd, D)

    # Optionally store the dominant FFN weights in bf16 (v6e/v7x path).
    W1 = params["W1"].astype(ffn_weights_dtype)
    W2 = params["W2"].astype(ffn_weights_dtype)

    # Zero-pad the decoder to 128 output lanes (sliced back to 1 in the wrapper).
    dec_w_pad = jnp.zeros((D, DEC_PAD), jnp.float32).at[:, :1].set(params["dec_w"])
    dec_b_pad = jnp.zeros((1, DEC_PAD), jnp.float32).at[:, :1].set(params["dec_b"])

    weights = [params["enc_w"], params["enc_b"],
               Wqkv, Bqkv, WOh, params["BO"],
               W1, params["B1"], W2, params["B2"],
               params["G1"], params["BE1"], params["G2"], params["BE2"],
               dec_w_pad, dec_b_pad]
    # Grid-invariant weight blocks (constant index_map): fetched once, resident
    # in VMEM across all grid steps (~1.1 MiB f32 total at these shapes).
    w_specs = [pl.BlockSpec(w.shape, lambda b, n=w.ndim: (0,) * n) for w in weights]

    out = pl.pallas_call(
        functools.partial(_fused_forward_kernel, nhead=nhead, num_layers=L),
        out_shape=jax.ShapeDtypeStruct((B, S, DEC_PAD), jnp.float32),
        grid=(num_batch_blocks,),
        in_specs=[pl.BlockSpec((TB, S, Fin), lambda b: (b, 0, 0))] + w_specs,
        out_specs=pl.BlockSpec((TB, S, DEC_PAD), lambda b: (b, 0, 0)),
        compiler_params=pltpu.CompilerParams(
            dimension_semantics=("parallel",),      # shards batch blocks on v7x
            vmem_limit_bytes=32 * 1024 * 1024),
    )(x, *weights)
    return out[:, :, :1]                                               # (B, S, 1)


# ---------------------------------------------------------------------------
# Deterministic synthetic parameters (mirrors the PyTorch __init__ shapes;
# nn.Linear weights pre-transposed to (in, out) so kernels compute x @ W + b).
# ---------------------------------------------------------------------------
def init_params(key, input_dim, d_model, nhead, num_layers, dim_ff):
    keys = iter(jax.random.split(key, 4 + num_layers * 12))

    def lin(fan_in, fan_out):
        w = jax.random.normal(next(keys), (fan_in, fan_out), jnp.float32) / math.sqrt(fan_in)
        b = jax.random.normal(next(keys), (1, fan_out), jnp.float32) * 0.02
        return w, b

    enc_w, enc_b = lin(input_dim, d_model)
    dec_w, dec_b = lin(d_model, 1)

    WQ, BQ, WK, BK, WV, BV, WO, BO = [], [], [], [], [], [], [], []
    W1, B1, W2, B2 = [], [], [], []
    for _ in range(num_layers):
        wq, bq = lin(d_model, d_model); WQ.append(wq); BQ.append(bq)
        wk, bk = lin(d_model, d_model); WK.append(wk); BK.append(bk)
        wv, bv = lin(d_model, d_model); WV.append(wv); BV.append(bv)
        wo, bo = lin(d_model, d_model); WO.append(wo); BO.append(bo)
        w1, b1 = lin(d_model, dim_ff);  W1.append(w1); B1.append(b1)
        w2, b2 = lin(dim_ff, d_model);  W2.append(w2); B2.append(b2)

    st = lambda xs: jnp.stack(xs, axis=0)
    return dict(
        nhead=nhead,
        enc_w=enc_w, enc_b=enc_b, dec_w=dec_w, dec_b=dec_b,
        WQ=st(WQ), BQ=st(BQ), WK=st(WK), BK=st(BK), WV=st(WV), BV=st(BV),
        WO=st(WO), BO=st(BO), W1=st(W1), B1=st(B1), W2=st(W2), B2=st(B2),
        G1=jnp.ones((num_layers, 1, d_model), jnp.float32),
        BE1=jnp.zeros((num_layers, 1, d_model), jnp.float32),
        G2=jnp.ones((num_layers, 1, d_model), jnp.float32),
        BE2=jnp.zeros((num_layers, 1, d_model), jnp.float32),
    )


# ---------------------------------------------------------------------------
# Pure-JAX reference (same math) for a correctness check
# ---------------------------------------------------------------------------
def reference_forward(x, params):
    def ln(z, g, b):
        mu = z.mean(-1, keepdims=True)
        var = ((z - mu) ** 2).mean(-1, keepdims=True)
        return (z - mu) / jnp.sqrt(var + EPS) * g + b

    nhead = params["nhead"]
    h = jax.nn.relu(x @ params["enc_w"] + params["enc_b"])
    L = params["WQ"].shape[0]
    B, S, D = h.shape
    hd = D // nhead
    for l in range(L):
        q = (h @ params["WQ"][l] + params["BQ"][l]).reshape(B, S, nhead, hd).transpose(0, 2, 1, 3)
        k = (h @ params["WK"][l] + params["BK"][l]).reshape(B, S, nhead, hd).transpose(0, 2, 1, 3)
        v = (h @ params["WV"][l] + params["BV"][l]).reshape(B, S, nhead, hd).transpose(0, 2, 1, 3)
        s = jnp.einsum("bhqd,bhkd->bhqk", q, k) / math.sqrt(hd)
        a = jax.nn.softmax(s, axis=-1)
        o = jnp.einsum("bhqk,bhkd->bhqd", a, v).transpose(0, 2, 1, 3).reshape(B, S, D)
        attn = o @ params["WO"][l] + params["BO"][l]
        h = ln(h + attn, params["G1"][l], params["BE1"][l])
        ff = jax.nn.relu(h @ params["W1"][l] + params["B1"][l]) @ params["W2"][l] + params["B2"][l]
        h = ln(h + ff, params["G2"][l], params["BE2"][l])
    return h @ params["dec_w"] + params["dec_b"]


if __name__ == "__main__":
    # Small shapes consistent with the module's forward: x is (B, seq, input_dim)
    input_dim, d_model, nhead, num_layers = 8, 32, 4, 2
    dim_ff = 2048  # nn.TransformerEncoderLayer default dim_feedforward
    B, S = 2, 8

    key = jax.random.PRNGKey(0)
    kx, kp = jax.random.split(key)
    x = jax.random.normal(kx, (B, S, input_dim), jnp.float32)
    params = init_params(kp, input_dim, d_model, nhead, num_layers, dim_ff)

    # Default: single grid step, whole batch folded into M (v5e/v6e).
    # On v7x, call with num_batch_blocks=2 to occupy both TensorCores.
    out = jax.block_until_ready(transformer_forecaster_forward(x, params))
    assert out.shape == (B, S, 1), out.shape

    ref = jax.block_until_ready(reference_forward(x, params))
    max_diff = float(jnp.max(jnp.abs(out - ref)))
    # f32 everywhere; only approximation is the EUP reciprocal in the softmax.
    if max_diff > 5e-3:
        raise AssertionError(f"Pallas output mismatch vs reference, max|diff|={max_diff}")

    print("KERNEL_OK")
</pallas_src>

<mosaic_0001>
module attributes {stable_mosaic.version = 11 : i64} {
  func.func @_fused_forward_kernel(%arg0: i32, %arg1: memref<2x8x8xf32, #tpu.memory_space<vmem>>, %arg2: memref<8x32xf32, #tpu.memory_space<vmem>>, %arg3: memref<1x32xf32, #tpu.memory_space<vmem>>, %arg4: memref<2x32x96xf32, #tpu.memory_space<vmem>>, %arg5: memref<2x1x96xf32, #tpu.memory_space<vmem>>, %arg6: memref<2x4x8x32xf32, #tpu.memory_space<vmem>>, %arg7: memref<2x1x32xf32, #tpu.memory_space<vmem>>, %arg8: memref<2x32x2048xf32, #tpu.memory_space<vmem>>, %arg9: memref<2x1x2048xf32, #tpu.memory_space<vmem>>, %arg10: memref<2x2048x32xf32, #tpu.memory_space<vmem>>, %arg11: memref<2x1x32xf32, #tpu.memory_space<vmem>>, %arg12: memref<2x1x32xf32, #tpu.memory_space<vmem>>, %arg13: memref<2x1x32xf32, #tpu.memory_space<vmem>>, %arg14: memref<2x1x32xf32, #tpu.memory_space<vmem>>, %arg15: memref<2x1x32xf32, #tpu.memory_space<vmem>>, %arg16: memref<32x128xf32, #tpu.memory_space<vmem>>, %arg17: memref<1x128xf32, #tpu.memory_space<vmem>>, %arg18: memref<2x8x128xf32, #tpu.memory_space<vmem>>) attributes {dimension_semantics = [#tpu.dimension_semantics<parallel>], iteration_bounds = array<i64: 1>, scalar_prefetch = 0 : i64, scratch_operands = 0 : i64, tpu.core_type = #tpu.core_type<tc>, window_params = [{transform_indices = @transform_0, window_bounds = array<i64: 2, 8, 8>}, {pipeline_mode = #tpu.pipeline_mode<synchronous>, transform_indices = @transform_1, window_bounds = array<i64: 8, 32>}, {pipeline_mode = #tpu.pipeline_mode<synchronous>, transform_indices = @transform_2, window_bounds = array<i64: 1, 32>}, {pipeline_mode = #tpu.pipeline_mode<synchronous>, transform_indices = @transform_3, window_bounds = array<i64: 2, 32, 96>}, {pipeline_mode = #tpu.pipeline_mode<synchronous>, transform_indices = @transform_4, window_bounds = array<i64: 2, 1, 96>}, {pipeline_mode = #tpu.pipeline_mode<synchronous>, transform_indices = @transform_5, window_bounds = array<i64: 2, 4, 8, 32>}, {pipeline_mode = #tpu.pipeline_mode<synchronous>, transform_indices = @transform_6, window_bounds = array<i64: 2, 1, 32>}, {pipeline_mode = #tpu.pipeline_mode<synchronous>, transform_indices = @transform_7, window_bounds = array<i64: 2, 32, 2048>}, {pipeline_mode = #tpu.pipeline_mode<synchronous>, transform_indices = @transform_8, window_bounds = array<i64: 2, 1, 2048>}, {pipeline_mode = #tpu.pipeline_mode<synchronous>, transform_indices = @transform_9, window_bounds = array<i64: 2, 2048, 32>}, {pipeline_mode = #tpu.pipeline_mode<synchronous>, transform_indices = @transform_10, window_bounds = array<i64: 2, 1, 32>}, {pipeline_mode = #tpu.pipeline_mode<synchronous>, transform_indices = @transform_11, window_bounds = array<i64: 2, 1, 32>}, {pipeline_mode = #tpu.pipeline_mode<synchronous>, transform_indices = @transform_12, window_bounds = array<i64: 2, 1, 32>}, {pipeline_mode = #tpu.pipeline_mode<synchronous>, transform_indices = @transform_13, window_bounds = array<i64: 2, 1, 32>}, {pipeline_mode = #tpu.pipeline_mode<synchronous>, transform_indices = @transform_14, window_bounds = array<i64: 2, 1, 32>}, {pipeline_mode = #tpu.pipeline_mode<synchronous>, transform_indices = @transform_15, window_bounds = array<i64: 32, 128>}, {pipeline_mode = #tpu.pipeline_mode<synchronous>, transform_indices = @transform_16, window_bounds = array<i64: 1, 128>}, {transform_indices = @transform_17, window_bounds = array<i64: 2, 8, 128>}]} {
    %c0 = arith.constant 0 : index
    %c0_0 = arith.constant 0 : index
    %c0_1 = arith.constant 0 : index
    %0 = vector.load %arg1[%c0, %c0_0, %c0_1] : memref<2x8x8xf32, #tpu.memory_space<vmem>>, vector<2x8x8xf32>
    %1 = vector.shape_cast %0 : vector<2x8x8xf32> to vector<16x8xf32>
    %c0_2 = arith.constant 0 : index
    %c0_3 = arith.constant 0 : index
    %2 = vector.load %arg2[%c0_2, %c0_3] : memref<8x32xf32, #tpu.memory_space<vmem>>, vector<8x32xf32>
    %cst = arith.constant dense<0.000000e+00> : vector<16x32xf32>
    %3 = tpu.matmul %1, %2, %cst {dimension_numbers = #tpu.dot_dimension_numbers<[1], [0], [0], [1], [0, 0, 1, 1], [], []>} : vector<16x8xf32>, vector<8x32xf32>, vector<16x32xf32> -> vector<16x32xf32>
    %c0_4 = arith.constant 0 : index
    %c0_5 = arith.constant 0 : index
    %4 = vector.load %arg3[%c0_4, %c0_5] : memref<1x32xf32, #tpu.memory_space<vmem>>, vector<1x32xf32>
    %5 = vector.broadcast %4 : vector<1x32xf32> to vector<16x32xf32>
    %6 = arith.addf %3, %5 : vector<16x32xf32>
    %cst_6 = arith.constant 0.000000e+00 : f32
    %7 = vector.broadcast %cst_6 : f32 to vector<16x32xf32>
    %8 = arith.maximumf %6, %7 : vector<16x32xf32>
    %c0_7 = arith.constant 0 : index
    %c0_8 = arith.constant 0 : index
    %c0_9 = arith.constant 0 : index
    %9 = vector.load %arg4[%c0_7, %c0_8, %c0_9] : memref<2x32x96xf32, #tpu.memory_space<vmem>>, vector<1x32x96xf32>
    %10 = vector.shape_cast %9 : vector<1x32x96xf32> to vector<32x96xf32>
    %cst_10 = arith.constant dense<0.000000e+00> : vector<16x96xf32>
    %11 = tpu.matmul %8, %10, %cst_10 {dimension_numbers = #tpu.dot_dimension_numbers<[1], [0], [0], [1], [0, 0, 1, 1], [], []>} : vector<16x32xf32>, vector<32x96xf32>, vector<16x96xf32> -> vector<16x96xf32>
    %c0_11 = arith.constant 0 : index
    %c0_12 = arith.constant 0 : index
    %c0_13 = arith.constant 0 : index
    %12 = vector.load %arg5[%c0_11, %c0_12, %c0_13] : memref<2x1x96xf32, #tpu.memory_space<vmem>>, vector<1x1x96xf32>
    %13 = vector.shape_cast %12 : vector<1x1x96xf32> to vector<1x96xf32>
    %14 = vector.broadcast %13 : vector<1x96xf32> to vector<16x96xf32>
    %15 = arith.addf %11, %14 : vector<16x96xf32>
    %16 = vector.shape_cast %15 : vector<16x96xf32> to vector<2x8x96xf32>
    %17 = vector.extract_strided_slice %16 {offsets = [0, 0, 0], sizes = [2, 8, 8], strides = [1, 1, 1]} : vector<2x8x96xf32> to vector<2x8x8xf32>
    %18 = vector.extract_strided_slice %16 {offsets = [0, 0, 32], sizes = [2, 8, 8], strides = [1, 1, 1]} : vector<2x8x96xf32> to vector<2x8x8xf32>
    %19 = vector.extract_strided_slice %16 {offsets = [0, 0, 64], sizes = [2, 8, 8], strides = [1, 1, 1]} : vector<2x8x96xf32> to vector<2x8x8xf32>
    "tpu.trace_start"() <{level = 10 : i32, message = "bqd,bkd->bqk"}> : () -> ()
    %cst_14 = arith.constant dense<0.000000e+00> : vector<2x8x8xf32>
    %20 = tpu.matmul %17, %18, %cst_14 {dimension_numbers = #tpu.dot_dimension_numbers<[2], [2], [1], [1], [0, 0, 0, 1, 1, 1], [0], [0]>} : vector<2x8x8xf32>, vector<2x8x8xf32>, vector<2x8x8xf32> -> vector<2x8x8xf32>
    "tpu.trace_stop"() : () -> ()
    %cst_15 = arith.constant 0.353553385 : f32
    %21 = vector.broadcast %cst_15 : f32 to vector<2x8x8xf32>
    %22 = arith.mulf %20, %21 : vector<2x8x8xf32>
    %cst_16 = arith.constant dense<0xFF800000> : vector<2x8xf32>
    %23 = vector.multi_reduction <maximumf>, %22, %cst_16 [2] : vector<2x8x8xf32> to vector<2x8xf32>
    %24 = vector.shape_cast %23 : vector<2x8xf32> to vector<2x8x1xf32>
    %25 = vector.broadcast %24 : vector<2x8x1xf32> to vector<2x8x8xf32>
    %26 = arith.subf %22, %25 : vector<2x8x8xf32>
    %27 = math.exp %26 : vector<2x8x8xf32>
    %cst_17 = arith.constant dense<0.000000e+00> : vector<2x8xf32>
    %28 = vector.multi_reduction <add>, %27, %cst_17 [2] : vector<2x8x8xf32> to vector<2x8xf32>
    %29 = vector.shape_cast %28 : vector<2x8xf32> to vector<2x8x1xf32>
    %30 = tpu.reciprocal %29 {approx = true} : vector<2x8x1xf32> -> vector<2x8x1xf32>
    %31 = vector.broadcast %30 : vector<2x8x1xf32> to vector<2x8x8xf32>
    %32 = arith.mulf %27, %31 : vector<2x8x8xf32>
    "tpu.trace_start"() <{level = 10 : i32, message = "bqk,bkd->bqd"}> : () -> ()
    %cst_18 = arith.constant dense<0.000000e+00> : vector<2x8x8xf32>
    %33 = tpu.matmul %32, %19, %cst_18 {dimension_numbers = #tpu.dot_dimension_numbers<[2], [1], [1], [2], [0, 0, 0, 1, 1, 2], [0], [0]>} : vector<2x8x8xf32>, vector<2x8x8xf32>, vector<2x8x8xf32> -> vector<2x8x8xf32>
    "tpu.trace_stop"() : () -> ()
    %34 = vector.shape_cast %33 : vector<2x8x8xf32> to vector<16x8xf32>
    %c0_19 = arith.constant 0 : index
    %c0_20 = arith.constant 0 : index
    %c0_21 = arith.constant 0 : index
    %c0_22 = arith.constant 0 : index
    %35 = vector.load %arg6[%c0_19, %c0_20, %c0_21, %c0_22] : memref<2x4x8x32xf32, #tpu.memory_space<vmem>>, vector<1x1x8x32xf32>
    %36 = vector.shape_cast %35 : vector<1x1x8x32xf32> to vector<8x32xf32>
    %cst_23 = arith.constant dense<0.000000e+00> : vector<16x32xf32>
    %37 = tpu.matmul %34, %36, %cst_23 {dimension_numbers = #tpu.dot_dimension_numbers<[1], [0], [0], [1], [0, 0, 1, 1], [], []>} : vector<16x8xf32>, vector<8x32xf32>, vector<16x32xf32> -> vector<16x32xf32>
    %38 = vector.extract_strided_slice %16 {offsets = [0, 0, 8], sizes = [2, 8, 8], strides = [1, 1, 1]} : vector<2x8x96xf32> to vector<2x8x8xf32>
    %39 = vector.extract_strided_slice %16 {offsets = [0, 0, 40], sizes = [2, 8, 8], strides = [1, 1, 1]} : vector<2x8x96xf32> to vector<2x8x8xf32>
    %40 = vector.extract_strided_slice %16 {offsets = [0, 0, 72], sizes = [2, 8, 8], strides = [1, 1, 1]} : vector<2x8x96xf32> to vector<2x8x8xf32>
    "tpu.trace_start"() <{level = 10 : i32, message = "bqd,bkd->bqk"}> : () -> ()
    %cst_24 = arith.constant dense<0.000000e+00> : vector<2x8x8xf32>
    %41 = tpu.matmul %38, %39, %cst_24 {dimension_numbers = #tpu.dot_dimension_numbers<[2], [2], [1], [1], [0, 0, 0, 1, 1, 1], [0], [0]>} : vector<2x8x8xf32>, vector<2x8x8xf32>, vector<2x8x8xf32> -> vector<2x8x8xf32>
    "tpu.trace_stop"() : () -> ()
    %cst_25 = arith.constant 0.353553385 : f32
    %42 = vector.broadcast %cst_25 : f32 to vector<2x8x8xf32>
    %43 = arith.mulf %41, %42 : vector<2x8x8xf32>
    %cst_26 = arith.constant dense<0xFF800000> : vector<2x8xf32>
    %44 = vector.multi_reduction <maximumf>, %43, %cst_26 [2] : vector<2x8x8xf32> to vector<2x8xf32>
    %45 = vector.shape_cast %44 : vector<2x8xf32> to vector<2x8x1xf32>
    %46 = vector.broadcast %45 : vector<2x8x1xf32> to vector<2x8x8xf32>
    %47 = arith.subf %43, %46 : vector<2x8x8xf32>
    %48 = math.exp %47 : vector<2x8x8xf32>
    %cst_27 = arith.constant dense<0.000000e+00> : vector<2x8xf32>
    %49 = vector.multi_reduction <add>, %48, %cst_27 [2] : vector<2x8x8xf32> to vector<2x8xf32>
    %50 = vector.shape_cast %49 : vector<2x8xf32> to vector<2x8x1xf32>
    %51 = tpu.reciprocal %50 {approx = true} : vector<2x8x1xf32> -> vector<2x8x1xf32>
    %52 = vector.broadcast %51 : vector<2x8x1xf32> to vector<2x8x8xf32>
    %53 = arith.mulf %48, %52 : vector<2x8x8xf32>
    "tpu.trace_start"() <{level = 10 : i32, message = "bqk,bkd->bqd"}> : () -> ()
    %cst_28 = arith.constant dense<0.000000e+00> : vector<2x8x8xf32>
    %54 = tpu.matmul %53, %40, %cst_28 {dimension_numbers = #tpu.dot_dimension_numbers<[2], [1], [1], [2], [0, 0, 0, 1, 1, 2], [0], [0]>} : vector<2x8x8xf32>, vector<2x8x8xf32>, vector<2x8x8xf32> -> vector<2x8x8xf32>
    "tpu.trace_stop"() : () -> ()
    %55 = vector.shape_cast %54 : vector<2x8x8xf32> to vector<16x8xf32>
    %c0_29 = arith.constant 0 : index
    %c1 = arith.constant 1 : index
    %c0_30 = arith.constant 0 : index
    %c0_31 = arith.constant 0 : index
    %56 = vector.load %arg6[%c0_29, %c1, %c0_30, %c0_31] : memref<2x4x8x32xf32, #tpu.memory_space<vmem>>, vector<1x1x8x32xf32>
    %57 = vector.shape_cast %56 : vector<1x1x8x32xf32> to vector<8x32xf32>
    %cst_32 = arith.constant dense<0.000000e+00> : vector<16x32xf32>
    %58 = tpu.matmul %55, %57, %cst_32 {dimension_numbers = #tpu.dot_dimension_numbers<[1], [0], [0], [1], [0, 0, 1, 1], [], []>} : vector<16x8xf32>, vector<8x32xf32>, vector<16x32xf32> -> vector<16x32xf32>
    %59 = arith.addf %37, %58 : vector<16x32xf32>
    %60 = vector.extract_strided_slice %16 {offsets = [0, 0, 16], sizes = [2, 8, 8], strides = [1, 1, 1]} : vector<2x8x96xf32> to vector<2x8x8xf32>
    %61 = vector.extract_strided_slice %16 {offsets = [0, 0, 48], sizes = [2, 8, 8], strides = [1, 1, 1]} : vector<2x8x96xf32> to vector<2x8x8xf32>
    %62 = vector.extract_strided_slice %16 {offsets = [0, 0, 80], sizes = [2, 8, 8], strides = [1, 1, 1]} : vector<2x8x96xf32> to vector<2x8x8xf32>
    "tpu.trace_start"() <{level = 10 : i32, message = "bqd,bkd->bqk"}> : () -> ()
    %cst_33 = arith.constant dense<0.000000e+00> : vector<2x8x8xf32>
    %63 = tpu.matmul %60, %61, %cst_33 {dimension_numbers = #tpu.dot_dimension_numbers<[2], [2], [1], [1], [0, 0, 0, 1, 1, 1], [0], [0]>} : vector<2x8x8xf32>, vector<2x8x8xf32>, vector<2x8x8xf32> -> vector<2x8x8xf32>
    "tpu.trace_stop"() : () -> ()
    %cst_34 = arith.constant 0.353553385 : f32
    %64 = vector.broadcast %cst_34 : f32 to vector<2x8x8xf32>
    %65 = arith.mulf %63, %64 : vector<2x8x8xf32>
    %cst_35 = arith.constant dense<0xFF800000> : vector<2x8xf32>
    %66 = vector.multi_reduction <maximumf>, %65, %cst_35 [2] : vector<2x8x8xf32> to vector<2x8xf32>
    %67 = vector.shape_cast %66 : vector<2x8xf32> to vector<2x8x1xf32>
    %68 = vector.broadcast %67 : vector<2x8x1xf32> to vector<2x8x8xf32>
    %69 = arith.subf %65, %68 : vector<2x8x8xf32>
    %70 = math.exp %69 : vector<2x8x8xf32>
    %cst_36 = arith.constant dense<0.000000e+00> : vector<2x8xf32>
    %71 = vector.multi_reduction <add>, %70, %cst_36 [2] : vector<2x8x8xf32> to vector<2x8xf32>
    %72 = vector.shape_cast %71 : vector<2x8xf32> to vector<2x8x1xf32>
    %73 = tpu.reciprocal %72 {approx = true} : vector<2x8x1xf32> -> vector<2x8x1xf32>
    %74 = vector.broadcast %73 : vector<2x8x1xf32> to vector<2x8x8xf32>
    %75 = arith.mulf %70, %74 : vector<2x8x8xf32>
    "tpu.trace_start"() <{level = 10 : i32, message = "bqk,bkd->bqd"}> : () -> ()
    %cst_37 = arith.constant dense<0.000000e+00> : vector<2x8x8xf32>
    %76 = tpu.matmul %75, %62, %cst_37 {dimension_numbers = #tpu.dot_dimension_numbers<[2], [1], [1], [2], [0, 0, 0, 1, 1, 2], [0], [0]>} : vector<2x8x8xf32>, vector<2x8x8xf32>, vector<2x8x8xf32> -> vector<2x8x8xf32>
    "tpu.trace_stop"() : () -> ()
    %77 = vector.shape_cast %76 : vector<2x8x8xf32> to vector<16x8xf32>
    %c0_38 = arith.constant 0 : index
    %c2 = arith.constant 2 : index
    %c0_39 = arith.constant 0 : index
    %c0_40 = arith.constant 0 : index
    %78 = vector.load %arg6[%c0_38, %c2, %c0_39, %c0_40] : memref<2x4x8x32xf32, #tpu.memory_space<vmem>>, vector<1x1x8x32xf32>
    %79 = vector.shape_cast %78 : vector<1x1x8x32xf32> to vector<8x32xf32>
    %cst_41 = arith.constant dense<0.000000e+00> : vector<16x32xf32>
    %80 = tpu.matmul %77, %79, %cst_41 {dimension_numbers = #tpu.dot_dimension_numbers<[1], [0], [0], [1], [0, 0, 1, 1], [], []>} : vector<16x8xf32>, vector<8x32xf32>, vector<16x32xf32> -> vector<16x32xf32>
    %81 = arith.addf %59, %80 : vector<16x32xf32>
    %82 = vector.extract_strided_slice %16 {offsets = [0, 0, 24], sizes = [2, 8, 8], strides = [1, 1, 1]} : vector<2x8x96xf32> to vector<2x8x8xf32>
    %83 = vector.extract_strided_slice %16 {offsets = [0, 0, 56], sizes = [2, 8, 8], strides = [1, 1, 1]} : vector<2x8x96xf32> to vector<2x8x8xf32>
    %84 = vector.extract_strided_slice %16 {offsets = [0, 0, 88], sizes = [2, 8, 8], strides = [1, 1, 1]} : vector<2x8x96xf32> to vector<2x8x8xf32>
    "tpu.trace_start"() <{level = 10 : i32, message = "bqd,bkd->bqk"}> : () -> ()
    %cst_42 = arith.constant dense<0.000000e+00> : vector<2x8x8xf32>
    %85 = tpu.matmul %82, %83, %cst_42 {dimension_numbers = #tpu.dot_dimension_numbers<[2], [2], [1], [1], [0, 0, 0, 1, 1, 1], [0], [0]>} : vector<2x8x8xf32>, vector<2x8x8xf32>, vector<2x8x8xf32> -> vector<2x8x8xf32>
    "tpu.trace_stop"() : () -> ()
    %cst_43 = arith.constant 0.353553385 : f32
    %86 = vector.broadcast %cst_43 : f32 to vector<2x8x8xf32>
    %87 = arith.mulf %85, %86 : vector<2x8x8xf32>
    %cst_44 = arith.constant dense<0xFF800000> : vector<2x8xf32>
    %88 = vector.multi_reduction <maximumf>, %87, %cst_44 [2] : vector<2x8x8xf32> to vector<2x8xf32>
    %89 = vector.shape_cast %88 : vector<2x8xf32> to vector<2x8x1xf32>
    %90 = vector.broadcast %89 : vector<2x8x1xf32> to vector<2x8x8xf32>
    %91 = arith.subf %87, %90 : vector<2x8x8xf32>
    %92 = math.exp %91 : vector<2x8x8xf32>
    %cst_45 = arith.constant dense<0.000000e+00> : vector<2x8xf32>
    %93 = vector.multi_reduction <add>, %92, %cst_45 [2] : vector<2x8x8xf32> to vector<2x8xf32>
    %94 = vector.shape_cast %93 : vector<2x8xf32> to vector<2x8x1xf32>
    %95 = tpu.reciprocal %94 {approx = true} : vector<2x8x1xf32> -> vector<2x8x1xf32>
    %96 = vector.broadcast %95 : vector<2x8x1xf32> to vector<2x8x8xf32>
    %97 = arith.mulf %92, %96 : vector<2x8x8xf32>
    "tpu.trace_start"() <{level = 10 : i32, message = "bqk,bkd->bqd"}> : () -> ()
    %cst_46 = arith.constant dense<0.000000e+00> : vector<2x8x8xf32>
    %98 = tpu.matmul %97, %84, %cst_46 {dimension_numbers = #tpu.dot_dimension_numbers<[2], [1], [1], [2], [0, 0, 0, 1, 1, 2], [0], [0]>} : vector<2x8x8xf32>, vector<2x8x8xf32>, vector<2x8x8xf32> -> vector<2x8x8xf32>
    "tpu.trace_stop"() : () -> ()
    %99 = vector.shape_cast %98 : vector<2x8x8xf32> to vector<16x8xf32>
    %c0_47 = arith.constant 0 : index
    %c3 = arith.constant 3 : index
    %c0_48 = arith.constant 0 : index
    %c0_49 = arith.constant 0 : index
    %100 = vector.load %arg6[%c0_47, %c3, %c0_48, %c0_49] : memref<2x4x8x32xf32, #tpu.memory_space<vmem>>, vector<1x1x8x32xf32>
    %101 = vector.shape_cast %100 : vector<1x1x8x32xf32> to vector<8x32xf32>
    %cst_50 = arith.constant dense<0.000000e+00> : vector<16x32xf32>
    %102 = tpu.matmul %99, %101, %cst_50 {dimension_numbers = #tpu.dot_dimension_numbers<[1], [0], [0], [1], [0, 0, 1, 1], [], []>} : vector<16x8xf32>, vector<8x32xf32>, vector<16x32xf32> -> vector<16x32xf32>
    %103 = arith.addf %81, %102 : vector<16x32xf32>
    %c0_51 = arith.constant 0 : index
    %c0_52 = arith.constant 0 : index
    %c0_53 = arith.constant 0 : index
    %104 = vector.load %arg7[%c0_51, %c0_52, %c0_53] : memref<2x1x32xf32, #tpu.memory_space<vmem>>, vector<1x1x32xf32>
    %105 = vector.shape_cast %104 : vector<1x1x32xf32> to vector<1x32xf32>
    %106 = vector.broadcast %105 : vector<1x32xf32> to vector<16x32xf32>
    %107 = arith.addf %103, %106 : vector<16x32xf32>
    %108 = arith.addf %8, %107 : vector<16x32xf32>
    %c0_54 = arith.constant 0 : index
    %c0_55 = arith.constant 0 : index
    %c0_56 = arith.constant 0 : index
    %109 = vector.load %arg12[%c0_54, %c0_55, %c0_56] : memref<2x1x32xf32, #tpu.memory_space<vmem>>, vector<1x1x32xf32>
    %110 = vector.shape_cast %109 : vector<1x1x32xf32> to vector<1x32xf32>
    %c0_57 = arith.constant 0 : index
    %c0_58 = arith.constant 0 : index
    %c0_59 = arith.constant 0 : index
    %111 = vector.load %arg13[%c0_57, %c0_58, %c0_59] : memref<2x1x32xf32, #tpu.memory_space<vmem>>, vector<1x1x32xf32>
    %112 = vector.shape_cast %111 : vector<1x1x32xf32> to vector<1x32xf32>
    %cst_60 = arith.constant dense<0.000000e+00> : vector<16xf32>
    %113 = vector.multi_reduction <add>, %108, %cst_60 [1] : vector<16x32xf32> to vector<16xf32>
    %114 = vector.shape_cast %113 : vector<16xf32> to vector<16x1xf32>
    %cst_61 = arith.constant 3.200000e+01 : f32
    %115 = vector.broadcast %cst_61 : f32 to vector<16x1xf32>
    %116 = arith.divf %114, %115 : vector<16x1xf32>
    %117 = vector.broadcast %116 : vector<16x1xf32> to vector<16x32xf32>
    %118 = arith.subf %108, %117 : vector<16x32xf32>
    %119 = arith.mulf %118, %118 : vector<16x32xf32>
    %cst_62 = arith.constant dense<0.000000e+00> : vector<16xf32>
    %120 = vector.multi_reduction <add>, %119, %cst_62 [1] : vector<16x32xf32> to vector<16xf32>
    %121 = vector.shape_cast %120 : vector<16xf32> to vector<16x1xf32>
    %cst_63 = arith.constant 3.200000e+01 : f32
    %122 = vector.broadcast %cst_63 : f32 to vector<16x1xf32>
    %123 = arith.divf %121, %122 : vector<16x1xf32>
    %124 = vector.broadcast %116 : vector<16x1xf32> to vector<16x32xf32>
    %125 = arith.subf %108, %124 : vector<16x32xf32>
    %cst_64 = arith.constant 9.99999974E-6 : f32
    %126 = vector.broadcast %cst_64 : f32 to vector<16x1xf32>
    %127 = arith.addf %123, %126 : vector<16x1xf32>
    %128 = math.rsqrt %127 : vector<16x1xf32>
    %129 = vector.broadcast %128 : vector<16x1xf32> to vector<16x32xf32>
    %130 = arith.mulf %125, %129 : vector<16x32xf32>
    %131 = vector.broadcast %110 : vector<1x32xf32> to vector<16x32xf32>
    %132 = arith.mulf %130, %131 : vector<16x32xf32>
    %133 = vector.broadcast %112 : vector<1x32xf32> to vector<16x32xf32>
    %134 = arith.addf %132, %133 : vector<16x32xf32>
    %c0_65 = arith.constant 0 : index
    %c0_66 = arith.constant 0 : index
    %c0_67 = arith.constant 0 : index
    %135 = vector.load %arg8[%c0_65, %c0_66, %c0_67] : memref<2x32x2048xf32, #tpu.memory_space<vmem>>, vector<1x32x2048xf32>
    %136 = vector.shape_cast %135 : vector<1x32x2048xf32> to vector<32x2048xf32>
    %cst_68 = arith.constant dense<0.000000e+00> : vector<16x2048xf32>
    %137 = tpu.matmul %134, %136, %cst_68 {dimension_numbers = #tpu.dot_dimension_numbers<[1], [0], [0], [1], [0, 0, 1, 1], [], []>} : vector<16x32xf32>, vector<32x2048xf32>, vector<16x2048xf32> -> vector<16x2048xf32>
    %c0_69 = arith.constant 0 : index
    %c0_70 = arith.constant 0 : index
    %c0_71 = arith.constant 0 : index
    %138 = vector.load %arg9[%c0_69, %c0_70, %c0_71] : memref<2x1x2048xf32, #tpu.memory_space<vmem>>, vector<1x1x2048xf32>
    %139 = vector.shape_cast %138 : vector<1x1x2048xf32> to vector<1x2048xf32>
    %140 = vector.broadcast %139 : vector<1x2048xf32> to vector<16x2048xf32>
    %141 = arith.addf %137, %140 : vector<16x2048xf32>
    %cst_72 = arith.constant 0.000000e+00 : f32
    %142 = vector.broadcast %cst_72 : f32 to vector<16x2048xf32>
    %143 = arith.maximumf %141, %142 : vector<16x2048xf32>
    %c0_73 = arith.constant 0 : index
    %c0_74 = arith.constant 0 : index
    %c0_75 = arith.constant 0 : index
    %144 = vector.load %arg10[%c0_73, %c0_74, %c0_75] : memref<2x2048x32xf32, #tpu.memory_space<vmem>>, vector<1x2048x32xf32>
    %145 = vector.shape_cast %144 : vector<1x2048x32xf32> to vector<2048x32xf32>
    %cst_76 = arith.constant dense<0.000000e+00> : vector<16x32xf32>
    %146 = tpu.matmul %143, %145, %cst_76 {dimension_numbers = #tpu.dot_dimension_numbers<[1], [0], [0], [1], [0, 0, 1, 1], [], []>} : vector<16x2048xf32>, vector<2048x32xf32>, vector<16x32xf32> -> vector<16x32xf32>
    %c0_77 = arith.constant 0 : index
    %c0_78 = arith.constant 0 : index
    %c0_79 = arith.constant 0 : index
    %147 = vector.load %arg11[%c0_77, %c0_78, %c0_79] : memref<2x1x32xf32, #tpu.memory_space<vmem>>, vector<1x1x32xf32>
    %148 = vector.shape_cast %147 : vector<1x1x32xf32> to vector<1x32xf32>
    %149 = vector.broadcast %148 : vector<1x32xf32> to vector<16x32xf32>
    %150 = arith.addf %146, %149 : vector<16x32xf32>
    %151 = arith.addf %134, %150 : vector<16x32xf32>
    %c0_80 = arith.constant 0 : index
    %c0_81 = arith.constant 0 : index
    %c0_82 = arith.constant 0 : index
    %152 = vector.load %arg14[%c0_80, %c0_81, %c0_82] : memref<2x1x32xf32, #tpu.memory_space<vmem>>, vector<1x1x32xf32>
    %153 = vector.shape_cast %152 : vector<1x1x32xf32> to vector<1x32xf32>
    %c0_83 = arith.constant 0 : index
    %c0_84 = arith.constant 0 : index
    %c0_85 = arith.constant 0 : index
    %154 = vector.load %arg15[%c0_83, %c0_84, %c0_85] : memref<2x1x32xf32, #tpu.memory_space<vmem>>, vector<1x1x32xf32>
    %155 = vector.shape_cast %154 : vector<1x1x32xf32> to vector<1x32xf32>
    %cst_86 = arith.constant dense<0.000000e+00> : vector<16xf32>
    %156 = vector.multi_reduction <add>, %151, %cst_86 [1] : vector<16x32xf32> to vector<16xf32>
    %157 = vector.shape_cast %156 : vector<16xf32> to vector<16x1xf32>
    %cst_87 = arith.constant 3.200000e+01 : f32
    %158 = vector.broadcast %cst_87 : f32 to vector<16x1xf32>
    %159 = arith.divf %157, %158 : vector<16x1xf32>
    %160 = vector.broadcast %159 : vector<16x1xf32> to vector<16x32xf32>
    %161 = arith.subf %151, %160 : vector<16x32xf32>
    %162 = arith.mulf %161, %161 : vector<16x32xf32>
    %cst_88 = arith.constant dense<0.000000e+00> : vector<16xf32>
    %163 = vector.multi_reduction <add>, %162, %cst_88 [1] : vector<16x32xf32> to vector<16xf32>
    %164 = vector.shape_cast %163 : vector<16xf32> to vector<16x1xf32>
    %cst_89 = arith.constant 3.200000e+01 : f32
    %165 = vector.broadcast %cst_89 : f32 to vector<16x1xf32>
    %166 = arith.divf %164, %165 : vector<16x1xf32>
    %167 = vector.broadcast %159 : vector<16x1xf32> to vector<16x32xf32>
    %168 = arith.subf %151, %167 : vector<16x32xf32>
    %cst_90 = arith.constant 9.99999974E-6 : f32
    %169 = vector.broadcast %cst_90 : f32 to vector<16x1xf32>
    %170 = arith.addf %166, %169 : vector<16x1xf32>
    %171 = math.rsqrt %170 : vector<16x1xf32>
    %172 = vector.broadcast %171 : vector<16x1xf32> to vector<16x32xf32>
    %173 = arith.mulf %168, %172 : vector<16x32xf32>
    %174 = vector.broadcast %153 : vector<1x32xf32> to vector<16x32xf32>
    %175 = arith.mulf %173, %174 : vector<16x32xf32>
    %176 = vector.broadcast %155 : vector<1x32xf32> to vector<16x32xf32>
    %177 = arith.addf %175, %176 : vector<16x32xf32>
    %c1_91 = arith.constant 1 : index
    %c0_92 = arith.constant 0 : index
    %c0_93 = arith.constant 0 : index
    %178 = vector.load %arg4[%c1_91, %c0_92, %c0_93] : memref<2x32x96xf32, #tpu.memory_space<vmem>>, vector<1x32x96xf32>
    %179 = vector.shape_cast %178 : vector<1x32x96xf32> to vector<32x96xf32>
    %cst_94 = arith.constant dense<0.000000e+00> : vector<16x96xf32>
    %180 = tpu.matmul %177, %179, %cst_94 {dimension_numbers = #tpu.dot_dimension_numbers<[1], [0], [0], [1], [0, 0, 1, 1], [], []>} : vector<16x32xf32>, vector<32x96xf32>, vector<16x96xf32> -> vector<16x96xf32>
    %c1_95 = arith.constant 1 : index
    %c0_96 = arith.constant 0 : index
    %c0_97 = arith.constant 0 : index
    %181 = vector.load %arg5[%c1_95, %c0_96, %c0_97] : memref<2x1x96xf32, #tpu.memory_space<vmem>>, vector<1x1x96xf32>
    %182 = vector.shape_cast %181 : vector<1x1x96xf32> to vector<1x96xf32>
    %183 = vector.broadcast %182 : vector<1x96xf32> to vector<16x96xf32>
    %184 = arith.addf %180, %183 : vector<16x96xf32>
    %185 = vector.shape_cast %184 : vector<16x96xf32> to vector<2x8x96xf32>
    %186 = vector.extract_strided_slice %185 {offsets = [0, 0, 0], sizes = [2, 8, 8], strides = [1, 1, 1]} : vector<2x8x96xf32> to vector<2x8x8xf32>
    %187 = vector.extract_strided_slice %185 {offsets = [0, 0, 32], sizes = [2, 8, 8], strides = [1, 1, 1]} : vector<2x8x96xf32> to vector<2x8x8xf32>
    %188 = vector.extract_strided_slice %185 {offsets = [0, 0, 64], sizes = [2, 8, 8], strides = [1, 1, 1]} : vector<2x8x96xf32> to vector<2x8x8xf32>
    "tpu.trace_start"() <{level = 10 : i32, message = "bqd,bkd->bqk"}> : () -> ()
    %cst_98 = arith.constant dense<0.000000e+00> : vector<2x8x8xf32>
    %189 = tpu.matmul %186, %187, %cst_98 {dimension_numbers = #tpu.dot_dimension_numbers<[2], [2], [1], [1], [0, 0, 0, 1, 1, 1], [0], [0]>} : vector<2x8x8xf32>, vector<2x8x8xf32>, vector<2x8x8xf32> -> vector<2x8x8xf32>
    "tpu.trace_stop"() : () -> ()
    %cst_99 = arith.constant 0.353553385 : f32
    %190 = vector.broadcast %cst_99 : f32 to vector<2x8x8xf32>
    %191 = arith.mulf %189, %190 : vector<2x8x8xf32>
    %cst_100 = arith.constant dense<0xFF800000> : vector<2x8xf32>
    %192 = vector.multi_reduction <maximumf>, %191, %cst_100 [2] : vector<2x8x8xf32> to vector<2x8xf32>
    %193 = vector.shape_cast %192 : vector<2x8xf32> to vector<2x8x1xf32>
    %194 = vector.broadcast %193 : vector<2x8x1xf32> to vector<2x8x8xf32>
    %195 = arith.subf %191, %194 : vector<2x8x8xf32>
    %196 = math.exp %195 : vector<2x8x8xf32>
    %cst_101 = arith.constant dense<0.000000e+00> : vector<2x8xf32>
    %197 = vector.multi_reduction <add>, %196, %cst_101 [2] : vector<2x8x8xf32> to vector<2x8xf32>
    %198 = vector.shape_cast %197 : vector<2x8xf32> to vector<2x8x1xf32>
    %199 = tpu.reciprocal %198 {approx = true} : vector<2x8x1xf32> -> vector<2x8x1xf32>
    %200 = vector.broadcast %199 : vector<2x8x1xf32> to vector<2x8x8xf32>
    %201 = arith.mulf %196, %200 : vector<2x8x8xf32>
    "tpu.trace_start"() <{level = 10 : i32, message = "bqk,bkd->bqd"}> : () -> ()
    %cst_102 = arith.constant dense<0.000000e+00> : vector<2x8x8xf32>
    %202 = tpu.matmul %201, %188, %cst_102 {dimension_numbers = #tpu.dot_dimension_numbers<[2], [1], [1], [2], [0, 0, 0, 1, 1, 2], [0], [0]>} : vector<2x8x8xf32>, vector<2x8x8xf32>, vector<2x8x8xf32> -> vector<2x8x8xf32>
    "tpu.trace_stop"() : () -> ()
    %203 = vector.shape_cast %202 : vector<2x8x8xf32> to vector<16x8xf32>
    %c1_103 = arith.constant 1 : index
    %c0_104 = arith.constant 0 : index
    %c0_105 = arith.constant 0 : index
    %c0_106 = arith.constant 0 : index
    %204 = vector.load %arg6[%c1_103, %c0_104, %c0_105, %c0_106] : memref<2x4x8x32xf32, #tpu.memory_space<vmem>>, vector<1x1x8x32xf32>
    %205 = vector.shape_cast %204 : vector<1x1x8x32xf32> to vector<8x32xf32>
    %cst_107 = arith.constant dense<0.000000e+00> : vector<16x32xf32>
    %206 = tpu.matmul %203, %205, %cst_107 {dimension_numbers = #tpu.dot_dimension_numbers<[1], [0], [0], [1], [0, 0, 1, 1], [], []>} : vector<16x8xf32>, vector<8x32xf32>, vector<16x32xf32> -> vector<16x32xf32>
    %207 = vector.extract_strided_slice %185 {offsets = [0, 0, 8], sizes = [2, 8, 8], strides = [1, 1, 1]} : vector<2x8x96xf32> to vector<2x8x8xf32>
    %208 = vector.extract_strided_slice %185 {offsets = [0, 0, 40], sizes = [2, 8, 8], strides = [1, 1, 1]} : vector<2x8x96xf32> to vector<2x8x8xf32>
    %209 = vector.extract_strided_slice %185 {offsets = [0, 0, 72], sizes = [2, 8, 8], strides = [1, 1, 1]} : vector<2x8x96xf32> to vector<2x8x8xf32>
    "tpu.trace_start"() <{level = 10 : i32, message = "bqd,bkd->bqk"}> : () -> ()
    %cst_108 = arith.constant dense<0.000000e+00> : vector<2x8x8xf32>
    %210 = tpu.matmul %207, %208, %cst_108 {dimension_numbers = #tpu.dot_dimension_numbers<[2], [2], [1], [1], [0, 0, 0, 1, 1, 1], [0], [0]>} : vector<2x8x8xf32>, vector<2x8x8xf32>, vector<2x8x8xf32> -> vector<2x8x8xf32>
    "tpu.trace_stop"() : () -> ()
    %cst_109 = arith.constant 0.353553385 : f32
    %211 = vector.broadcast %cst_109 : f32 to vector<2x8x8xf32>
    %212 = arith.mulf %210, %211 : vector<2x8x8xf32>
    %cst_110 = arith.constant dense<0xFF800000> : vector<2x8xf32>
    %213 = vector.multi_reduction <maximumf>, %212, %cst_110 [2] : vector<2x8x8xf32> to vector<2x8xf32>
    %214 = vector.shape_cast %213 : vector<2x8xf32> to vector<2x8x1xf32>
    %215 = vector.broadcast %214 : vector<2x8x1xf32> to vector<2x8x8xf32>
    %216 = arith.subf %212, %215 : vector<2x8x8xf32>
    %217 = math.exp %216 : vector<2x8x8xf32>
    %cst_111 = arith.constant dense<0.000000e+00> : vector<2x8xf32>
    %218 = vector.multi_reduction <add>, %217, %cst_111 [2] : vector<2x8x8xf32> to vector<2x8xf32>
    %219 = vector.shape_cast %218 : vector<2x8xf32> to vector<2x8x1xf32>
    %220 = tpu.reciprocal %219 {approx = true} : vector<2x8x1xf32> -> vector<2x8x1xf32>
    %221 = vector.broadcast %220 : vector<2x8x1xf32> to vector<2x8x8xf32>
    %222 = arith.mulf %217, %221 : vector<2x8x8xf32>
    "tpu.trace_start"() <{level = 10 : i32, message = "bqk,bkd->bqd"}> : () -> ()
    %cst_112 = arith.constant dense<0.000000e+00> : vector<2x8x8xf32>
    %223 = tpu.matmul %222, %209, %cst_112 {dimension_numbers = #tpu.dot_dimension_numbers<[2], [1], [1], [2], [0, 0, 0, 1, 1, 2], [0], [0]>} : vector<2x8x8xf32>, vector<2x8x8xf32>, vector<2x8x8xf32> -> vector<2x8x8xf32>
    "tpu.trace_stop"() : () -> ()
    %224 = vector.shape_cast %223 : vector<2x8x8xf32> to vector<16x8xf32>
    %c1_113 = arith.constant 1 : index
    %c1_114 = arith.constant 1 : index
    %c0_115 = arith.constant 0 : index
    %c0_116 = arith.constant 0 : index
    %225 = vector.load %arg6[%c1_113, %c1_114, %c0_115, %c0_116] : memref<2x4x8x32xf32, #tpu.memory_space<vmem>>, vector<1x1x8x32xf32>
    %226 = vector.shape_cast %225 : vector<1x1x8x32xf32> to vector<8x32xf32>
    %cst_117 = arith.constant dense<0.000000e+00> : vector<16x32xf32>
    %227 = tpu.matmul %224, %226, %cst_117 {dimension_numbers = #tpu.dot_dimension_numbers<[1], [0], [0], [1], [0, 0, 1, 1], [], []>} : vector<16x8xf32>, vector<8x32xf32>, vector<16x32xf32> -> vector<16x32xf32>
    %228 = arith.addf %206, %227 : vector<16x32xf32>
    %229 = vector.extract_strided_slice %185 {offsets = [0, 0, 16], sizes = [2, 8, 8], strides = [1, 1, 1]} : vector<2x8x96xf32> to vector<2x8x8xf32>
    %230 = vector.extract_strided_slice %185 {offsets = [0, 0, 48], sizes = [2, 8, 8], strides = [1, 1, 1]} : vector<2x8x96xf32> to vector<2x8x8xf32>
    %231 = vector.extract_strided_slice %185 {offsets = [0, 0, 80], sizes = [2, 8, 8], strides = [1, 1, 1]} : vector<2x8x96xf32> to vector<2x8x8xf32>
    "tpu.trace_start"() <{level = 10 : i32, message = "bqd,bkd->bqk"}> : () -> ()
    %cst_118 = arith.constant dense<0.000000e+00> : vector<2x8x8xf32>
    %232 = tpu.matmul %229, %230, %cst_118 {dimension_numbers = #tpu.dot_dimension_numbers<[2], [2], [1], [1], [0, 0, 0, 1, 1, 1], [0], [0]>} : vector<2x8x8xf32>, vector<2x8x8xf32>, vector<2x8x8xf32> -> vector<2x8x8xf32>
    "tpu.trace_stop"() : () -> ()
    %cst_119 = arith.constant 0.353553385 : f32
    %233 = vector.broadcast %cst_119 : f32 to vector<2x8x8xf32>
    %234 = arith.mulf %232, %233 : vector<2x8x8xf32>
    %cst_120 = arith.constant dense<0xFF800000> : vector<2x8xf32>
    %235 = vector.multi_reduction <maximumf>, %234, %cst_120 [2] : vector<2x8x8xf32> to vector<2x8xf32>
    %236 = vector.shape_cast %235 : vector<2x8xf32> to vector<2x8x1xf32>
    %237 = vector.broadcast %236 : vector<2x8x1xf32> to vector<2x8x8xf32>
    %238 = arith.subf %234, %237 : vector<2x8x8xf32>
    %239 = math.exp %238 : vector<2x8x8xf32>
    %cst_121 = arith.constant dense<0.000000e+00> : vector<2x8xf32>
    %240 = vector.multi_reduction <add>, %239, %cst_121 [2] : vector<2x8x8xf32> to vector<2x8xf32>
    %241 = vector.shape_cast %240 : vector<2x8xf32> to vector<2x8x1xf32>
    %242 = tpu.reciprocal %241 {approx = true} : vector<2x8x1xf32> -> vector<2x8x1xf32>
    %243 = vector.broadcast %242 : vector<2x8x1xf32> to vector<2x8x8xf32>
    %244 = arith.mulf %239, %243 : vector<2x8x8xf32>
    "tpu.trace_start"() <{level = 10 : i32, message = "bqk,bkd->bqd"}> : () -> ()
    %cst_122 = arith.constant dense<0.000000e+00> : vector<2x8x8xf32>
    %245 = tpu.matmul %244, %231, %cst_122 {dimension_numbers = #tpu.dot_dimension_numbers<[2], [1], [1], [2], [0, 0, 0, 1, 1, 2], [0], [0]>} : vector<2x8x8xf32>, vector<2x8x8xf32>, vector<2x8x8xf32> -> vector<2x8x8xf32>
    "tpu.trace_stop"() : () -> ()
    %246 = vector.shape_cast %245 : vector<2x8x8xf32> to vector<16x8xf32>
    %c1_123 = arith.constant 1 : index
    %c2_124 = arith.constant 2 : index
    %c0_125 = arith.constant 0 : index
    %c0_126 = arith.constant 0 : index
    %247 = vector.load %arg6[%c1_123, %c2_124, %c0_125, %c0_126] : memref<2x4x8x32xf32, #tpu.memory_space<vmem>>, vector<1x1x8x32xf32>
    %248 = vector.shape_cast %247 : vector<1x1x8x32xf32> to vector<8x32xf32>
    %cst_127 = arith.constant dense<0.000000e+00> : vector<16x32xf32>
    %249 = tpu.matmul %246, %248, %cst_127 {dimension_numbers = #tpu.dot_dimension_numbers<[1], [0], [0], [1], [0, 0, 1, 1], [], []>} : vector<16x8xf32>, vector<8x32xf32>, vector<16x32xf32> -> vector<16x32xf32>
    %250 = arith.addf %228, %249 : vector<16x32xf32>
    %251 = vector.extract_strided_slice %185 {offsets = [0, 0, 24], sizes = [2, 8, 8], strides = [1, 1, 1]} : vector<2x8x96xf32> to vector<2x8x8xf32>
    %252 = vector.extract_strided_slice %185 {offsets = [0, 0, 56], sizes = [2, 8, 8], strides = [1, 1, 1]} : vector<2x8x96xf32> to vector<2x8x8xf32>
    %253 = vector.extract_strided_slice %185 {offsets = [0, 0, 88], sizes = [2, 8, 8], strides = [1, 1, 1]} : vector<2x8x96xf32> to vector<2x8x8xf32>
    "tpu.trace_start"() <{level = 10 : i32, message = "bqd,bkd->bqk"}> : () -> ()
    %cst_128 = arith.constant dense<0.000000e+00> : vector<2x8x8xf32>
    %254 = tpu.matmul %251, %252, %cst_128 {dimension_numbers = #tpu.dot_dimension_numbers<[2], [2], [1], [1], [0, 0, 0, 1, 1, 1], [0], [0]>} : vector<2x8x8xf32>, vector<2x8x8xf32>, vector<2x8x8xf32> -> vector<2x8x8xf32>
    "tpu.trace_stop"() : () -> ()
    %cst_129 = arith.constant 0.353553385 : f32
    %255 = vector.broadcast %cst_129 : f32 to vector<2x8x8xf32>
    %256 = arith.mulf %254, %255 : vector<2x8x8xf32>
    %cst_130 = arith.constant dense<0xFF800000> : vector<2x8xf32>
    %257 = vector.multi_reduction <maximumf>, %256, %cst_130 [2] : vector<2x8x8xf32> to vector<2x8xf32>
    %258 = vector.shape_cast %257 : vector<2x8xf32> to vector<2x8x1xf32>
    %259 = vector.broadcast %258 : vector<2x8x1xf32> to vector<2x8x8xf32>
    %260 = arith.subf %256, %259 : vector<2x8x8xf32>
    %261 = math.exp %260 : vector<2x8x8xf32>
    %cst_131 = arith.constant dense<0.000000e+00> : vector<2x8xf32>
    %262 = vector.multi_reduction <add>, %261, %cst_131 [2] : vector<2x8x8xf32> to vector<2x8xf32>
    %263 = vector.shape_cast %262 : vector<2x8xf32> to vector<2x8x1xf32>
    %264 = tpu.reciprocal %263 {approx = true} : vector<2x8x1xf32> -> vector<2x8x1xf32>
    %265 = vector.broadcast %264 : vector<2x8x1xf32> to vector<2x8x8xf32>
    %266 = arith.mulf %261, %265 : vector<2x8x8xf32>
    "tpu.trace_start"() <{level = 10 : i32, message = "bqk,bkd->bqd"}> : () -> ()
    %cst_132 = arith.constant dense<0.000000e+00> : vector<2x8x8xf32>
    %267 = tpu.matmul %266, %253, %cst_132 {dimension_numbers = #tpu.dot_dimension_numbers<[2], [1], [1], [2], [0, 0, 0, 1, 1, 2], [0], [0]>} : vector<2x8x8xf32>, vector<2x8x8xf32>, vector<2x8x8xf32> -> vector<2x8x8xf32>
    "tpu.trace_stop"() : () -> ()
    %268 = vector.shape_cast %267 : vector<2x8x8xf32> to vector<16x8xf32>
    %c1_133 = arith.constant 1 : index
    %c3_134 = arith.constant 3 : index
    %c0_135 = arith.constant 0 : index
    %c0_136 = arith.constant 0 : index
    %269 = vector.load %arg6[%c1_133, %c3_134, %c0_135, %c0_136] : memref<2x4x8x32xf32, #tpu.memory_space<vmem>>, vector<1x1x8x32xf32>
    %270 = vector.shape_cast %269 : vector<1x1x8x32xf32> to vector<8x32xf32>
    %cst_137 = arith.constant dense<0.000000e+00> : vector<16x32xf32>
    %271 = tpu.matmul %268, %270, %cst_137 {dimension_numbers = #tpu.dot_dimension_numbers<[1], [0], [0], [1], [0, 0, 1, 1], [], []>} : vector<16x8xf32>, vector<8x32xf32>, vector<16x32xf32> -> vector<16x32xf32>
    %272 = arith.addf %250, %271 : vector<16x32xf32>
    %c1_138 = arith.constant 1 : index
    %c0_139 = arith.constant 0 : index
    %c0_140 = arith.constant 0 : index
    %273 = vector.load %arg7[%c1_138, %c0_139, %c0_140] : memref<2x1x32xf32, #tpu.memory_space<vmem>>, vector<1x1x32xf32>
    %274 = vector.shape_cast %273 : vector<1x1x32xf32> to vector<1x32xf32>
    %275 = vector.broadcast %274 : vector<1x32xf32> to vector<16x32xf32>
    %276 = arith.addf %272, %275 : vector<16x32xf32>
    %277 = arith.addf %177, %276 : vector<16x32xf32>
    %c1_141 = arith.constant 1 : index
    %c0_142 = arith.constant 0 : index
    %c0_143 = arith.constant 0 : index
    %278 = vector.load %arg12[%c1_141, %c0_142, %c0_143] : memref<2x1x32xf32, #tpu.memory_space<vmem>>, vector<1x1x32xf32>
    %279 = vector.shape_cast %278 : vector<1x1x32xf32> to vector<1x32xf32>
    %c1_144 = arith.constant 1 : index
    %c0_145 = arith.constant 0 : index
    %c0_146 = arith.constant 0 : index
    %280 = vector.load %arg13[%c1_144, %c0_145, %c0_146] : memref<2x1x32xf32, #tpu.memory_space<vmem>>, vector<1x1x32xf32>
    %281 = vector.shape_cast %280 : vector<1x1x32xf32> to vector<1x32xf32>
    %cst_147 = arith.constant dense<0.000000e+00> : vector<16xf32>
    %282 = vector.multi_reduction <add>, %277, %cst_147 [1] : vector<16x32xf32> to vector<16xf32>
    %283 = vector.shape_cast %282 : vector<16xf32> to vector<16x1xf32>
    %cst_148 = arith.constant 3.200000e+01 : f32
    %284 = vector.broadcast %cst_148 : f32 to vector<16x1xf32>
    %285 = arith.divf %283, %284 : vector<16x1xf32>
    %286 = vector.broadcast %285 : vector<16x1xf32> to vector<16x32xf32>
    %287 = arith.subf %277, %286 : vector<16x32xf32>
    %288 = arith.mulf %287, %287 : vector<16x32xf32>
    %cst_149 = arith.constant dense<0.000000e+00> : vector<16xf32>
    %289 = vector.multi_reduction <add>, %288, %cst_149 [1] : vector<16x32xf32> to vector<16xf32>
    %290 = vector.shape_cast %289 : vector<16xf32> to vector<16x1xf32>
    %cst_150 = arith.constant 3.200000e+01 : f32
    %291 = vector.broadcast %cst_150 : f32 to vector<16x1xf32>
    %292 = arith.divf %290, %291 : vector<16x1xf32>
    %293 = vector.broadcast %285 : vector<16x1xf32> to vector<16x32xf32>
    %294 = arith.subf %277, %293 : vector<16x32xf32>
    %cst_151 = arith.constant 9.99999974E-6 : f32
    %295 = vector.broadcast %cst_151 : f32 to vector<16x1xf32>
    %296 = arith.addf %292, %295 : vector<16x1xf32>
    %297 = math.rsqrt %296 : vector<16x1xf32>
    %298 = vector.broadcast %297 : vector<16x1xf32> to vector<16x32xf32>
    %299 = arith.mulf %294, %298 : vector<16x32xf32>
    %300 = vector.broadcast %279 : vector<1x32xf32> to vector<16x32xf32>
    %301 = arith.mulf %299, %300 : vector<16x32xf32>
    %302 = vector.broadcast %281 : vector<1x32xf32> to vector<16x32xf32>
    %303 = arith.addf %301, %302 : vector<16x32xf32>
    %c1_152 = arith.constant 1 : index
    %c0_153 = arith.constant 0 : index
    %c0_154 = arith.constant 0 : index
    %304 = vector.load %arg8[%c1_152, %c0_153, %c0_154] : memref<2x32x2048xf32, #tpu.memory_space<vmem>>, vector<1x32x2048xf32>
    %305 = vector.shape_cast %304 : vector<1x32x2048xf32> to vector<32x2048xf32>
    %cst_155 = arith.constant dense<0.000000e+00> : vector<16x2048xf32>
    %306 = tpu.matmul %303, %305, %cst_155 {dimension_numbers = #tpu.dot_dimension_numbers<[1], [0], [0], [1], [0, 0, 1, 1], [], []>} : vector<16x32xf32>, vector<32x2048xf32>, vector<16x2048xf32> -> vector<16x2048xf32>
    %c1_156 = arith.constant 1 : index
    %c0_157 = arith.constant 0 : index
    %c0_158 = arith.constant 0 : index
    %307 = vector.load %arg9[%c1_156, %c0_157, %c0_158] : memref<2x1x2048xf32, #tpu.memory_space<vmem>>, vector<1x1x2048xf32>
    %308 = vector.shape_cast %307 : vector<1x1x2048xf32> to vector<1x2048xf32>
    %309 = vector.broadcast %308 : vector<1x2048xf32> to vector<16x2048xf32>
    %310 = arith.addf %306, %309 : vector<16x2048xf32>
    %cst_159 = arith.constant 0.000000e+00 : f32
    %311 = vector.broadcast %cst_159 : f32 to vector<16x2048xf32>
    %312 = arith.maximumf %310, %311 : vector<16x2048xf32>
    %c1_160 = arith.constant 1 : index
    %c0_161 = arith.constant 0 : index
    %c0_162 = arith.constant 0 : index
    %313 = vector.load %arg10[%c1_160, %c0_161, %c0_162] : memref<2x2048x32xf32, #tpu.memory_space<vmem>>, vector<1x2048x32xf32>
    %314 = vector.shape_cast %313 : vector<1x2048x32xf32> to vector<2048x32xf32>
    %cst_163 = arith.constant dense<0.000000e+00> : vector<16x32xf32>
    %315 = tpu.matmul %312, %314, %cst_163 {dimension_numbers = #tpu.dot_dimension_numbers<[1], [0], [0], [1], [0, 0, 1, 1], [], []>} : vector<16x2048xf32>, vector<2048x32xf32>, vector<16x32xf32> -> vector<16x32xf32>
    %c1_164 = arith.constant 1 : index
    %c0_165 = arith.constant 0 : index
    %c0_166 = arith.constant 0 : index
    %316 = vector.load %arg11[%c1_164, %c0_165, %c0_166] : memref<2x1x32xf32, #tpu.memory_space<vmem>>, vector<1x1x32xf32>
    %317 = vector.shape_cast %316 : vector<1x1x32xf32> to vector<1x32xf32>
    %318 = vector.broadcast %317 : vector<1x32xf32> to vector<16x32xf32>
    %319 = arith.addf %315, %318 : vector<16x32xf32>
    %320 = arith.addf %303, %319 : vector<16x32xf32>
    %c1_167 = arith.constant 1 : index
    %c0_168 = arith.constant 0 : index
    %c0_169 = arith.constant 0 : index
    %321 = vector.load %arg14[%c1_167, %c0_168, %c0_169] : memref<2x1x32xf32, #tpu.memory_space<vmem>>, vector<1x1x32xf32>
    %322 = vector.shape_cast %321 : vector<1x1x32xf32> to vector<1x32xf32>
    %c1_170 = arith.constant 1 : index
    %c0_171 = arith.constant 0 : index
    %c0_172 = arith.constant 0 : index
    %323 = vector.load %arg15[%c1_170, %c0_171, %c0_172] : memref<2x1x32xf32, #tpu.memory_space<vmem>>, vector<1x1x32xf32>
    %324 = vector.shape_cast %323 : vector<1x1x32xf32> to vector<1x32xf32>
    %cst_173 = arith.constant dense<0.000000e+00> : vector<16xf32>
    %325 = vector.multi_reduction <add>, %320, %cst_173 [1] : vector<16x32xf32> to vector<16xf32>
    %326 = vector.shape_cast %325 : vector<16xf32> to vector<16x1xf32>
    %cst_174 = arith.constant 3.200000e+01 : f32
    %327 = vector.broadcast %cst_174 : f32 to vector<16x1xf32>
    %328 = arith.divf %326, %327 : vector<16x1xf32>
    %329 = vector.broadcast %328 : vector<16x1xf32> to vector<16x32xf32>
    %330 = arith.subf %320, %329 : vector<16x32xf32>
    %331 = arith.mulf %330, %330 : vector<16x32xf32>
    %cst_175 = arith.constant dense<0.000000e+00> : vector<16xf32>
    %332 = vector.multi_reduction <add>, %331, %cst_175 [1] : vector<16x32xf32> to vector<16xf32>
    %333 = vector.shape_cast %332 : vector<16xf32> to vector<16x1xf32>
    %cst_176 = arith.constant 3.200000e+01 : f32
    %334 = vector.broadcast %cst_176 : f32 to vector<16x1xf32>
    %335 = arith.divf %333, %334 : vector<16x1xf32>
    %336 = vector.broadcast %328 : vector<16x1xf32> to vector<16x32xf32>
    %337 = arith.subf %320, %336 : vector<16x32xf32>
    %cst_177 = arith.constant 9.99999974E-6 : f32
    %338 = vector.broadcast %cst_177 : f32 to vector<16x1xf32>
    %339 = arith.addf %335, %338 : vector<16x1xf32>
    %340 = math.rsqrt %339 : vector<16x1xf32>
    %341 = vector.broadcast %340 : vector<16x1xf32> to vector<16x32xf32>
    %342 = arith.mulf %337, %341 : vector<16x32xf32>
    %343 = vector.broadcast %322 : vector<1x32xf32> to vector<16x32xf32>
    %344 = arith.mulf %342, %343 : vector<16x32xf32>
    %345 = vector.broadcast %324 : vector<1x32xf32> to vector<16x32xf32>
    %346 = arith.addf %344, %345 : vector<16x32xf32>
    %c0_178 = arith.constant 0 : index
    %c0_179 = arith.constant 0 : index
    %347 = vector.load %arg16[%c0_178, %c0_179] : memref<32x128xf32, #tpu.memory_space<vmem>>, vector<32x128xf32>
    %cst_180 = arith.constant dense<0.000000e+00> : vector<16x128xf32>
    %348 = tpu.matmul %346, %347, %cst_180 {dimension_numbers = #tpu.dot_dimension_numbers<[1], [0], [0], [1], [0, 0, 1, 1], [], []>} : vector<16x32xf32>, vector<32x128xf32>, vector<16x128xf32> -> vector<16x128xf32>
    %c0_181 = arith.constant 0 : index
    %c0_182 = arith.constant 0 : index
    %349 = vector.load %arg17[%c0_181, %c0_182] : memref<1x128xf32, #tpu.memory_space<vmem>>, vector<1x128xf32>
    %350 = vector.broadcast %349 : vector<1x128xf32> to vector<16x128xf32>
    %351 = arith.addf %348, %350 : vector<16x128xf32>
    %352 = vector.shape_cast %351 : vector<16x128xf32> to vector<2x8x128xf32>
    %c0_183 = arith.constant 0 : index
    %c0_184 = arith.constant 0 : index
    %c0_185 = arith.constant 0 : index
    %353 = vector.load %arg18[%c0_183, %c0_184, %c0_185] : memref<2x8x128xf32, #tpu.memory_space<vmem>>, vector<2x8x128xf32>
    tpu.vector_store %arg18[%c0_183, %c0_184, %c0_185], %352 {strides = array<i32>} : memref<2x8x128xf32, #tpu.memory_space<vmem>>, vector<2x8x128xf32>,
    return
  }
  func.func @transform_0(%arg0: i32) -> (i32, i32, i32) {
    %c0_i32 = arith.constant 0 : i32
    %c0_i32_0 = arith.constant 0 : i32
    %c0_i32_1 = arith.constant 0 : i32
    return %arg0, %c0_i32, %c0_i32_0 : i32, i32, i32
  }
  func.func @transform_1(%arg0: i32) -> (i32, i32) {
    %c0_i32 = arith.constant 0 : i32
    %c0_i32_0 = arith.constant 0 : i32
    %c0_i32_1 = arith.constant 0 : i32
    return %c0_i32, %c0_i32_0 : i32, i32
  }
  func.func @transform_2(%arg0: i32) -> (i32, i32) {
    %c0_i32 = arith.constant 0 : i32
    %c0_i32_0 = arith.constant 0 : i32
    %c0_i32_1 = arith.constant 0 : i32
    return %c0_i32, %c0_i32_0 : i32, i32
  }
  func.func @transform_3(%arg0: i32) -> (i32, i32, i32) {
    %c0_i32 = arith.constant 0 : i32
    %c0_i32_0 = arith.constant 0 : i32
    %c0_i32_1 = arith.constant 0 : i32
    %c0_i32_2 = arith.constant 0 : i32
    return %c0_i32, %c0_i32_0, %c0_i32_1 : i32, i32, i32
  }
  func.func @transform_4(%arg0: i32) -> (i32, i32, i32) {
    %c0_i32 = arith.constant 0 : i32
    %c0_i32_0 = arith.constant 0 : i32
    %c0_i32_1 = arith.constant 0 : i32
    %c0_i32_2 = arith.constant 0 : i32
    return %c0_i32, %c0_i32_0, %c0_i32_1 : i32, i32, i32
  }
  func.func @transform_5(%arg0: i32) -> (i32, i32, i32, i32) {
    %c0_i32 = arith.constant 0 : i32
    %c0_i32_0 = arith.constant 0 : i32
    %c0_i32_1 = arith.constant 0 : i32
    %c0_i32_2 = arith.constant 0 : i32
    %c0_i32_3 = arith.constant 0 : i32
    return %c0_i32, %c0_i32_0, %c0_i32_1, %c0_i32_2 : i32, i32, i32, i32
  }
  func.func @transform_6(%arg0: i32) -> (i32, i32, i32) {
    %c0_i32 = arith.constant 0 : i32
    %c0_i32_0 = arith.constant 0 : i32
    %c0_i32_1 = arith.constant 0 : i32
    %c0_i32_2 = arith.constant 0 : i32
    return %c0_i32, %c0_i32_0, %c0_i32_1 : i32, i32, i32
  }
  func.func @transform_7(%arg0: i32) -> (i32, i32, i32) {
    %c0_i32 = arith.constant 0 : i32
    %c0_i32_0 = arith.constant 0 : i32
    %c0_i32_1 = arith.constant 0 : i32
    %c0_i32_2 = arith.constant 0 : i32
    return %c0_i32, %c0_i32_0, %c0_i32_1 : i32, i32, i32
  }
  func.func @transform_8(%arg0: i32) -> (i32, i32, i32) {
    %c0_i32 = arith.constant 0 : i32
    %c0_i32_0 = arith.constant 0 : i32
    %c0_i32_1 = arith.constant 0 : i32
    %c0_i32_2 = arith.constant 0 : i32
    return %c0_i32, %c0_i32_0, %c0_i32_1 : i32, i32, i32
  }
  func.func @transform_9(%arg0: i32) -> (i32, i32, i32) {
    %c0_i32 = arith.constant 0 : i32
    %c0_i32_0 = arith.constant 0 : i32
    %c0_i32_1 = arith.constant 0 : i32
    %c0_i32_2 = arith.constant 0 : i32
    return %c0_i32, %c0_i32_0, %c0_i32_1 : i32, i32, i32
  }
  func.func @transform_10(%arg0: i32) -> (i32, i32, i32) {
    %c0_i32 = arith.constant 0 : i32
    %c0_i32_0 = arith.constant 0 : i32
    %c0_i32_1 = arith.constant 0 : i32
    %c0_i32_2 = arith.constant 0 : i32
    return %c0_i32, %c0_i32_0, %c0_i32_1 : i32, i32, i32
  }
  func.func @transform_11(%arg0: i32) -> (i32, i32, i32) {
    %c0_i32 = arith.constant 0 : i32
    %c0_i32_0 = arith.constant 0 : i32
    %c0_i32_1 = arith.constant 0 : i32
    %c0_i32_2 = arith.constant 0 : i32
    return %c0_i32, %c0_i32_0, %c0_i32_1 : i32, i32, i32
  }
  func.func @transform_12(%arg0: i32) -> (i32, i32, i32) {
    %c0_i32 = arith.constant 0 : i32
    %c0_i32_0 = arith.constant 0 : i32
    %c0_i32_1 = arith.constant 0 : i32
    %c0_i32_2 = arith.constant 0 : i32
    return %c0_i32, %c0_i32_0, %c0_i32_1 : i32, i32, i32
  }
  func.func @transform_13(%arg0: i32) -> (i32, i32, i32) {
    %c0_i32 = arith.constant 0 : i32
    %c0_i32_0 = arith.constant 0 : i32
    %c0_i32_1 = arith.constant 0 : i32
    %c0_i32_2 = arith.constant 0 : i32
    return %c0_i32, %c0_i32_0, %c0_i32_1 : i32, i32, i32
  }
  func.func @transform_14(%arg0: i32) -> (i32, i32, i32) {
    %c0_i32 = arith.constant 0 : i32
    %c0_i32_0 = arith.constant 0 : i32
    %c0_i32_1 = arith.constant 0 : i32
    %c0_i32_2 = arith.constant 0 : i32
    return %c0_i32, %c0_i32_0, %c0_i32_1 : i32, i32, i32
  }
  func.func @transform_15(%arg0: i32) -> (i32, i32) {
    %c0_i32 = arith.constant 0 : i32
    %c0_i32_0 = arith.constant 0 : i32
    %c0_i32_1 = arith.constant 0 : i32
    return %c0_i32, %c0_i32_0 : i32, i32
  }
  func.func @transform_16(%arg0: i32) -> (i32, i32) {
    %c0_i32 = arith.constant 0 : i32
    %c0_i32_0 = arith.constant 0 : i32
    %c0_i32_1 = arith.constant 0 : i32
    return %c0_i32, %c0_i32_0 : i32, i32
  }
  func.func @transform_17(%arg0: i32) -> (i32, i32, i32) {
    %c0_i32 = arith.constant 0 : i32
    %c0_i32_0 = arith.constant 0 : i32
    %c0_i32_1 = arith.constant 0 : i32
    return %arg0, %c0_i32, %c0_i32_0 : i32, i32, i32
  }
}

</mosaic_0001>

<llo_original>
// kernel: tpu_custom_call.1
$region0: #{tpu_custom_call.1}
  #allocation0 [shape = 'u32[]', space=smem, size = 0x4, offset = 0x4, fixed_abs, tag = 'smem constant byte address 0x4 - core index']
  #allocation1 [shape = 'u32[144,128]{1,0:T(1,128)}', space=vmem, size = 0x12000, scoped, tag = 'internal scratch']
  %s0 = inlined_call_operand.vmem [shape: f32[2,8,8], index: 0, kind: input, shape index: {}]
  %s1 = inlined_call_operand.vmem [shape: f32[8,32], index: 1, kind: input, shape index: {}]
  %s2 = inlined_call_operand.vmem [shape: f32[1,32], index: 2, kind: input, shape index: {}]
  %s3 = inlined_call_operand.vmem [shape: f32[2,32,96], index: 3, kind: input, shape index: {}]
  %s4 = inlined_call_operand.vmem [shape: f32[2,1,96], index: 4, kind: input, shape index: {}]
  %s5 = inlined_call_operand.vmem [shape: f32[2,4,8,32], index: 5, kind: input, shape index: {}]
  %s6 = inlined_call_operand.vmem [shape: f32[2,1,32], index: 6, kind: input, shape index: {}]
  %s7 = inlined_call_operand.vmem [shape: f32[2,32,2048], index: 7, kind: input, shape index: {}]
  %s8 = inlined_call_operand.vmem [shape: f32[2,1,2048], index: 8, kind: input, shape index: {}]
  %s9 = inlined_call_operand.vmem [shape: f32[2,2048,32], index: 9, kind: input, shape index: {}]
  %s10 = inlined_call_operand.vmem [shape: f32[2,1,32], index: 10, kind: input, shape index: {}]
  %s11 = inlined_call_operand.vmem [shape: f32[2,1,32], index: 11, kind: input, shape index: {}]
  %s12 = inlined_call_operand.vmem [shape: f32[2,1,32], index: 12, kind: input, shape index: {}]
  %s13 = inlined_call_operand.vmem [shape: f32[2,1,32], index: 13, kind: input, shape index: {}]
  %s14 = inlined_call_operand.vmem [shape: f32[2,1,32], index: 14, kind: input, shape index: {}]
  %s15 = inlined_call_operand.vmem [shape: f32[32,128], index: 15, kind: input, shape index: {}]
  %s16 = inlined_call_operand.vmem [shape: f32[1,128], index: 16, kind: input, shape index: {}]
  %s17 = inlined_call_operand.hbm [shape: f32[2,8,128], index: 17, kind: output, shape index: {}]
  %s18 = sld [smem:[#allocation0]]
  $region78: #{tpu_custom_call.1} parent=0
    _
  %s20 = ssub.s32 1, %s18
  %s21 = scalar_select 0, %s20, %s18
  $region1: #{tpu_custom_call.1} parent=0
    #allocation2 [shape = 'u8[8192]{0}', space=vmem, size = 0x2000, scoped, tag = 'output window, operand 0, single buffered']
    #allocation3 [shape = 's32[1]{0}', space=sflag, size = 0x4, scoped, tag = 'scoped memory for tpu_custom_call.1']
    %22 = vsyncpa [#allocation3], 0
    // Predicated region
    $region2: #{tpu_custom_call.1} parent=1 // pred_check
      _
    $region3: #{tpu_custom_call.1} parent=1 // pred_check_branch
      %24 = sbr.rel (0) target = $region5
    $region4: #{tpu_custom_call.1} parent=1 // pred_region
      _
    $region5: #{tpu_custom_call.1} parent=1 // pred_fallthru
      _
    // Predicated region
    $region6: #{tpu_custom_call.1} parent=1 // pred_check
      _
    $region7: #{tpu_custom_call.1} parent=1 // pred_check_branch
      %26 = sbr.rel (0) target = $region9
    $region8: #{tpu_custom_call.1} parent=1 // pred_region
      _
    $region9: #{tpu_custom_call.1} parent=1 // pred_fallthru
      _
    // Predicated region
    $region10: #{tpu_custom_call.1} parent=1 // pred_check
      _
    $region11: #{tpu_custom_call.1} parent=1 // pred_check_branch
      %28 = sbr.rel (0) target = $region13
    $region12: #{tpu_custom_call.1} parent=1 // pred_region
      _
    $region13: #{tpu_custom_call.1} parent=1 // pred_fallthru
      _
    // Predicated region
    $region14: #{tpu_custom_call.1} parent=1 // pred_check
      _
    $region15: #{tpu_custom_call.1} parent=1 // pred_check_branch
      %30 = sbr.rel (0) target = $region17
    $region16: #{tpu_custom_call.1} parent=1 // pred_region
      _
    $region17: #{tpu_custom_call.1} parent=1 // pred_fallthru
      _
    // Predicated region
    $region18: #{tpu_custom_call.1} parent=1 // pred_check
      _
    $region19: #{tpu_custom_call.1} parent=1 // pred_check_branch
      %32 = sbr.rel (0) target = $region21
    $region20: #{tpu_custom_call.1} parent=1 // pred_region
      _
    $region21: #{tpu_custom_call.1} parent=1 // pred_fallthru
      _
    // Predicated region
    $region22: #{tpu_custom_call.1} parent=1 // pred_check
      _
    $region23: #{tpu_custom_call.1} parent=1 // pred_check_branch
      %34 = sbr.rel (0) target = $region25
    $region24: #{tpu_custom_call.1} parent=1 // pred_region
      _
    $region25: #{tpu_custom_call.1} parent=1 // pred_fallthru
      _
    // Predicated region
    $region26: #{tpu_custom_call.1} parent=1 // pred_check
      _
    $region27: #{tpu_custom_call.1} parent=1 // pred_check_branch
      %36 = sbr.rel (0) target = $region29
    $region28: #{tpu_custom_call.1} parent=1 // pred_region
      _
    $region29: #{tpu_custom_call.1} parent=1 // pred_fallthru
      _
    // Predicated region
    $region30: #{tpu_custom_call.1} parent=1 // pred_check
      _
    $region31: #{tpu_custom_call.1} parent=1 // pred_check_branch
      %38 = sbr.rel (0) target = $region33
    $region32: #{tpu_custom_call.1} parent=1 // pred_region
      _
    $region33: #{tpu_custom_call.1} parent=1 // pred_fallthru
      _
    // Predicated region
    $region34: #{tpu_custom_call.1} parent=1 // pred_check
      _
    $region35: #{tpu_custom_call.1} parent=1 // pred_check_branch
      %40 = sbr.rel (0) target = $region37
    $region36: #{tpu_custom_call.1} parent=1 // pred_region
      _
    $region37: #{tpu_custom_call.1} parent=1 // pred_fallthru
      _
    // Predicated region
    $region38: #{tpu_custom_call.1} parent=1 // pred_check
      _
    $region39: #{tpu_custom_call.1} parent=1 // pred_check_branch
      %42 = sbr.rel (0) target = $region41
    $region40: #{tpu_custom_call.1} parent=1 // pred_region
      _
    $region41: #{tpu_custom_call.1} parent=1 // pred_fallthru
      _
    // Predicated region
    $region42: #{tpu_custom_call.1} parent=1 // pred_check
      _
    $region43: #{tpu_custom_call.1} parent=1 // pred_check_branch
      %44 = sbr.rel (0) target = $region45
    $region44: #{tpu_custom_call.1} parent=1 // pred_region
      _
    $region45: #{tpu_custom_call.1} parent=1 // pred_fallthru
      _
    // Predicated region
    $region46: #{tpu_custom_call.1} parent=1 // pred_check
      _
    $region47: #{tpu_custom_call.1} parent=1 // pred_check_branch
      %46 = sbr.rel (0) target = $region49
    $region48: #{tpu_custom_call.1} parent=1 // pred_region
      _
    $region49: #{tpu_custom_call.1} parent=1 // pred_fallthru
      _
    // Predicated region
    $region50: #{tpu_custom_call.1} parent=1 // pred_check
      _
    $region51: #{tpu_custom_call.1} parent=1 // pred_check_branch
      %48 = sbr.rel (0) target = $region53
    $region52: #{tpu_custom_call.1} parent=1 // pred_region
      _
    $region53: #{tpu_custom_call.1} parent=1 // pred_fallthru
      _
    // Predicated region
    $region54: #{tpu_custom_call.1} parent=1 // pred_check
      _
    $region55: #{tpu_custom_call.1} parent=1 // pred_check_branch
      %50 = sbr.rel (0) target = $region57
    $region56: #{tpu_custom_call.1} parent=1 // pred_region
      _
    $region57: #{tpu_custom_call.1} parent=1 // pred_fallthru
      _
    // Predicated region
    $region58: #{tpu_custom_call.1} parent=1 // pred_check
      _
    $region59: #{tpu_custom_call.1} parent=1 // pred_check_branch
      %52 = sbr.rel (0) target = $region61
    $region60: #{tpu_custom_call.1} parent=1 // pred_region
      _
    $region61: #{tpu_custom_call.1} parent=1 // pred_fallthru
      _
    // Predicated region
    $region62: #{tpu_custom_call.1} parent=1 // pred_check
      _
    $region63: #{tpu_custom_call.1} parent=1 // pred_check_branch
      %54 = sbr.rel (0) target = $region65
    $region64: #{tpu_custom_call.1} parent=1 // pred_region
      _
    $region65: #{tpu_custom_call.1} parent=1 // pred_fallthru
      _
    // Predicated region
    $region66: #{tpu_custom_call.1} parent=1 // pred_check
      _
    $region67: #{tpu_custom_call.1} parent=1 // pred_check_branch
      %56 = sbr.rel (0) target = $region69
    $region68: #{tpu_custom_call.1} parent=1 // pred_region
      _
    $region69: #{tpu_custom_call.1} parent=1 // pred_fallthru
      _
    %v57 = vld [vmem:[%s0] sm:$0xff]
    %v58 = vld [vmem:[%s0 + $0x8] sm:$0xff]
    %v59 = vld [vmem:[%s1] sm:$0xff]
    %v60 = vld [vmem:[%s2] sm:$0x1]
    %v62 = vlaneseq
    %v63 = vshrl.u32 %v62, 7
    %v64 = vsub.s32 0, %v63
    %v65 = vrot.slane %v60, %v64
    %vm67 = vcmask 64512
    %v69 = vsel %vm67, %v57, 0
    %v72 = vsel %vm67, %v58, 0
    %74 = vmatprep.subr.mxu0 0.0
    %75 = vmatpush1.msra.mxu0 0.0
    %76 = vmatprep.subr.mxu0 0.0
    %77 = vmatpush1.msra.mxu0 0.0
    %78 = vmatprep.subr.mxu0 0.0
    %79 = vmatpush1.msra.mxu0 0.0
    %80 = vmatprep.subr.mxu0 0.0
    %81 = vmatpush1.msra.mxu0 0.0
    %82 = vmatprep.subr.mxu0 0.0
    %83 = vmatpush1.msra.mxu0 0.0
    %84 = vmatprep.subr.mxu0 0.0
    %85 = vmatpush1.msra.mxu0 0.0
    %86 = vmatprep.subr.mxu0 0.0
    %87 = vmatpush1.msra.mxu0 0.0
    %88 = vmatprep.subr.mxu0 0.0
    %89 = vmatpush1.msra.mxu0 0.0
    %90 = vmatprep.subr.mxu0 0.0
    %91 = vmatpush1.msra.mxu0 0.0
    %92 = vmatprep.subr.mxu0 0.0
    %93 = vmatpush1.msra.mxu0 0.0
    %94 = vmatprep.subr.mxu0 0.0
    %95 = vmatpush1.msra.mxu0 0.0
    %96 = vmatprep.subr.mxu0 0.0
    %97 = vmatpush1.msra.mxu0 0.0
    %98 = vmatprep.subr.mxu0 0.0
    %99 = vmatpush1.msra.mxu0 0.0
    %100 = vmatprep.subr.mxu0 0.0
    %101 = vmatpush1.msra.mxu0 0.0
    %102 = vmatprep.subr.mxu0 0.0
    %103 = vmatpush1.msra.mxu0 0.0
    %104 = vmatprep.subr.mxu0 0.0
    %105 = vmatpush1.msra.mxu0 %v59
    %106 = vmatprep.subr.mxu0 0.0
    %107 = vmatpush2.msra.mxu0 0.0
    %108 = vmatprep.subr.mxu0 0.0
    %109 = vmatpush2.msra.mxu0 0.0
    %110 = vmatprep.subr.mxu0 0.0
    %111 = vmatpush2.msra.mxu0 0.0
    %112 = vmatprep.subr.mxu0 0.0
    %113 = vmatpush2.msra.mxu0 0.0
    %114 = vmatprep.subr.mxu0 0.0
    %115 = vmatpush2.msra.mxu0 0.0
    %116 = vmatprep.subr.mxu0 0.0
    %117 = vmatpush2.msra.mxu0 0.0
    %118 = vmatprep.subr.mxu0 0.0
    %119 = vmatpush2.msra.mxu0 0.0
    %120 = vmatprep.subr.mxu0 0.0
    %121 = vmatpush2.msra.mxu0 0.0
    %122 = vmatprep.subr.mxu0 0.0
    %123 = vmatpush2.msra.mxu0 0.0
    %124 = vmatprep.subr.mxu0 0.0
    %125 = vmatpush2.msra.mxu0 0.0
    %126 = vmatprep.subr.mxu0 0.0
    %127 = vmatpush2.msra.mxu0 0.0
    %128 = vmatprep.subr.mxu0 0.0
    %129 = vmatpush2.msra.mxu0 0.0
    %130 = vmatprep.subr.mxu0 0.0
    %131 = vmatpush2.msra.mxu0 0.0
    %132 = vmatprep.subr.mxu0 0.0
    %133 = vmatpush2.msra.mxu0 0.0
    %134 = vmatprep.subr.mxu0 0.0
    %135 = vmatpush2.msra.mxu0 0.0
    %136 = vmatprep.subr.mxu0 0.0
    %137 = vmatpush2.msra.mxu0 0.0
    %138 = vmatprep.mubr.f32.mxu0 0.0
    %139 = vmatmul.mubr.f32.gmra.mxu0 %v69
    %v140 = vpop.f32.mrf.mxu0
    %v141 = vadd.f32 %v65, %v140
    %v142 = vpop.f32.mrf.mxu0
    %143 = vmatprep.mubr.f32.mxu0 0.0
    %144 = vmatmul.mubr.f32.gmra.mxu0 %v72
    %v145 = vpop.f32.mrf.mxu0
    %v146 = vadd.f32 %v65, %v145
    %v147 = vpop.f32.mrf.mxu0
    %148 = vdwg.mxu0
    %v149 = vmax.f32 %v141, 0.0
    %v150 = vmax.f32 %v146, 0.0
    %v151 = vld [vmem:[%s3] sm:$0xff]
    %v152 = vld [vmem:[%s3 + $0x8] sm:$0xff]
    %v153 = vld [vmem:[%s3 + $0x10] sm:$0xff]
    %v154 = vld [vmem:[%s3 + $0x18] sm:$0xff]
    %v155 = vld [vmem:[%s4] sm:$0x1]
    %v157 = vlaneseq
    %v158 = vshrl.u32 %v157, 7
    %v159 = vsub.s32 0, %v158
    %v160 = vrot.slane %v155, %v159
    %vm162 = vcmask 261120
    %v164 = vsel %vm162, %v149, 0
    %v167 = vsel %vm162, %v150, 0
    %169 = vmatprep.subr.mxu0 0.0
    %170 = vmatpush1.msra.mxu0 0.0
    %171 = vmatprep.subr.mxu0 0.0
    %172 = vmatpush1.msra.mxu0 0.0
    %173 = vmatprep.subr.mxu0 0.0
    %174 = vmatpush1.msra.mxu0 0.0
    %175 = vmatprep.subr.mxu0 0.0
    %176 = vmatpush1.msra.mxu0 0.0
    %177 = vmatprep.subr.mxu0 0.0
    %178 = vmatpush1.msra.mxu0 0.0
    %179 = vmatprep.subr.mxu0 0.0
    %180 = vmatpush1.msra.mxu0 0.0
    %181 = vmatprep.subr.mxu0 0.0
    %182 = vmatpush1.msra.mxu0 0.0
    %183 = vmatprep.subr.mxu0 0.0
    %184 = vmatpush1.msra.mxu0 0.0
    %185 = vmatprep.subr.mxu0 0.0
    %186 = vmatpush1.msra.mxu0 0.0
    %187 = vmatprep.subr.mxu0 0.0
    %188 = vmatpush1.msra.mxu0 0.0
    %189 = vmatprep.subr.mxu0 0.0
    %190 = vmatpush1.msra.mxu0 0.0
    %191 = vmatprep.subr.mxu0 0.0
    %192 = vmatpush1.msra.mxu0 0.0
    %193 = vmatprep.subr.mxu0 0.0
    %194 = vmatpush1.msra.mxu0 %v154
    %195 = vmatprep.subr.mxu0 0.0
    %196 = vmatpush1.msra.mxu0 %v153
    %197 = vmatprep.subr.mxu0 0.0
    %198 = vmatpush1.msra.mxu0 %v152
    %199 = vmatprep.subr.mxu0 0.0
    %200 = vmatpush1.msra.mxu0 %v151
    %201 = vmatprep.subr.mxu0 0.0
    %202 = vmatpush2.msra.mxu0 0.0
    %203 = vmatprep.subr.mxu0 0.0
    %204 = vmatpush2.msra.mxu0 0.0
    %205 = vmatprep.subr.mxu0 0.0
    %206 = vmatpush2.msra.mxu0 0.0
    %207 = vmatprep.subr.mxu0 0.0
    %208 = vmatpush2.msra.mxu0 0.0
    %209 = vmatprep.subr.mxu0 0.0
    %210 = vmatpush2.msra.mxu0 0.0
    %211 = vmatprep.subr.mxu0 0.0
    %212 = vmatpush2.msra.mxu0 0.0
    %213 = vmatprep.subr.mxu0 0.0
    %214 = vmatpush2.msra.mxu0 0.0
    %215 = vmatprep.subr.mxu0 0.0
    %216 = vmatpush2.msra.mxu0 0.0
    %217 = vmatprep.subr.mxu0 0.0
    %218 = vmatpush2.msra.mxu0 0.0
    %219 = vmatprep.subr.mxu0 0.0
    %220 = vmatpush2.msra.mxu0 0.0
    %221 = vmatprep.subr.mxu0 0.0
    %222 = vmatpush2.msra.mxu0 0.0
    %223 = vmatprep.subr.mxu0 0.0
    %224 = vmatpush2.msra.mxu0 0.0
    %225 = vmatprep.subr.mxu0 0.0
    %226 = vmatpush2.msra.mxu0 0.0
    %227 = vmatprep.subr.mxu0 0.0
    %228 = vmatpush2.msra.mxu0 0.0
    %229 = vmatprep.subr.mxu0 0.0
    %230 = vmatpush2.msra.mxu0 0.0
    %231 = vmatprep.subr.mxu0 0.0
    %232 = vmatpush2.msra.mxu0 0.0
    %233 = vmatprep.mubr.f32.mxu0 0.0
    %234 = vmatmul.mubr.f32.gmra.mxu0 %v164
    %v235 = vpop.f32.mrf.mxu0
    %v236 = vadd.f32 %v160, %v235
    %v237 = vpop.f32.mrf.mxu0
    %238 = vmatprep.mubr.f32.mxu0 0.0
    %239 = vmatmul.mubr.f32.gmra.mxu0 %v167
    %v240 = vpop.f32.mrf.mxu0
    %v241 = vadd.f32 %v160, %v240
    %v242 = vpop.f32.mrf.mxu0
    %243 = vdwg.mxu0
    %245 = vrot.lane.b32.xlu0 %v236, 96
    %v246 = vpop.permute.xlu0 %245
    %v247 = vsel %vm67, %v236, 0
    %v249 = vsel %vm67, %v246, 0
    %251 = vmatprep.subr.mxu0 0.0
    %252 = vmatpush1.xpose.msra.mxu0 0.0
    %253 = vmatprep.subr.mxu0 0.0
    %254 = vmatpush1.xpose.msra.mxu0 0.0
    %255 = vmatprep.subr.mxu0 0.0
    %256 = vmatpush1.xpose.msra.mxu0 0.0
    %257 = vmatprep.subr.mxu0 0.0
    %258 = vmatpush1.xpose.msra.mxu0 0.0
    %259 = vmatprep.subr.mxu0 0.0
    %260 = vmatpush1.xpose.msra.mxu0 0.0
    %261 = vmatprep.subr.mxu0 0.0
    %262 = vmatpush1.xpose.msra.mxu0 0.0
    %263 = vmatprep.subr.mxu0 0.0
    %264 = vmatpush1.xpose.msra.mxu0 0.0
    %265 = vmatprep.subr.mxu0 0.0
    %266 = vmatpush1.xpose.msra.mxu0 0.0
    %267 = vmatprep.subr.mxu0 0.0
    %268 = vmatpush1.xpose.msra.mxu0 0.0
    %269 = vmatprep.subr.mxu0 0.0
    %270 = vmatpush1.xpose.msra.mxu0 0.0
    %271 = vmatprep.subr.mxu0 0.0
    %272 = vmatpush1.xpose.msra.mxu0 0.0
    %273 = vmatprep.subr.mxu0 0.0
    %274 = vmatpush1.xpose.msra.mxu0 0.0
    %275 = vmatprep.subr.mxu0 0.0
    %276 = vmatpush1.xpose.msra.mxu0 0.0
    %277 = vmatprep.subr.mxu0 0.0
    %278 = vmatpush1.xpose.msra.mxu0 0.0
    %279 = vmatprep.subr.mxu0 0.0
    %280 = vmatpush1.xpose.msra.mxu0 0.0
    %281 = vmatprep.subr.mxu0 0.0
    %282 = vmatpush1.xpose.msra.mxu0 %v249
    %283 = vmatprep.subr.mxu0 0.0
    %284 = vmatpush2.xpose.msra.mxu0 0.0
    %285 = vmatprep.subr.mxu0 0.0
    %286 = vmatpush2.xpose.msra.mxu0 0.0
    %287 = vmatprep.subr.mxu0 0.0
    %288 = vmatpush2.xpose.msra.mxu0 0.0
    %289 = vmatprep.subr.mxu0 0.0
    %290 = vmatpush2.xpose.msra.mxu0 0.0
    %291 = vmatprep.subr.mxu0 0.0
    %292 = vmatpush2.xpose.msra.mxu0 0.0
    %293 = vmatprep.subr.mxu0 0.0
    %294 = vmatpush2.xpose.msra.mxu0 0.0
    %295 = vmatprep.subr.mxu0 0.0
    %296 = vmatpush2.xpose.msra.mxu0 0.0
    %297 = vmatprep.subr.mxu0 0.0
    %298 = vmatpush2.xpose.msra.mxu0 0.0
    %299 = vmatprep.subr.mxu0 0.0
    %300 = vmatpush2.xpose.msra.mxu0 0.0
    %301 = vmatprep.subr.mxu0 0.0
    %302 = vmatpush2.xpose.msra.mxu0 0.0
    %303 = vmatprep.subr.mxu0 0.0
    %304 = vmatpush2.xpose.msra.mxu0 0.0
    %305 = vmatprep.subr.mxu0 0.0
    %306 = vmatpush2.xpose.msra.mxu0 0.0
    %307 = vmatprep.subr.mxu0 0.0
    %308 = vmatpush2.xpose.msra.mxu0 0.0
    %309 = vmatprep.subr.mxu0 0.0
    %310 = vmatpush2.xpose.msra.mxu0 0.0
    %311 = vmatprep.subr.mxu0 0.0
    %312 = vmatpush2.xpose.msra.mxu0 0.0
    %313 = vmatprep.subr.mxu0 0.0
    %314 = vmatpush2.xpose.msra.mxu0 0.0
    %315 = vmatprep.mubr.f32.mxu0 0.0
    %316 = vmatmul.mubr.f32.gmra.mxu0 %v247
    %v317 = vpop.f32.mrf.mxu0
    %v318 = vadd.f32 0.0, %v317
    %v319 = vpop.f32.mrf.mxu0
    %320 = vdwg.mxu0
    %322 = vrot.lane.b32.xlu0 %v241, 96
    %v323 = vpop.permute.xlu0 %322
    %v324 = vsel %vm67, %v241, 0
    %v326 = vsel %vm67, %v323, 0
    %328 = vmatprep.subr.mxu0 0.0
    %329 = vmatpush1.xpose.msra.mxu0 0.0
    %330 = vmatprep.subr.mxu0 0.0
    %331 = vmatpush1.xpose.msra.mxu0 0.0
    %332 = vmatprep.subr.mxu0 0.0
    %333 = vmatpush1.xpose.msra.mxu0 0.0
    %334 = vmatprep.subr.mxu0 0.0
    %335 = vmatpush1.xpose.msra.mxu0 0.0
    %336 = vmatprep.subr.mxu0 0.0
    %337 = vmatpush1.xpose.msra.mxu0 0.0
    %338 = vmatprep.subr.mxu0 0.0
    %339 = vmatpush1.xpose.msra.mxu0 0.0
    %340 = vmatprep.subr.mxu0 0.0
    %341 = vmatpush1.xpose.msra.mxu0 0.0
    %342 = vmatprep.subr.mxu0 0.0
    %343 = vmatpush1.xpose.msra.mxu0 0.0
    %344 = vmatprep.subr.mxu0 0.0
    %345 = vmatpush1.xpose.msra.mxu0 0.0
    %346 = vmatprep.subr.mxu0 0.0
    %347 = vmatpush1.xpose.msra.mxu0 0.0
    %348 = vmatprep.subr.mxu0 0.0
    %349 = vmatpush1.xpose.msra.mxu0 0.0
    %350 = vmatprep.subr.mxu0 0.0
    %351 = vmatpush1.xpose.msra.mxu0 0.0
    %352 = vmatprep.subr.mxu0 0.0
    %353 = vmatpush1.xpose.msra.mxu0 0.0
    %354 = vmatprep.subr.mxu0 0.0
    %355 = vmatpush1.xpose.msra.mxu0 0.0
    %356 = vmatprep.subr.mxu0 0.0
    %357 = vmatpush1.xpose.msra.mxu0 0.0
    %358 = vmatprep.subr.mxu0 0.0
    %359 = vmatpush1.xpose.msra.mxu0 %v326
    %360 = vmatprep.subr.mxu0 0.0
    %361 = vmatpush2.xpose.msra.mxu0 0.0
    %362 = vmatprep.subr.mxu0 0.0
    %363 = vmatpush2.xpose.msra.mxu0 0.0
    %364 = vmatprep.subr.mxu0 0.0
    %365 = vmatpush2.xpose.msra.mxu0 0.0
    %366 = vmatprep.subr.mxu0 0.0
    %367 = vmatpush2.xpose.msra.mxu0 0.0
    %368 = vmatprep.subr.mxu0 0.0
    %369 = vmatpush2.xpose.msra.mxu0 0.0
    %370 = vmatprep.subr.mxu0 0.0
    %371 = vmatpush2.xpose.msra.mxu0 0.0
    %372 = vmatprep.subr.mxu0 0.0
    %373 = vmatpush2.xpose.msra.mxu0 0.0
    %374 = vmatprep.subr.mxu0 0.0
    %375 = vmatpush2.xpose.msra.mxu0 0.0
    %376 = vmatprep.subr.mxu0 0.0
    %377 = vmatpush2.xpose.msra.mxu0 0.0
    %378 = vmatprep.subr.mxu0 0.0
    %379 = vmatpush2.xpose.msra.mxu0 0.0
    %380 = vmatprep.subr.mxu0 0.0
    %381 = vmatpush2.xpose.msra.mxu0 0.0
    %382 = vmatprep.subr.mxu0 0.0
    %383 = vmatpush2.xpose.msra.mxu0 0.0
    %384 = vmatprep.subr.mxu0 0.0
    %385 = vmatpush2.xpose.msra.mxu0 0.0
    %386 = vmatprep.subr.mxu0 0.0
    %387 = vmatpush2.xpose.msra.mxu0 0.0
    %388 = vmatprep.subr.mxu0 0.0
    %389 = vmatpush2.xpose.msra.mxu0 0.0
    %390 = vmatprep.subr.mxu0 0.0
    %391 = vmatpush2.xpose.msra.mxu0 0.0
    %392 = vmatprep.mubr.f32.mxu0 0.0
    %393 = vmatmul.mubr.f32.gmra.mxu0 %v324
    %v394 = vpop.f32.mrf.mxu0
    %v395 = vadd.f32 0.0, %v394
    %v396 = vpop.f32.mrf.mxu0
    %397 = vdwg.mxu0
    %v398 = vmul.f32 %v318, 0.35355338
    %v399 = vmul.f32 %v395, 0.35355338
    %v400 = vsel %vm67, %v398, -inf
    %401 = vmax.xlane.f32.xlu0 %v400
    %v402 = vpop.xlane.xlu0 %401
    %v403 = vsel %vm67, %v399, -inf
    %404 = vmax.xlane.f32.xlu0 %v403
    %v405 = vpop.xlane.xlu0 %404
    %v406 = vsub.f32 %v398, %v402
    %v407 = vsub.f32 %v399, %v405
    %v408 = vmul.f32 %v406, 1.442695
    %v409 = vpow.pop %v408
    %v410 = vmul.f32 %v407, 1.442695
    %v411 = vpow.pop %v410
    %v412 = vsel %vm67, %v409, 0.0
    %413 = vadd.xlane.f32.xlu0 %v412
    %v414 = vpop.xlane.xlu0 %413
    %v415 = vsel %vm67, %v411, 0.0
    %416 = vadd.xlane.f32.xlu0 %v415
    %v417 = vpop.xlane.xlu0 %416
    %v418 = vrcp.pop %v414
    %v419 = vrcp.pop %v417
    %v420 = vmul.f32 %v409, %v418
    %v421 = vmul.f32 %v411, %v419
    %422 = vrot.lane.b32.xlu0 %v236, 64
    %v423 = vpop.permute.xlu0 %422
    %v426 = vsel %vm67, %v420, 0
    %428 = vmatprep.subr.mxu0 0.0
    %429 = vmatpush1.msra.mxu0 0.0
    %430 = vmatprep.subr.mxu0 0.0
    %431 = vmatpush1.msra.mxu0 0.0
    %432 = vmatprep.subr.mxu0 0.0
    %433 = vmatpush1.msra.mxu0 0.0
    %434 = vmatprep.subr.mxu0 0.0
    %435 = vmatpush1.msra.mxu0 0.0
    %436 = vmatprep.subr.mxu0 0.0
    %437 = vmatpush1.msra.mxu0 0.0
    %438 = vmatprep.subr.mxu0 0.0
    %439 = vmatpush1.msra.mxu0 0.0
    %440 = vmatprep.subr.mxu0 0.0
    %441 = vmatpush1.msra.mxu0 0.0
    %442 = vmatprep.subr.mxu0 0.0
    %443 = vmatpush1.msra.mxu0 0.0
    %444 = vmatprep.subr.mxu0 0.0
    %445 = vmatpush1.msra.mxu0 0.0
    %446 = vmatprep.subr.mxu0 0.0
    %447 = vmatpush1.msra.mxu0 0.0
    %448 = vmatprep.subr.mxu0 0.0
    %449 = vmatpush1.msra.mxu0 0.0
    %450 = vmatprep.subr.mxu0 0.0
    %451 = vmatpush1.msra.mxu0 0.0
    %452 = vmatprep.subr.mxu0 0.0
    %453 = vmatpush1.msra.mxu0 0.0
    %454 = vmatprep.subr.mxu0 0.0
    %455 = vmatpush1.msra.mxu0 0.0
    %456 = vmatprep.subr.mxu0 0.0
    %457 = vmatpush1.msra.mxu0 0.0
    %458 = vmatprep.subr.mxu0 0.0
    %459 = vmatpush1.msra.mxu0 %v423
    %460 = vmatprep.subr.mxu0 0.0
    %461 = vmatpush2.msra.mxu0 0.0
    %462 = vmatprep.subr.mxu0 0.0
    %463 = vmatpush2.msra.mxu0 0.0
    %464 = vmatprep.subr.mxu0 0.0
    %465 = vmatpush2.msra.mxu0 0.0
    %466 = vmatprep.subr.mxu0 0.0
    %467 = vmatpush2.msra.mxu0 0.0
    %468 = vmatprep.subr.mxu0 0.0
    %469 = vmatpush2.msra.mxu0 0.0
    %470 = vmatprep.subr.mxu0 0.0
    %471 = vmatpush2.msra.mxu0 0.0
    %472 = vmatprep.subr.mxu0 0.0
    %473 = vmatpush2.msra.mxu0 0.0
    %474 = vmatprep.subr.mxu0 0.0
    %475 = vmatpush2.msra.mxu0 0.0
    %476 = vmatprep.subr.mxu0 0.0
    %477 = vmatpush2.msra.mxu0 0.0
    %478 = vmatprep.subr.mxu0 0.0
    %479 = vmatpush2.msra.mxu0 0.0
    %480 = vmatprep.subr.mxu0 0.0
    %481 = vmatpush2.msra.mxu0 0.0
    %482 = vmatprep.subr.mxu0 0.0
    %483 = vmatpush2.msra.mxu0 0.0
    %484 = vmatprep.subr.mxu0 0.0
    %485 = vmatpush2.msra.mxu0 0.0
    %486 = vmatprep.subr.mxu0 0.0
    %487 = vmatpush2.msra.mxu0 0.0
    %488 = vmatprep.subr.mxu0 0.0
    %489 = vmatpush2.msra.mxu0 0.0
    %490 = vmatprep.subr.mxu0 0.0
    %491 = vmatpush2.msra.mxu0 0.0
    %492 = vmatprep.mubr.f32.mxu0 0.0
    %493 = vmatmul.mubr.f32.gmra.mxu0 %v426
    %v494 = vpop.f32.mrf.mxu0
    %v495 = vadd.f32 0.0, %v494
    %v496 = vpop.f32.mrf.mxu0
    %497 = vdwg.mxu0
    %498 = vrot.lane.b32.xlu0 %v241, 64
    %v499 = vpop.permute.xlu0 %498
    %v502 = vsel %vm67, %v421, 0
    %504 = vmatprep.subr.mxu0 0.0
    %505 = vmatpush1.msra.mxu0 0.0
    %506 = vmatprep.subr.mxu0 0.0
    %507 = vmatpush1.msra.mxu0 0.0
    %508 = vmatprep.subr.mxu0 0.0
    %509 = vmatpush1.msra.mxu0 0.0
    %510 = vmatprep.subr.mxu0 0.0
    %511 = vmatpush1.msra.mxu0 0.0
    %512 = vmatprep.subr.mxu0 0.0
    %513 = vmatpush1.msra.mxu0 0.0
    %514 = vmatprep.subr.mxu0 0.0
    %515 = vmatpush1.msra.mxu0 0.0
    %516 = vmatprep.subr.mxu0 0.0
    %517 = vmatpush1.msra.mxu0 0.0
    %518 = vmatprep.subr.mxu0 0.0
    %519 = vmatpush1.msra.mxu0 0.0
    %520 = vmatprep.subr.mxu0 0.0
    %521 = vmatpush1.msra.mxu0 0.0
    %522 = vmatprep.subr.mxu0 0.0
    %523 = vmatpush1.msra.mxu0 0.0
    %524 = vmatprep.subr.mxu0 0.0
    %525 = vmatpush1.msra.mxu0 0.0
    %526 = vmatprep.subr.mxu0 0.0
    %527 = vmatpush1.msra.mxu0 0.0
    %528 = vmatprep.subr.mxu0 0.0
    %529 = vmatpush1.msra.mxu0 0.0
    %530 = vmatprep.subr.mxu0 0.0
    %531 = vmatpush1.msra.mxu0 0.0
    %532 = vmatprep.subr.mxu0 0.0
    %533 = vmatpush1.msra.mxu0 0.0
    %534 = vmatprep.subr.mxu0 0.0
    %535 = vmatpush1.msra.mxu0 %v499
    %536 = vmatprep.subr.mxu0 0.0
    %537 = vmatpush2.msra.mxu0 0.0
    %538 = vmatprep.subr.mxu0 0.0
    %539 = vmatpush2.msra.mxu0 0.0
    %540 = vmatprep.subr.mxu0 0.0
    %541 = vmatpush2.msra.mxu0 0.0
    %542 = vmatprep.subr.mxu0 0.0
    %543 = vmatpush2.msra.mxu0 0.0
    %544 = vmatprep.subr.mxu0 0.0
    %545 = vmatpush2.msra.mxu0 0.0
    %546 = vmatprep.subr.mxu0 0.0
    %547 = vmatpush2.msra.mxu0 0.0
    %548 = vmatprep.subr.mxu0 0.0
    %549 = vmatpush2.msra.mxu0 0.0
    %550 = vmatprep.subr.mxu0 0.0
    %551 = vmatpush2.msra.mxu0 0.0
    %552 = vmatprep.subr.mxu0 0.0
    %553 = vmatpush2.msra.mxu0 0.0
    %554 = vmatprep.subr.mxu0 0.0
    %555 = vmatpush2.msra.mxu0 0.0
    %556 = vmatprep.subr.mxu0 0.0
    %557 = vmatpush2.msra.mxu0 0.0
    %558 = vmatprep.subr.mxu0 0.0
    %559 = vmatpush2.msra.mxu0 0.0
    %560 = vmatprep.subr.mxu0 0.0
    %561 = vmatpush2.msra.mxu0 0.0
    %562 = vmatprep.subr.mxu0 0.0
    %563 = vmatpush2.msra.mxu0 0.0
    %564 = vmatprep.subr.mxu0 0.0
    %565 = vmatpush2.msra.mxu0 0.0
    %566 = vmatprep.subr.mxu0 0.0
    %567 = vmatpush2.msra.mxu0 0.0
    %568 = vmatprep.mubr.f32.mxu0 0.0
    %569 = vmatmul.mubr.f32.gmra.mxu0 %v502
    %v570 = vpop.f32.mrf.mxu0
    %v571 = vadd.f32 0.0, %v570
    %v572 = vpop.f32.mrf.mxu0
    %573 = vdwg.mxu0
    %v574 = vld [vmem:[%s5] sm:$0xff]
    %575 = vrot.lane.b32.xlu0 %v236, 120
    %v576 = vpop.permute.xlu0 %575
    %577 = vrot.lane.b32.xlu0 %v236, 88
    %v578 = vpop.permute.xlu0 %577
    %v579 = vsel %vm67, %v576, 0
    %v581 = vsel %vm67, %v578, 0
    %583 = vmatprep.subr.mxu0 0.0
    %584 = vmatpush1.xpose.msra.mxu0 0.0
    %585 = vmatprep.subr.mxu0 0.0
    %586 = vmatpush1.xpose.msra.mxu0 0.0
    %587 = vmatprep.subr.mxu0 0.0
    %588 = vmatpush1.xpose.msra.mxu0 0.0
    %589 = vmatprep.subr.mxu0 0.0
    %590 = vmatpush1.xpose.msra.mxu0 0.0
    %591 = vmatprep.subr.mxu0 0.0
    %592 = vmatpush1.xpose.msra.mxu0 0.0
    %593 = vmatprep.subr.mxu0 0.0
    %594 = vmatpush1.xpose.msra.mxu0 0.0
    %595 = vmatprep.subr.mxu0 0.0
    %596 = vmatpush1.xpose.msra.mxu0 0.0
    %597 = vmatprep.subr.mxu0 0.0
    %598 = vmatpush1.xpose.msra.mxu0 0.0
    %599 = vmatprep.subr.mxu0 0.0
    %600 = vmatpush1.xpose.msra.mxu0 0.0
    %601 = vmatprep.subr.mxu0 0.0
    %602 = vmatpush1.xpose.msra.mxu0 0.0
    %603 = vmatprep.subr.mxu0 0.0
    %604 = vmatpush1.xpose.msra.mxu0 0.0
    %605 = vmatprep.subr.mxu0 0.0
    %606 = vmatpush1.xpose.msra.mxu0 0.0
    %607 = vmatprep.subr.mxu0 0.0
    %608 = vmatpush1.xpose.msra.mxu0 0.0
    %609 = vmatprep.subr.mxu0 0.0
    %610 = vmatpush1.xpose.msra.mxu0 0.0
    %611 = vmatprep.subr.mxu0 0.0
    %612 = vmatpush1.xpose.msra.mxu0 0.0
    %613 = vmatprep.subr.mxu0 0.0
    %614 = vmatpush1.xpose.msra.mxu0 %v581
    %615 = vmatprep.subr.mxu0 0.0
    %616 = vmatpush2.xpose.msra.mxu0 0.0
    %617 = vmatprep.subr.mxu0 0.0
    %618 = vmatpush2.xpose.msra.mxu0 0.0
    %619 = vmatprep.subr.mxu0 0.0
    %620 = vmatpush2.xpose.msra.mxu0 0.0
    %621 = vmatprep.subr.mxu0 0.0
    %622 = vmatpush2.xpose.msra.mxu0 0.0
    %623 = vmatprep.subr.mxu0 0.0
    %624 = vmatpush2.xpose.msra.mxu0 0.0
    %625 = vmatprep.subr.mxu0 0.0
    %626 = vmatpush2.xpose.msra.mxu0 0.0
    %627 = vmatprep.subr.mxu0 0.0
    %628 = vmatpush2.xpose.msra.mxu0 0.0
    %629 = vmatprep.subr.mxu0 0.0
    %630 = vmatpush2.xpose.msra.mxu0 0.0
    %631 = vmatprep.subr.mxu0 0.0
    %632 = vmatpush2.xpose.msra.mxu0 0.0
    %633 = vmatprep.subr.mxu0 0.0
    %634 = vmatpush2.xpose.msra.mxu0 0.0
    %635 = vmatprep.subr.mxu0 0.0
    %636 = vmatpush2.xpose.msra.mxu0 0.0
    %637 = vmatprep.subr.mxu0 0.0
    %638 = vmatpush2.xpose.msra.mxu0 0.0
    %639 = vmatprep.subr.mxu0 0.0
    %640 = vmatpush2.xpose.msra.mxu0 0.0
    %641 = vmatprep.subr.mxu0 0.0
    %642 = vmatpush2.xpose.msra.mxu0 0.0
    %643 = vmatprep.subr.mxu0 0.0
    %644 = vmatpush2.xpose.msra.mxu0 0.0
    %645 = vmatprep.subr.mxu0 0.0
    %646 = vmatpush2.xpose.msra.mxu0 0.0
    %647 = vmatprep.mubr.f32.mxu0 0.0
    %648 = vmatmul.mubr.f32.gmra.mxu0 %v579
    %v649 = vpop.f32.mrf.mxu0
    %v650 = vadd.f32 0.0, %v649
    %v651 = vpop.f32.mrf.mxu0
    %652 = vdwg.mxu0
    %653 = vrot.lane.b32.xlu0 %v241, 120
    %v654 = vpop.permute.xlu0 %653
    %655 = vrot.lane.b32.xlu0 %v241, 88
    %v656 = vpop.permute.xlu0 %655
    %v657 = vsel %vm67, %v654, 0
    %v659 = vsel %vm67, %v656, 0
    %661 = vmatprep.subr.mxu0 0.0
    %662 = vmatpush1.xpose.msra.mxu0 0.0
    %663 = vmatprep.subr.mxu0 0.0
    %664 = vmatpush1.xpose.msra.mxu0 0.0
    %665 = vmatprep.subr.mxu0 0.0
    %666 = vmatpush1.xpose.msra.mxu0 0.0
    %667 = vmatprep.subr.mxu0 0.0
    %668 = vmatpush1.xpose.msra.mxu0 0.0
    %669 = vmatprep.subr.mxu0 0.0
    %670 = vmatpush1.xpose.msra.mxu0 0.0
    %671 = vmatprep.subr.mxu0 0.0
    %672 = vmatpush1.xpose.msra.mxu0 0.0
    %673 = vmatprep.subr.mxu0 0.0
    %674 = vmatpush1.xpose.msra.mxu0 0.0
    %675 = vmatprep.subr.mxu0 0.0
    %676 = vmatpush1.xpose.msra.mxu0 0.0
    %677 = vmatprep.subr.mxu0 0.0
    %678 = vmatpush1.xpose.msra.mxu0 0.0
    %679 = vmatprep.subr.mxu0 0.0
    %680 = vmatpush1.xpose.msra.mxu0 0.0
    %681 = vmatprep.subr.mxu0 0.0
    %682 = vmatpush1.xpose.msra.mxu0 0.0
    %683 = vmatprep.subr.mxu0 0.0
    %684 = vmatpush1.xpose.msra.mxu0 0.0
    %685 = vmatprep.subr.mxu0 0.0
    %686 = vmatpush1.xpose.msra.mxu0 0.0
    %687 = vmatprep.subr.mxu0 0.0
    %688 = vmatpush1.xpose.msra.mxu0 0.0
    %689 = vmatprep.subr.mxu0 0.0
    %690 = vmatpush1.xpose.msra.mxu0 0.0
    %691 = vmatprep.subr.mxu0 0.0
    %692 = vmatpush1.xpose.msra.mxu0 %v659
    %693 = vmatprep.subr.mxu0 0.0
    %694 = vmatpush2.xpose.msra.mxu0 0.0
    %695 = vmatprep.subr.mxu0 0.0
    %696 = vmatpush2.xpose.msra.mxu0 0.0
    %697 = vmatprep.subr.mxu0 0.0
    %698 = vmatpush2.xpose.msra.mxu0 0.0
    %699 = vmatprep.subr.mxu0 0.0
    %700 = vmatpush2.xpose.msra.mxu0 0.0
    %701 = vmatprep.subr.mxu0 0.0
    %702 = vmatpush2.xpose.msra.mxu0 0.0
    %703 = vmatprep.subr.mxu0 0.0
    %704 = vmatpush2.xpose.msra.mxu0 0.0
    %705 = vmatprep.subr.mxu0 0.0
    %706 = vmatpush2.xpose.msra.mxu0 0.0
    %707 = vmatprep.subr.mxu0 0.0
    %708 = vmatpush2.xpose.msra.mxu0 0.0
    %709 = vmatprep.subr.mxu0 0.0
    %710 = vmatpush2.xpose.msra.mxu0 0.0
    %711 = vmatprep.subr.mxu0 0.0
    %712 = vmatpush2.xpose.msra.mxu0 0.0
    %713 = vmatprep.subr.mxu0 0.0
    %714 = vmatpush2.xpose.msra.mxu0 0.0
    %715 = vmatprep.subr.mxu0 0.0
    %716 = vmatpush2.xpose.msra.mxu0 0.0
    %717 = vmatprep.subr.mxu0 0.0
    %718 = vmatpush2.xpose.msra.mxu0 0.0
    %719 = vmatprep.subr.mxu0 0.0
    %720 = vmatpush2.xpose.msra.mxu0 0.0
    %721 = vmatprep.subr.mxu0 0.0
    %722 = vmatpush2.xpose.msra.mxu0 0.0
    %723 = vmatprep.subr.mxu0 0.0
    %724 = vmatpush2.xpose.msra.mxu0 0.0
    %725 = vmatprep.mubr.f32.mxu0 0.0
    %726 = vmatmul.mubr.f32.gmra.mxu0 %v657
    %v727 = vpop.f32.mrf.mxu0
    %v728 = vadd.f32 0.0, %v727
    %v729 = vpop.f32.mrf.mxu0
    %730 = vdwg.mxu0
    %v731 = vmul.f32 %v650, 0.35355338
    %v732 = vmul.f32 %v728, 0.35355338
    %v733 = vsel %vm67, %v731, -inf
    %734 = vmax.xlane.f32.xlu0 %v733
    %v735 = vpop.xlane.xlu0 %734
    %v736 = vsel %vm67, %v732, -inf
    %737 = vmax.xlane.f32.xlu0 %v736
    %v738 = vpop.xlane.xlu0 %737
    %v739 = vsub.f32 %v731, %v735
    %v740 = vsub.f32 %v732, %v738
    %v741 = vmul.f32 %v739, 1.442695
    %v742 = vpow.pop %v741
    %v743 = vmul.f32 %v740, 1.442695
    %v744 = vpow.pop %v743
    %v745 = vsel %vm67, %v742, 0.0
    %746 = vadd.xlane.f32.xlu0 %v745
    %v747 = vpop.xlane.xlu0 %746
    %v748 = vsel %vm67, %v744, 0.0
    %749 = vadd.xlane.f32.xlu0 %v748
    %v750 = vpop.xlane.xlu0 %749
    %v751 = vrcp.pop %v747
    %v752 = vrcp.pop %v750
    %v753 = vmul.f32 %v742, %v751
    %v754 = vmul.f32 %v744, %v752
    %755 = vrot.lane.b32.xlu0 %v236, 56
    %v756 = vpop.permute.xlu0 %755
    %v759 = vsel %vm67, %v753, 0
    %761 = vmatprep.subr.mxu0 0.0
    %762 = vmatpush1.msra.mxu0 0.0
    %763 = vmatprep.subr.mxu0 0.0
    %764 = vmatpush1.msra.mxu0 0.0
    %765 = vmatprep.subr.mxu0 0.0
    %766 = vmatpush1.msra.mxu0 0.0
    %767 = vmatprep.subr.mxu0 0.0
    %768 = vmatpush1.msra.mxu0 0.0
    %769 = vmatprep.subr.mxu0 0.0
    %770 = vmatpush1.msra.mxu0 0.0
    %771 = vmatprep.subr.mxu0 0.0
    %772 = vmatpush1.msra.mxu0 0.0
    %773 = vmatprep.subr.mxu0 0.0
    %774 = vmatpush1.msra.mxu0 0.0
    %775 = vmatprep.subr.mxu0 0.0
    %776 = vmatpush1.msra.mxu0 0.0
    %777 = vmatprep.subr.mxu0 0.0
    %778 = vmatpush1.msra.mxu0 0.0
    %779 = vmatprep.subr.mxu0 0.0
    %780 = vmatpush1.msra.mxu0 0.0
    %781 = vmatprep.subr.mxu0 0.0
    %782 = vmatpush1.msra.mxu0 0.0
    %783 = vmatprep.subr.mxu0 0.0
    %784 = vmatpush1.msra.mxu0 0.0
    %785 = vmatprep.subr.mxu0 0.0
    %786 = vmatpush1.msra.mxu0 0.0
    %787 = vmatprep.subr.mxu0 0.0
    %788 = vmatpush1.msra.mxu0 0.0
    %789 = vmatprep.subr.mxu0 0.0
    %790 = vmatpush1.msra.mxu0 0.0
    %791 = vmatprep.subr.mxu0 0.0
    %792 = vmatpush1.msra.mxu0 %v756
    %793 = vmatprep.subr.mxu0 0.0
    %794 = vmatpush2.msra.mxu0 0.0
    %795 = vmatprep.subr.mxu0 0.0
    %796 = vmatpush2.msra.mxu0 0.0
    %797 = vmatprep.subr.mxu0 0.0
    %798 = vmatpush2.msra.mxu0 0.0
    %799 = vmatprep.subr.mxu0 0.0
    %800 = vmatpush2.msra.mxu0 0.0
    %801 = vmatprep.subr.mxu0 0.0
    %802 = vmatpush2.msra.mxu0 0.0
    %803 = vmatprep.subr.mxu0 0.0
    %804 = vmatpush2.msra.mxu0 0.0
    %805 = vmatprep.subr.mxu0 0.0
    %806 = vmatpush2.msra.mxu0 0.0
    %807 = vmatprep.subr.mxu0 0.0
    %808 = vmatpush2.msra.mxu0 0.0
    %809 = vmatprep.subr.mxu0 0.0
    %810 = vmatpush2.msra.mxu0 0.0
    %811 = vmatprep.subr.mxu0 0.0
    %812 = vmatpush2.msra.mxu0 0.0
    %813 = vmatprep.subr.mxu0 0.0
    %814 = vmatpush2.msra.mxu0 0.0
    %815 = vmatprep.subr.mxu0 0.0
    %816 = vmatpush2.msra.mxu0 0.0
    %817 = vmatprep.subr.mxu0 0.0
    %818 = vmatpush2.msra.mxu0 0.0
    %819 = vmatprep.subr.mxu0 0.0
    %820 = vmatpush2.msra.mxu0 0.0
    %821 = vmatprep.subr.mxu0 0.0
    %822 = vmatpush2.msra.mxu0 0.0
    %823 = vmatprep.subr.mxu0 0.0
    %824 = vmatpush2.msra.mxu0 0.0
    %825 = vmatprep.mubr.f32.mxu0 0.0
    %826 = vmatmul.mubr.f32.gmra.mxu0 %v759
    %v827 = vpop.f32.mrf.mxu0
    %v828 = vadd.f32 0.0, %v827
    %v829 = vpop.f32.mrf.mxu0
    %830 = vdwg.mxu0
    %831 = vrot.lane.b32.xlu0 %v241, 56
    %v832 = vpop.permute.xlu0 %831
    %v835 = vsel %vm67, %v754, 0
    %837 = vmatprep.subr.mxu0 0.0
    %838 = vmatpush1.msra.mxu0 0.0
    %839 = vmatprep.subr.mxu0 0.0
    %840 = vmatpush1.msra.mxu0 0.0
    %841 = vmatprep.subr.mxu0 0.0
    %842 = vmatpush1.msra.mxu0 0.0
    %843 = vmatprep.subr.mxu0 0.0
    %844 = vmatpush1.msra.mxu0 0.0
    %845 = vmatprep.subr.mxu0 0.0
    %846 = vmatpush1.msra.mxu0 0.0
    %847 = vmatprep.subr.mxu0 0.0
    %848 = vmatpush1.msra.mxu0 0.0
    %849 = vmatprep.subr.mxu0 0.0
    %850 = vmatpush1.msra.mxu0 0.0
    %851 = vmatprep.subr.mxu0 0.0
    %852 = vmatpush1.msra.mxu0 0.0
    %853 = vmatprep.subr.mxu0 0.0
    %854 = vmatpush1.msra.mxu0 0.0
    %855 = vmatprep.subr.mxu0 0.0
    %856 = vmatpush1.msra.mxu0 0.0
    %857 = vmatprep.subr.mxu0 0.0
    %858 = vmatpush1.msra.mxu0 0.0
    %859 = vmatprep.subr.mxu0 0.0
    %860 = vmatpush1.msra.mxu0 0.0
    %861 = vmatprep.subr.mxu0 0.0
    %862 = vmatpush1.msra.mxu0 0.0
    %863 = vmatprep.subr.mxu0 0.0
    %864 = vmatpush1.msra.mxu0 0.0
    %865 = vmatprep.subr.mxu0 0.0
    %866 = vmatpush1.msra.mxu0 0.0
    %867 = vmatprep.subr.mxu0 0.0
    %868 = vmatpush1.msra.mxu0 %v832
    %869 = vmatprep.subr.mxu0 0.0
    %870 = vmatpush2.msra.mxu0 0.0
    %871 = vmatprep.subr.mxu0 0.0
    %872 = vmatpush2.msra.mxu0 0.0
    %873 = vmatprep.subr.mxu0 0.0
    %874 = vmatpush2.msra.mxu0 0.0
    %875 = vmatprep.subr.mxu0 0.0
    %876 = vmatpush2.msra.mxu0 0.0
    %877 = vmatprep.subr.mxu0 0.0
    %878 = vmatpush2.msra.mxu0 0.0
    %879 = vmatprep.subr.mxu0 0.0
    %880 = vmatpush2.msra.mxu0 0.0
    %881 = vmatprep.subr.mxu0 0.0
    %882 = vmatpush2.msra.mxu0 0.0
    %883 = vmatprep.subr.mxu0 0.0
    %884 = vmatpush2.msra.mxu0 0.0
    %885 = vmatprep.subr.mxu0 0.0
    %886 = vmatpush2.msra.mxu0 0.0
    %887 = vmatprep.subr.mxu0 0.0
    %888 = vmatpush2.msra.mxu0 0.0
    %889 = vmatprep.subr.mxu0 0.0
    %890 = vmatpush2.msra.mxu0 0.0
    %891 = vmatprep.subr.mxu0 0.0
    %892 = vmatpush2.msra.mxu0 0.0
    %893 = vmatprep.subr.mxu0 0.0
    %894 = vmatpush2.msra.mxu0 0.0
    %895 = vmatprep.subr.mxu0 0.0
    %896 = vmatpush2.msra.mxu0 0.0
    %897 = vmatprep.subr.mxu0 0.0
    %898 = vmatpush2.msra.mxu0 0.0
    %899 = vmatprep.subr.mxu0 0.0
    %900 = vmatpush2.msra.mxu0 0.0
    %901 = vmatprep.mubr.f32.mxu0 0.0
    %902 = vmatmul.mubr.f32.gmra.mxu0 %v835
    %v903 = vpop.f32.mrf.mxu0
    %v904 = vadd.f32 0.0, %v903
    %v905 = vpop.f32.mrf.mxu0
    %906 = vdwg.mxu0
    %s907 = scalar_lea.vmem %s5, 8
    %v908 = vld [vmem:[%s907] sm:$0xff]
    %v910 = vsel %vm67, %v828, 0
    %v913 = vsel %vm67, %v904, 0
    %915 = vmatprep.subr.mxu0 0.0
    %916 = vmatpush1.msra.mxu0 0.0
    %917 = vmatprep.subr.mxu0 0.0
    %918 = vmatpush1.msra.mxu0 0.0
    %919 = vmatprep.subr.mxu0 0.0
    %920 = vmatpush1.msra.mxu0 0.0
    %921 = vmatprep.subr.mxu0 0.0
    %922 = vmatpush1.msra.mxu0 0.0
    %923 = vmatprep.subr.mxu0 0.0
    %924 = vmatpush1.msra.mxu0 0.0
    %925 = vmatprep.subr.mxu0 0.0
    %926 = vmatpush1.msra.mxu0 0.0
    %927 = vmatprep.subr.mxu0 0.0
    %928 = vmatpush1.msra.mxu0 0.0
    %929 = vmatprep.subr.mxu0 0.0
    %930 = vmatpush1.msra.mxu0 0.0
    %931 = vmatprep.subr.mxu0 0.0
    %932 = vmatpush1.msra.mxu0 0.0
    %933 = vmatprep.subr.mxu0 0.0
    %934 = vmatpush1.msra.mxu0 0.0
    %935 = vmatprep.subr.mxu0 0.0
    %936 = vmatpush1.msra.mxu0 0.0
    %937 = vmatprep.subr.mxu0 0.0
    %938 = vmatpush1.msra.mxu0 0.0
    %939 = vmatprep.subr.mxu0 0.0
    %940 = vmatpush1.msra.mxu0 0.0
    %941 = vmatprep.subr.mxu0 0.0
    %942 = vmatpush1.msra.mxu0 0.0
    %943 = vmatprep.subr.mxu0 0.0
    %944 = vmatpush1.msra.mxu0 0.0
    %945 = vmatprep.subr.mxu0 0.0
    %946 = vmatpush1.msra.mxu0 %v908
    %947 = vmatprep.subr.mxu0 0.0
    %948 = vmatpush2.msra.mxu0 0.0
    %949 = vmatprep.subr.mxu0 0.0
    %950 = vmatpush2.msra.mxu0 0.0
    %951 = vmatprep.subr.mxu0 0.0
    %952 = vmatpush2.msra.mxu0 0.0
    %953 = vmatprep.subr.mxu0 0.0
    %954 = vmatpush2.msra.mxu0 0.0
    %955 = vmatprep.subr.mxu0 0.0
    %956 = vmatpush2.msra.mxu0 0.0
    %957 = vmatprep.subr.mxu0 0.0
    %958 = vmatpush2.msra.mxu0 0.0
    %959 = vmatprep.subr.mxu0 0.0
    %960 = vmatpush2.msra.mxu0 0.0
    %961 = vmatprep.subr.mxu0 0.0
    %962 = vmatpush2.msra.mxu0 0.0
    %963 = vmatprep.subr.mxu0 0.0
    %964 = vmatpush2.msra.mxu0 0.0
    %965 = vmatprep.subr.mxu0 0.0
    %966 = vmatpush2.msra.mxu0 0.0
    %967 = vmatprep.subr.mxu0 0.0
    %968 = vmatpush2.msra.mxu0 0.0
    %969 = vmatprep.subr.mxu0 0.0
    %970 = vmatpush2.msra.mxu0 0.0
    %971 = vmatprep.subr.mxu0 0.0
    %972 = vmatpush2.msra.mxu0 0.0
    %973 = vmatprep.subr.mxu0 0.0
    %974 = vmatpush2.msra.mxu0 0.0
    %975 = vmatprep.subr.mxu0 0.0
    %976 = vmatpush2.msra.mxu0 0.0
    %977 = vmatprep.subr.mxu0 0.0
    %978 = vmatpush2.msra.mxu0 0.0
    %979 = vmatprep.mubr.f32.mxu0 0.0
    %980 = vmatmul.mubr.f32.gmra.mxu0 %v910
    %v981 = vpop.f32.mrf.mxu0
    %v982 = vadd.f32 0.0, %v981
    %v983 = vpop.f32.mrf.mxu0
    %984 = vmatprep.mubr.f32.mxu0 0.0
    %985 = vmatmul.mubr.f32.gmra.mxu0 %v913
    %v986 = vpop.f32.mrf.mxu0
    %v987 = vadd.f32 0.0, %v986
    %v988 = vpop.f32.mrf.mxu0
    %989 = vdwg.mxu0
    %v991 = vsel %vm67, %v495, 0
    %v994 = vsel %vm67, %v571, 0
    %996 = vmatprep.subr.mxu0 0.0
    %997 = vmatpush1.msra.mxu0 0.0
    %998 = vmatprep.subr.mxu0 0.0
    %999 = vmatpush1.msra.mxu0 0.0
    %1000 = vmatprep.subr.mxu0 0.0
    %1001 = vmatpush1.msra.mxu0 0.0
    %1002 = vmatprep.subr.mxu0 0.0
    %1003 = vmatpush1.msra.mxu0 0.0
    %1004 = vmatprep.subr.mxu0 0.0
    %1005 = vmatpush1.msra.mxu0 0.0
    %1006 = vmatprep.subr.mxu0 0.0
    %1007 = vmatpush1.msra.mxu0 0.0
    %1008 = vmatprep.subr.mxu0 0.0
    %1009 = vmatpush1.msra.mxu0 0.0
    %1010 = vmatprep.subr.mxu0 0.0
    %1011 = vmatpush1.msra.mxu0 0.0
    %1012 = vmatprep.subr.mxu0 0.0
    %1013 = vmatpush1.msra.mxu0 0.0
    %1014 = vmatprep.subr.mxu0 0.0
    %1015 = vmatpush1.msra.mxu0 0.0
    %1016 = vmatprep.subr.mxu0 0.0
    %1017 = vmatpush1.msra.mxu0 0.0
    %1018 = vmatprep.subr.mxu0 0.0
    %1019 = vmatpush1.msra.mxu0 0.0
    %1020 = vmatprep.subr.mxu0 0.0
    %1021 = vmatpush1.msra.mxu0 0.0
    %1022 = vmatprep.subr.mxu0 0.0
    %1023 = vmatpush1.msra.mxu0 0.0
    %1024 = vmatprep.subr.mxu0 0.0
    %1025 = vmatpush1.msra.mxu0 0.0
    %1026 = vmatprep.subr.mxu0 0.0
    %1027 = vmatpush1.msra.mxu0 %v574
    %1028 = vmatprep.subr.mxu0 0.0
    %1029 = vmatpush2.msra.mxu0 0.0
    %1030 = vmatprep.subr.mxu0 0.0
    %1031 = vmatpush2.msra.mxu0 0.0
    %1032 = vmatprep.subr.mxu0 0.0
    %1033 = vmatpush2.msra.mxu0 0.0
    %1034 = vmatprep.subr.mxu0 0.0
    %1035 = vmatpush2.msra.mxu0 0.0
    %1036 = vmatprep.subr.mxu0 0.0
    %1037 = vmatpush2.msra.mxu0 0.0
    %1038 = vmatprep.subr.mxu0 0.0
    %1039 = vmatpush2.msra.mxu0 0.0
    %1040 = vmatprep.subr.mxu0 0.0
    %1041 = vmatpush2.msra.mxu0 0.0
    %1042 = vmatprep.subr.mxu0 0.0
    %1043 = vmatpush2.msra.mxu0 0.0
    %1044 = vmatprep.subr.mxu0 0.0
    %1045 = vmatpush2.msra.mxu0 0.0
    %1046 = vmatprep.subr.mxu0 0.0
    %1047 = vmatpush2.msra.mxu0 0.0
    %1048 = vmatprep.subr.mxu0 0.0
    %1049 = vmatpush2.msra.mxu0 0.0
    %1050 = vmatprep.subr.mxu0 0.0
    %1051 = vmatpush2.msra.mxu0 0.0
    %1052 = vmatprep.subr.mxu0 0.0
    %1053 = vmatpush2.msra.mxu0 0.0
    %1054 = vmatprep.subr.mxu0 0.0
    %1055 = vmatpush2.msra.mxu0 0.0
    %1056 = vmatprep.subr.mxu0 0.0
    %1057 = vmatpush2.msra.mxu0 0.0
    %1058 = vmatprep.subr.mxu0 0.0
    %1059 = vmatpush2.msra.mxu0 0.0
    %1060 = vmatprep.mubr.f32.mxu0 0.0
    %1061 = vmatmul.mubr.f32.gmra.mxu0 %v991
    %v1062 = vpop.f32.mrf.mxu0
    %v1063 = vadd.f32 %v982, %v1062
    %v1064 = vpop.f32.mrf.mxu0
    %1065 = vmatprep.mubr.f32.mxu0 0.0
    %1066 = vmatmul.mubr.f32.gmra.mxu0 %v994
    %v1067 = vpop.f32.mrf.mxu0
    %v1068 = vadd.f32 %v987, %v1067
    %v1069 = vpop.f32.mrf.mxu0
    %1070 = vdwg.mxu0
    %1071 = vrot.lane.b32.xlu0 %v236, 112
    %v1072 = vpop.permute.xlu0 %1071
    %1073 = vrot.lane.b32.xlu0 %v236, 80
    %v1074 = vpop.permute.xlu0 %1073
    %v1075 = vsel %vm67, %v1072, 0
    %v1077 = vsel %vm67, %v1074, 0
    %1079 = vmatprep.subr.mxu0 0.0
    %1080 = vmatpush1.xpose.msra.mxu0 0.0
    %1081 = vmatprep.subr.mxu0 0.0
    %1082 = vmatpush1.xpose.msra.mxu0 0.0
    %1083 = vmatprep.subr.mxu0 0.0
    %1084 = vmatpush1.xpose.msra.mxu0 0.0
    %1085 = vmatprep.subr.mxu0 0.0
    %1086 = vmatpush1.xpose.msra.mxu0 0.0
    %1087 = vmatprep.subr.mxu0 0.0
    %1088 = vmatpush1.xpose.msra.mxu0 0.0
    %1089 = vmatprep.subr.mxu0 0.0
    %1090 = vmatpush1.xpose.msra.mxu0 0.0
    %1091 = vmatprep.subr.mxu0 0.0
    %1092 = vmatpush1.xpose.msra.mxu0 0.0
    %1093 = vmatprep.subr.mxu0 0.0
    %1094 = vmatpush1.xpose.msra.mxu0 0.0
    %1095 = vmatprep.subr.mxu0 0.0
    %1096 = vmatpush1.xpose.msra.mxu0 0.0
    %1097 = vmatprep.subr.mxu0 0.0
    %1098 = vmatpush1.xpose.msra.mxu0 0.0
    %1099 = vmatprep.subr.mxu0 0.0
    %1100 = vmatpush1.xpose.msra.mxu0 0.0
    %1101 = vmatprep.subr.mxu0 0.0
    %1102 = vmatpush1.xpose.msra.mxu0 0.0
    %1103 = vmatprep.subr.mxu0 0.0
    %1104 = vmatpush1.xpose.msra.mxu0 0.0
    %1105 = vmatprep.subr.mxu0 0.0
    %1106 = vmatpush1.xpose.msra.mxu0 0.0
    %1107 = vmatprep.subr.mxu0 0.0
    %1108 = vmatpush1.xpose.msra.mxu0 0.0
    %1109 = vmatprep.subr.mxu0 0.0
    %1110 = vmatpush1.xpose.msra.mxu0 %v1077
    %1111 = vmatprep.subr.mxu0 0.0
    %1112 = vmatpush2.xpose.msra.mxu0 0.0
    %1113 = vmatprep.subr.mxu0 0.0
    %1114 = vmatpush2.xpose.msra.mxu0 0.0
    %1115 = vmatprep.subr.mxu0 0.0
    %1116 = vmatpush2.xpose.msra.mxu0 0.0
    %1117 = vmatprep.subr.mxu0 0.0
    %1118 = vmatpush2.xpose.msra.mxu0 0.0
    %1119 = vmatprep.subr.mxu0 0.0
    %1120 = vmatpush2.xpose.msra.mxu0 0.0
    %1121 = vmatprep.subr.mxu0 0.0
    %1122 = vmatpush2.xpose.msra.mxu0 0.0
    %1123 = vmatprep.subr.mxu0 0.0
    %1124 = vmatpush2.xpose.msra.mxu0 0.0
    %1125 = vmatprep.subr.mxu0 0.0
    %1126 = vmatpush2.xpose.msra.mxu0 0.0
    %1127 = vmatprep.subr.mxu0 0.0
    %1128 = vmatpush2.xpose.msra.mxu0 0.0
    %1129 = vmatprep.subr.mxu0 0.0
    %1130 = vmatpush2.xpose.msra.mxu0 0.0
    %1131 = vmatprep.subr.mxu0 0.0
    %1132 = vmatpush2.xpose.msra.mxu0 0.0
    %1133 = vmatprep.subr.mxu0 0.0
    %1134 = vmatpush2.xpose.msra.mxu0 0.0
    %1135 = vmatprep.subr.mxu0 0.0
    %1136 = vmatpush2.xpose.msra.mxu0 0.0
    %1137 = vmatprep.subr.mxu0 0.0
    %1138 = vmatpush2.xpose.msra.mxu0 0.0
    %1139 = vmatprep.subr.mxu0 0.0
    %1140 = vmatpush2.xpose.msra.mxu0 0.0
    %1141 = vmatprep.subr.mxu0 0.0
    %1142 = vmatpush2.xpose.msra.mxu0 0.0
    %1143 = vmatprep.mubr.f32.mxu0 0.0
    %1144 = vmatmul.mubr.f32.gmra.mxu0 %v1075
    %v1145 = vpop.f32.mrf.mxu0
    %v1146 = vadd.f32 0.0, %v1145
    %v1147 = vpop.f32.mrf.mxu0
    %1148 = vdwg.mxu0
    %1149 = vrot.lane.b32.xlu0 %v241, 112
    %v1150 = vpop.permute.xlu0 %1149
    %1151 = vrot.lane.b32.xlu0 %v241, 80
    %v1152 = vpop.permute.xlu0 %1151
    %v1153 = vsel %vm67, %v1150, 0
    %v1155 = vsel %vm67, %v1152, 0
    %1157 = vmatprep.subr.mxu0 0.0
    %1158 = vmatpush1.xpose.msra.mxu0 0.0
    %1159 = vmatprep.subr.mxu0 0.0
    %1160 = vmatpush1.xpose.msra.mxu0 0.0
    %1161 = vmatprep.subr.mxu0 0.0
    %1162 = vmatpush1.xpose.msra.mxu0 0.0
    %1163 = vmatprep.subr.mxu0 0.0
    %1164 = vmatpush1.xpose.msra.mxu0 0.0
    %1165 = vmatprep.subr.mxu0 0.0
    %1166 = vmatpush1.xpose.msra.mxu0 0.0
    %1167 = vmatprep.subr.mxu0 0.0
    %1168 = vmatpush1.xpose.msra.mxu0 0.0
    %1169 = vmatprep.subr.mxu0 0.0
    %1170 = vmatpush1.xpose.msra.mxu0 0.0
    %1171 = vmatprep.subr.mxu0 0.0
    %1172 = vmatpush1.xpose.msra.mxu0 0.0
    %1173 = vmatprep.subr.mxu0 0.0
    %1174 = vmatpush1.xpose.msra.mxu0 0.0
    %1175 = vmatprep.subr.mxu0 0.0
    %1176 = vmatpush1.xpose.msra.mxu0 0.0
    %1177 = vmatprep.subr.mxu0 0.0
    %1178 = vmatpush1.xpose.msra.mxu0 0.0
    %1179 = vmatprep.subr.mxu0 0.0
    %1180 = vmatpush1.xpose.msra.mxu0 0.0
    %1181 = vmatprep.subr.mxu0 0.0
    %1182 = vmatpush1.xpose.msra.mxu0 0.0
    %1183 = vmatprep.subr.mxu0 0.0
    %1184 = vmatpush1.xpose.msra.mxu0 0.0
    %1185 = vmatprep.subr.mxu0 0.0
    %1186 = vmatpush1.xpose.msra.mxu0 0.0
    %1187 = vmatprep.subr.mxu0 0.0
    %1188 = vmatpush1.xpose.msra.mxu0 %v1155
    %1189 = vmatprep.subr.mxu0 0.0
    %1190 = vmatpush2.xpose.msra.mxu0 0.0
    %1191 = vmatprep.subr.mxu0 0.0
    %1192 = vmatpush2.xpose.msra.mxu0 0.0
    %1193 = vmatprep.subr.mxu0 0.0
    %1194 = vmatpush2.xpose.msra.mxu0 0.0
    %1195 = vmatprep.subr.mxu0 0.0
    %1196 = vmatpush2.xpose.msra.mxu0 0.0
    %1197 = vmatprep.subr.mxu0 0.0
    %1198 = vmatpush2.xpose.msra.mxu0 0.0
    %1199 = vmatprep.subr.mxu0 0.0
    %1200 = vmatpush2.xpose.msra.mxu0 0.0
    %1201 = vmatprep.subr.mxu0 0.0
    %1202 = vmatpush2.xpose.msra.mxu0 0.0
    %1203 = vmatprep.subr.mxu0 0.0
    %1204 = vmatpush2.xpose.msra.mxu0 0.0
    %1205 = vmatprep.subr.mxu0 0.0
    %1206 = vmatpush2.xpose.msra.mxu0 0.0
    %1207 = vmatprep.subr.mxu0 0.0
    %1208 = vmatpush2.xpose.msra.mxu0 0.0
    %1209 = vmatprep.subr.mxu0 0.0
    %1210 = vmatpush2.xpose.msra.mxu0 0.0
    %1211 = vmatprep.subr.mxu0 0.0
    %1212 = vmatpush2.xpose.msra.mxu0 0.0
    %1213 = vmatprep.subr.mxu0 0.0
    %1214 = vmatpush2.xpose.msra.mxu0 0.0
    %1215 = vmatprep.subr.mxu0 0.0
    %1216 = vmatpush2.xpose.msra.mxu0 0.0
    %1217 = vmatprep.subr.mxu0 0.0
    %1218 = vmatpush2.xpose.msra.mxu0 0.0
    %1219 = vmatprep.subr.mxu0 0.0
    %1220 = vmatpush2.xpose.msra.mxu0 0.0
    %1221 = vmatprep.mubr.f32.mxu0 0.0
    %1222 = vmatmul.mubr.f32.gmra.mxu0 %v1153
    %v1223 = vpop.f32.mrf.mxu0
    %v1224 = vadd.f32 0.0, %v1223
    %v1225 = vpop.f32.mrf.mxu0
    %1226 = vdwg.mxu0
    %v1227 = vmul.f32 %v1146, 0.35355338
    %v1228 = vmul.f32 %v1224, 0.35355338
    %v1229 = vsel %vm67, %v1227, -inf
    %1230 = vmax.xlane.f32.xlu0 %v1229
    %v1231 = vpop.xlane.xlu0 %1230
    %v1232 = vsel %vm67, %v1228, -inf
    %1233 = vmax.xlane.f32.xlu0 %v1232
    %v1234 = vpop.xlane.xlu0 %1233
    %v1235 = vsub.f32 %v1227, %v1231
    %v1236 = vsub.f32 %v1228, %v1234
    %v1237 = vmul.f32 %v1235, 1.442695
    %v1238 = vpow.pop %v1237
    %v1239 = vmul.f32 %v1236, 1.442695
    %v1240 = vpow.pop %v1239
    %v1241 = vsel %vm67, %v1238, 0.0
    %1242 = vadd.xlane.f32.xlu0 %v1241
    %v1243 = vpop.xlane.xlu0 %1242
    %v1244 = vsel %vm67, %v1240, 0.0
    %1245 = vadd.xlane.f32.xlu0 %v1244
    %v1246 = vpop.xlane.xlu0 %1245
    %v1247 = vrcp.pop %v1243
    %v1248 = vrcp.pop %v1246
    %v1249 = vmul.f32 %v1238, %v1247
    %v1250 = vmul.f32 %v1240, %v1248
    %1251 = vrot.lane.b32.xlu0 %v236, 48
    %v1252 = vpop.permute.xlu0 %1251
    %v1255 = vsel %vm67, %v1249, 0
    %1257 = vmatprep.subr.mxu0 0.0
    %1258 = vmatpush1.msra.mxu0 0.0
    %1259 = vmatprep.subr.mxu0 0.0
    %1260 = vmatpush1.msra.mxu0 0.0
    %1261 = vmatprep.subr.mxu0 0.0
    %1262 = vmatpush1.msra.mxu0 0.0
    %1263 = vmatprep.subr.mxu0 0.0
    %1264 = vmatpush1.msra.mxu0 0.0
    %1265 = vmatprep.subr.mxu0 0.0
    %1266 = vmatpush1.msra.mxu0 0.0
    %1267 = vmatprep.subr.mxu0 0.0
    %1268 = vmatpush1.msra.mxu0 0.0
    %1269 = vmatprep.subr.mxu0 0.0
    %1270 = vmatpush1.msra.mxu0 0.0
    %1271 = vmatprep.subr.mxu0 0.0
    %1272 = vmatpush1.msra.mxu0 0.0
    %1273 = vmatprep.subr.mxu0 0.0
    %1274 = vmatpush1.msra.mxu0 0.0
    %1275 = vmatprep.subr.mxu0 0.0
    %1276 = vmatpush1.msra.mxu0 0.0
    %1277 = vmatprep.subr.mxu0 0.0
    %1278 = vmatpush1.msra.mxu0 0.0
    %1279 = vmatprep.subr.mxu0 0.0
    %1280 = vmatpush1.msra.mxu0 0.0
    %1281 = vmatprep.subr.mxu0 0.0
    %1282 = vmatpush1.msra.mxu0 0.0
    %1283 = vmatprep.subr.mxu0 0.0
    %1284 = vmatpush1.msra.mxu0 0.0
    %1285 = vmatprep.subr.mxu0 0.0
    %1286 = vmatpush1.msra.mxu0 0.0
    %1287 = vmatprep.subr.mxu0 0.0
    %1288 = vmatpush1.msra.mxu0 %v1252
    %1289 = vmatprep.subr.mxu0 0.0
    %1290 = vmatpush2.msra.mxu0 0.0
    %1291 = vmatprep.subr.mxu0 0.0
    %1292 = vmatpush2.msra.mxu0 0.0
    %1293 = vmatprep.subr.mxu0 0.0
    %1294 = vmatpush2.msra.mxu0 0.0
    %1295 = vmatprep.subr.mxu0 0.0
    %1296 = vmatpush2.msra.mxu0 0.0
    %1297 = vmatprep.subr.mxu0 0.0
    %1298 = vmatpush2.msra.mxu0 0.0
    %1299 = vmatprep.subr.mxu0 0.0
    %1300 = vmatpush2.msra.mxu0 0.0
    %1301 = vmatprep.subr.mxu0 0.0
    %1302 = vmatpush2.msra.mxu0 0.0
    %1303 = vmatprep.subr.mxu0 0.0
    %1304 = vmatpush2.msra.mxu0 0.0
    %1305 = vmatprep.subr.mxu0 0.0
    %1306 = vmatpush2.msra.mxu0 0.0
    %1307 = vmatprep.subr.mxu0 0.0
    %1308 = vmatpush2.msra.mxu0 0.0
    %1309 = vmatprep.subr.mxu0 0.0
    %1310 = vmatpush2.msra.mxu0 0.0
    %1311 = vmatprep.subr.mxu0 0.0
    %1312 = vmatpush2.msra.mxu0 0.0
    %1313 = vmatprep.subr.mxu0 0.0
    %1314 = vmatpush2.msra.mxu0 0.0
    %1315 = vmatprep.subr.mxu0 0.0
    %1316 = vmatpush2.msra.mxu0 0.0
    %1317 = vmatprep.subr.mxu0 0.0
    %1318 = vmatpush2.msra.mxu0 0.0
    %1319 = vmatprep.subr.mxu0 0.0
    %1320 = vmatpush2.msra.mxu0 0.0
    %1321 = vmatprep.mubr.f32.mxu0 0.0
    %1322 = vmatmul.mubr.f32.gmra.mxu0 %v1255
    %v1323 = vpop.f32.mrf.mxu0
    %v1324 = vadd.f32 0.0, %v1323
    %v1325 = vpop.f32.mrf.mxu0
    %1326 = vdwg.mxu0
    %1327 = vrot.lane.b32.xlu0 %v241, 48
    %v1328 = vpop.permute.xlu0 %1327
    %v1331 = vsel %vm67, %v1250, 0
    %1333 = vmatprep.subr.mxu0 0.0
    %1334 = vmatpush1.msra.mxu0 0.0
    %1335 = vmatprep.subr.mxu0 0.0
    %1336 = vmatpush1.msra.mxu0 0.0
    %1337 = vmatprep.subr.mxu0 0.0
    %1338 = vmatpush1.msra.mxu0 0.0
    %1339 = vmatprep.subr.mxu0 0.0
    %1340 = vmatpush1.msra.mxu0 0.0
    %1341 = vmatprep.subr.mxu0 0.0
    %1342 = vmatpush1.msra.mxu0 0.0
    %1343 = vmatprep.subr.mxu0 0.0
    %1344 = vmatpush1.msra.mxu0 0.0
    %1345 = vmatprep.subr.mxu0 0.0
    %1346 = vmatpush1.msra.mxu0 0.0
    %1347 = vmatprep.subr.mxu0 0.0
    %1348 = vmatpush1.msra.mxu0 0.0
    %1349 = vmatprep.subr.mxu0 0.0
    %1350 = vmatpush1.msra.mxu0 0.0
    %1351 = vmatprep.subr.mxu0 0.0
    %1352 = vmatpush1.msra.mxu0 0.0
    %1353 = vmatprep.subr.mxu0 0.0
    %1354 = vmatpush1.msra.mxu0 0.0
    %1355 = vmatprep.subr.mxu0 0.0
    %1356 = vmatpush1.msra.mxu0 0.0
    %1357 = vmatprep.subr.mxu0 0.0
    %1358 = vmatpush1.msra.mxu0 0.0
    %1359 = vmatprep.subr.mxu0 0.0
    %1360 = vmatpush1.msra.mxu0 0.0
    %1361 = vmatprep.subr.mxu0 0.0
    %1362 = vmatpush1.msra.mxu0 0.0
    %1363 = vmatprep.subr.mxu0 0.0
    %1364 = vmatpush1.msra.mxu0 %v1328
    %1365 = vmatprep.subr.mxu0 0.0
    %1366 = vmatpush2.msra.mxu0 0.0
    %1367 = vmatprep.subr.mxu0 0.0
    %1368 = vmatpush2.msra.mxu0 0.0
    %1369 = vmatprep.subr.mxu0 0.0
    %1370 = vmatpush2.msra.mxu0 0.0
    %1371 = vmatprep.subr.mxu0 0.0
    %1372 = vmatpush2.msra.mxu0 0.0
    %1373 = vmatprep.subr.mxu0 0.0
    %1374 = vmatpush2.msra.mxu0 0.0
    %1375 = vmatprep.subr.mxu0 0.0
    %1376 = vmatpush2.msra.mxu0 0.0
    %1377 = vmatprep.subr.mxu0 0.0
    %1378 = vmatpush2.msra.mxu0 0.0
    %1379 = vmatprep.subr.mxu0 0.0
    %1380 = vmatpush2.msra.mxu0 0.0
    %1381 = vmatprep.subr.mxu0 0.0
    %1382 = vmatpush2.msra.mxu0 0.0
    %1383 = vmatprep.subr.mxu0 0.0
    %1384 = vmatpush2.msra.mxu0 0.0
    %1385 = vmatprep.subr.mxu0 0.0
    %1386 = vmatpush2.msra.mxu0 0.0
    %1387 = vmatprep.subr.mxu0 0.0
    %1388 = vmatpush2.msra.mxu0 0.0
    %1389 = vmatprep.subr.mxu0 0.0
    %1390 = vmatpush2.msra.mxu0 0.0
    %1391 = vmatprep.subr.mxu0 0.0
    %1392 = vmatpush2.msra.mxu0 0.0
    %1393 = vmatprep.subr.mxu0 0.0
    %1394 = vmatpush2.msra.mxu0 0.0
    %1395 = vmatprep.subr.mxu0 0.0
    %1396 = vmatpush2.msra.mxu0 0.0
    %1397 = vmatprep.mubr.f32.mxu0 0.0
    %1398 = vmatmul.mubr.f32.gmra.mxu0 %v1331
    %v1399 = vpop.f32.mrf.mxu0
    %v1400 = vadd.f32 0.0, %v1399
    %v1401 = vpop.f32.mrf.mxu0
    %1402 = vdwg.mxu0
    %s1403 = scalar_lea.vmem %s5, 16
    %v1404 = vld [vmem:[%s1403] sm:$0xff]
    %v1406 = vsel %vm67, %v1324, 0
    %v1409 = vsel %vm67, %v1400, 0
    %1411 = vmatprep.subr.mxu0 0.0
    %1412 = vmatpush1.msra.mxu0 0.0
    %1413 = vmatprep.subr.mxu0 0.0
    %1414 = vmatpush1.msra.mxu0 0.0
    %1415 = vmatprep.subr.mxu0 0.0
    %1416 = vmatpush1.msra.mxu0 0.0
    %1417 = vmatprep.subr.mxu0 0.0
    %1418 = vmatpush1.msra.mxu0 0.0
    %1419 = vmatprep.subr.mxu0 0.0
    %1420 = vmatpush1.msra.mxu0 0.0
    %1421 = vmatprep.subr.mxu0 0.0
    %1422 = vmatpush1.msra.mxu0 0.0
    %1423 = vmatprep.subr.mxu0 0.0
    %1424 = vmatpush1.msra.mxu0 0.0
    %1425 = vmatprep.subr.mxu0 0.0
    %1426 = vmatpush1.msra.mxu0 0.0
    %1427 = vmatprep.subr.mxu0 0.0
    %1428 = vmatpush1.msra.mxu0 0.0
    %1429 = vmatprep.subr.mxu0 0.0
    %1430 = vmatpush1.msra.mxu0 0.0
    %1431 = vmatprep.subr.mxu0 0.0
    %1432 = vmatpush1.msra.mxu0 0.0
    %1433 = vmatprep.subr.mxu0 0.0
    %1434 = vmatpush1.msra.mxu0 0.0
    %1435 = vmatprep.subr.mxu0 0.0
    %1436 = vmatpush1.msra.mxu0 0.0
    %1437 = vmatprep.subr.mxu0 0.0
    %1438 = vmatpush1.msra.mxu0 0.0
    %1439 = vmatprep.subr.mxu0 0.0
    %1440 = vmatpush1.msra.mxu0 0.0
    %1441 = vmatprep.subr.mxu0 0.0
    %1442 = vmatpush1.msra.mxu0 %v1404
    %1443 = vmatprep.subr.mxu0 0.0
    %1444 = vmatpush2.msra.mxu0 0.0
    %1445 = vmatprep.subr.mxu0 0.0
    %1446 = vmatpush2.msra.mxu0 0.0
    %1447 = vmatprep.subr.mxu0 0.0
    %1448 = vmatpush2.msra.mxu0 0.0
    %1449 = vmatprep.subr.mxu0 0.0
    %1450 = vmatpush2.msra.mxu0 0.0
    %1451 = vmatprep.subr.mxu0 0.0
    %1452 = vmatpush2.msra.mxu0 0.0
    %1453 = vmatprep.subr.mxu0 0.0
    %1454 = vmatpush2.msra.mxu0 0.0
    %1455 = vmatprep.subr.mxu0 0.0
    %1456 = vmatpush2.msra.mxu0 0.0
    %1457 = vmatprep.subr.mxu0 0.0
    %1458 = vmatpush2.msra.mxu0 0.0
    %1459 = vmatprep.subr.mxu0 0.0
    %1460 = vmatpush2.msra.mxu0 0.0
    %1461 = vmatprep.subr.mxu0 0.0
    %1462 = vmatpush2.msra.mxu0 0.0
    %1463 = vmatprep.subr.mxu0 0.0
    %1464 = vmatpush2.msra.mxu0 0.0
    %1465 = vmatprep.subr.mxu0 0.0
    %1466 = vmatpush2.msra.mxu0 0.0
    %1467 = vmatprep.subr.mxu0 0.0
    %1468 = vmatpush2.msra.mxu0 0.0
    %1469 = vmatprep.subr.mxu0 0.0
    %1470 = vmatpush2.msra.mxu0 0.0
    %1471 = vmatprep.subr.mxu0 0.0
    %1472 = vmatpush2.msra.mxu0 0.0
    %1473 = vmatprep.subr.mxu0 0.0
    %1474 = vmatpush2.msra.mxu0 0.0
    %1475 = vmatprep.mubr.f32.mxu0 0.0
    %1476 = vmatmul.mubr.f32.gmra.mxu0 %v1406
    %v1477 = vpop.f32.mrf.mxu0
    %v1478 = vadd.f32 0.0, %v1477
    %v1479 = vpop.f32.mrf.mxu0
    %1480 = vmatprep.mubr.f32.mxu0 0.0
    %1481 = vmatmul.mubr.f32.gmra.mxu0 %v1409
    %v1482 = vpop.f32.mrf.mxu0
    %v1483 = vadd.f32 0.0, %v1482
    %v1484 = vpop.f32.mrf.mxu0
    %1485 = vdwg.mxu0
    %v1486 = vadd.f32 %v1063, %v1478
    %v1487 = vadd.f32 %v1068, %v1483
    %1488 = vrot.lane.b32.xlu0 %v236, 104
    %v1489 = vpop.permute.xlu0 %1488
    %1490 = vrot.lane.b32.xlu0 %v236, 72
    %v1491 = vpop.permute.xlu0 %1490
    %v1492 = vsel %vm67, %v1489, 0
    %v1494 = vsel %vm67, %v1491, 0
    %1496 = vmatprep.subr.mxu0 0.0
    %1497 = vmatpush1.xpose.msra.mxu0 0.0
    %1498 = vmatprep.subr.mxu0 0.0
    %1499 = vmatpush1.xpose.msra.mxu0 0.0
    %1500 = vmatprep.subr.mxu0 0.0
    %1501 = vmatpush1.xpose.msra.mxu0 0.0
    %1502 = vmatprep.subr.mxu0 0.0
    %1503 = vmatpush1.xpose.msra.mxu0 0.0
    %1504 = vmatprep.subr.mxu0 0.0
    %1505 = vmatpush1.xpose.msra.mxu0 0.0
    %1506 = vmatprep.subr.mxu0 0.0
    %1507 = vmatpush1.xpose.msra.mxu0 0.0
    %1508 = vmatprep.subr.mxu0 0.0
    %1509 = vmatpush1.xpose.msra.mxu0 0.0
    %1510 = vmatprep.subr.mxu0 0.0
    %1511 = vmatpush1.xpose.msra.mxu0 0.0
    %1512 = vmatprep.subr.mxu0 0.0
    %1513 = vmatpush1.xpose.msra.mxu0 0.0
    %1514 = vmatprep.subr.mxu0 0.0
    %1515 = vmatpush1.xpose.msra.mxu0 0.0
    %1516 = vmatprep.subr.mxu0 0.0
    %1517 = vmatpush1.xpose.msra.mxu0 0.0
    %1518 = vmatprep.subr.mxu0 0.0
    %1519 = vmatpush1.xpose.msra.mxu0 0.0
    %1520 = vmatprep.subr.mxu0 0.0
    %1521 = vmatpush1.xpose.msra.mxu0 0.0
    %1522 = vmatprep.subr.mxu0 0.0
    %1523 = vmatpush1.xpose.msra.mxu0 0.0
    %1524 = vmatprep.subr.mxu0 0.0
    %1525 = vmatpush1.xpose.msra.mxu0 0.0
    %1526 = vmatprep.subr.mxu0 0.0
    %1527 = vmatpush1.xpose.msra.mxu0 %v1494
    %1528 = vmatprep.subr.mxu0 0.0
    %1529 = vmatpush2.xpose.msra.mxu0 0.0
    %1530 = vmatprep.subr.mxu0 0.0
    %1531 = vmatpush2.xpose.msra.mxu0 0.0
    %1532 = vmatprep.subr.mxu0 0.0
    %1533 = vmatpush2.xpose.msra.mxu0 0.0
    %1534 = vmatprep.subr.mxu0 0.0
    %1535 = vmatpush2.xpose.msra.mxu0 0.0
    %1536 = vmatprep.subr.mxu0 0.0
    %1537 = vmatpush2.xpose.msra.mxu0 0.0
    %1538 = vmatprep.subr.mxu0 0.0
    %1539 = vmatpush2.xpose.msra.mxu0 0.0
    %1540 = vmatprep.subr.mxu0 0.0
    %1541 = vmatpush2.xpose.msra.mxu0 0.0
    %1542 = vmatprep.subr.mxu0 0.0
    %1543 = vmatpush2.xpose.msra.mxu0 0.0
    %1544 = vmatprep.subr.mxu0 0.0
    %1545 = vmatpush2.xpose.msra.mxu0 0.0
    %1546 = vmatprep.subr.mxu0 0.0
    %1547 = vmatpush2.xpose.msra.mxu0 0.0
    %1548 = vmatprep.subr.mxu0 0.0
    %1549 = vmatpush2.xpose.msra.mxu0 0.0
    %1550 = vmatprep.subr.mxu0 0.0
    %1551 = vmatpush2.xpose.msra.mxu0 0.0
    %1552 = vmatprep.subr.mxu0 0.0
    %1553 = vmatpush2.xpose.msra.mxu0 0.0
    %1554 = vmatprep.subr.mxu0 0.0
    %1555 = vmatpush2.xpose.msra.mxu0 0.0
    %1556 = vmatprep.subr.mxu0 0.0
    %1557 = vmatpush2.xpose.msra.mxu0 0.0
    %1558 = vmatprep.subr.mxu0 0.0
    %1559 = vmatpush2.xpose.msra.mxu0 0.0
    %1560 = vmatprep.mubr.f32.mxu0 0.0
    %1561 = vmatmul.mubr.f32.gmra.mxu0 %v1492
    %v1562 = vpop.f32.mrf.mxu0
    %v1563 = vadd.f32 0.0, %v1562
    %v1564 = vpop.f32.mrf.mxu0
    %1565 = vdwg.mxu0
    %1566 = vrot.lane.b32.xlu0 %v241, 104
    %v1567 = vpop.permute.xlu0 %1566
    %1568 = vrot.lane.b32.xlu0 %v241, 72
    %v1569 = vpop.permute.xlu0 %1568
    %v1570 = vsel %vm67, %v1567, 0
    %v1572 = vsel %vm67, %v1569, 0
    %1574 = vmatprep.subr.mxu0 0.0
    %1575 = vmatpush1.xpose.msra.mxu0 0.0
    %1576 = vmatprep.subr.mxu0 0.0
    %1577 = vmatpush1.xpose.msra.mxu0 0.0
    %1578 = vmatprep.subr.mxu0 0.0
    %1579 = vmatpush1.xpose.msra.mxu0 0.0
    %1580 = vmatprep.subr.mxu0 0.0
    %1581 = vmatpush1.xpose.msra.mxu0 0.0
    %1582 = vmatprep.subr.mxu0 0.0
    %1583 = vmatpush1.xpose.msra.mxu0 0.0
    %1584 = vmatprep.subr.mxu0 0.0
    %1585 = vmatpush1.xpose.msra.mxu0 0.0
    %1586 = vmatprep.subr.mxu0 0.0
    %1587 = vmatpush1.xpose.msra.mxu0 0.0
    %1588 = vmatprep.subr.mxu0 0.0
    %1589 = vmatpush1.xpose.msra.mxu0 0.0
    %1590 = vmatprep.subr.mxu0 0.0
    %1591 = vmatpush1.xpose.msra.mxu0 0.0
    %1592 = vmatprep.subr.mxu0 0.0
    %1593 = vmatpush1.xpose.msra.mxu0 0.0
    %1594 = vmatprep.subr.mxu0 0.0
    %1595 = vmatpush1.xpose.msra.mxu0 0.0
    %1596 = vmatprep.subr.mxu0 0.0
    %1597 = vmatpush1.xpose.msra.mxu0 0.0
    %1598 = vmatprep.subr.mxu0 0.0
    %1599 = vmatpush1.xpose.msra.mxu0 0.0
    %1600 = vmatprep.subr.mxu0 0.0
    %1601 = vmatpush1.xpose.msra.mxu0 0.0
    %1602 = vmatprep.subr.mxu0 0.0
    %1603 = vmatpush1.xpose.msra.mxu0 0.0
    %1604 = vmatprep.subr.mxu0 0.0
    %1605 = vmatpush1.xpose.msra.mxu0 %v1572
    %1606 = vmatprep.subr.mxu0 0.0
    %1607 = vmatpush2.xpose.msra.mxu0 0.0
    %1608 = vmatprep.subr.mxu0 0.0
    %1609 = vmatpush2.xpose.msra.mxu0 0.0
    %1610 = vmatprep.subr.mxu0 0.0
    %1611 = vmatpush2.xpose.msra.mxu0 0.0
    %1612 = vmatprep.subr.mxu0 0.0
    %1613 = vmatpush2.xpose.msra.mxu0 0.0
    %1614 = vmatprep.subr.mxu0 0.0
    %1615 = vmatpush2.xpose.msra.mxu0 0.0
    %1616 = vmatprep.subr.mxu0 0.0
    %1617 = vmatpush2.xpose.msra.mxu0 0.0
    %1618 = vmatprep.subr.mxu0 0.0
    %1619 = vmatpush2.xpose.msra.mxu0 0.0
    %1620 = vmatprep.subr.mxu0 0.0
    %1621 = vmatpush2.xpose.msra.mxu0 0.0
    %1622 = vmatprep.subr.mxu0 0.0
    %1623 = vmatpush2.xpose.msra.mxu0 0.0
    %1624 = vmatprep.subr.mxu0 0.0
    %1625 = vmatpush2.xpose.msra.mxu0 0.0
    %1626 = vmatprep.subr.mxu0 0.0
    %1627 = vmatpush2.xpose.msra.mxu0 0.0
    %1628 = vmatprep.subr.mxu0 0.0
    %1629 = vmatpush2.xpose.msra.mxu0 0.0
    %1630 = vmatprep.subr.mxu0 0.0
    %1631 = vmatpush2.xpose.msra.mxu0 0.0
    %1632 = vmatprep.subr.mxu0 0.0
    %1633 = vmatpush2.xpose.msra.mxu0 0.0
    %1634 = vmatprep.subr.mxu0 0.0
    %1635 = vmatpush2.xpose.msra.mxu0 0.0
    %1636 = vmatprep.subr.mxu0 0.0
    %1637 = vmatpush2.xpose.msra.mxu0 0.0
    %1638 = vmatprep.mubr.f32.mxu0 0.0
    %1639 = vmatmul.mubr.f32.gmra.mxu0 %v1570
    %v1640 = vpop.f32.mrf.mxu0
    %v1641 = vadd.f32 0.0, %v1640
    %v1642 = vpop.f32.mrf.mxu0
    %1643 = vdwg.mxu0
    %v1644 = vmul.f32 %v1563, 0.35355338
    %v1645 = vmul.f32 %v1641, 0.35355338
    %v1646 = vsel %vm67, %v1644, -inf
    %1647 = vmax.xlane.f32.xlu0 %v1646
    %v1648 = vpop.xlane.xlu0 %1647
    %v1649 = vsel %vm67, %v1645, -inf
    %1650 = vmax.xlane.f32.xlu0 %v1649
    %v1651 = vpop.xlane.xlu0 %1650
    %v1652 = vsub.f32 %v1644, %v1648
    %v1653 = vsub.f32 %v1645, %v1651
    %v1654 = vmul.f32 %v1652, 1.442695
    %v1655 = vpow.pop %v1654
    %v1656 = vmul.f32 %v1653, 1.442695
    %v1657 = vpow.pop %v1656
    %v1658 = vsel %vm67, %v1655, 0.0
    %1659 = vadd.xlane.f32.xlu0 %v1658
    %v1660 = vpop.xlane.xlu0 %1659
    %v1661 = vsel %vm67, %v1657, 0.0
    %1662 = vadd.xlane.f32.xlu0 %v1661
    %v1663 = vpop.xlane.xlu0 %1662
    %v1664 = vrcp.pop %v1660
    %v1665 = vrcp.pop %v1663
    %v1666 = vmul.f32 %v1655, %v1664
    %v1667 = vmul.f32 %v1657, %v1665
    %1668 = vrot.lane.b32.xlu0 %v236, 40
    %v1669 = vpop.permute.xlu0 %1668
    %v1672 = vsel %vm67, %v1666, 0
    %1674 = vmatprep.subr.mxu0 0.0
    %1675 = vmatpush1.msra.mxu0 0.0
    %1676 = vmatprep.subr.mxu0 0.0
    %1677 = vmatpush1.msra.mxu0 0.0
    %1678 = vmatprep.subr.mxu0 0.0
    %1679 = vmatpush1.msra.mxu0 0.0
    %1680 = vmatprep.subr.mxu0 0.0
    %1681 = vmatpush1.msra.mxu0 0.0
    %1682 = vmatprep.subr.mxu0 0.0
    %1683 = vmatpush1.msra.mxu0 0.0
    %1684 = vmatprep.subr.mxu0 0.0
    %1685 = vmatpush1.msra.mxu0 0.0
    %1686 = vmatprep.subr.mxu0 0.0
    %1687 = vmatpush1.msra.mxu0 0.0
    %1688 = vmatprep.subr.mxu0 0.0
    %1689 = vmatpush1.msra.mxu0 0.0
    %1690 = vmatprep.subr.mxu0 0.0
    %1691 = vmatpush1.msra.mxu0 0.0
    %1692 = vmatprep.subr.mxu0 0.0
    %1693 = vmatpush1.msra.mxu0 0.0
    %1694 = vmatprep.subr.mxu0 0.0
    %1695 = vmatpush1.msra.mxu0 0.0
    %1696 = vmatprep.subr.mxu0 0.0
    %1697 = vmatpush1.msra.mxu0 0.0
    %1698 = vmatprep.subr.mxu0 0.0
    %1699 = vmatpush1.msra.mxu0 0.0
    %1700 = vmatprep.subr.mxu0 0.0
    %1701 = vmatpush1.msra.mxu0 0.0
    %1702 = vmatprep.subr.mxu0 0.0
    %1703 = vmatpush1.msra.mxu0 0.0
    %1704 = vmatprep.subr.mxu0 0.0
    %1705 = vmatpush1.msra.mxu0 %v1669
    %1706 = vmatprep.subr.mxu0 0.0
    %1707 = vmatpush2.msra.mxu0 0.0
    %1708 = vmatprep.subr.mxu0 0.0
    %1709 = vmatpush2.msra.mxu0 0.0
    %1710 = vmatprep.subr.mxu0 0.0
    %1711 = vmatpush2.msra.mxu0 0.0
    %1712 = vmatprep.subr.mxu0 0.0
    %1713 = vmatpush2.msra.mxu0 0.0
    %1714 = vmatprep.subr.mxu0 0.0
    %1715 = vmatpush2.msra.mxu0 0.0
    %1716 = vmatprep.subr.mxu0 0.0
    %1717 = vmatpush2.msra.mxu0 0.0
    %1718 = vmatprep.subr.mxu0 0.0
    %1719 = vmatpush2.msra.mxu0 0.0
    %1720 = vmatprep.subr.mxu0 0.0
    %1721 = vmatpush2.msra.mxu0 0.0
    %1722 = vmatprep.subr.mxu0 0.0
    %1723 = vmatpush2.msra.mxu0 0.0
    %1724 = vmatprep.subr.mxu0 0.0
    %1725 = vmatpush2.msra.mxu0 0.0
    %1726 = vmatprep.subr.mxu0 0.0
    %1727 = vmatpush2.msra.mxu0 0.0
    %1728 = vmatprep.subr.mxu0 0.0
    %1729 = vmatpush2.msra.mxu0 0.0
    %1730 = vmatprep.subr.mxu0 0.0
    %1731 = vmatpush2.msra.mxu0 0.0
    %1732 = vmatprep.subr.mxu0 0.0
    %1733 = vmatpush2.msra.mxu0 0.0
    %1734 = vmatprep.subr.mxu0 0.0
    %1735 = vmatpush2.msra.mxu0 0.0
    %1736 = vmatprep.subr.mxu0 0.0
    %1737 = vmatpush2.msra.mxu0 0.0
    %1738 = vmatprep.mubr.f32.mxu0 0.0
    %1739 = vmatmul.mubr.f32.gmra.mxu0 %v1672
    %v1740 = vpop.f32.mrf.mxu0
    %v1741 = vadd.f32 0.0, %v1740
    %v1742 = vpop.f32.mrf.mxu0
    %1743 = vdwg.mxu0
    %1744 = vrot.lane.b32.xlu0 %v241, 40
    %v1745 = vpop.permute.xlu0 %1744
    %v1748 = vsel %vm67, %v1667, 0
    %1750 = vmatprep.subr.mxu0 0.0
    %1751 = vmatpush1.msra.mxu0 0.0
    %1752 = vmatprep.subr.mxu0 0.0
    %1753 = vmatpush1.msra.mxu0 0.0
    %1754 = vmatprep.subr.mxu0 0.0
    %1755 = vmatpush1.msra.mxu0 0.0
    %1756 = vmatprep.subr.mxu0 0.0
    %1757 = vmatpush1.msra.mxu0 0.0
    %1758 = vmatprep.subr.mxu0 0.0
    %1759 = vmatpush1.msra.mxu0 0.0
    %1760 = vmatprep.subr.mxu0 0.0
    %1761 = vmatpush1.msra.mxu0 0.0
    %1762 = vmatprep.subr.mxu0 0.0
    %1763 = vmatpush1.msra.mxu0 0.0
    %1764 = vmatprep.subr.mxu0 0.0
    %1765 = vmatpush1.msra.mxu0 0.0
    %1766 = vmatprep.subr.mxu0 0.0
    %1767 = vmatpush1.msra.mxu0 0.0
    %1768 = vmatprep.subr.mxu0 0.0
    %1769 = vmatpush1.msra.mxu0 0.0
    %1770 = vmatprep.subr.mxu0 0.0
    %1771 = vmatpush1.msra.mxu0 0.0
    %1772 = vmatprep.subr.mxu0 0.0
    %1773 = vmatpush1.msra.mxu0 0.0
    %1774 = vmatprep.subr.mxu0 0.0
    %1775 = vmatpush1.msra.mxu0 0.0
    %1776 = vmatprep.subr.mxu0 0.0
    %1777 = vmatpush1.msra.mxu0 0.0
    %1778 = vmatprep.subr.mxu0 0.0
    %1779 = vmatpush1.msra.mxu0 0.0
    %1780 = vmatprep.subr.mxu0 0.0
    %1781 = vmatpush1.msra.mxu0 %v1745
    %1782 = vmatprep.subr.mxu0 0.0
    %1783 = vmatpush2.msra.mxu0 0.0
    %1784 = vmatprep.subr.mxu0 0.0
    %1785 = vmatpush2.msra.mxu0 0.0
    %1786 = vmatprep.subr.mxu0 0.0
    %1787 = vmatpush2.msra.mxu0 0.0
    %1788 = vmatprep.subr.mxu0 0.0
    %1789 = vmatpush2.msra.mxu0 0.0
    %1790 = vmatprep.subr.mxu0 0.0
    %1791 = vmatpush2.msra.mxu0 0.0
    %1792 = vmatprep.subr.mxu0 0.0
    %1793 = vmatpush2.msra.mxu0 0.0
    %1794 = vmatprep.subr.mxu0 0.0
    %1795 = vmatpush2.msra.mxu0 0.0
    %1796 = vmatprep.subr.mxu0 0.0
    %1797 = vmatpush2.msra.mxu0 0.0
    %1798 = vmatprep.subr.mxu0 0.0
    %1799 = vmatpush2.msra.mxu0 0.0
    %1800 = vmatprep.subr.mxu0 0.0
    %1801 = vmatpush2.msra.mxu0 0.0
    %1802 = vmatprep.subr.mxu0 0.0
    %1803 = vmatpush2.msra.mxu0 0.0
    %1804 = vmatprep.subr.mxu0 0.0
    %1805 = vmatpush2.msra.mxu0 0.0
    %1806 = vmatprep.subr.mxu0 0.0
    %1807 = vmatpush2.msra.mxu0 0.0
    %1808 = vmatprep.subr.mxu0 0.0
    %1809 = vmatpush2.msra.mxu0 0.0
    %1810 = vmatprep.subr.mxu0 0.0
    %1811 = vmatpush2.msra.mxu0 0.0
    %1812 = vmatprep.subr.mxu0 0.0
    %1813 = vmatpush2.msra.mxu0 0.0
    %1814 = vmatprep.mubr.f32.mxu0 0.0
    %1815 = vmatmul.mubr.f32.gmra.mxu0 %v1748
    %v1816 = vpop.f32.mrf.mxu0
    %v1817 = vadd.f32 0.0, %v1816
    %v1818 = vpop.f32.mrf.mxu0
    %1819 = vdwg.mxu0
    %s1820 = scalar_lea.vmem %s5, 24
    %v1821 = vld [vmem:[%s1820] sm:$0xff]
    %v1823 = vsel %vm67, %v1741, 0
    %v1826 = vsel %vm67, %v1817, 0
    %1828 = vmatprep.subr.mxu0 0.0
    %1829 = vmatpush1.msra.mxu0 0.0
    %1830 = vmatprep.subr.mxu0 0.0
    %1831 = vmatpush1.msra.mxu0 0.0
    %1832 = vmatprep.subr.mxu0 0.0
    %1833 = vmatpush1.msra.mxu0 0.0
    %1834 = vmatprep.subr.mxu0 0.0
    %1835 = vmatpush1.msra.mxu0 0.0
    %1836 = vmatprep.subr.mxu0 0.0
    %1837 = vmatpush1.msra.mxu0 0.0
    %1838 = vmatprep.subr.mxu0 0.0
    %1839 = vmatpush1.msra.mxu0 0.0
    %1840 = vmatprep.subr.mxu0 0.0
    %1841 = vmatpush1.msra.mxu0 0.0
    %1842 = vmatprep.subr.mxu0 0.0
    %1843 = vmatpush1.msra.mxu0 0.0
    %1844 = vmatprep.subr.mxu0 0.0
    %1845 = vmatpush1.msra.mxu0 0.0
    %1846 = vmatprep.subr.mxu0 0.0
    %1847 = vmatpush1.msra.mxu0 0.0
    %1848 = vmatprep.subr.mxu0 0.0
    %1849 = vmatpush1.msra.mxu0 0.0
    %1850 = vmatprep.subr.mxu0 0.0
    %1851 = vmatpush1.msra.mxu0 0.0
    %1852 = vmatprep.subr.mxu0 0.0
    %1853 = vmatpush1.msra.mxu0 0.0
    %1854 = vmatprep.subr.mxu0 0.0
    %1855 = vmatpush1.msra.mxu0 0.0
    %1856 = vmatprep.subr.mxu0 0.0
    %1857 = vmatpush1.msra.mxu0 0.0
    %1858 = vmatprep.subr.mxu0 0.0
    %1859 = vmatpush1.msra.mxu0 %v1821
    %1860 = vmatprep.subr.mxu0 0.0
    %1861 = vmatpush2.msra.mxu0 0.0
    %1862 = vmatprep.subr.mxu0 0.0
    %1863 = vmatpush2.msra.mxu0 0.0
    %1864 = vmatprep.subr.mxu0 0.0
    %1865 = vmatpush2.msra.mxu0 0.0
    %1866 = vmatprep.subr.mxu0 0.0
    %1867 = vmatpush2.msra.mxu0 0.0
    %1868 = vmatprep.subr.mxu0 0.0
    %1869 = vmatpush2.msra.mxu0 0.0
    %1870 = vmatprep.subr.mxu0 0.0
    %1871 = vmatpush2.msra.mxu0 0.0
    %1872 = vmatprep.subr.mxu0 0.0
    %1873 = vmatpush2.msra.mxu0 0.0
    %1874 = vmatprep.subr.mxu0 0.0
    %1875 = vmatpush2.msra.mxu0 0.0
    %1876 = vmatprep.subr.mxu0 0.0
    %1877 = vmatpush2.msra.mxu0 0.0
    %1878 = vmatprep.subr.mxu0 0.0
    %1879 = vmatpush2.msra.mxu0 0.0
    %1880 = vmatprep.subr.mxu0 0.0
    %1881 = vmatpush2.msra.mxu0 0.0
    %1882 = vmatprep.subr.mxu0 0.0
    %1883 = vmatpush2.msra.mxu0 0.0
    %1884 = vmatprep.subr.mxu0 0.0
    %1885 = vmatpush2.msra.mxu0 0.0
    %1886 = vmatprep.subr.mxu0 0.0
    %1887 = vmatpush2.msra.mxu0 0.0
    %1888 = vmatprep.subr.mxu0 0.0
    %1889 = vmatpush2.msra.mxu0 0.0
    %1890 = vmatprep.subr.mxu0 0.0
    %1891 = vmatpush2.msra.mxu0 0.0
    %1892 = vmatprep.mubr.f32.mxu0 0.0
    %1893 = vmatmul.mubr.f32.gmra.mxu0 %v1823
    %v1894 = vpop.f32.mrf.mxu0
    %v1895 = vadd.f32 0.0, %v1894
    %v1896 = vpop.f32.mrf.mxu0
    %1897 = vmatprep.mubr.f32.mxu0 0.0
    %1898 = vmatmul.mubr.f32.gmra.mxu0 %v1826
    %v1899 = vpop.f32.mrf.mxu0
    %v1900 = vadd.f32 0.0, %v1899
    %v1901 = vpop.f32.mrf.mxu0
    %1902 = vdwg.mxu0
    %v1903 = vadd.f32 %v1486, %v1895
    %v1904 = vadd.f32 %v1487, %v1900
    %v1905 = vld [vmem:[%s6] sm:$0x1]
    %v1907 = vlaneseq
    %v1908 = vshrl.u32 %v1907, 7
    %v1909 = vsub.s32 0, %v1908
    %v1910 = vrot.slane %v1905, %v1909
    %v1912 = vadd.f32 %v1903, %v1910
    %v1913 = vadd.f32 %v1904, %v1910
    %v1914 = vadd.f32 %v149, %v1912
    %v1915 = vadd.f32 %v150, %v1913
    %v1916 = vld [vmem:[%s11] sm:$0x1]
    %v1917 = vld [vmem:[%s12] sm:$0x1]
    %v1918 = vsel %vm162, %v1914, 0.0
    %1919 = vadd.xlane.f32.xlu0 %v1918
    %v1920 = vpop.xlane.xlu0 %1919
    %v1921 = vsel %vm162, %v1915, 0.0
    %1922 = vadd.xlane.f32.xlu0 %v1921
    %v1923 = vpop.xlane.xlu0 %1922
    %v1924 = vrcp.pop 32.0
    %v1925 = vmul.f32 %v1920, %v1924
    %v1926 = vmul.f32 %v1923, %v1924
    %v1927 = vsub.f32 %v1914, %v1925
    %v1928 = vsub.f32 %v1915, %v1926
    %v1929 = vmul.f32 %v1927, %v1927
    %v1930 = vmul.f32 %v1928, %v1928
    %v1931 = vsel %vm162, %v1929, 0.0
    %1932 = vadd.xlane.f32.xlu0 %v1931
    %v1933 = vpop.xlane.xlu0 %1932
    %v1934 = vsel %vm162, %v1930, 0.0
    %1935 = vadd.xlane.f32.xlu0 %v1934
    %v1936 = vpop.xlane.xlu0 %1935
    %v1937 = vmul.f32 %v1933, %v1924
    %v1938 = vmul.f32 %v1936, %v1924
    %v1939 = vadd.f32 %v1937, 1e-05
    %v1940 = vadd.f32 %v1938, 1e-05
    %v1941 = vrsqrt.pop %v1939
    %v1942 = vrsqrt.pop %v1940
    %v1943 = vmul.f32 %v1927, %v1941
    %v1944 = vmul.f32 %v1928, %v1942
    %v1946 = vlaneseq
    %v1947 = vshrl.u32 %v1946, 7
    %v1948 = vsub.s32 0, %v1947
    %v1949 = vrot.slane %v1916, %v1948
    %v1951 = vmul.f32 %v1943, %v1949
    %v1952 = vmul.f32 %v1944, %v1949
    %v1954 = vlaneseq
    %v1955 = vshrl.u32 %v1954, 7
    %v1956 = vsub.s32 0, %v1955
    %v1957 = vrot.slane %v1917, %v1956
    %v1959 = vadd.f32 %v1951, %v1957
    %v1960 = vadd.f32 %v1952, %v1957
    %v1961 = vld [vmem:[%s7] sm:$0xff]
    %v1962 = vld [vmem:[%s7 + $0x8] sm:$0xff]
    %v1963 = vld [vmem:[%s7 + $0x10] sm:$0xff]
    %v1964 = vld [vmem:[%s7 + $0x18] sm:$0xff]
    %v1965 = vld [vmem:[%s7 + $0x20] sm:$0xff]
    %v1966 = vld [vmem:[%s7 + $0x28] sm:$0xff]
    %v1967 = vld [vmem:[%s7 + $0x30] sm:$0xff]
    %v1968 = vld [vmem:[%s7 + $0x38] sm:$0xff]
    %v1969 = vld [vmem:[%s7 + $0x40] sm:$0xff]
    %v1970 = vld [vmem:[%s7 + $0x48] sm:$0xff]
    %v1971 = vld [vmem:[%s7 + $0x50] sm:$0xff]
    %v1972 = vld [vmem:[%s7 + $0x58] sm:$0xff]
    %v1973 = vld [vmem:[%s7 + $0x60] sm:$0xff]
    %v1974 = vld [vmem:[%s7 + $0x68] sm:$0xff]
    %v1975 = vld [vmem:[%s7 + $0x70] sm:$0xff]
    %v1976 = vld [vmem:[%s7 + $0x78] sm:$0xff]
    %v1977 = vld [vmem:[%s7 + $0x80] sm:$0xff]
    %v1978 = vld [vmem:[%s7 + $0x88] sm:$0xff]
    %v1979 = vld [vmem:[%s7 + $0x90] sm:$0xff]
    %v1980 = vld [vmem:[%s7 + $0x98] sm:$0xff]
    %v1981 = vld [vmem:[%s7 + $0xa0] sm:$0xff]
    %v1982 = vld [vmem:[%s7 + $0xa8] sm:$0xff]
    %v1983 = vld [vmem:[%s7 + $0xb0] sm:$0xff]
    %v1984 = vld [vmem:[%s7 + $0xb8] sm:$0xff]
    %v1985 = vld [vmem:[%s7 + $0xc0] sm:$0xff]
    %v1986 = vld [vmem:[%s7 + $0xc8] sm:$0xff]
    %v1987 = vld [vmem:[%s7 + $0xd0] sm:$0xff]
    %v1988 = vld [vmem:[%s7 + $0xd8] sm:$0xff]
    %v1989 = vld [vmem:[%s7 + $0xe0] sm:$0xff]
    %v1990 = vld [vmem:[%s7 + $0xe8] sm:$0xff]
    %v1991 = vld [vmem:[%s7 + $0xf0] sm:$0xff]
    %v1992 = vld [vmem:[%s7 + $0xf8] sm:$0xff]
    %v1993 = vld [vmem:[%s7 + $0x100] sm:$0xff]
    %v1994 = vld [vmem:[%s7 + $0x108] sm:$0xff]
    %v1995 = vld [vmem:[%s7 + $0x110] sm:$0xff]
    %v1996 = vld [vmem:[%s7 + $0x118] sm:$0xff]
    %v1997 = vld [vmem:[%s7 + $0x120] sm:$0xff]
    %v1998 = vld [vmem:[%s7 + $0x128] sm:$0xff]
    %v1999 = vld [vmem:[%s7 + $0x130] sm:$0xff]
    %v2000 = vld [vmem:[%s7 + $0x138] sm:$0xff]
    %v2001 = vld [vmem:[%s7 + $0x140] sm:$0xff]
    %v2002 = vld [vmem:[%s7 + $0x148] sm:$0xff]
    %v2003 = vld [vmem:[%s7 + $0x150] sm:$0xff]
    %v2004 = vld [vmem:[%s7 + $0x158] sm:$0xff]
    %v2005 = vld [vmem:[%s7 + $0x160] sm:$0xff]
    %v2006 = vld [vmem:[%s7 + $0x168] sm:$0xff]
    %v2007 = vld [vmem:[%s7 + $0x170] sm:$0xff]
    %v2008 = vld [vmem:[%s7 + $0x178] sm:$0xff]
    %v2009 = vld [vmem:[%s7 + $0x180] sm:$0xff]
    %v2010 = vld [vmem:[%s7 + $0x188] sm:$0xff]
    %v2011 = vld [vmem:[%s7 + $0x190] sm:$0xff]
    %v2012 = vld [vmem:[%s7 + $0x198] sm:$0xff]
    %v2013 = vld [vmem:[%s7 + $0x1a0] sm:$0xff]
    %v2014 = vld [vmem:[%s7 + $0x1a8] sm:$0xff]
    %v2015 = vld [vmem:[%s7 + $0x1b0] sm:$0xff]
    %v2016 = vld [vmem:[%s7 + $0x1b8] sm:$0xff]
    %v2017 = vld [vmem:[%s7 + $0x1c0] sm:$0xff]
    %v2018 = vld [vmem:[%s7 + $0x1c8] sm:$0xff]
    %v2019 = vld [vmem:[%s7 + $0x1d0] sm:$0xff]
    %v2020 = vld [vmem:[%s7 + $0x1d8] sm:$0xff]
    %v2021 = vld [vmem:[%s7 + $0x1e0] sm:$0xff]
    %v2022 = vld [vmem:[%s7 + $0x1e8] sm:$0xff]
    %v2023 = vld [vmem:[%s7 + $0x1f0] sm:$0xff]
    %v2024 = vld [vmem:[%s7 + $0x1f8] sm:$0xff]
    %v2025 = vld [vmem:[%s8] sm:$0xff]
    %v2026 = vld [vmem:[%s8 + $0x8] sm:$0xff]
    %v2029 = vlaneseq
    %v2030 = vshrl.u32 %v2029, 7
    %v2031 = vsub.s32 0, %v2030
    %v2032 = vrot.slane %v2025, %v2031
    %v2033 = vlaneseq
    %v2034 = vshrl.u32 %v2033, 7
    %v2035 = vsub.s32 1, %v2034
    %v2036 = vrot.slane %v2025, %v2035
    %v2037 = vlaneseq
    %v2038 = vshrl.u32 %v2037, 7
    %v2039 = vsub.s32 2, %v2038
    %v2040 = vrot.slane %v2025, %v2039
    %v2041 = vlaneseq
    %v2042 = vshrl.u32 %v2041, 7
    %v2043 = vsub.s32 3, %v2042
    %v2044 = vrot.slane %v2025, %v2043
    %v2045 = vlaneseq
    %v2046 = vshrl.u32 %v2045, 7
    %v2047 = vsub.s32 4, %v2046
    %v2048 = vrot.slane %v2025, %v2047
    %v2049 = vlaneseq
    %v2050 = vshrl.u32 %v2049, 7
    %v2051 = vsub.s32 5, %v2050
    %v2052 = vrot.slane %v2025, %v2051
    %v2053 = vlaneseq
    %v2054 = vshrl.u32 %v2053, 7
    %v2055 = vsub.s32 6, %v2054
    %v2056 = vrot.slane %v2025, %v2055
    %v2057 = vlaneseq
    %v2058 = vshrl.u32 %v2057, 7
    %v2059 = vsub.s32 7, %v2058
    %v2060 = vrot.slane %v2025, %v2059
    %v2061 = vlaneseq
    %v2062 = vshrl.u32 %v2061, 7
    %v2063 = vsub.s32 0, %v2062
    %v2064 = vrot.slane %v2026, %v2063
    %v2065 = vlaneseq
    %v2066 = vshrl.u32 %v2065, 7
    %v2067 = vsub.s32 1, %v2066
    %v2068 = vrot.slane %v2026, %v2067
    %v2069 = vlaneseq
    %v2070 = vshrl.u32 %v2069, 7
    %v2071 = vsub.s32 2, %v2070
    %v2072 = vrot.slane %v2026, %v2071
    %v2073 = vlaneseq
    %v2074 = vshrl.u32 %v2073, 7
    %v2075 = vsub.s32 3, %v2074
    %v2076 = vrot.slane %v2026, %v2075
    %v2077 = vlaneseq
    %v2078 = vshrl.u32 %v2077, 7
    %v2079 = vsub.s32 4, %v2078
    %v2080 = vrot.slane %v2026, %v2079
    %v2081 = vlaneseq
    %v2082 = vshrl.u32 %v2081, 7
    %v2083 = vsub.s32 5, %v2082
    %v2084 = vrot.slane %v2026, %v2083
    %v2085 = vlaneseq
    %v2086 = vshrl.u32 %v2085, 7
    %v2087 = vsub.s32 6, %v2086
    %v2088 = vrot.slane %v2026, %v2087
    %v2089 = vlaneseq
    %v2090 = vshrl.u32 %v2089, 7
    %v2091 = vsub.s32 7, %v2090
    %v2092 = vrot.slane %v2026, %v2091
    %v2110 = vsel %vm162, %v1959, 0
    %v2113 = vsel %vm162, %v1960, 0
    %2115 = vmatprep.subr.mxu0 0.0
    %2116 = vmatpush1.msra.mxu0 0.0
    %2117 = vmatprep.subr.mxu0 0.0
    %2118 = vmatpush1.msra.mxu0 0.0
    %2119 = vmatprep.subr.mxu0 0.0
    %2120 = vmatpush1.msra.mxu0 0.0
    %2121 = vmatprep.subr.mxu0 0.0
    %2122 = vmatpush1.msra.mxu0 0.0
    %2123 = vmatprep.subr.mxu0 0.0
    %2124 = vmatpush1.msra.mxu0 0.0
    %2125 = vmatprep.subr.mxu0 0.0
    %2126 = vmatpush1.msra.mxu0 0.0
    %2127 = vmatprep.subr.mxu0 0.0
    %2128 = vmatpush1.msra.mxu0 0.0
    %2129 = vmatprep.subr.mxu0 0.0
    %2130 = vmatpush1.msra.mxu0 0.0
    %2131 = vmatprep.subr.mxu0 0.0
    %2132 = vmatpush1.msra.mxu0 0.0
    %2133 = vmatprep.subr.mxu0 0.0
    %2134 = vmatpush1.msra.mxu0 0.0
    %2135 = vmatprep.subr.mxu0 0.0
    %2136 = vmatpush1.msra.mxu0 0.0
    %2137 = vmatprep.subr.mxu0 0.0
    %2138 = vmatpush1.msra.mxu0 0.0
    %2139 = vmatprep.subr.mxu0 %v2010
    %2140 = vmatpush1.msra.mxu0 %v2009
    %2141 = vmatprep.subr.mxu0 %v1994
    %2142 = vmatpush1.msra.mxu0 %v1993
    %2143 = vmatprep.subr.mxu0 %v1978
    %2144 = vmatpush1.msra.mxu0 %v1977
    %2145 = vmatprep.subr.mxu0 %v1962
    %2146 = vmatpush1.msra.mxu0 %v1961
    %2147 = vmatprep.subr.mxu0 0.0
    %2148 = vmatpush2.msra.mxu0 0.0
    %2149 = vmatprep.subr.mxu0 0.0
    %2150 = vmatpush2.msra.mxu0 0.0
    %2151 = vmatprep.subr.mxu0 0.0
    %2152 = vmatpush2.msra.mxu0 0.0
    %2153 = vmatprep.subr.mxu0 0.0
    %2154 = vmatpush2.msra.mxu0 0.0
    %2155 = vmatprep.subr.mxu0 0.0
    %2156 = vmatpush2.msra.mxu0 0.0
    %2157 = vmatprep.subr.mxu0 0.0
    %2158 = vmatpush2.msra.mxu0 0.0
    %2159 = vmatprep.subr.mxu0 0.0
    %2160 = vmatpush2.msra.mxu0 0.0
    %2161 = vmatprep.subr.mxu0 0.0
    %2162 = vmatpush2.msra.mxu0 0.0
    %2163 = vmatprep.subr.mxu0 0.0
    %2164 = vmatpush2.msra.mxu0 0.0
    %2165 = vmatprep.subr.mxu0 0.0
    %2166 = vmatpush2.msra.mxu0 0.0
    %2167 = vmatprep.subr.mxu0 0.0
    %2168 = vmatpush2.msra.mxu0 0.0
    %2169 = vmatprep.subr.mxu0 0.0
    %2170 = vmatpush2.msra.mxu0 0.0
    %2171 = vmatprep.subr.mxu0 0.0
    %2172 = vmatpush2.msra.mxu0 0.0
    %2173 = vmatprep.subr.mxu0 0.0
    %2174 = vmatpush2.msra.mxu0 0.0
    %2175 = vmatprep.subr.mxu0 0.0
    %2176 = vmatpush2.msra.mxu0 0.0
    %2177 = vmatprep.subr.mxu0 0.0
    %2178 = vmatpush2.msra.mxu0 0.0
    %2179 = vmatprep.mubr.f32.mxu0 0.0
    %2180 = vmatmul.mubr.f32.gmra.mxu0 %v2110
    %v2181 = vpop.f32.mrf.mxu0
    %v2182 = vadd.f32 %v2032, %v2181
    %v2183 = vpop.f32.mrf.mxu0
    %v2184 = vadd.f32 %v2036, %v2183
    %2185 = vmatprep.mubr.f32.mxu0 0.0
    %2186 = vmatmul.mubr.f32.gmra.mxu0 %v2113
    %v2187 = vpop.f32.mrf.mxu0
    %v2188 = vadd.f32 %v2032, %v2187
    %v2189 = vpop.f32.mrf.mxu0
    %v2190 = vadd.f32 %v2036, %v2189
    %2191 = vdwg.mxu0
    %2192 = vmatprep.subr.mxu0 0.0
    %2193 = vmatpush1.msra.mxu0 0.0
    %2194 = vmatprep.subr.mxu0 0.0
    %2195 = vmatpush1.msra.mxu0 0.0
    %2196 = vmatprep.subr.mxu0 0.0
    %2197 = vmatpush1.msra.mxu0 0.0
    %2198 = vmatprep.subr.mxu0 0.0
    %2199 = vmatpush1.msra.mxu0 0.0
    %2200 = vmatprep.subr.mxu0 0.0
    %2201 = vmatpush1.msra.mxu0 0.0
    %2202 = vmatprep.subr.mxu0 0.0
    %2203 = vmatpush1.msra.mxu0 0.0
    %2204 = vmatprep.subr.mxu0 0.0
    %2205 = vmatpush1.msra.mxu0 0.0
    %2206 = vmatprep.subr.mxu0 0.0
    %2207 = vmatpush1.msra.mxu0 0.0
    %2208 = vmatprep.subr.mxu0 0.0
    %2209 = vmatpush1.msra.mxu0 0.0
    %2210 = vmatprep.subr.mxu0 0.0
    %2211 = vmatpush1.msra.mxu0 0.0
    %2212 = vmatprep.subr.mxu0 0.0
    %2213 = vmatpush1.msra.mxu0 0.0
    %2214 = vmatprep.subr.mxu0 0.0
    %2215 = vmatpush1.msra.mxu0 0.0
    %2216 = vmatprep.subr.mxu0 %v2012
    %2217 = vmatpush1.msra.mxu0 %v2011
    %2218 = vmatprep.subr.mxu0 %v1996
    %2219 = vmatpush1.msra.mxu0 %v1995
    %2220 = vmatprep.subr.mxu0 %v1980
    %2221 = vmatpush1.msra.mxu0 %v1979
    %2222 = vmatprep.subr.mxu0 %v1964
    %2223 = vmatpush1.msra.mxu0 %v1963
    %2224 = vmatprep.subr.mxu0 0.0
    %2225 = vmatpush2.msra.mxu0 0.0
    %2226 = vmatprep.subr.mxu0 0.0
    %2227 = vmatpush2.msra.mxu0 0.0
    %2228 = vmatprep.subr.mxu0 0.0
    %2229 = vmatpush2.msra.mxu0 0.0
    %2230 = vmatprep.subr.mxu0 0.0
    %2231 = vmatpush2.msra.mxu0 0.0
    %2232 = vmatprep.subr.mxu0 0.0
    %2233 = vmatpush2.msra.mxu0 0.0
    %2234 = vmatprep.subr.mxu0 0.0
    %2235 = vmatpush2.msra.mxu0 0.0
    %2236 = vmatprep.subr.mxu0 0.0
    %2237 = vmatpush2.msra.mxu0 0.0
    %2238 = vmatprep.subr.mxu0 0.0
    %2239 = vmatpush2.msra.mxu0 0.0
    %2240 = vmatprep.subr.mxu0 0.0
    %2241 = vmatpush2.msra.mxu0 0.0
    %2242 = vmatprep.subr.mxu0 0.0
    %2243 = vmatpush2.msra.mxu0 0.0
    %2244 = vmatprep.subr.mxu0 0.0
    %2245 = vmatpush2.msra.mxu0 0.0
    %2246 = vmatprep.subr.mxu0 0.0
    %2247 = vmatpush2.msra.mxu0 0.0
    %2248 = vmatprep.subr.mxu0 0.0
    %2249 = vmatpush2.msra.mxu0 0.0
    %2250 = vmatprep.subr.mxu0 0.0
    %2251 = vmatpush2.msra.mxu0 0.0
    %2252 = vmatprep.subr.mxu0 0.0
    %2253 = vmatpush2.msra.mxu0 0.0
    %2254 = vmatprep.subr.mxu0 0.0
    %2255 = vmatpush2.msra.mxu0 0.0
    %2256 = vmatprep.mubr.f32.mxu0 0.0
    %2257 = vmatmul.mubr.f32.gmra.mxu0 %v2110
    %v2258 = vpop.f32.mrf.mxu0
    %v2259 = vadd.f32 %v2040, %v2258
    %v2260 = vpop.f32.mrf.mxu0
    %v2261 = vadd.f32 %v2044, %v2260
    %2262 = vmatprep.mubr.f32.mxu0 0.0
    %2263 = vmatmul.mubr.f32.gmra.mxu0 %v2113
    %v2264 = vpop.f32.mrf.mxu0
    %v2265 = vadd.f32 %v2040, %v2264
    %v2266 = vpop.f32.mrf.mxu0
    %v2267 = vadd.f32 %v2044, %v2266
    %2268 = vdwg.mxu0
    %2269 = vmatprep.subr.mxu0 0.0
    %2270 = vmatpush1.msra.mxu0 0.0
    %2271 = vmatprep.subr.mxu0 0.0
    %2272 = vmatpush1.msra.mxu0 0.0
    %2273 = vmatprep.subr.mxu0 0.0
    %2274 = vmatpush1.msra.mxu0 0.0
    %2275 = vmatprep.subr.mxu0 0.0
    %2276 = vmatpush1.msra.mxu0 0.0
    %2277 = vmatprep.subr.mxu0 0.0
    %2278 = vmatpush1.msra.mxu0 0.0
    %2279 = vmatprep.subr.mxu0 0.0
    %2280 = vmatpush1.msra.mxu0 0.0
    %2281 = vmatprep.subr.mxu0 0.0
    %2282 = vmatpush1.msra.mxu0 0.0
    %2283 = vmatprep.subr.mxu0 0.0
    %2284 = vmatpush1.msra.mxu0 0.0
    %2285 = vmatprep.subr.mxu0 0.0
    %2286 = vmatpush1.msra.mxu0 0.0
    %2287 = vmatprep.subr.mxu0 0.0
    %2288 = vmatpush1.msra.mxu0 0.0
    %2289 = vmatprep.subr.mxu0 0.0
    %2290 = vmatpush1.msra.mxu0 0.0
    %2291 = vmatprep.subr.mxu0 0.0
    %2292 = vmatpush1.msra.mxu0 0.0
    %2293 = vmatprep.subr.mxu0 %v2014
    %2294 = vmatpush1.msra.mxu0 %v2013
    %2295 = vmatprep.subr.mxu0 %v1998
    %2296 = vmatpush1.msra.mxu0 %v1997
    %2297 = vmatprep.subr.mxu0 %v1982
    %2298 = vmatpush1.msra.mxu0 %v1981
    %2299 = vmatprep.subr.mxu0 %v1966
    %2300 = vmatpush1.msra.mxu0 %v1965
    %2301 = vmatprep.subr.mxu0 0.0
    %2302 = vmatpush2.msra.mxu0 0.0
    %2303 = vmatprep.subr.mxu0 0.0
    %2304 = vmatpush2.msra.mxu0 0.0
    %2305 = vmatprep.subr.mxu0 0.0
    %2306 = vmatpush2.msra.mxu0 0.0
    %2307 = vmatprep.subr.mxu0 0.0
    %2308 = vmatpush2.msra.mxu0 0.0
    %2309 = vmatprep.subr.mxu0 0.0
    %2310 = vmatpush2.msra.mxu0 0.0
    %2311 = vmatprep.subr.mxu0 0.0
    %2312 = vmatpush2.msra.mxu0 0.0
    %2313 = vmatprep.subr.mxu0 0.0
    %2314 = vmatpush2.msra.mxu0 0.0
    %2315 = vmatprep.subr.mxu0 0.0
    %2316 = vmatpush2.msra.mxu0 0.0
    %2317 = vmatprep.subr.mxu0 0.0
    %2318 = vmatpush2.msra.mxu0 0.0
    %2319 = vmatprep.subr.mxu0 0.0
    %2320 = vmatpush2.msra.mxu0 0.0
    %2321 = vmatprep.subr.mxu0 0.0
    %2322 = vmatpush2.msra.mxu0 0.0
    %2323 = vmatprep.subr.mxu0 0.0
    %2324 = vmatpush2.msra.mxu0 0.0
    %2325 = vmatprep.subr.mxu0 0.0
    %2326 = vmatpush2.msra.mxu0 0.0
    %2327 = vmatprep.subr.mxu0 0.0
    %2328 = vmatpush2.msra.mxu0 0.0
    %2329 = vmatprep.subr.mxu0 0.0
    %2330 = vmatpush2.msra.mxu0 0.0
    %2331 = vmatprep.subr.mxu0 0.0
    %2332 = vmatpush2.msra.mxu0 0.0
    %2333 = vmatprep.mubr.f32.mxu0 0.0
    %2334 = vmatmul.mubr.f32.gmra.mxu0 %v2110
    %v2335 = vpop.f32.mrf.mxu0
    %v2336 = vadd.f32 %v2048, %v2335
    %v2337 = vpop.f32.mrf.mxu0
    %v2338 = vadd.f32 %v2052, %v2337
    %2339 = vmatprep.mubr.f32.mxu0 0.0
    %2340 = vmatmul.mubr.f32.gmra.mxu0 %v2113
    %v2341 = vpop.f32.mrf.mxu0
    %v2342 = vadd.f32 %v2048, %v2341
    %v2343 = vpop.f32.mrf.mxu0
    %v2344 = vadd.f32 %v2052, %v2343
    %2345 = vdwg.mxu0
    %2346 = vmatprep.subr.mxu0 0.0
    %2347 = vmatpush1.msra.mxu0 0.0
    %2348 = vmatprep.subr.mxu0 0.0
    %2349 = vmatpush1.msra.mxu0 0.0
    %2350 = vmatprep.subr.mxu0 0.0
    %2351 = vmatpush1.msra.mxu0 0.0
    %2352 = vmatprep.subr.mxu0 0.0
    %2353 = vmatpush1.msra.mxu0 0.0
    %2354 = vmatprep.subr.mxu0 0.0
    %2355 = vmatpush1.msra.mxu0 0.0
    %2356 = vmatprep.subr.mxu0 0.0
    %2357 = vmatpush1.msra.mxu0 0.0
    %2358 = vmatprep.subr.mxu0 0.0
    %2359 = vmatpush1.msra.mxu0 0.0
    %2360 = vmatprep.subr.mxu0 0.0
    %2361 = vmatpush1.msra.mxu0 0.0
    %2362 = vmatprep.subr.mxu0 0.0
    %2363 = vmatpush1.msra.mxu0 0.0
    %2364 = vmatprep.subr.mxu0 0.0
    %2365 = vmatpush1.msra.mxu0 0.0
    %2366 = vmatprep.subr.mxu0 0.0
    %2367 = vmatpush1.msra.mxu0 0.0
    %2368 = vmatprep.subr.mxu0 0.0
    %2369 = vmatpush1.msra.mxu0 0.0
    %2370 = vmatprep.subr.mxu0 %v2016
    %2371 = vmatpush1.msra.mxu0 %v2015
    %2372 = vmatprep.subr.mxu0 %v2000
    %2373 = vmatpush1.msra.mxu0 %v1999
    %2374 = vmatprep.subr.mxu0 %v1984
    %2375 = vmatpush1.msra.mxu0 %v1983
    %2376 = vmatprep.subr.mxu0 %v1968
    %2377 = vmatpush1.msra.mxu0 %v1967
    %2378 = vmatprep.subr.mxu0 0.0
    %2379 = vmatpush2.msra.mxu0 0.0
    %2380 = vmatprep.subr.mxu0 0.0
    %2381 = vmatpush2.msra.mxu0 0.0
    %2382 = vmatprep.subr.mxu0 0.0
    %2383 = vmatpush2.msra.mxu0 0.0
    %2384 = vmatprep.subr.mxu0 0.0
    %2385 = vmatpush2.msra.mxu0 0.0
    %2386 = vmatprep.subr.mxu0 0.0
    %2387 = vmatpush2.msra.mxu0 0.0
    %2388 = vmatprep.subr.mxu0 0.0
    %2389 = vmatpush2.msra.mxu0 0.0
    %2390 = vmatprep.subr.mxu0 0.0
    %2391 = vmatpush2.msra.mxu0 0.0
    %2392 = vmatprep.subr.mxu0 0.0
    %2393 = vmatpush2.msra.mxu0 0.0
    %2394 = vmatprep.subr.mxu0 0.0
    %2395 = vmatpush2.msra.mxu0 0.0
    %2396 = vmatprep.subr.mxu0 0.0
    %2397 = vmatpush2.msra.mxu0 0.0
    %2398 = vmatprep.subr.mxu0 0.0
    %2399 = vmatpush2.msra.mxu0 0.0
    %2400 = vmatprep.subr.mxu0 0.0
    %2401 = vmatpush2.msra.mxu0 0.0
    %2402 = vmatprep.subr.mxu0 0.0
    %2403 = vmatpush2.msra.mxu0 0.0
    %2404 = vmatprep.subr.mxu0 0.0
    %2405 = vmatpush2.msra.mxu0 0.0
    %2406 = vmatprep.subr.mxu0 0.0
    %2407 = vmatpush2.msra.mxu0 0.0
    %2408 = vmatprep.subr.mxu0 0.0
    %2409 = vmatpush2.msra.mxu0 0.0
    %2410 = vmatprep.mubr.f32.mxu0 0.0
    %2411 = vmatmul.mubr.f32.gmra.mxu0 %v2110
    %v2412 = vpop.f32.mrf.mxu0
    %v2413 = vadd.f32 %v2056, %v2412
    %v2414 = vpop.f32.mrf.mxu0
    %v2415 = vadd.f32 %v2060, %v2414
    %2416 = vmatprep.mubr.f32.mxu0 0.0
    %2417 = vmatmul.mubr.f32.gmra.mxu0 %v2113
    %v2418 = vpop.f32.mrf.mxu0
    %v2419 = vadd.f32 %v2056, %v2418
    %v2420 = vpop.f32.mrf.mxu0
    %v2421 = vadd.f32 %v2060, %v2420
    %2422 = vdwg.mxu0
    %2423 = vmatprep.subr.mxu0 0.0
    %2424 = vmatpush1.msra.mxu0 0.0
    %2425 = vmatprep.subr.mxu0 0.0
    %2426 = vmatpush1.msra.mxu0 0.0
    %2427 = vmatprep.subr.mxu0 0.0
    %2428 = vmatpush1.msra.mxu0 0.0
    %2429 = vmatprep.subr.mxu0 0.0
    %2430 = vmatpush1.msra.mxu0 0.0
    %2431 = vmatprep.subr.mxu0 0.0
    %2432 = vmatpush1.msra.mxu0 0.0
    %2433 = vmatprep.subr.mxu0 0.0
    %2434 = vmatpush1.msra.mxu0 0.0
    %2435 = vmatprep.subr.mxu0 0.0
    %2436 = vmatpush1.msra.mxu0 0.0
    %2437 = vmatprep.subr.mxu0 0.0
    %2438 = vmatpush1.msra.mxu0 0.0
    %2439 = vmatprep.subr.mxu0 0.0
    %2440 = vmatpush1.msra.mxu0 0.0
    %2441 = vmatprep.subr.mxu0 0.0
    %2442 = vmatpush1.msra.mxu0 0.0
    %2443 = vmatprep.subr.mxu0 0.0
    %2444 = vmatpush1.msra.mxu0 0.0
    %2445 = vmatprep.subr.mxu0 0.0
    %2446 = vmatpush1.msra.mxu0 0.0
    %2447 = vmatprep.subr.mxu0 %v2018
    %2448 = vmatpush1.msra.mxu0 %v2017
    %2449 = vmatprep.subr.mxu0 %v2002
    %2450 = vmatpush1.msra.mxu0 %v2001
    %2451 = vmatprep.subr.mxu0 %v1986
    %2452 = vmatpush1.msra.mxu0 %v1985
    %2453 = vmatprep.subr.mxu0 %v1970
    %2454 = vmatpush1.msra.mxu0 %v1969
    %2455 = vmatprep.subr.mxu0 0.0
    %2456 = vmatpush2.msra.mxu0 0.0
    %2457 = vmatprep.subr.mxu0 0.0
    %2458 = vmatpush2.msra.mxu0 0.0
    %2459 = vmatprep.subr.mxu0 0.0
    %2460 = vmatpush2.msra.mxu0 0.0
    %2461 = vmatprep.subr.mxu0 0.0
    %2462 = vmatpush2.msra.mxu0 0.0
    %2463 = vmatprep.subr.mxu0 0.0
    %2464 = vmatpush2.msra.mxu0 0.0
    %2465 = vmatprep.subr.mxu0 0.0
    %2466 = vmatpush2.msra.mxu0 0.0
    %2467 = vmatprep.subr.mxu0 0.0
    %2468 = vmatpush2.msra.mxu0 0.0
    %2469 = vmatprep.subr.mxu0 0.0
    %2470 = vmatpush2.msra.mxu0 0.0
    %2471 = vmatprep.subr.mxu0 0.0
    %2472 = vmatpush2.msra.mxu0 0.0
    %2473 = vmatprep.subr.mxu0 0.0
    %2474 = vmatpush2.msra.mxu0 0.0
    %2475 = vmatprep.subr.mxu0 0.0
    %2476 = vmatpush2.msra.mxu0 0.0
    %2477 = vmatprep.subr.mxu0 0.0
    %2478 = vmatpush2.msra.mxu0 0.0
    %2479 = vmatprep.subr.mxu0 0.0
    %2480 = vmatpush2.msra.mxu0 0.0
    %2481 = vmatprep.subr.mxu0 0.0
    %2482 = vmatpush2.msra.mxu0 0.0
    %2483 = vmatprep.subr.mxu0 0.0
    %2484 = vmatpush2.msra.mxu0 0.0
    %2485 = vmatprep.subr.mxu0 0.0
    %2486 = vmatpush2.msra.mxu0 0.0
    %2487 = vmatprep.mubr.f32.mxu0 0.0
    %2488 = vmatmul.mubr.f32.gmra.mxu0 %v2110
    %v2489 = vpop.f32.mrf.mxu0
    %v2490 = vadd.f32 %v2064, %v2489
    %v2491 = vpop.f32.mrf.mxu0
    %v2492 = vadd.f32 %v2068, %v2491
    %2493 = vmatprep.mubr.f32.mxu0 0.0
    %2494 = vmatmul.mubr.f32.gmra.mxu0 %v2113
    %v2495 = vpop.f32.mrf.mxu0
    %v2496 = vadd.f32 %v2064, %v2495
    %v2497 = vpop.f32.mrf.mxu0
    %v2498 = vadd.f32 %v2068, %v2497
    %2499 = vdwg.mxu0
    %2500 = vmatprep.subr.mxu0 0.0
    %2501 = vmatpush1.msra.mxu0 0.0
    %2502 = vmatprep.subr.mxu0 0.0
    %2503 = vmatpush1.msra.mxu0 0.0
    %2504 = vmatprep.subr.mxu0 0.0
    %2505 = vmatpush1.msra.mxu0 0.0
    %2506 = vmatprep.subr.mxu0 0.0
    %2507 = vmatpush1.msra.mxu0 0.0
    %2508 = vmatprep.subr.mxu0 0.0
    %2509 = vmatpush1.msra.mxu0 0.0
    %2510 = vmatprep.subr.mxu0 0.0
    %2511 = vmatpush1.msra.mxu0 0.0
    %2512 = vmatprep.subr.mxu0 0.0
    %2513 = vmatpush1.msra.mxu0 0.0
    %2514 = vmatprep.subr.mxu0 0.0
    %2515 = vmatpush1.msra.mxu0 0.0
    %2516 = vmatprep.subr.mxu0 0.0
    %2517 = vmatpush1.msra.mxu0 0.0
    %2518 = vmatprep.subr.mxu0 0.0
    %2519 = vmatpush1.msra.mxu0 0.0
    %2520 = vmatprep.subr.mxu0 0.0
    %2521 = vmatpush1.msra.mxu0 0.0
    %2522 = vmatprep.subr.mxu0 0.0
    %2523 = vmatpush1.msra.mxu0 0.0
    %2524 = vmatprep.subr.mxu0 %v2020
    %2525 = vmatpush1.msra.mxu0 %v2019
    %2526 = vmatprep.subr.mxu0 %v2004
    %2527 = vmatpush1.msra.mxu0 %v2003
    %2528 = vmatprep.subr.mxu0 %v1988
    %2529 = vmatpush1.msra.mxu0 %v1987
    %2530 = vmatprep.subr.mxu0 %v1972
    %2531 = vmatpush1.msra.mxu0 %v1971
    %2532 = vmatprep.subr.mxu0 0.0
    %2533 = vmatpush2.msra.mxu0 0.0
    %2534 = vmatprep.subr.mxu0 0.0
    %2535 = vmatpush2.msra.mxu0 0.0
    %2536 = vmatprep.subr.mxu0 0.0
    %2537 = vmatpush2.msra.mxu0 0.0
    %2538 = vmatprep.subr.mxu0 0.0
    %2539 = vmatpush2.msra.mxu0 0.0
    %2540 = vmatprep.subr.mxu0 0.0
    %2541 = vmatpush2.msra.mxu0 0.0
    %2542 = vmatprep.subr.mxu0 0.0
    %2543 = vmatpush2.msra.mxu0 0.0
    %2544 = vmatprep.subr.mxu0 0.0
    %2545 = vmatpush2.msra.mxu0 0.0
    %2546 = vmatprep.subr.mxu0 0.0
    %2547 = vmatpush2.msra.mxu0 0.0
    %2548 = vmatprep.subr.mxu0 0.0
    %2549 = vmatpush2.msra.mxu0 0.0
    %2550 = vmatprep.subr.mxu0 0.0
    %2551 = vmatpush2.msra.mxu0 0.0
    %2552 = vmatprep.subr.mxu0 0.0
    %2553 = vmatpush2.msra.mxu0 0.0
    %2554 = vmatprep.subr.mxu0 0.0
    %2555 = vmatpush2.msra.mxu0 0.0
    %2556 = vmatprep.subr.mxu0 0.0
    %2557 = vmatpush2.msra.mxu0 0.0
    %2558 = vmatprep.subr.mxu0 0.0
    %2559 = vmatpush2.msra.mxu0 0.0
    %2560 = vmatprep.subr.mxu0 0.0
    %2561 = vmatpush2.msra.mxu0 0.0
    %2562 = vmatprep.subr.mxu0 0.0
    %2563 = vmatpush2.msra.mxu0 0.0
    %2564 = vmatprep.mubr.f32.mxu0 0.0
    %2565 = vmatmul.mubr.f32.gmra.mxu0 %v2110
    %v2566 = vpop.f32.mrf.mxu0
    %v2567 = vadd.f32 %v2072, %v2566
    %v2568 = vpop.f32.mrf.mxu0
    %v2569 = vadd.f32 %v2076, %v2568
    %2570 = vmatprep.mubr.f32.mxu0 0.0
    %2571 = vmatmul.mubr.f32.gmra.mxu0 %v2113
    %v2572 = vpop.f32.mrf.mxu0
    %v2573 = vadd.f32 %v2072, %v2572
    %v2574 = vpop.f32.mrf.mxu0
    %v2575 = vadd.f32 %v2076, %v2574
    %2576 = vdwg.mxu0
    %2577 = vmatprep.subr.mxu0 0.0
    %2578 = vmatpush1.msra.mxu0 0.0
    %2579 = vmatprep.subr.mxu0 0.0
    %2580 = vmatpush1.msra.mxu0 0.0
    %2581 = vmatprep.subr.mxu0 0.0
    %2582 = vmatpush1.msra.mxu0 0.0
    %2583 = vmatprep.subr.mxu0 0.0
    %2584 = vmatpush1.msra.mxu0 0.0
    %2585 = vmatprep.subr.mxu0 0.0
    %2586 = vmatpush1.msra.mxu0 0.0
    %2587 = vmatprep.subr.mxu0 0.0
    %2588 = vmatpush1.msra.mxu0 0.0
    %2589 = vmatprep.subr.mxu0 0.0
    %2590 = vmatpush1.msra.mxu0 0.0
    %2591 = vmatprep.subr.mxu0 0.0
    %2592 = vmatpush1.msra.mxu0 0.0
    %2593 = vmatprep.subr.mxu0 0.0
    %2594 = vmatpush1.msra.mxu0 0.0
    %2595 = vmatprep.subr.mxu0 0.0
    %2596 = vmatpush1.msra.mxu0 0.0
    %2597 = vmatprep.subr.mxu0 0.0
    %2598 = vmatpush1.msra.mxu0 0.0
    %2599 = vmatprep.subr.mxu0 0.0
    %2600 = vmatpush1.msra.mxu0 0.0
    %2601 = vmatprep.subr.mxu0 %v2022
    %2602 = vmatpush1.msra.mxu0 %v2021
    %2603 = vmatprep.subr.mxu0 %v2006
    %2604 = vmatpush1.msra.mxu0 %v2005
    %2605 = vmatprep.subr.mxu0 %v1990
    %2606 = vmatpush1.msra.mxu0 %v1989
    %2607 = vmatprep.subr.mxu0 %v1974
    %2608 = vmatpush1.msra.mxu0 %v1973
    %2609 = vmatprep.subr.mxu0 0.0
    %2610 = vmatpush2.msra.mxu0 0.0
    %2611 = vmatprep.subr.mxu0 0.0
    %2612 = vmatpush2.msra.mxu0 0.0
    %2613 = vmatprep.subr.mxu0 0.0
    %2614 = vmatpush2.msra.mxu0 0.0
    %2615 = vmatprep.subr.mxu0 0.0
    %2616 = vmatpush2.msra.mxu0 0.0
    %2617 = vmatprep.subr.mxu0 0.0
    %2618 = vmatpush2.msra.mxu0 0.0
    %2619 = vmatprep.subr.mxu0 0.0
    %2620 = vmatpush2.msra.mxu0 0.0
    %2621 = vmatprep.subr.mxu0 0.0
    %2622 = vmatpush2.msra.mxu0 0.0
    %2623 = vmatprep.subr.mxu0 0.0
    %2624 = vmatpush2.msra.mxu0 0.0
    %2625 = vmatprep.subr.mxu0 0.0
    %2626 = vmatpush2.msra.mxu0 0.0
    %2627 = vmatprep.subr.mxu0 0.0
    %2628 = vmatpush2.msra.mxu0 0.0
    %2629 = vmatprep.subr.mxu0 0.0
    %2630 = vmatpush2.msra.mxu0 0.0
    %2631 = vmatprep.subr.mxu0 0.0
    %2632 = vmatpush2.msra.mxu0 0.0
    %2633 = vmatprep.subr.mxu0 0.0
    %2634 = vmatpush2.msra.mxu0 0.0
    %2635 = vmatprep.subr.mxu0 0.0
    %2636 = vmatpush2.msra.mxu0 0.0
    %2637 = vmatprep.subr.mxu0 0.0
    %2638 = vmatpush2.msra.mxu0 0.0
    %2639 = vmatprep.subr.mxu0 0.0
    %2640 = vmatpush2.msra.mxu0 0.0
    %2641 = vmatprep.mubr.f32.mxu0 0.0
    %2642 = vmatmul.mubr.f32.gmra.mxu0 %v2110
    %v2643 = vpop.f32.mrf.mxu0
    %v2644 = vadd.f32 %v2080, %v2643
    %v2645 = vpop.f32.mrf.mxu0
    %v2646 = vadd.f32 %v2084, %v2645
    %2647 = vmatprep.mubr.f32.mxu0 0.0
    %2648 = vmatmul.mubr.f32.gmra.mxu0 %v2113
    %v2649 = vpop.f32.mrf.mxu0
    %v2650 = vadd.f32 %v2080, %v2649
    %v2651 = vpop.f32.mrf.mxu0
    %v2652 = vadd.f32 %v2084, %v2651
    %2653 = vdwg.mxu0
    %2654 = vmatprep.subr.mxu0 0.0
    %2655 = vmatpush1.msra.mxu0 0.0
    %2656 = vmatprep.subr.mxu0 0.0
    %2657 = vmatpush1.msra.mxu0 0.0
    %2658 = vmatprep.subr.mxu0 0.0
    %2659 = vmatpush1.msra.mxu0 0.0
    %2660 = vmatprep.subr.mxu0 0.0
    %2661 = vmatpush1.msra.mxu0 0.0
    %2662 = vmatprep.subr.mxu0 0.0
    %2663 = vmatpush1.msra.mxu0 0.0
    %2664 = vmatprep.subr.mxu0 0.0
    %2665 = vmatpush1.msra.mxu0 0.0
    %2666 = vmatprep.subr.mxu0 0.0
    %2667 = vmatpush1.msra.mxu0 0.0
    %2668 = vmatprep.subr.mxu0 0.0
    %2669 = vmatpush1.msra.mxu0 0.0
    %2670 = vmatprep.subr.mxu0 0.0
    %2671 = vmatpush1.msra.mxu0 0.0
    %2672 = vmatprep.subr.mxu0 0.0
    %2673 = vmatpush1.msra.mxu0 0.0
    %2674 = vmatprep.subr.mxu0 0.0
    %2675 = vmatpush1.msra.mxu0 0.0
    %2676 = vmatprep.subr.mxu0 0.0
    %2677 = vmatpush1.msra.mxu0 0.0
    %2678 = vmatprep.subr.mxu0 %v2024
    %2679 = vmatpush1.msra.mxu0 %v2023
    %2680 = vmatprep.subr.mxu0 %v2008
    %2681 = vmatpush1.msra.mxu0 %v2007
    %2682 = vmatprep.subr.mxu0 %v1992
    %2683 = vmatpush1.msra.mxu0 %v1991
    %2684 = vmatprep.subr.mxu0 %v1976
    %2685 = vmatpush1.msra.mxu0 %v1975
    %2686 = vmatprep.subr.mxu0 0.0
    %2687 = vmatpush2.msra.mxu0 0.0
    %2688 = vmatprep.subr.mxu0 0.0
    %2689 = vmatpush2.msra.mxu0 0.0
    %2690 = vmatprep.subr.mxu0 0.0
    %2691 = vmatpush2.msra.mxu0 0.0
    %2692 = vmatprep.subr.mxu0 0.0
    %2693 = vmatpush2.msra.mxu0 0.0
    %2694 = vmatprep.subr.mxu0 0.0
    %2695 = vmatpush2.msra.mxu0 0.0
    %2696 = vmatprep.subr.mxu0 0.0
    %2697 = vmatpush2.msra.mxu0 0.0
    %2698 = vmatprep.subr.mxu0 0.0
    %2699 = vmatpush2.msra.mxu0 0.0
    %2700 = vmatprep.subr.mxu0 0.0
    %2701 = vmatpush2.msra.mxu0 0.0
    %2702 = vmatprep.subr.mxu0 0.0
    %2703 = vmatpush2.msra.mxu0 0.0
    %2704 = vmatprep.subr.mxu0 0.0
    %2705 = vmatpush2.msra.mxu0 0.0
    %2706 = vmatprep.subr.mxu0 0.0
    %2707 = vmatpush2.msra.mxu0 0.0
    %2708 = vmatprep.subr.mxu0 0.0
    %2709 = vmatpush2.msra.mxu0 0.0
    %2710 = vmatprep.subr.mxu0 0.0
    %2711 = vmatpush2.msra.mxu0 0.0
    %2712 = vmatprep.subr.mxu0 0.0
    %2713 = vmatpush2.msra.mxu0 0.0
    %2714 = vmatprep.subr.mxu0 0.0
    %2715 = vmatpush2.msra.mxu0 0.0
    %2716 = vmatprep.subr.mxu0 0.0
    %2717 = vmatpush2.msra.mxu0 0.0
    %2718 = vmatprep.mubr.f32.mxu0 0.0
    %2719 = vmatmul.mubr.f32.gmra.mxu0 %v2110
    %v2720 = vpop.f32.mrf.mxu0
    %v2721 = vadd.f32 %v2088, %v2720
    %v2722 = vpop.f32.mrf.mxu0
    %v2723 = vadd.f32 %v2092, %v2722
    %2724 = vmatprep.mubr.f32.mxu0 0.0
    %2725 = vmatmul.mubr.f32.gmra.mxu0 %v2113
    %v2726 = vpop.f32.mrf.mxu0
    %v2727 = vadd.f32 %v2088, %v2726
    %v2728 = vpop.f32.mrf.mxu0
    %v2729 = vadd.f32 %v2092, %v2728
    %2730 = vdwg.mxu0
    %v2731 = vmax.f32 %v2182, 0.0
    %v2732 = vmax.f32 %v2184, 0.0
    %v2733 = vmax.f32 %v2259, 0.0
    %v2734 = vmax.f32 %v2261, 0.0
    %v2735 = vmax.f32 %v2336, 0.0
    %v2736 = vmax.f32 %v2338, 0.0
    %v2737 = vmax.f32 %v2413, 0.0
    %v2738 = vmax.f32 %v2415, 0.0
    %v2739 = vmax.f32 %v2490, 0.0
    %v2740 = vmax.f32 %v2492, 0.0
    %v2741 = vmax.f32 %v2567, 0.0
    %v2742 = vmax.f32 %v2569, 0.0
    %v2743 = vmax.f32 %v2644, 0.0
    %v2744 = vmax.f32 %v2646, 0.0
    %v2745 = vmax.f32 %v2721, 0.0
    %v2746 = vmax.f32 %v2723, 0.0
    %v2747 = vmax.f32 %v2188, 0.0
    %v2748 = vmax.f32 %v2190, 0.0
    %v2749 = vmax.f32 %v2265, 0.0
    %v2750 = vmax.f32 %v2267, 0.0
    %v2751 = vmax.f32 %v2342, 0.0
    %v2752 = vmax.f32 %v2344, 0.0
    %v2753 = vmax.f32 %v2419, 0.0
    %v2754 = vmax.f32 %v2421, 0.0
    %v2755 = vmax.f32 %v2496, 0.0
    %v2756 = vmax.f32 %v2498, 0.0
    %v2757 = vmax.f32 %v2573, 0.0
    %v2758 = vmax.f32 %v2575, 0.0
    %v2759 = vmax.f32 %v2650, 0.0
    %v2760 = vmax.f32 %v2652, 0.0
    %v2761 = vmax.f32 %v2727, 0.0
    %v2762 = vmax.f32 %v2729, 0.0
    %v2763 = vld [vmem:[%s9] sm:$0xff]
    %v2764 = vld [vmem:[%s9 + $0x8] sm:$0xff]
    %v2765 = vld [vmem:[%s9 + $0x10] sm:$0xff]
    %v2766 = vld [vmem:[%s9 + $0x18] sm:$0xff]
    %v2767 = vld [vmem:[%s9 + $0x20] sm:$0xff]
    %v2768 = vld [vmem:[%s9 + $0x28] sm:$0xff]
    %v2769 = vld [vmem:[%s9 + $0x30] sm:$0xff]
    %v2770 = vld [vmem:[%s9 + $0x38] sm:$0xff]
    %v2771 = vld [vmem:[%s9 + $0x40] sm:$0xff]
    %v2772 = vld [vmem:[%s9 + $0x48] sm:$0xff]
    %v2773 = vld [vmem:[%s9 + $0x50] sm:$0xff]
    %v2774 = vld [vmem:[%s9 + $0x58] sm:$0xff]
    %v2775 = vld [vmem:[%s9 + $0x60] sm:$0xff]
    %v2776 = vld [vmem:[%s9 + $0x68] sm:$0xff]
    %v2777 = vld [vmem:[%s9 + $0x70] sm:$0xff]
    %v2778 = vld [vmem:[%s9 + $0x78] sm:$0xff]
    %v2779 = vld [vmem:[%s9 + $0x80] sm:$0xff]
    %v2780 = vld [vmem:[%s9 + $0x88] sm:$0xff]
    %v2781 = vld [vmem:[%s9 + $0x90] sm:$0xff]
    %v2782 = vld [vmem:[%s9 + $0x98] sm:$0xff]
    %v2783 = vld [vmem:[%s9 + $0xa0] sm:$0xff]
    %v2784 = vld [vmem:[%s9 + $0xa8] sm:$0xff]
    %v2785 = vld [vmem:[%s9 + $0xb0] sm:$0xff]
    %v2786 = vld [vmem:[%s9 + $0xb8] sm:$0xff]
    %v2787 = vld [vmem:[%s9 + $0xc0] sm:$0xff]
    %v2788 = vld [vmem:[%s9 + $0xc8] sm:$0xff]
    %v2789 = vld [vmem:[%s9 + $0xd0] sm:$0xff]
    %v2790 = vld [vmem:[%s9 + $0xd8] sm:$0xff]
    %v2791 = vld [vmem:[%s9 + $0xe0] sm:$0xff]
    %v2792 = vld [vmem:[%s9 + $0xe8] sm:$0xff]
    %v2793 = vld [vmem:[%s9 + $0xf0] sm:$0xff]
    %v2794 = vld [vmem:[%s9 + $0xf8] sm:$0xff]
    %v2795 = vld [vmem:[%s9 + $0x100] sm:$0xff]
    %v2796 = vld [vmem:[%s9 + $0x108] sm:$0xff]
    %v2797 = vld [vmem:[%s9 + $0x110] sm:$0xff]
    %v2798 = vld [vmem:[%s9 + $0x118] sm:$0xff]
    %v2799 = vld [vmem:[%s9 + $0x120] sm:$0xff]
    %v2800 = vld [vmem:[%s9 + $0x128] sm:$0xff]
    %v2801 = vld [vmem:[%s9 + $0x130] sm:$0xff]
    %v2802 = vld [vmem:[%s9 + $0x138] sm:$0xff]
    %v2803 = vld [vmem:[%s9 + $0x140] sm:$0xff]
    %v2804 = vld [vmem:[%s9 + $0x148] sm:$0xff]
    %v2805 = vld [vmem:[%s9 + $0x150] sm:$0xff]
    %v2806 = vld [vmem:[%s9 + $0x158] sm:$0xff]
    %v2807 = vld [vmem:[%s9 + $0x160] sm:$0xff]
    %v2808 = vld [vmem:[%s9 + $0x168] sm:$0xff]
    %v2809 = vld [vmem:[%s9 + $0x170] sm:$0xff]
    %v2810 = vld [vmem:[%s9 + $0x178] sm:$0xff]
    %v2811 = vld [vmem:[%s9 + $0x180] sm:$0xff]
    %v2812 = vld [vmem:[%s9 + $0x188] sm:$0xff]
    %v2813 = vld [vmem:[%s9 + $0x190] sm:$0xff]
    %v2814 = vld [vmem:[%s9 + $0x198] sm:$0xff]
    %v2815 = vld [vmem:[%s9 + $0x1a0] sm:$0xff]
    %v2816 = vld [vmem:[%s9 + $0x1a8] sm:$0xff]
    %v2817 = vld [vmem:[%s9 + $0x1b0] sm:$0xff]
    %v2818 = vld [vmem:[%s9 + $0x1b8] sm:$0xff]
    %v2819 = vld [vmem:[%s9 + $0x1c0] sm:$0xff]
    %v2820 = vld [vmem:[%s9 + $0x1c8] sm:$0xff]
    %v2821 = vld [vmem:[%s9 + $0x1d0] sm:$0xff]
    %v2822 = vld [vmem:[%s9 + $0x1d8] sm:$0xff]
    %v2823 = vld [vmem:[%s9 + $0x1e0] sm:$0xff]
    %v2824 = vld [vmem:[%s9 + $0x1e8] sm:$0xff]
    %v2825 = vld [vmem:[%s9 + $0x1f0] sm:$0xff]
    %v2826 = vld [vmem:[%s9 + $0x1f8] sm:$0xff]
    %v2827 = vld [vmem:[%s9 + $0x200] sm:$0xff]
    %v2828 = vld [vmem:[%s9 + $0x208] sm:$0xff]
    %v2829 = vld [vmem:[%s9 + $0x210] sm:$0xff]
    %v2830 = vld [vmem:[%s9 + $0x218] sm:$0xff]
    %v2831 = vld [vmem:[%s9 + $0x220] sm:$0xff]
    %v2832 = vld [vmem:[%s9 + $0x228] sm:$0xff]
    %v2833 = vld [vmem:[%s9 + $0x230] sm:$0xff]
    %v2834 = vld [vmem:[%s9 + $0x238] sm:$0xff]
    %v2835 = vld [vmem:[%s9 + $0x240] sm:$0xff]
    %v2836 = vld [vmem:[%s9 + $0x248] sm:$0xff]
    %v2837 = vld [vmem:[%s9 + $0x250] sm:$0xff]
    %v2838 = vld [vmem:[%s9 + $0x258] sm:$0xff]
    %v2839 = vld [vmem:[%s9 + $0x260] sm:$0xff]
    %v2840 = vld [vmem:[%s9 + $0x268] sm:$0xff]
    %v2841 = vld [vmem:[%s9 + $0x270] sm:$0xff]
    %v2842 = vld [vmem:[%s9 + $0x278] sm:$0xff]
    %v2843 = vld [vmem:[%s9 + $0x280] sm:$0xff]
    %v2844 = vld [vmem:[%s9 + $0x288] sm:$0xff]
    %v2845 = vld [vmem:[%s9 + $0x290] sm:$0xff]
    %v2846 = vld [vmem:[%s9 + $0x298] sm:$0xff]
    %v2847 = vld [vmem:[%s9 + $0x2a0] sm:$0xff]
    %v2848 = vld [vmem:[%s9 + $0x2a8] sm:$0xff]
    %v2849 = vld [vmem:[%s9 + $0x2b0] sm:$0xff]
    %v2850 = vld [vmem:[%s9 + $0x2b8] sm:$0xff]
    %v2851 = vld [vmem:[%s9 + $0x2c0] sm:$0xff]
    %v2852 = vld [vmem:[%s9 + $0x2c8] sm:$0xff]
    %v2853 = vld [vmem:[%s9 + $0x2d0] sm:$0xff]
    %v2854 = vld [vmem:[%s9 + $0x2d8] sm:$0xff]
    %v2855 = vld [vmem:[%s9 + $0x2e0] sm:$0xff]
    %v2856 = vld [vmem:[%s9 + $0x2e8] sm:$0xff]
    %v2857 = vld [vmem:[%s9 + $0x2f0] sm:$0xff]
    %v2858 = vld [vmem:[%s9 + $0x2f8] sm:$0xff]
    %v2859 = vld [vmem:[%s9 + $0x300] sm:$0xff]
    %v2860 = vld [vmem:[%s9 + $0x308] sm:$0xff]
    %v2861 = vld [vmem:[%s9 + $0x310] sm:$0xff]
    %v2862 = vld [vmem:[%s9 + $0x318] sm:$0xff]
    %v2863 = vld [vmem:[%s9 + $0x320] sm:$0xff]
    %v2864 = vld [vmem:[%s9 + $0x328] sm:$0xff]
    %v2865 = vld [vmem:[%s9 + $0x330] sm:$0xff]
    %v2866 = vld [vmem:[%s9 + $0x338] sm:$0xff]
    %v2867 = vld [vmem:[%s9 + $0x340] sm:$0xff]
    %v2868 = vld [vmem:[%s9 + $0x348] sm:$0xff]
    %v2869 = vld [vmem:[%s9 + $0x350] sm:$0xff]
    %v2870 = vld [vmem:[%s9 + $0x358] sm:$0xff]
    %v2871 = vld [vmem:[%s9 + $0x360] sm:$0xff]
    %v2872 = vld [vmem:[%s9 + $0x368] sm:$0xff]
    %v2873 = vld [vmem:[%s9 + $0x370] sm:$0xff]
    %v2874 = vld [vmem:[%s9 + $0x378] sm:$0xff]
    %v2875 = vld [vmem:[%s9 + $0x380] sm:$0xff]
    %v2876 = vld [vmem:[%s9 + $0x388] sm:$0xff]
    %v2877 = vld [vmem:[%s9 + $0x390] sm:$0xff]
    %v2878 = vld [vmem:[%s9 + $0x398] sm:$0xff]
    %v2879 = vld [vmem:[%s9 + $0x3a0] sm:$0xff]
    %v2880 = vld [vmem:[%s9 + $0x3a8] sm:$0xff]
    %v2881 = vld [vmem:[%s9 + $0x3b0] sm:$0xff]
    %v2882 = vld [vmem:[%s9 + $0x3b8] sm:$0xff]
    %v2883 = vld [vmem:[%s9 + $0x3c0] sm:$0xff]
    %v2884 = vld [vmem:[%s9 + $0x3c8] sm:$0xff]
    %v2885 = vld [vmem:[%s9 + $0x3d0] sm:$0xff]
    %v2886 = vld [vmem:[%s9 + $0x3d8] sm:$0xff]
    %v2887 = vld [vmem:[%s9 + $0x3e0] sm:$0xff]
    %v2888 = vld [vmem:[%s9 + $0x3e8] sm:$0xff]
    %v2889 = vld [vmem:[%s9 + $0x3f0] sm:$0xff]
    %v2890 = vld [vmem:[%s9 + $0x3f8] sm:$0xff]
    %v2891 = vld [vmem:[%s9 + $0x400] sm:$0xff]
    %v2892 = vld [vmem:[%s9 + $0x408] sm:$0xff]
    %v2893 = vld [vmem:[%s9 + $0x410] sm:$0xff]
    %v2894 = vld [vmem:[%s9 + $0x418] sm:$0xff]
    %v2895 = vld [vmem:[%s9 + $0x420] sm:$0xff]
    %v2896 = vld [vmem:[%s9 + $0x428] sm:$0xff]
    %v2897 = vld [vmem:[%s9 + $0x430] sm:$0xff]
    %v2898 = vld [vmem:[%s9 + $0x438] sm:$0xff]
    %v2899 = vld [vmem:[%s9 + $0x440] sm:$0xff]
    %v2900 = vld [vmem:[%s9 + $0x448] sm:$0xff]
    %v2901 = vld [vmem:[%s9 + $0x450] sm:$0xff]
    %v2902 = vld [vmem:[%s9 + $0x458] sm:$0xff]
    %v2903 = vld [vmem:[%s9 + $0x460] sm:$0xff]
    %v2904 = vld [vmem:[%s9 + $0x468] sm:$0xff]
    %v2905 = vld [vmem:[%s9 + $0x470] sm:$0xff]
    %v2906 = vld [vmem:[%s9 + $0x478] sm:$0xff]
    %v2907 = vld [vmem:[%s9 + $0x480] sm:$0xff]
    %v2908 = vld [vmem:[%s9 + $0x488] sm:$0xff]
    %v2909 = vld [vmem:[%s9 + $0x490] sm:$0xff]
    %v2910 = vld [vmem:[%s9 + $0x498] sm:$0xff]
    %v2911 = vld [vmem:[%s9 + $0x4a0] sm:$0xff]
    %v2912 = vld [vmem:[%s9 + $0x4a8] sm:$0xff]
    %v2913 = vld [vmem:[%s9 + $0x4b0] sm:$0xff]
    %v2914 = vld [vmem:[%s9 + $0x4b8] sm:$0xff]
    %v2915 = vld [vmem:[%s9 + $0x4c0] sm:$0xff]
    %v2916 = vld [vmem:[%s9 + $0x4c8] sm:$0xff]
    %v2917 = vld [vmem:[%s9 + $0x4d0] sm:$0xff]
    %v2918 = vld [vmem:[%s9 + $0x4d8] sm:$0xff]
    %v2919 = vld [vmem:[%s9 + $0x4e0] sm:$0xff]
    %v2920 = vld [vmem:[%s9 + $0x4e8] sm:$0xff]
    %v2921 = vld [vmem:[%s9 + $0x4f0] sm:$0xff]
    %v2922 = vld [vmem:[%s9 + $0x4f8] sm:$0xff]
    %v2923 = vld [vmem:[%s9 + $0x500] sm:$0xff]
    %v2924 = vld [vmem:[%s9 + $0x508] sm:$0xff]
    %v2925 = vld [vmem:[%s9 + $0x510] sm:$0xff]
    %v2926 = vld [vmem:[%s9 + $0x518] sm:$0xff]
    %v2927 = vld [vmem:[%s9 + $0x520] sm:$0xff]
    %v2928 = vld [vmem:[%s9 + $0x528] sm:$0xff]
    %v2929 = vld [vmem:[%s9 + $0x530] sm:$0xff]
    %v2930 = vld [vmem:[%s9 + $0x538] sm:$0xff]
    %v2931 = vld [vmem:[%s9 + $0x540] sm:$0xff]
    %v2932 = vld [vmem:[%s9 + $0x548] sm:$0xff]
    %v2933 = vld [vmem:[%s9 + $0x550] sm:$0xff]
    %v2934 = vld [vmem:[%s9 + $0x558] sm:$0xff]
    %v2935 = vld [vmem:[%s9 + $0x560] sm:$0xff]
    %v2936 = vld [vmem:[%s9 + $0x568] sm:$0xff]
    %v2937 = vld [vmem:[%s9 + $0x570] sm:$0xff]
    %v2938 = vld [vmem:[%s9 + $0x578] sm:$0xff]
    %v2939 = vld [vmem:[%s9 + $0x580] sm:$0xff]
    %v2940 = vld [vmem:[%s9 + $0x588] sm:$0xff]
    %v2941 = vld [vmem:[%s9 + $0x590] sm:$0xff]
    %v2942 = vld [vmem:[%s9 + $0x598] sm:$0xff]
    %v2943 = vld [vmem:[%s9 + $0x5a0] sm:$0xff]
    %v2944 = vld [vmem:[%s9 + $0x5a8] sm:$0xff]
    %v2945 = vld [vmem:[%s9 + $0x5b0] sm:$0xff]
    %v2946 = vld [vmem:[%s9 + $0x5b8] sm:$0xff]
    %v2947 = vld [vmem:[%s9 + $0x5c0] sm:$0xff]
    %v2948 = vld [vmem:[%s9 + $0x5c8] sm:$0xff]
    %v2949 = vld [vmem:[%s9 + $0x5d0] sm:$0xff]
    %v2950 = vld [vmem:[%s9 + $0x5d8] sm:$0xff]
    %v2951 = vld [vmem:[%s9 + $0x5e0] sm:$0xff]
    %v2952 = vld [vmem:[%s9 + $0x5e8] sm:$0xff]
    %v2953 = vld [vmem:[%s9 + $0x5f0] sm:$0xff]
    %v2954 = vld [vmem:[%s9 + $0x5f8] sm:$0xff]
    %v2955 = vld [vmem:[%s9 + $0x600] sm:$0xff]
    %v2956 = vld [vmem:[%s9 + $0x608] sm:$0xff]
    %v2957 = vld [vmem:[%s9 + $0x610] sm:$0xff]
    %v2958 = vld [vmem:[%s9 + $0x618] sm:$0xff]
    %v2959 = vld [vmem:[%s9 + $0x620] sm:$0xff]
    %v2960 = vld [vmem:[%s9 + $0x628] sm:$0xff]
    %v2961 = vld [vmem:[%s9 + $0x630] sm:$0xff]
    %v2962 = vld [vmem:[%s9 + $0x638] sm:$0xff]
    %v2963 = vld [vmem:[%s9 + $0x640] sm:$0xff]
    %v2964 = vld [vmem:[%s9 + $0x648] sm:$0xff]
    %v2965 = vld [vmem:[%s9 + $0x650] sm:$0xff]
    %v2966 = vld [vmem:[%s9 + $0x658] sm:$0xff]
    %v2967 = vld [vmem:[%s9 + $0x660] sm:$0xff]
    %v2968 = vld [vmem:[%s9 + $0x668] sm:$0xff]
    %v2969 = vld [vmem:[%s9 + $0x670] sm:$0xff]
    %v2970 = vld [vmem:[%s9 + $0x678] sm:$0xff]
    %v2971 = vld [vmem:[%s9 + $0x680] sm:$0xff]
    %v2972 = vld [vmem:[%s9 + $0x688] sm:$0xff]
    %v2973 = vld [vmem:[%s9 + $0x690] sm:$0xff]
    %v2974 = vld [vmem:[%s9 + $0x698] sm:$0xff]
    %v2975 = vld [vmem:[%s9 + $0x6a0] sm:$0xff]
    %v2976 = vld [vmem:[%s9 + $0x6a8] sm:$0xff]
    %v2977 = vld [vmem:[%s9 + $0x6b0] sm:$0xff]
    %v2978 = vld [vmem:[%s9 + $0x6b8] sm:$0xff]
    %v2979 = vld [vmem:[%s9 + $0x6c0] sm:$0xff]
    %v2980 = vld [vmem:[%s9 + $0x6c8] sm:$0xff]
    %v2981 = vld [vmem:[%s9 + $0x6d0] sm:$0xff]
    %v2982 = vld [vmem:[%s9 + $0x6d8] sm:$0xff]
    %v2983 = vld [vmem:[%s9 + $0x6e0] sm:$0xff]
    %v2984 = vld [vmem:[%s9 + $0x6e8] sm:$0xff]
    %v2985 = vld [vmem:[%s9 + $0x6f0] sm:$0xff]
    %v2986 = vld [vmem:[%s9 + $0x6f8] sm:$0xff]
    %v2987 = vld [vmem:[%s9 + $0x700] sm:$0xff]
    %v2988 = vld [vmem:[%s9 + $0x708] sm:$0xff]
    %v2989 = vld [vmem:[%s9 + $0x710] sm:$0xff]
    %v2990 = vld [vmem:[%s9 + $0x718] sm:$0xff]
    %v2991 = vld [vmem:[%s9 + $0x720] sm:$0xff]
    %v2992 = vld [vmem:[%s9 + $0x728] sm:$0xff]
    %v2993 = vld [vmem:[%s9 + $0x730] sm:$0xff]
    %v2994 = vld [vmem:[%s9 + $0x738] sm:$0xff]
    %v2995 = vld [vmem:[%s9 + $0x740] sm:$0xff]
    %v2996 = vld [vmem:[%s9 + $0x748] sm:$0xff]
    %v2997 = vld [vmem:[%s9 + $0x750] sm:$0xff]
    %v2998 = vld [vmem:[%s9 + $0x758] sm:$0xff]
    %v2999 = vld [vmem:[%s9 + $0x760] sm:$0xff]
    %v3000 = vld [vmem:[%s9 + $0x768] sm:$0xff]
    %v3001 = vld [vmem:[%s9 + $0x770] sm:$0xff]
    %v3002 = vld [vmem:[%s9 + $0x778] sm:$0xff]
    %v3003 = vld [vmem:[%s9 + $0x780] sm:$0xff]
    %v3004 = vld [vmem:[%s9 + $0x788] sm:$0xff]
    %v3005 = vld [vmem:[%s9 + $0x790] sm:$0xff]
    %v3006 = vld [vmem:[%s9 + $0x798] sm:$0xff]
    %v3007 = vld [vmem:[%s9 + $0x7a0] sm:$0xff]
    %v3008 = vld [vmem:[%s9 + $0x7a8] sm:$0xff]
    %v3009 = vld [vmem:[%s9 + $0x7b0] sm:$0xff]
    %v3010 = vld [vmem:[%s9 + $0x7b8] sm:$0xff]
    %v3011 = vld [vmem:[%s9 + $0x7c0] sm:$0xff]
    %v3012 = vld [vmem:[%s9 + $0x7c8] sm:$0xff]
    %v3013 = vld [vmem:[%s9 + $0x7d0] sm:$0xff]
    %v3014 = vld [vmem:[%s9 + $0x7d8] sm:$0xff]
    %v3015 = vld [vmem:[%s9 + $0x7e0] sm:$0xff]
    %v3016 = vld [vmem:[%s9 + $0x7e8] sm:$0xff]
    %v3017 = vld [vmem:[%s9 + $0x7f0] sm:$0xff]
    %v3018 = vld [vmem:[%s9 + $0x7f8] sm:$0xff]
    %v3019 = vld [vmem:[%s10] sm:$0x1]
    %v3021 = vlaneseq
    %v3022 = vshrl.u32 %v3021, 7
    %v3023 = vsub.s32 0, %v3022
    %v3024 = vrot.slane %v3019, %v3023
    %3026 = vmatprep.subr.mxu0 0.0
    %3027 = vmatpush1.msra.mxu0 %v2778
    %3028 = vmatprep.subr.mxu0 0.0
    %3029 = vmatpush1.msra.mxu0 %v2777
    %3030 = vmatprep.subr.mxu0 0.0
    %3031 = vmatpush1.msra.mxu0 %v2776
    %3032 = vmatprep.subr.mxu0 0.0
    %3033 = vmatpush1.msra.mxu0 %v2775
    %3034 = vmatprep.subr.mxu0 0.0
    %3035 = vmatpush1.msra.mxu0 %v2774
    %3036 = vmatprep.subr.mxu0 0.0
    %3037 = vmatpush1.msra.mxu0 %v2773
    %3038 = vmatprep.subr.mxu0 0.0
    %3039 = vmatpush1.msra.mxu0 %v2772
    %3040 = vmatprep.subr.mxu0 0.0
    %3041 = vmatpush1.msra.mxu0 %v2771
    %3042 = vmatprep.subr.mxu0 0.0
    %3043 = vmatpush1.msra.mxu0 %v2770
    %3044 = vmatprep.subr.mxu0 0.0
    %3045 = vmatpush1.msra.mxu0 %v2769
    %3046 = vmatprep.subr.mxu0 0.0
    %3047 = vmatpush1.msra.mxu0 %v2768
    %3048 = vmatprep.subr.mxu0 0.0
    %3049 = vmatpush1.msra.mxu0 %v2767
    %3050 = vmatprep.subr.mxu0 0.0
    %3051 = vmatpush1.msra.mxu0 %v2766
    %3052 = vmatprep.subr.mxu0 0.0
    %3053 = vmatpush1.msra.mxu0 %v2765
    %3054 = vmatprep.subr.mxu0 0.0
    %3055 = vmatpush1.msra.mxu0 %v2764
    %3056 = vmatprep.subr.mxu0 0.0
    %3057 = vmatpush1.msra.mxu0 %v2763
    %3058 = vmatprep.subr.mxu0 0.0
    %3059 = vmatpush2.msra.mxu0 %v2794
    %3060 = vmatprep.subr.mxu0 0.0
    %3061 = vmatpush2.msra.mxu0 %v2793
    %3062 = vmatprep.subr.mxu0 0.0
    %3063 = vmatpush2.msra.mxu0 %v2792
    %3064 = vmatprep.subr.mxu0 0.0
    %3065 = vmatpush2.msra.mxu0 %v2791
    %3066 = vmatprep.subr.mxu0 0.0
    %3067 = vmatpush2.msra.mxu0 %v2790
    %3068 = vmatprep.subr.mxu0 0.0
    %3069 = vmatpush2.msra.mxu0 %v2789
    %3070 = vmatprep.subr.mxu0 0.0
    %3071 = vmatpush2.msra.mxu0 %v2788
    %3072 = vmatprep.subr.mxu0 0.0
    %3073 = vmatpush2.msra.mxu0 %v2787
    %3074 = vmatprep.subr.mxu0 0.0
    %3075 = vmatpush2.msra.mxu0 %v2786
    %3076 = vmatprep.subr.mxu0 0.0
    %3077 = vmatpush2.msra.mxu0 %v2785
    %3078 = vmatprep.subr.mxu0 0.0
    %3079 = vmatpush2.msra.mxu0 %v2784
    %3080 = vmatprep.subr.mxu0 0.0
    %3081 = vmatpush2.msra.mxu0 %v2783
    %3082 = vmatprep.subr.mxu0 0.0
    %3083 = vmatpush2.msra.mxu0 %v2782
    %3084 = vmatprep.subr.mxu0 0.0
    %3085 = vmatpush2.msra.mxu0 %v2781
    %3086 = vmatprep.subr.mxu0 0.0
    %3087 = vmatpush2.msra.mxu0 %v2780
    %3088 = vmatprep.subr.mxu0 0.0
    %3089 = vmatpush2.msra.mxu0 %v2779
    %3090 = vmatprep.mubr.f32.mxu0 %v2732
    %3091 = vmatmul.mubr.f32.gmra.mxu0 %v2731
    %v3092 = vpop.f32.mrf.mxu0
    %v3093 = vadd.f32 %v3024, %v3092
    %v3094 = vpop.f32.mrf.mxu0
    %3095 = vmatprep.mubr.f32.mxu0 %v2748
    %3096 = vmatmul.mubr.f32.gmra.mxu0 %v2747
    %v3097 = vpop.f32.mrf.mxu0
    %v3098 = vadd.f32 %v3024, %v3097
    %v3099 = vpop.f32.mrf.mxu0
    %3100 = vdwg.mxu0
    %3101 = vmatprep.subr.mxu0 0.0
    %3102 = vmatpush1.msra.mxu0 %v2810
    %3103 = vmatprep.subr.mxu0 0.0
    %3104 = vmatpush1.msra.mxu0 %v2809
    %3105 = vmatprep.subr.mxu0 0.0
    %3106 = vmatpush1.msra.mxu0 %v2808
    %3107 = vmatprep.subr.mxu0 0.0
    %3108 = vmatpush1.msra.mxu0 %v2807
    %3109 = vmatprep.subr.mxu0 0.0
    %3110 = vmatpush1.msra.mxu0 %v2806
    %3111 = vmatprep.subr.mxu0 0.0
    %3112 = vmatpush1.msra.mxu0 %v2805
    %3113 = vmatprep.subr.mxu0 0.0
    %3114 = vmatpush1.msra.mxu0 %v2804
    %3115 = vmatprep.subr.mxu0 0.0
    %3116 = vmatpush1.msra.mxu0 %v2803
    %3117 = vmatprep.subr.mxu0 0.0
    %3118 = vmatpush1.msra.mxu0 %v2802
    %3119 = vmatprep.subr.mxu0 0.0
    %3120 = vmatpush1.msra.mxu0 %v2801
    %3121 = vmatprep.subr.mxu0 0.0
    %3122 = vmatpush1.msra.mxu0 %v2800
    %3123 = vmatprep.subr.mxu0 0.0
    %3124 = vmatpush1.msra.mxu0 %v2799
    %3125 = vmatprep.subr.mxu0 0.0
    %3126 = vmatpush1.msra.mxu0 %v2798
    %3127 = vmatprep.subr.mxu0 0.0
    %3128 = vmatpush1.msra.mxu0 %v2797
    %3129 = vmatprep.subr.mxu0 0.0
    %3130 = vmatpush1.msra.mxu0 %v2796
    %3131 = vmatprep.subr.mxu0 0.0
    %3132 = vmatpush1.msra.mxu0 %v2795
    %3133 = vmatprep.subr.mxu0 0.0
    %3134 = vmatpush2.msra.mxu0 %v2826
    %3135 = vmatprep.subr.mxu0 0.0
    %3136 = vmatpush2.msra.mxu0 %v2825
    %3137 = vmatprep.subr.mxu0 0.0
    %3138 = vmatpush2.msra.mxu0 %v2824
    %3139 = vmatprep.subr.mxu0 0.0
    %3140 = vmatpush2.msra.mxu0 %v2823
    %3141 = vmatprep.subr.mxu0 0.0
    %3142 = vmatpush2.msra.mxu0 %v2822
    %3143 = vmatprep.subr.mxu0 0.0
    %3144 = vmatpush2.msra.mxu0 %v2821
    %3145 = vmatprep.subr.mxu0 0.0
    %3146 = vmatpush2.msra.mxu0 %v2820
    %3147 = vmatprep.subr.mxu0 0.0
    %3148 = vmatpush2.msra.mxu0 %v2819
    %3149 = vmatprep.subr.mxu0 0.0
    %3150 = vmatpush2.msra.mxu0 %v2818
    %3151 = vmatprep.subr.mxu0 0.0
    %3152 = vmatpush2.msra.mxu0 %v2817
    %3153 = vmatprep.subr.mxu0 0.0
    %3154 = vmatpush2.msra.mxu0 %v2816
    %3155 = vmatprep.subr.mxu0 0.0
    %3156 = vmatpush2.msra.mxu0 %v2815
    %3157 = vmatprep.subr.mxu0 0.0
    %3158 = vmatpush2.msra.mxu0 %v2814
    %3159 = vmatprep.subr.mxu0 0.0
    %3160 = vmatpush2.msra.mxu0 %v2813
    %3161 = vmatprep.subr.mxu0 0.0
    %3162 = vmatpush2.msra.mxu0 %v2812
    %3163 = vmatprep.subr.mxu0 0.0
    %3164 = vmatpush2.msra.mxu0 %v2811
    %3165 = vmatprep.mubr.f32.mxu0 %v2734
    %3166 = vmatmul.mubr.f32.gmra.mxu0 %v2733
    %v3167 = vpop.f32.mrf.mxu0
    %v3168 = vadd.f32 %v3093, %v3167
    %v3169 = vpop.f32.mrf.mxu0
    %3170 = vmatprep.mubr.f32.mxu0 %v2750
    %3171 = vmatmul.mubr.f32.gmra.mxu0 %v2749
    %v3172 = vpop.f32.mrf.mxu0
    %v3173 = vadd.f32 %v3098, %v3172
    %v3174 = vpop.f32.mrf.mxu0
    %3175 = vdwg.mxu0
    %3176 = vmatprep.subr.mxu0 0.0
    %3177 = vmatpush1.msra.mxu0 %v2842
    %3178 = vmatprep.subr.mxu0 0.0
    %3179 = vmatpush1.msra.mxu0 %v2841
    %3180 = vmatprep.subr.mxu0 0.0
    %3181 = vmatpush1.msra.mxu0 %v2840
    %3182 = vmatprep.subr.mxu0 0.0
    %3183 = vmatpush1.msra.mxu0 %v2839
    %3184 = vmatprep.subr.mxu0 0.0
    %3185 = vmatpush1.msra.mxu0 %v2838
    %3186 = vmatprep.subr.mxu0 0.0
    %3187 = vmatpush1.msra.mxu0 %v2837
    %3188 = vmatprep.subr.mxu0 0.0
    %3189 = vmatpush1.msra.mxu0 %v2836
    %3190 = vmatprep.subr.mxu0 0.0
    %3191 = vmatpush1.msra.mxu0 %v2835
    %3192 = vmatprep.subr.mxu0 0.0
    %3193 = vmatpush1.msra.mxu0 %v2834
    %3194 = vmatprep.subr.mxu0 0.0
    %3195 = vmatpush1.msra.mxu0 %v2833
    %3196 = vmatprep.subr.mxu0 0.0
    %3197 = vmatpush1.msra.mxu0 %v2832
    %3198 = vmatprep.subr.mxu0 0.0
    %3199 = vmatpush1.msra.mxu0 %v2831
    %3200 = vmatprep.subr.mxu0 0.0
    %3201 = vmatpush1.msra.mxu0 %v2830
    %3202 = vmatprep.subr.mxu0 0.0
    %3203 = vmatpush1.msra.mxu0 %v2829
    %3204 = vmatprep.subr.mxu0 0.0
    %3205 = vmatpush1.msra.mxu0 %v2828
    %3206 = vmatprep.subr.mxu0 0.0
    %3207 = vmatpush1.msra.mxu0 %v2827
    %3208 = vmatprep.subr.mxu0 0.0
    %3209 = vmatpush2.msra.mxu0 %v2858
    %3210 = vmatprep.subr.mxu0 0.0
    %3211 = vmatpush2.msra.mxu0 %v2857
    %3212 = vmatprep.subr.mxu0 0.0
    %3213 = vmatpush2.msra.mxu0 %v2856
    %3214 = vmatprep.subr.mxu0 0.0
    %3215 = vmatpush2.msra.mxu0 %v2855
    %3216 = vmatprep.subr.mxu0 0.0
    %3217 = vmatpush2.msra.mxu0 %v2854
    %3218 = vmatprep.subr.mxu0 0.0
    %3219 = vmatpush2.msra.mxu0 %v2853
    %3220 = vmatprep.subr.mxu0 0.0
    %3221 = vmatpush2.msra.mxu0 %v2852
    %3222 = vmatprep.subr.mxu0 0.0
    %3223 = vmatpush2.msra.mxu0 %v2851
    %3224 = vmatprep.subr.mxu0 0.0
    %3225 = vmatpush2.msra.mxu0 %v2850
    %3226 = vmatprep.subr.mxu0 0.0
    %3227 = vmatpush2.msra.mxu0 %v2849
    %3228 = vmatprep.subr.mxu0 0.0
    %3229 = vmatpush2.msra.mxu0 %v2848
    %3230 = vmatprep.subr.mxu0 0.0
    %3231 = vmatpush2.msra.mxu0 %v2847
    %3232 = vmatprep.subr.mxu0 0.0
    %3233 = vmatpush2.msra.mxu0 %v2846
    %3234 = vmatprep.subr.mxu0 0.0
    %3235 = vmatpush2.msra.mxu0 %v2845
    %3236 = vmatprep.subr.mxu0 0.0
    %3237 = vmatpush2.msra.mxu0 %v2844
    %3238 = vmatprep.subr.mxu0 0.0
    %3239 = vmatpush2.msra.mxu0 %v2843
    %3240 = vmatprep.mubr.f32.mxu0 %v2736
    %3241 = vmatmul.mubr.f32.gmra.mxu0 %v2735
    %v3242 = vpop.f32.mrf.mxu0
    %v3243 = vadd.f32 %v3168, %v3242
    %v3244 = vpop.f32.mrf.mxu0
    %3245 = vmatprep.mubr.f32.mxu0 %v2752
    %3246 = vmatmul.mubr.f32.gmra.mxu0 %v2751
    %v3247 = vpop.f32.mrf.mxu0
    %v3248 = vadd.f32 %v3173, %v3247
    %v3249 = vpop.f32.mrf.mxu0
    %3250 = vdwg.mxu0
    %3251 = vmatprep.subr.mxu0 0.0
    %3252 = vmatpush1.msra.mxu0 %v2874
    %3253 = vmatprep.subr.mxu0 0.0
    %3254 = vmatpush1.msra.mxu0 %v2873
    %3255 = vmatprep.subr.mxu0 0.0
    %3256 = vmatpush1.msra.mxu0 %v2872
    %3257 = vmatprep.subr.mxu0 0.0
    %3258 = vmatpush1.msra.mxu0 %v2871
    %3259 = vmatprep.subr.mxu0 0.0
    %3260 = vmatpush1.msra.mxu0 %v2870
    %3261 = vmatprep.subr.mxu0 0.0
    %3262 = vmatpush1.msra.mxu0 %v2869
    %3263 = vmatprep.subr.mxu0 0.0
    %3264 = vmatpush1.msra.mxu0 %v2868
    %3265 = vmatprep.subr.mxu0 0.0
    %3266 = vmatpush1.msra.mxu0 %v2867
    %3267 = vmatprep.subr.mxu0 0.0
    %3268 = vmatpush1.msra.mxu0 %v2866
    %3269 = vmatprep.subr.mxu0 0.0
    %3270 = vmatpush1.msra.mxu0 %v2865
    %3271 = vmatprep.subr.mxu0 0.0
    %3272 = vmatpush1.msra.mxu0 %v2864
    %3273 = vmatprep.subr.mxu0 0.0
    %3274 = vmatpush1.msra.mxu0 %v2863
    %3275 = vmatprep.subr.mxu0 0.0
    %3276 = vmatpush1.msra.mxu0 %v2862
    %3277 = vmatprep.subr.mxu0 0.0
    %3278 = vmatpush1.msra.mxu0 %v2861
    %3279 = vmatprep.subr.mxu0 0.0
    %3280 = vmatpush1.msra.mxu0 %v2860
    %3281 = vmatprep.subr.mxu0 0.0
    %3282 = vmatpush1.msra.mxu0 %v2859
    %3283 = vmatprep.subr.mxu0 0.0
    %3284 = vmatpush2.msra.mxu0 %v2890
    %3285 = vmatprep.subr.mxu0 0.0
    %3286 = vmatpush2.msra.mxu0 %v2889
    %3287 = vmatprep.subr.mxu0 0.0
    %3288 = vmatpush2.msra.mxu0 %v2888
    %3289 = vmatprep.subr.mxu0 0.0
    %3290 = vmatpush2.msra.mxu0 %v2887
    %3291 = vmatprep.subr.mxu0 0.0
    %3292 = vmatpush2.msra.mxu0 %v2886
    %3293 = vmatprep.subr.mxu0 0.0
    %3294 = vmatpush2.msra.mxu0 %v2885
    %3295 = vmatprep.subr.mxu0 0.0
    %3296 = vmatpush2.msra.mxu0 %v2884
    %3297 = vmatprep.subr.mxu0 0.0
    %3298 = vmatpush2.msra.mxu0 %v2883
    %3299 = vmatprep.subr.mxu0 0.0
    %3300 = vmatpush2.msra.mxu0 %v2882
    %3301 = vmatprep.subr.mxu0 0.0
    %3302 = vmatpush2.msra.mxu0 %v2881
    %3303 = vmatprep.subr.mxu0 0.0
    %3304 = vmatpush2.msra.mxu0 %v2880
    %3305 = vmatprep.subr.mxu0 0.0
    %3306 = vmatpush2.msra.mxu0 %v2879
    %3307 = vmatprep.subr.mxu0 0.0
    %3308 = vmatpush2.msra.mxu0 %v2878
    %3309 = vmatprep.subr.mxu0 0.0
    %3310 = vmatpush2.msra.mxu0 %v2877
    %3311 = vmatprep.subr.mxu0 0.0
    %3312 = vmatpush2.msra.mxu0 %v2876
    %3313 = vmatprep.subr.mxu0 0.0
    %3314 = vmatpush2.msra.mxu0 %v2875
    %3315 = vmatprep.mubr.f32.mxu0 %v2738
    %3316 = vmatmul.mubr.f32.gmra.mxu0 %v2737
    %v3317 = vpop.f32.mrf.mxu0
    %v3318 = vadd.f32 %v3243, %v3317
    %v3319 = vpop.f32.mrf.mxu0
    %3320 = vmatprep.mubr.f32.mxu0 %v2754
    %3321 = vmatmul.mubr.f32.gmra.mxu0 %v2753
    %v3322 = vpop.f32.mrf.mxu0
    %v3323 = vadd.f32 %v3248, %v3322
    %v3324 = vpop.f32.mrf.mxu0
    %3325 = vdwg.mxu0
    %3326 = vmatprep.subr.mxu0 0.0
    %3327 = vmatpush1.msra.mxu0 %v2906
    %3328 = vmatprep.subr.mxu0 0.0
    %3329 = vmatpush1.msra.mxu0 %v2905
    %3330 = vmatprep.subr.mxu0 0.0
    %3331 = vmatpush1.msra.mxu0 %v2904
    %3332 = vmatprep.subr.mxu0 0.0
    %3333 = vmatpush1.msra.mxu0 %v2903
    %3334 = vmatprep.subr.mxu0 0.0
    %3335 = vmatpush1.msra.mxu0 %v2902
    %3336 = vmatprep.subr.mxu0 0.0
    %3337 = vmatpush1.msra.mxu0 %v2901
    %3338 = vmatprep.subr.mxu0 0.0
    %3339 = vmatpush1.msra.mxu0 %v2900
    %3340 = vmatprep.subr.mxu0 0.0
    %3341 = vmatpush1.msra.mxu0 %v2899
    %3342 = vmatprep.subr.mxu0 0.0
    %3343 = vmatpush1.msra.mxu0 %v2898
    %3344 = vmatprep.subr.mxu0 0.0
    %3345 = vmatpush1.msra.mxu0 %v2897
    %3346 = vmatprep.subr.mxu0 0.0
    %3347 = vmatpush1.msra.mxu0 %v2896
    %3348 = vmatprep.subr.mxu0 0.0
    %3349 = vmatpush1.msra.mxu0 %v2895
    %3350 = vmatprep.subr.mxu0 0.0
    %3351 = vmatpush1.msra.mxu0 %v2894
    %3352 = vmatprep.subr.mxu0 0.0
    %3353 = vmatpush1.msra.mxu0 %v2893
    %3354 = vmatprep.subr.mxu0 0.0
    %3355 = vmatpush1.msra.mxu0 %v2892
    %3356 = vmatprep.subr.mxu0 0.0
    %3357 = vmatpush1.msra.mxu0 %v2891
    %3358 = vmatprep.subr.mxu0 0.0
    %3359 = vmatpush2.msra.mxu0 %v2922
    %3360 = vmatprep.subr.mxu0 0.0
    %3361 = vmatpush2.msra.mxu0 %v2921
    %3362 = vmatprep.subr.mxu0 0.0
    %3363 = vmatpush2.msra.mxu0 %v2920
    %3364 = vmatprep.subr.mxu0 0.0
    %3365 = vmatpush2.msra.mxu0 %v2919
    %3366 = vmatprep.subr.mxu0 0.0
    %3367 = vmatpush2.msra.mxu0 %v2918
    %3368 = vmatprep.subr.mxu0 0.0
    %3369 = vmatpush2.msra.mxu0 %v2917
    %3370 = vmatprep.subr.mxu0 0.0
    %3371 = vmatpush2.msra.mxu0 %v2916
    %3372 = vmatprep.subr.mxu0 0.0
    %3373 = vmatpush2.msra.mxu0 %v2915
    %3374 = vmatprep.subr.mxu0 0.0
    %3375 = vmatpush2.msra.mxu0 %v2914
    %3376 = vmatprep.subr.mxu0 0.0
    %3377 = vmatpush2.msra.mxu0 %v2913
    %3378 = vmatprep.subr.mxu0 0.0
    %3379 = vmatpush2.msra.mxu0 %v2912
    %3380 = vmatprep.subr.mxu0 0.0
    %3381 = vmatpush2.msra.mxu0 %v2911
    %3382 = vmatprep.subr.mxu0 0.0
    %3383 = vmatpush2.msra.mxu0 %v2910
    %3384 = vmatprep.subr.mxu0 0.0
    %3385 = vmatpush2.msra.mxu0 %v2909
    %3386 = vmatprep.subr.mxu0 0.0
    %3387 = vmatpush2.msra.mxu0 %v2908
    %3388 = vmatprep.subr.mxu0 0.0
    %3389 = vmatpush2.msra.mxu0 %v2907
    %3390 = vmatprep.mubr.f32.mxu0 %v2740
    %3391 = vmatmul.mubr.f32.gmra.mxu0 %v2739
    %v3392 = vpop.f32.mrf.mxu0
    %v3393 = vadd.f32 %v3318, %v3392
    %v3394 = vpop.f32.mrf.mxu0
    %3395 = vmatprep.mubr.f32.mxu0 %v2756
    %3396 = vmatmul.mubr.f32.gmra.mxu0 %v2755
    %v3397 = vpop.f32.mrf.mxu0
    %v3398 = vadd.f32 %v3323, %v3397
    %v3399 = vpop.f32.mrf.mxu0
    %3400 = vdwg.mxu0
    %3401 = vmatprep.subr.mxu0 0.0
    %3402 = vmatpush1.msra.mxu0 %v2938
    %3403 = vmatprep.subr.mxu0 0.0
    %3404 = vmatpush1.msra.mxu0 %v2937
    %3405 = vmatprep.subr.mxu0 0.0
    %3406 = vmatpush1.msra.mxu0 %v2936
    %3407 = vmatprep.subr.mxu0 0.0
    %3408 = vmatpush1.msra.mxu0 %v2935
    %3409 = vmatprep.subr.mxu0 0.0
    %3410 = vmatpush1.msra.mxu0 %v2934
    %3411 = vmatprep.subr.mxu0 0.0
    %3412 = vmatpush1.msra.mxu0 %v2933
    %3413 = vmatprep.subr.mxu0 0.0
    %3414 = vmatpush1.msra.mxu0 %v2932
    %3415 = vmatprep.subr.mxu0 0.0
    %3416 = vmatpush1.msra.mxu0 %v2931
    %3417 = vmatprep.subr.mxu0 0.0
    %3418 = vmatpush1.msra.mxu0 %v2930
    %3419 = vmatprep.subr.mxu0 0.0
    %3420 = vmatpush1.msra.mxu0 %v2929
    %3421 = vmatprep.subr.mxu0 0.0
    %3422 = vmatpush1.msra.mxu0 %v2928
    %3423 = vmatprep.subr.mxu0 0.0
    %3424 = vmatpush1.msra.mxu0 %v2927
    %3425 = vmatprep.subr.mxu0 0.0
    %3426 = vmatpush1.msra.mxu0 %v2926
    %3427 = vmatprep.subr.mxu0 0.0
    %3428 = vmatpush1.msra.mxu0 %v2925
    %3429 = vmatprep.subr.mxu0 0.0
    %3430 = vmatpush1.msra.mxu0 %v2924
    %3431 = vmatprep.subr.mxu0 0.0
    %3432 = vmatpush1.msra.mxu0 %v2923
    %3433 = vmatprep.subr.mxu0 0.0
    %3434 = vmatpush2.msra.mxu0 %v2954
    %3435 = vmatprep.subr.mxu0 0.0
    %3436 = vmatpush2.msra.mxu0 %v2953
    %3437 = vmatprep.subr.mxu0 0.0
    %3438 = vmatpush2.msra.mxu0 %v2952
    %3439 = vmatprep.subr.mxu0 0.0
    %3440 = vmatpush2.msra.mxu0 %v2951
    %3441 = vmatprep.subr.mxu0 0.0
    %3442 = vmatpush2.msra.mxu0 %v2950
    %3443 = vmatprep.subr.mxu0 0.0
    %3444 = vmatpush2.msra.mxu0 %v2949
    %3445 = vmatprep.subr.mxu0 0.0
    %3446 = vmatpush2.msra.mxu0 %v2948
    %3447 = vmatprep.subr.mxu0 0.0
    %3448 = vmatpush2.msra.mxu0 %v2947
    %3449 = vmatprep.subr.mxu0 0.0
    %3450 = vmatpush2.msra.mxu0 %v2946
    %3451 = vmatprep.subr.mxu0 0.0
    %3452 = vmatpush2.msra.mxu0 %v2945
    %3453 = vmatprep.subr.mxu0 0.0
    %3454 = vmatpush2.msra.mxu0 %v2944
    %3455 = vmatprep.subr.mxu0 0.0
    %3456 = vmatpush2.msra.mxu0 %v2943
    %3457 = vmatprep.subr.mxu0 0.0
    %3458 = vmatpush2.msra.mxu0 %v2942
    %3459 = vmatprep.subr.mxu0 0.0
    %3460 = vmatpush2.msra.mxu0 %v2941
    %3461 = vmatprep.subr.mxu0 0.0
    %3462 = vmatpush2.msra.mxu0 %v2940
    %3463 = vmatprep.subr.mxu0 0.0
    %3464 = vmatpush2.msra.mxu0 %v2939
    %3465 = vmatprep.mubr.f32.mxu0 %v2742
    %3466 = vmatmul.mubr.f32.gmra.mxu0 %v2741
    %v3467 = vpop.f32.mrf.mxu0
    %v3468 = vadd.f32 %v3393, %v3467
    %v3469 = vpop.f32.mrf.mxu0
    %3470 = vmatprep.mubr.f32.mxu0 %v2758
    %3471 = vmatmul.mubr.f32.gmra.mxu0 %v2757
    %v3472 = vpop.f32.mrf.mxu0
    %v3473 = vadd.f32 %v3398, %v3472
    %v3474 = vpop.f32.mrf.mxu0
    %3475 = vdwg.mxu0
    %3476 = vmatprep.subr.mxu0 0.0
    %3477 = vmatpush1.msra.mxu0 %v2970
    %3478 = vmatprep.subr.mxu0 0.0
    %3479 = vmatpush1.msra.mxu0 %v2969
    %3480 = vmatprep.subr.mxu0 0.0
    %3481 = vmatpush1.msra.mxu0 %v2968
    %3482 = vmatprep.subr.mxu0 0.0
    %3483 = vmatpush1.msra.mxu0 %v2967
    %3484 = vmatprep.subr.mxu0 0.0
    %3485 = vmatpush1.msra.mxu0 %v2966
    %3486 = vmatprep.subr.mxu0 0.0
    %3487 = vmatpush1.msra.mxu0 %v2965
    %3488 = vmatprep.subr.mxu0 0.0
    %3489 = vmatpush1.msra.mxu0 %v2964
    %3490 = vmatprep.subr.mxu0 0.0
    %3491 = vmatpush1.msra.mxu0 %v2963
    %3492 = vmatprep.subr.mxu0 0.0
    %3493 = vmatpush1.msra.mxu0 %v2962
    %3494 = vmatprep.subr.mxu0 0.0
    %3495 = vmatpush1.msra.mxu0 %v2961
    %3496 = vmatprep.subr.mxu0 0.0
    %3497 = vmatpush1.msra.mxu0 %v2960
    %3498 = vmatprep.subr.mxu0 0.0
    %3499 = vmatpush1.msra.mxu0 %v2959
    %3500 = vmatprep.subr.mxu0 0.0
    %3501 = vmatpush1.msra.mxu0 %v2958
    %3502 = vmatprep.subr.mxu0 0.0
    %3503 = vmatpush1.msra.mxu0 %v2957
    %3504 = vmatprep.subr.mxu0 0.0
    %3505 = vmatpush1.msra.mxu0 %v2956
    %3506 = vmatprep.subr.mxu0 0.0
    %3507 = vmatpush1.msra.mxu0 %v2955
    %3508 = vmatprep.subr.mxu0 0.0
    %3509 = vmatpush2.msra.mxu0 %v2986
    %3510 = vmatprep.subr.mxu0 0.0
    %3511 = vmatpush2.msra.mxu0 %v2985
    %3512 = vmatprep.subr.mxu0 0.0
    %3513 = vmatpush2.msra.mxu0 %v2984
    %3514 = vmatprep.subr.mxu0 0.0
    %3515 = vmatpush2.msra.mxu0 %v2983
    %3516 = vmatprep.subr.mxu0 0.0
    %3517 = vmatpush2.msra.mxu0 %v2982
    %3518 = vmatprep.subr.mxu0 0.0
    %3519 = vmatpush2.msra.mxu0 %v2981
    %3520 = vmatprep.subr.mxu0 0.0
    %3521 = vmatpush2.msra.mxu0 %v2980
    %3522 = vmatprep.subr.mxu0 0.0
    %3523 = vmatpush2.msra.mxu0 %v2979
    %3524 = vmatprep.subr.mxu0 0.0
    %3525 = vmatpush2.msra.mxu0 %v2978
    %3526 = vmatprep.subr.mxu0 0.0
    %3527 = vmatpush2.msra.mxu0 %v2977
    %3528 = vmatprep.subr.mxu0 0.0
    %3529 = vmatpush2.msra.mxu0 %v2976
    %3530 = vmatprep.subr.mxu0 0.0
    %3531 = vmatpush2.msra.mxu0 %v2975
    %3532 = vmatprep.subr.mxu0 0.0
    %3533 = vmatpush2.msra.mxu0 %v2974
    %3534 = vmatprep.subr.mxu0 0.0
    %3535 = vmatpush2.msra.mxu0 %v2973
    %3536 = vmatprep.subr.mxu0 0.0
    %3537 = vmatpush2.msra.mxu0 %v2972
    %3538 = vmatprep.subr.mxu0 0.0
    %3539 = vmatpush2.msra.mxu0 %v2971
    %3540 = vmatprep.mubr.f32.mxu0 %v2744
    %3541 = vmatmul.mubr.f32.gmra.mxu0 %v2743
    %v3542 = vpop.f32.mrf.mxu0
    %v3543 = vadd.f32 %v3468, %v3542
    %v3544 = vpop.f32.mrf.mxu0
    %3545 = vmatprep.mubr.f32.mxu0 %v2760
    %3546 = vmatmul.mubr.f32.gmra.mxu0 %v2759
    %v3547 = vpop.f32.mrf.mxu0
    %v3548 = vadd.f32 %v3473, %v3547
    %v3549 = vpop.f32.mrf.mxu0
    %3550 = vdwg.mxu0
    %3551 = vmatprep.subr.mxu0 0.0
    %3552 = vmatpush1.msra.mxu0 %v3002
    %3553 = vmatprep.subr.mxu0 0.0
    %3554 = vmatpush1.msra.mxu0 %v3001
    %3555 = vmatprep.subr.mxu0 0.0
    %3556 = vmatpush1.msra.mxu0 %v3000
    %3557 = vmatprep.subr.mxu0 0.0
    %3558 = vmatpush1.msra.mxu0 %v2999
    %3559 = vmatprep.subr.mxu0 0.0
    %3560 = vmatpush1.msra.mxu0 %v2998
    %3561 = vmatprep.subr.mxu0 0.0
    %3562 = vmatpush1.msra.mxu0 %v2997
    %3563 = vmatprep.subr.mxu0 0.0
    %3564 = vmatpush1.msra.mxu0 %v2996
    %3565 = vmatprep.subr.mxu0 0.0
    %3566 = vmatpush1.msra.mxu0 %v2995
    %3567 = vmatprep.subr.mxu0 0.0
    %3568 = vmatpush1.msra.mxu0 %v2994
    %3569 = vmatprep.subr.mxu0 0.0
    %3570 = vmatpush1.msra.mxu0 %v2993
    %3571 = vmatprep.subr.mxu0 0.0
    %3572 = vmatpush1.msra.mxu0 %v2992
    %3573 = vmatprep.subr.mxu0 0.0
    %3574 = vmatpush1.msra.mxu0 %v2991
    %3575 = vmatprep.subr.mxu0 0.0
    %3576 = vmatpush1.msra.mxu0 %v2990
    %3577 = vmatprep.subr.mxu0 0.0
    %3578 = vmatpush1.msra.mxu0 %v2989
    %3579 = vmatprep.subr.mxu0 0.0
    %3580 = vmatpush1.msra.mxu0 %v2988
    %3581 = vmatprep.subr.mxu0 0.0
    %3582 = vmatpush1.msra.mxu0 %v2987
    %3583 = vmatprep.subr.mxu0 0.0
    %3584 = vmatpush2.msra.mxu0 %v3018
    %3585 = vmatprep.subr.mxu0 0.0
    %3586 = vmatpush2.msra.mxu0 %v3017
    %3587 = vmatprep.subr.mxu0 0.0
    %3588 = vmatpush2.msra.mxu0 %v3016
    %3589 = vmatprep.subr.mxu0 0.0
    %3590 = vmatpush2.msra.mxu0 %v3015
    %3591 = vmatprep.subr.mxu0 0.0
    %3592 = vmatpush2.msra.mxu0 %v3014
    %3593 = vmatprep.subr.mxu0 0.0
    %3594 = vmatpush2.msra.mxu0 %v3013
    %3595 = vmatprep.subr.mxu0 0.0
    %3596 = vmatpush2.msra.mxu0 %v3012
    %3597 = vmatprep.subr.mxu0 0.0
    %3598 = vmatpush2.msra.mxu0 %v3011
    %3599 = vmatprep.subr.mxu0 0.0
    %3600 = vmatpush2.msra.mxu0 %v3010
    %3601 = vmatprep.subr.mxu0 0.0
    %3602 = vmatpush2.msra.mxu0 %v3009
    %3603 = vmatprep.subr.mxu0 0.0
    %3604 = vmatpush2.msra.mxu0 %v3008
    %3605 = vmatprep.subr.mxu0 0.0
    %3606 = vmatpush2.msra.mxu0 %v3007
    %3607 = vmatprep.subr.mxu0 0.0
    %3608 = vmatpush2.msra.mxu0 %v3006
    %3609 = vmatprep.subr.mxu0 0.0
    %3610 = vmatpush2.msra.mxu0 %v3005
    %3611 = vmatprep.subr.mxu0 0.0
    %3612 = vmatpush2.msra.mxu0 %v3004
    %3613 = vmatprep.subr.mxu0 0.0
    %3614 = vmatpush2.msra.mxu0 %v3003
    %3615 = vmatprep.mubr.f32.mxu0 %v2746
    %3616 = vmatmul.mubr.f32.gmra.mxu0 %v2745
    %v3617 = vpop.f32.mrf.mxu0
    %v3618 = vadd.f32 %v3543, %v3617
    %v3619 = vpop.f32.mrf.mxu0
    %3620 = vmatprep.mubr.f32.mxu0 %v2762
    %3621 = vmatmul.mubr.f32.gmra.mxu0 %v2761
    %v3622 = vpop.f32.mrf.mxu0
    %v3623 = vadd.f32 %v3548, %v3622
    %v3624 = vpop.f32.mrf.mxu0
    %3625 = vdwg.mxu0
    %v3626 = vadd.f32 %v1959, %v3618
    %v3627 = vadd.f32 %v1960, %v3623
    %v3628 = vld [vmem:[%s13] sm:$0x1]
    %v3629 = vld [vmem:[%s14] sm:$0x1]
    %v3630 = vsel %vm162, %v3626, 0.0
    %3631 = vadd.xlane.f32.xlu0 %v3630
    %v3632 = vpop.xlane.xlu0 %3631
    %v3633 = vsel %vm162, %v3627, 0.0
    %3634 = vadd.xlane.f32.xlu0 %v3633
    %v3635 = vpop.xlane.xlu0 %3634
    %v3636 = vmul.f32 %v3632, %v1924
    %v3637 = vmul.f32 %v3635, %v1924
    %v3638 = vsub.f32 %v3626, %v3636
    %v3639 = vsub.f32 %v3627, %v3637
    %v3640 = vmul.f32 %v3638, %v3638
    %v3641 = vmul.f32 %v3639, %v3639
    %v3642 = vsel %vm162, %v3640, 0.0
    %3643 = vadd.xlane.f32.xlu0 %v3642
    %v3644 = vpop.xlane.xlu0 %3643
    %v3645 = vsel %vm162, %v3641, 0.0
    %3646 = vadd.xlane.f32.xlu0 %v3645
    %v3647 = vpop.xlane.xlu0 %3646
    %v3648 = vmul.f32 %v3644, %v1924
    %v3649 = vmul.f32 %v3647, %v1924
    %v3650 = vadd.f32 %v3648, 1e-05
    %v3651 = vadd.f32 %v3649, 1e-05
    %v3652 = vrsqrt.pop %v3650
    %v3653 = vrsqrt.pop %v3651
    %v3654 = vmul.f32 %v3638, %v3652
    %v3655 = vmul.f32 %v3639, %v3653
    %v3657 = vlaneseq
    %v3658 = vshrl.u32 %v3657, 7
    %v3659 = vsub.s32 0, %v3658
    %v3660 = vrot.slane %v3628, %v3659
    %v3662 = vmul.f32 %v3654, %v3660
    %v3663 = vmul.f32 %v3655, %v3660
    %v3665 = vlaneseq
    %v3666 = vshrl.u32 %v3665, 7
    %v3667 = vsub.s32 0, %v3666
    %v3668 = vrot.slane %v3629, %v3667
    %v3670 = vadd.f32 %v3662, %v3668
    %v3671 = vadd.f32 %v3663, %v3668
    %s3672 = scalar_lea.vmem %s3, 32
    %v3673 = vld [vmem:[%s3672] sm:$0xff]
    %v3674 = vld [vmem:[%s3672 + $0x8] sm:$0xff]
    %v3675 = vld [vmem:[%s3672 + $0x10] sm:$0xff]
    %v3676 = vld [vmem:[%s3672 + $0x18] sm:$0xff]
    %s3677 = scalar_lea.vmem %s4, 1
    %v3678 = vld [vmem:[%s3677] sm:$0x1]
    %v3680 = vlaneseq
    %v3681 = vshrl.u32 %v3680, 7
    %v3682 = vsub.s32 0, %v3681
    %v3683 = vrot.slane %v3678, %v3682
    %v3686 = vsel %vm162, %v3670, 0
    %v3689 = vsel %vm162, %v3671, 0
    %3691 = vmatprep.subr.mxu0 0.0
    %3692 = vmatpush1.msra.mxu0 0.0
    %3693 = vmatprep.subr.mxu0 0.0
    %3694 = vmatpush1.msra.mxu0 0.0
    %3695 = vmatprep.subr.mxu0 0.0
    %3696 = vmatpush1.msra.mxu0 0.0
    %3697 = vmatprep.subr.mxu0 0.0
    %3698 = vmatpush1.msra.mxu0 0.0
    %3699 = vmatprep.subr.mxu0 0.0
    %3700 = vmatpush1.msra.mxu0 0.0
    %3701 = vmatprep.subr.mxu0 0.0
    %3702 = vmatpush1.msra.mxu0 0.0
    %3703 = vmatprep.subr.mxu0 0.0
    %3704 = vmatpush1.msra.mxu0 0.0
    %3705 = vmatprep.subr.mxu0 0.0
    %3706 = vmatpush1.msra.mxu0 0.0
    %3707 = vmatprep.subr.mxu0 0.0
    %3708 = vmatpush1.msra.mxu0 0.0
    %3709 = vmatprep.subr.mxu0 0.0
    %3710 = vmatpush1.msra.mxu0 0.0
    %3711 = vmatprep.subr.mxu0 0.0
    %3712 = vmatpush1.msra.mxu0 0.0
    %3713 = vmatprep.subr.mxu0 0.0
    %3714 = vmatpush1.msra.mxu0 0.0
    %3715 = vmatprep.subr.mxu0 0.0
    %3716 = vmatpush1.msra.mxu0 %v3676
    %3717 = vmatprep.subr.mxu0 0.0
    %3718 = vmatpush1.msra.mxu0 %v3675
    %3719 = vmatprep.subr.mxu0 0.0
    %3720 = vmatpush1.msra.mxu0 %v3674
    %3721 = vmatprep.subr.mxu0 0.0
    %3722 = vmatpush1.msra.mxu0 %v3673
    %3723 = vmatprep.subr.mxu0 0.0
    %3724 = vmatpush2.msra.mxu0 0.0
    %3725 = vmatprep.subr.mxu0 0.0
    %3726 = vmatpush2.msra.mxu0 0.0
    %3727 = vmatprep.subr.mxu0 0.0
    %3728 = vmatpush2.msra.mxu0 0.0
    %3729 = vmatprep.subr.mxu0 0.0
    %3730 = vmatpush2.msra.mxu0 0.0
    %3731 = vmatprep.subr.mxu0 0.0
    %3732 = vmatpush2.msra.mxu0 0.0
    %3733 = vmatprep.subr.mxu0 0.0
    %3734 = vmatpush2.msra.mxu0 0.0
    %3735 = vmatprep.subr.mxu0 0.0
    %3736 = vmatpush2.msra.mxu0 0.0
    %3737 = vmatprep.subr.mxu0 0.0
    %3738 = vmatpush2.msra.mxu0 0.0
    %3739 = vmatprep.subr.mxu0 0.0
    %3740 = vmatpush2.msra.mxu0 0.0
    %3741 = vmatprep.subr.mxu0 0.0
    %3742 = vmatpush2.msra.mxu0 0.0
    %3743 = vmatprep.subr.mxu0 0.0
    %3744 = vmatpush2.msra.mxu0 0.0
    %3745 = vmatprep.subr.mxu0 0.0
    %3746 = vmatpush2.msra.mxu0 0.0
    %3747 = vmatprep.subr.mxu0 0.0
    %3748 = vmatpush2.msra.mxu0 0.0
    %3749 = vmatprep.subr.mxu0 0.0
    %3750 = vmatpush2.msra.mxu0 0.0
    %3751 = vmatprep.subr.mxu0 0.0
    %3752 = vmatpush2.msra.mxu0 0.0
    %3753 = vmatprep.subr.mxu0 0.0
    %3754 = vmatpush2.msra.mxu0 0.0
    %3755 = vmatprep.mubr.f32.mxu0 0.0
    %3756 = vmatmul.mubr.f32.gmra.mxu0 %v3686
    %v3757 = vpop.f32.mrf.mxu0
    %v3758 = vadd.f32 %v3683, %v3757
    %v3759 = vpop.f32.mrf.mxu0
    %3760 = vmatprep.mubr.f32.mxu0 0.0
    %3761 = vmatmul.mubr.f32.gmra.mxu0 %v3689
    %v3762 = vpop.f32.mrf.mxu0
    %v3763 = vadd.f32 %v3683, %v3762
    %v3764 = vpop.f32.mrf.mxu0
    %3765 = vdwg.mxu0
    %3767 = vrot.lane.b32.xlu0 %v3758, 96
    %v3768 = vpop.permute.xlu0 %3767
    %v3769 = vsel %vm67, %v3758, 0
    %v3771 = vsel %vm67, %v3768, 0
    %3773 = vmatprep.subr.mxu0 0.0
    %3774 = vmatpush1.xpose.msra.mxu0 0.0
    %3775 = vmatprep.subr.mxu0 0.0
    %3776 = vmatpush1.xpose.msra.mxu0 0.0
    %3777 = vmatprep.subr.mxu0 0.0
    %3778 = vmatpush1.xpose.msra.mxu0 0.0
    %3779 = vmatprep.subr.mxu0 0.0
    %3780 = vmatpush1.xpose.msra.mxu0 0.0
    %3781 = vmatprep.subr.mxu0 0.0
    %3782 = vmatpush1.xpose.msra.mxu0 0.0
    %3783 = vmatprep.subr.mxu0 0.0
    %3784 = vmatpush1.xpose.msra.mxu0 0.0
    %3785 = vmatprep.subr.mxu0 0.0
    %3786 = vmatpush1.xpose.msra.mxu0 0.0
    %3787 = vmatprep.subr.mxu0 0.0
    %3788 = vmatpush1.xpose.msra.mxu0 0.0
    %3789 = vmatprep.subr.mxu0 0.0
    %3790 = vmatpush1.xpose.msra.mxu0 0.0
    %3791 = vmatprep.subr.mxu0 0.0
    %3792 = vmatpush1.xpose.msra.mxu0 0.0
    %3793 = vmatprep.subr.mxu0 0.0
    %3794 = vmatpush1.xpose.msra.mxu0 0.0
    %3795 = vmatprep.subr.mxu0 0.0
    %3796 = vmatpush1.xpose.msra.mxu0 0.0
    %3797 = vmatprep.subr.mxu0 0.0
    %3798 = vmatpush1.xpose.msra.mxu0 0.0
    %3799 = vmatprep.subr.mxu0 0.0
    %3800 = vmatpush1.xpose.msra.mxu0 0.0
    %3801 = vmatprep.subr.mxu0 0.0
    %3802 = vmatpush1.xpose.msra.mxu0 0.0
    %3803 = vmatprep.subr.mxu0 0.0
    %3804 = vmatpush1.xpose.msra.mxu0 %v3771
    %3805 = vmatprep.subr.mxu0 0.0
    %3806 = vmatpush2.xpose.msra.mxu0 0.0
    %3807 = vmatprep.subr.mxu0 0.0
    %3808 = vmatpush2.xpose.msra.mxu0 0.0
    %3809 = vmatprep.subr.mxu0 0.0
    %3810 = vmatpush2.xpose.msra.mxu0 0.0
    %3811 = vmatprep.subr.mxu0 0.0
    %3812 = vmatpush2.xpose.msra.mxu0 0.0
    %3813 = vmatprep.subr.mxu0 0.0
    %3814 = vmatpush2.xpose.msra.mxu0 0.0
    %3815 = vmatprep.subr.mxu0 0.0
    %3816 = vmatpush2.xpose.msra.mxu0 0.0
    %3817 = vmatprep.subr.mxu0 0.0
    %3818 = vmatpush2.xpose.msra.mxu0 0.0
    %3819 = vmatprep.subr.mxu0 0.0
    %3820 = vmatpush2.xpose.msra.mxu0 0.0
    %3821 = vmatprep.subr.mxu0 0.0
    %3822 = vmatpush2.xpose.msra.mxu0 0.0
    %3823 = vmatprep.subr.mxu0 0.0
    %3824 = vmatpush2.xpose.msra.mxu0 0.0
    %3825 = vmatprep.subr.mxu0 0.0
    %3826 = vmatpush2.xpose.msra.mxu0 0.0
    %3827 = vmatprep.subr.mxu0 0.0
    %3828 = vmatpush2.xpose.msra.mxu0 0.0
    %3829 = vmatprep.subr.mxu0 0.0
    %3830 = vmatpush2.xpose.msra.mxu0 0.0
    %3831 = vmatprep.subr.mxu0 0.0
    %3832 = vmatpush2.xpose.msra.mxu0 0.0
    %3833 = vmatprep.subr.mxu0 0.0
    %3834 = vmatpush2.xpose.msra.mxu0 0.0
    %3835 = vmatprep.subr.mxu0 0.0
    %3836 = vmatpush2.xpose.msra.mxu0 0.0
    %3837 = vmatprep.mubr.f32.mxu0 0.0
    %3838 = vmatmul.mubr.f32.gmra.mxu0 %v3769
    %v3839 = vpop.f32.mrf.mxu0
    %v3840 = vadd.f32 0.0, %v3839
    %v3841 = vpop.f32.mrf.mxu0
    %3842 = vdwg.mxu0
    %3844 = vrot.lane.b32.xlu0 %v3763, 96
    %v3845 = vpop.permute.xlu0 %3844
    %v3846 = vsel %vm67, %v3763, 0
    %v3848 = vsel %vm67, %v3845, 0
    %3850 = vmatprep.subr.mxu0 0.0
    %3851 = vmatpush1.xpose.msra.mxu0 0.0
    %3852 = vmatprep.subr.mxu0 0.0
    %3853 = vmatpush1.xpose.msra.mxu0 0.0
    %3854 = vmatprep.subr.mxu0 0.0
    %3855 = vmatpush1.xpose.msra.mxu0 0.0
    %3856 = vmatprep.subr.mxu0 0.0
    %3857 = vmatpush1.xpose.msra.mxu0 0.0
    %3858 = vmatprep.subr.mxu0 0.0
    %3859 = vmatpush1.xpose.msra.mxu0 0.0
    %3860 = vmatprep.subr.mxu0 0.0
    %3861 = vmatpush1.xpose.msra.mxu0 0.0
    %3862 = vmatprep.subr.mxu0 0.0
    %3863 = vmatpush1.xpose.msra.mxu0 0.0
    %3864 = vmatprep.subr.mxu0 0.0
    %3865 = vmatpush1.xpose.msra.mxu0 0.0
    %3866 = vmatprep.subr.mxu0 0.0
    %3867 = vmatpush1.xpose.msra.mxu0 0.0
    %3868 = vmatprep.subr.mxu0 0.0
    %3869 = vmatpush1.xpose.msra.mxu0 0.0
    %3870 = vmatprep.subr.mxu0 0.0
    %3871 = vmatpush1.xpose.msra.mxu0 0.0
    %3872 = vmatprep.subr.mxu0 0.0
    %3873 = vmatpush1.xpose.msra.mxu0 0.0
    %3874 = vmatprep.subr.mxu0 0.0
    %3875 = vmatpush1.xpose.msra.mxu0 0.0
    %3876 = vmatprep.subr.mxu0 0.0
    %3877 = vmatpush1.xpose.msra.mxu0 0.0
    %3878 = vmatprep.subr.mxu0 0.0
    %3879 = vmatpush1.xpose.msra.mxu0 0.0
    %3880 = vmatprep.subr.mxu0 0.0
    %3881 = vmatpush1.xpose.msra.mxu0 %v3848
    %3882 = vmatprep.subr.mxu0 0.0
    %3883 = vmatpush2.xpose.msra.mxu0 0.0
    %3884 = vmatprep.subr.mxu0 0.0
    %3885 = vmatpush2.xpose.msra.mxu0 0.0
    %3886 = vmatprep.subr.mxu0 0.0
    %3887 = vmatpush2.xpose.msra.mxu0 0.0
    %3888 = vmatprep.subr.mxu0 0.0
    %3889 = vmatpush2.xpose.msra.mxu0 0.0
    %3890 = vmatprep.subr.mxu0 0.0
    %3891 = vmatpush2.xpose.msra.mxu0 0.0
    %3892 = vmatprep.subr.mxu0 0.0
    %3893 = vmatpush2.xpose.msra.mxu0 0.0
    %3894 = vmatprep.subr.mxu0 0.0
    %3895 = vmatpush2.xpose.msra.mxu0 0.0
    %3896 = vmatprep.subr.mxu0 0.0
    %3897 = vmatpush2.xpose.msra.mxu0 0.0
    %3898 = vmatprep.subr.mxu0 0.0
    %3899 = vmatpush2.xpose.msra.mxu0 0.0
    %3900 = vmatprep.subr.mxu0 0.0
    %3901 = vmatpush2.xpose.msra.mxu0 0.0
    %3902 = vmatprep.subr.mxu0 0.0
    %3903 = vmatpush2.xpose.msra.mxu0 0.0
    %3904 = vmatprep.subr.mxu0 0.0
    %3905 = vmatpush2.xpose.msra.mxu0 0.0
    %3906 = vmatprep.subr.mxu0 0.0
    %3907 = vmatpush2.xpose.msra.mxu0 0.0
    %3908 = vmatprep.subr.mxu0 0.0
    %3909 = vmatpush2.xpose.msra.mxu0 0.0
    %3910 = vmatprep.subr.mxu0 0.0
    %3911 = vmatpush2.xpose.msra.mxu0 0.0
    %3912 = vmatprep.subr.mxu0 0.0
    %3913 = vmatpush2.xpose.msra.mxu0 0.0
    %3914 = vmatprep.mubr.f32.mxu0 0.0
    %3915 = vmatmul.mubr.f32.gmra.mxu0 %v3846
    %v3916 = vpop.f32.mrf.mxu0
    %v3917 = vadd.f32 0.0, %v3916
    %v3918 = vpop.f32.mrf.mxu0
    %3919 = vdwg.mxu0
    %v3920 = vmul.f32 %v3840, 0.35355338
    %v3921 = vmul.f32 %v3917, 0.35355338
    %v3922 = vsel %vm67, %v3920, -inf
    %3923 = vmax.xlane.f32.xlu0 %v3922
    %v3924 = vpop.xlane.xlu0 %3923
    %v3925 = vsel %vm67, %v3921, -inf
    %3926 = vmax.xlane.f32.xlu0 %v3925
    %v3927 = vpop.xlane.xlu0 %3926
    %v3928 = vsub.f32 %v3920, %v3924
    %v3929 = vsub.f32 %v3921, %v3927
    %v3930 = vmul.f32 %v3928, 1.442695
    %v3931 = vpow.pop %v3930
    %v3932 = vmul.f32 %v3929, 1.442695
    %v3933 = vpow.pop %v3932
    %v3934 = vsel %vm67, %v3931, 0.0
    %3935 = vadd.xlane.f32.xlu0 %v3934
    %v3936 = vpop.xlane.xlu0 %3935
    %v3937 = vsel %vm67, %v3933, 0.0
    %3938 = vadd.xlane.f32.xlu0 %v3937
    %v3939 = vpop.xlane.xlu0 %3938
    %v3940 = vrcp.pop %v3936
    %v3941 = vrcp.pop %v3939
    %v3942 = vmul.f32 %v3931, %v3940
    %v3943 = vmul.f32 %v3933, %v3941
    %3944 = vrot.lane.b32.xlu0 %v3758, 64
    %v3945 = vpop.permute.xlu0 %3944
    %v3948 = vsel %vm67, %v3942, 0
    %3950 = vmatprep.subr.mxu0 0.0
    %3951 = vmatpush1.msra.mxu0 0.0
    %3952 = vmatprep.subr.mxu0 0.0
    %3953 = vmatpush1.msra.mxu0 0.0
    %3954 = vmatprep.subr.mxu0 0.0
    %3955 = vmatpush1.msra.mxu0 0.0
    %3956 = vmatprep.subr.mxu0 0.0
    %3957 = vmatpush1.msra.mxu0 0.0
    %3958 = vmatprep.subr.mxu0 0.0
    %3959 = vmatpush1.msra.mxu0 0.0
    %3960 = vmatprep.subr.mxu0 0.0
    %3961 = vmatpush1.msra.mxu0 0.0
    %3962 = vmatprep.subr.mxu0 0.0
    %3963 = vmatpush1.msra.mxu0 0.0
    %3964 = vmatprep.subr.mxu0 0.0
    %3965 = vmatpush1.msra.mxu0 0.0
    %3966 = vmatprep.subr.mxu0 0.0
    %3967 = vmatpush1.msra.mxu0 0.0
    %3968 = vmatprep.subr.mxu0 0.0
    %3969 = vmatpush1.msra.mxu0 0.0
    %3970 = vmatprep.subr.mxu0 0.0
    %3971 = vmatpush1.msra.mxu0 0.0
    %3972 = vmatprep.subr.mxu0 0.0
    %3973 = vmatpush1.msra.mxu0 0.0
    %3974 = vmatprep.subr.mxu0 0.0
    %3975 = vmatpush1.msra.mxu0 0.0
    %3976 = vmatprep.subr.mxu0 0.0
    %3977 = vmatpush1.msra.mxu0 0.0
    %3978 = vmatprep.subr.mxu0 0.0
    %3979 = vmatpush1.msra.mxu0 0.0
    %3980 = vmatprep.subr.mxu0 0.0
    %3981 = vmatpush1.msra.mxu0 %v3945
    %3982 = vmatprep.subr.mxu0 0.0
    %3983 = vmatpush2.msra.mxu0 0.0
    %3984 = vmatprep.subr.mxu0 0.0
    %3985 = vmatpush2.msra.mxu0 0.0
    %3986 = vmatprep.subr.mxu0 0.0
    %3987 = vmatpush2.msra.mxu0 0.0
    %3988 = vmatprep.subr.mxu0 0.0
    %3989 = vmatpush2.msra.mxu0 0.0
    %3990 = vmatprep.subr.mxu0 0.0
    %3991 = vmatpush2.msra.mxu0 0.0
    %3992 = vmatprep.subr.mxu0 0.0
    %3993 = vmatpush2.msra.mxu0 0.0
    %3994 = vmatprep.subr.mxu0 0.0
    %3995 = vmatpush2.msra.mxu0 0.0
    %3996 = vmatprep.subr.mxu0 0.0
    %3997 = vmatpush2.msra.mxu0 0.0
    %3998 = vmatprep.subr.mxu0 0.0
    %3999 = vmatpush2.msra.mxu0 0.0
    %4000 = vmatprep.subr.mxu0 0.0
    %4001 = vmatpush2.msra.mxu0 0.0
    %4002 = vmatprep.subr.mxu0 0.0
    %4003 = vmatpush2.msra.mxu0 0.0
    %4004 = vmatprep.subr.mxu0 0.0
    %4005 = vmatpush2.msra.mxu0 0.0
    %4006 = vmatprep.subr.mxu0 0.0
    %4007 = vmatpush2.msra.mxu0 0.0
    %4008 = vmatprep.subr.mxu0 0.0
    %4009 = vmatpush2.msra.mxu0 0.0
    %4010 = vmatprep.subr.mxu0 0.0
    %4011 = vmatpush2.msra.mxu0 0.0
    %4012 = vmatprep.subr.mxu0 0.0
    %4013 = vmatpush2.msra.mxu0 0.0
    %4014 = vmatprep.mubr.f32.mxu0 0.0
    %4015 = vmatmul.mubr.f32.gmra.mxu0 %v3948
    %v4016 = vpop.f32.mrf.mxu0
    %v4017 = vadd.f32 0.0, %v4016
    %v4018 = vpop.f32.mrf.mxu0
    %4019 = vdwg.mxu0
    %4020 = vrot.lane.b32.xlu0 %v3763, 64
    %v4021 = vpop.permute.xlu0 %4020
    %v4024 = vsel %vm67, %v3943, 0
    %4026 = vmatprep.subr.mxu0 0.0
    %4027 = vmatpush1.msra.mxu0 0.0
    %4028 = vmatprep.subr.mxu0 0.0
    %4029 = vmatpush1.msra.mxu0 0.0
    %4030 = vmatprep.subr.mxu0 0.0
    %4031 = vmatpush1.msra.mxu0 0.0
    %4032 = vmatprep.subr.mxu0 0.0
    %4033 = vmatpush1.msra.mxu0 0.0
    %4034 = vmatprep.subr.mxu0 0.0
    %4035 = vmatpush1.msra.mxu0 0.0
    %4036 = vmatprep.subr.mxu0 0.0
    %4037 = vmatpush1.msra.mxu0 0.0
    %4038 = vmatprep.subr.mxu0 0.0
    %4039 = vmatpush1.msra.mxu0 0.0
    %4040 = vmatprep.subr.mxu0 0.0
    %4041 = vmatpush1.msra.mxu0 0.0
    %4042 = vmatprep.subr.mxu0 0.0
    %4043 = vmatpush1.msra.mxu0 0.0
    %4044 = vmatprep.subr.mxu0 0.0
    %4045 = vmatpush1.msra.mxu0 0.0
    %4046 = vmatprep.subr.mxu0 0.0
    %4047 = vmatpush1.msra.mxu0 0.0
    %4048 = vmatprep.subr.mxu0 0.0
    %4049 = vmatpush1.msra.mxu0 0.0
    %4050 = vmatprep.subr.mxu0 0.0
    %4051 = vmatpush1.msra.mxu0 0.0
    %4052 = vmatprep.subr.mxu0 0.0
    %4053 = vmatpush1.msra.mxu0 0.0
    %4054 = vmatprep.subr.mxu0 0.0
    %4055 = vmatpush1.msra.mxu0 0.0
    %4056 = vmatprep.subr.mxu0 0.0
    %4057 = vmatpush1.msra.mxu0 %v4021
    %4058 = vmatprep.subr.mxu0 0.0
    %4059 = vmatpush2.msra.mxu0 0.0
    %4060 = vmatprep.subr.mxu0 0.0
    %4061 = vmatpush2.msra.mxu0 0.0
    %4062 = vmatprep.subr.mxu0 0.0
    %4063 = vmatpush2.msra.mxu0 0.0
    %4064 = vmatprep.subr.mxu0 0.0
    %4065 = vmatpush2.msra.mxu0 0.0
    %4066 = vmatprep.subr.mxu0 0.0
    %4067 = vmatpush2.msra.mxu0 0.0
    %4068 = vmatprep.subr.mxu0 0.0
    %4069 = vmatpush2.msra.mxu0 0.0
    %4070 = vmatprep.subr.mxu0 0.0
    %4071 = vmatpush2.msra.mxu0 0.0
    %4072 = vmatprep.subr.mxu0 0.0
    %4073 = vmatpush2.msra.mxu0 0.0
    %4074 = vmatprep.subr.mxu0 0.0
    %4075 = vmatpush2.msra.mxu0 0.0
    %4076 = vmatprep.subr.mxu0 0.0
    %4077 = vmatpush2.msra.mxu0 0.0
    %4078 = vmatprep.subr.mxu0 0.0
    %4079 = vmatpush2.msra.mxu0 0.0
    %4080 = vmatprep.subr.mxu0 0.0
    %4081 = vmatpush2.msra.mxu0 0.0
    %4082 = vmatprep.subr.mxu0 0.0
    %4083 = vmatpush2.msra.mxu0 0.0
    %4084 = vmatprep.subr.mxu0 0.0
    %4085 = vmatpush2.msra.mxu0 0.0
    %4086 = vmatprep.subr.mxu0 0.0
    %4087 = vmatpush2.msra.mxu0 0.0
    %4088 = vmatprep.subr.mxu0 0.0
    %4089 = vmatpush2.msra.mxu0 0.0
    %4090 = vmatprep.mubr.f32.mxu0 0.0
    %4091 = vmatmul.mubr.f32.gmra.mxu0 %v4024
    %v4092 = vpop.f32.mrf.mxu0
    %v4093 = vadd.f32 0.0, %v4092
    %v4094 = vpop.f32.mrf.mxu0
    %4095 = vdwg.mxu0
    %s4096 = scalar_lea.vmem %s5, 32
    %v4097 = vld [vmem:[%s4096] sm:$0xff]
    %4098 = vrot.lane.b32.xlu0 %v3758, 120
    %v4099 = vpop.permute.xlu0 %4098
    %4100 = vrot.lane.b32.xlu0 %v3758, 88
    %v4101 = vpop.permute.xlu0 %4100
    %v4102 = vsel %vm67, %v4099, 0
    %v4104 = vsel %vm67, %v4101, 0
    %4106 = vmatprep.subr.mxu0 0.0
    %4107 = vmatpush1.xpose.msra.mxu0 0.0
    %4108 = vmatprep.subr.mxu0 0.0
    %4109 = vmatpush1.xpose.msra.mxu0 0.0
    %4110 = vmatprep.subr.mxu0 0.0
    %4111 = vmatpush1.xpose.msra.mxu0 0.0
    %4112 = vmatprep.subr.mxu0 0.0
    %4113 = vmatpush1.xpose.msra.mxu0 0.0
    %4114 = vmatprep.subr.mxu0 0.0
    %4115 = vmatpush1.xpose.msra.mxu0 0.0
    %4116 = vmatprep.subr.mxu0 0.0
    %4117 = vmatpush1.xpose.msra.mxu0 0.0
    %4118 = vmatprep.subr.mxu0 0.0
    %4119 = vmatpush1.xpose.msra.mxu0 0.0
    %4120 = vmatprep.subr.mxu0 0.0
    %4121 = vmatpush1.xpose.msra.mxu0 0.0
    %4122 = vmatprep.subr.mxu0 0.0
    %4123 = vmatpush1.xpose.msra.mxu0 0.0
    %4124 = vmatprep.subr.mxu0 0.0
    %4125 = vmatpush1.xpose.msra.mxu0 0.0
    %4126 = vmatprep.subr.mxu0 0.0
    %4127 = vmatpush1.xpose.msra.mxu0 0.0
    %4128 = vmatprep.subr.mxu0 0.0
    %4129 = vmatpush1.xpose.msra.mxu0 0.0
    %4130 = vmatprep.subr.mxu0 0.0
    %4131 = vmatpush1.xpose.msra.mxu0 0.0
    %4132 = vmatprep.subr.mxu0 0.0
    %4133 = vmatpush1.xpose.msra.mxu0 0.0
    %4134 = vmatprep.subr.mxu0 0.0
    %4135 = vmatpush1.xpose.msra.mxu0 0.0
    %4136 = vmatprep.subr.mxu0 0.0
    %4137 = vmatpush1.xpose.msra.mxu0 %v4104
    %4138 = vmatprep.subr.mxu0 0.0
    %4139 = vmatpush2.xpose.msra.mxu0 0.0
    %4140 = vmatprep.subr.mxu0 0.0
    %4141 = vmatpush2.xpose.msra.mxu0 0.0
    %4142 = vmatprep.subr.mxu0 0.0
    %4143 = vmatpush2.xpose.msra.mxu0 0.0
    %4144 = vmatprep.subr.mxu0 0.0
    %4145 = vmatpush2.xpose.msra.mxu0 0.0
    %4146 = vmatprep.subr.mxu0 0.0
    %4147 = vmatpush2.xpose.msra.mxu0 0.0
    %4148 = vmatprep.subr.mxu0 0.0
    %4149 = vmatpush2.xpose.msra.mxu0 0.0
    %4150 = vmatprep.subr.mxu0 0.0
    %4151 = vmatpush2.xpose.msra.mxu0 0.0
    %4152 = vmatprep.subr.mxu0 0.0
    %4153 = vmatpush2.xpose.msra.mxu0 0.0
    %4154 = vmatprep.subr.mxu0 0.0
    %4155 = vmatpush2.xpose.msra.mxu0 0.0
    %4156 = vmatprep.subr.mxu0 0.0
    %4157 = vmatpush2.xpose.msra.mxu0 0.0
    %4158 = vmatprep.subr.mxu0 0.0
    %4159 = vmatpush2.xpose.msra.mxu0 0.0
    %4160 = vmatprep.subr.mxu0 0.0
    %4161 = vmatpush2.xpose.msra.mxu0 0.0
    %4162 = vmatprep.subr.mxu0 0.0
    %4163 = vmatpush2.xpose.msra.mxu0 0.0
    %4164 = vmatprep.subr.mxu0 0.0
    %4165 = vmatpush2.xpose.msra.mxu0 0.0
    %4166 = vmatprep.subr.mxu0 0.0
    %4167 = vmatpush2.xpose.msra.mxu0 0.0
    %4168 = vmatprep.subr.mxu0 0.0
    %4169 = vmatpush2.xpose.msra.mxu0 0.0
    %4170 = vmatprep.mubr.f32.mxu0 0.0
    %4171 = vmatmul.mubr.f32.gmra.mxu0 %v4102
    %v4172 = vpop.f32.mrf.mxu0
    %v4173 = vadd.f32 0.0, %v4172
    %v4174 = vpop.f32.mrf.mxu0
    %4175 = vdwg.mxu0
    %4176 = vrot.lane.b32.xlu0 %v3763, 120
    %v4177 = vpop.permute.xlu0 %4176
    %4178 = vrot.lane.b32.xlu0 %v3763, 88
    %v4179 = vpop.permute.xlu0 %4178
    %v4180 = vsel %vm67, %v4177, 0
    %v4182 = vsel %vm67, %v4179, 0
    %4184 = vmatprep.subr.mxu0 0.0
    %4185 = vmatpush1.xpose.msra.mxu0 0.0
    %4186 = vmatprep.subr.mxu0 0.0
    %4187 = vmatpush1.xpose.msra.mxu0 0.0
    %4188 = vmatprep.subr.mxu0 0.0
    %4189 = vmatpush1.xpose.msra.mxu0 0.0
    %4190 = vmatprep.subr.mxu0 0.0
    %4191 = vmatpush1.xpose.msra.mxu0 0.0
    %4192 = vmatprep.subr.mxu0 0.0
    %4193 = vmatpush1.xpose.msra.mxu0 0.0
    %4194 = vmatprep.subr.mxu0 0.0
    %4195 = vmatpush1.xpose.msra.mxu0 0.0
    %4196 = vmatprep.subr.mxu0 0.0
    %4197 = vmatpush1.xpose.msra.mxu0 0.0
    %4198 = vmatprep.subr.mxu0 0.0
    %4199 = vmatpush1.xpose.msra.mxu0 0.0
    %4200 = vmatprep.subr.mxu0 0.0
    %4201 = vmatpush1.xpose.msra.mxu0 0.0
    %4202 = vmatprep.subr.mxu0 0.0
    %4203 = vmatpush1.xpose.msra.mxu0 0.0
    %4204 = vmatprep.subr.mxu0 0.0
    %4205 = vmatpush1.xpose.msra.mxu0 0.0
    %4206 = vmatprep.subr.mxu0 0.0
    %4207 = vmatpush1.xpose.msra.mxu0 0.0
    %4208 = vmatprep.subr.mxu0 0.0
    %4209 = vmatpush1.xpose.msra.mxu0 0.0
    %4210 = vmatprep.subr.mxu0 0.0
    %4211 = vmatpush1.xpose.msra.mxu0 0.0
    %4212 = vmatprep.subr.mxu0 0.0
    %4213 = vmatpush1.xpose.msra.mxu0 0.0
    %4214 = vmatprep.subr.mxu0 0.0
    %4215 = vmatpush1.xpose.msra.mxu0 %v4182
    %4216 = vmatprep.subr.mxu0 0.0
    %4217 = vmatpush2.xpose.msra.mxu0 0.0
    %4218 = vmatprep.subr.mxu0 0.0
    %4219 = vmatpush2.xpose.msra.mxu0 0.0
    %4220 = vmatprep.subr.mxu0 0.0
    %4221 = vmatpush2.xpose.msra.mxu0 0.0
    %4222 = vmatprep.subr.mxu0 0.0
    %4223 = vmatpush2.xpose.msra.mxu0 0.0
    %4224 = vmatprep.subr.mxu0 0.0
    %4225 = vmatpush2.xpose.msra.mxu0 0.0
    %4226 = vmatprep.subr.mxu0 0.0
    %4227 = vmatpush2.xpose.msra.mxu0 0.0
    %4228 = vmatprep.subr.mxu0 0.0
    %4229 = vmatpush2.xpose.msra.mxu0 0.0
    %4230 = vmatprep.subr.mxu0 0.0
    %4231 = vmatpush2.xpose.msra.mxu0 0.0
    %4232 = vmatprep.subr.mxu0 0.0
    %4233 = vmatpush2.xpose.msra.mxu0 0.0
    %4234 = vmatprep.subr.mxu0 0.0
    %4235 = vmatpush2.xpose.msra.mxu0 0.0
    %4236 = vmatprep.subr.mxu0 0.0
    %4237 = vmatpush2.xpose.msra.mxu0 0.0
    %4238 = vmatprep.subr.mxu0 0.0
    %4239 = vmatpush2.xpose.msra.mxu0 0.0
    %4240 = vmatprep.subr.mxu0 0.0
    %4241 = vmatpush2.xpose.msra.mxu0 0.0
    %4242 = vmatprep.subr.mxu0 0.0
    %4243 = vmatpush2.xpose.msra.mxu0 0.0
    %4244 = vmatprep.subr.mxu0 0.0
    %4245 = vmatpush2.xpose.msra.mxu0 0.0
    %4246 = vmatprep.subr.mxu0 0.0
    %4247 = vmatpush2.xpose.msra.mxu0 0.0
    %4248 = vmatprep.mubr.f32.mxu0 0.0
    %4249 = vmatmul.mubr.f32.gmra.mxu0 %v4180
    %v4250 = vpop.f32.mrf.mxu0
    %v4251 = vadd.f32 0.0, %v4250
    %v4252 = vpop.f32.mrf.mxu0
    %4253 = vdwg.mxu0
    %v4254 = vmul.f32 %v4173, 0.35355338
    %v4255 = vmul.f32 %v4251, 0.35355338
    %v4256 = vsel %vm67, %v4254, -inf
    %4257 = vmax.xlane.f32.xlu0 %v4256
    %v4258 = vpop.xlane.xlu0 %4257
    %v4259 = vsel %vm67, %v4255, -inf
    %4260 = vmax.xlane.f32.xlu0 %v4259
    %v4261 = vpop.xlane.xlu0 %4260
    %v4262 = vsub.f32 %v4254, %v4258
    %v4263 = vsub.f32 %v4255, %v4261
    %v4264 = vmul.f32 %v4262, 1.442695
    %v4265 = vpow.pop %v4264
    %v4266 = vmul.f32 %v4263, 1.442695
    %v4267 = vpow.pop %v4266
    %v4268 = vsel %vm67, %v4265, 0.0
    %4269 = vadd.xlane.f32.xlu0 %v4268
    %v4270 = vpop.xlane.xlu0 %4269
    %v4271 = vsel %vm67, %v4267, 0.0
    %4272 = vadd.xlane.f32.xlu0 %v4271
    %v4273 = vpop.xlane.xlu0 %4272
    %v4274 = vrcp.pop %v4270
    %v4275 = vrcp.pop %v4273
    %v4276 = vmul.f32 %v4265, %v4274
    %v4277 = vmul.f32 %v4267, %v4275
    %4278 = vrot.lane.b32.xlu0 %v3758, 56
    %v4279 = vpop.permute.xlu0 %4278
    %v4282 = vsel %vm67, %v4276, 0
    %4284 = vmatprep.subr.mxu0 0.0
    %4285 = vmatpush1.msra.mxu0 0.0
    %4286 = vmatprep.subr.mxu0 0.0
    %4287 = vmatpush1.msra.mxu0 0.0
    %4288 = vmatprep.subr.mxu0 0.0
    %4289 = vmatpush1.msra.mxu0 0.0
    %4290 = vmatprep.subr.mxu0 0.0
    %4291 = vmatpush1.msra.mxu0 0.0
    %4292 = vmatprep.subr.mxu0 0.0
    %4293 = vmatpush1.msra.mxu0 0.0
    %4294 = vmatprep.subr.mxu0 0.0
    %4295 = vmatpush1.msra.mxu0 0.0
    %4296 = vmatprep.subr.mxu0 0.0
    %4297 = vmatpush1.msra.mxu0 0.0
    %4298 = vmatprep.subr.mxu0 0.0
    %4299 = vmatpush1.msra.mxu0 0.0
    %4300 = vmatprep.subr.mxu0 0.0
    %4301 = vmatpush1.msra.mxu0 0.0
    %4302 = vmatprep.subr.mxu0 0.0
    %4303 = vmatpush1.msra.mxu0 0.0
    %4304 = vmatprep.subr.mxu0 0.0
    %4305 = vmatpush1.msra.mxu0 0.0
    %4306 = vmatprep.subr.mxu0 0.0
    %4307 = vmatpush1.msra.mxu0 0.0
    %4308 = vmatprep.subr.mxu0 0.0
    %4309 = vmatpush1.msra.mxu0 0.0
    %4310 = vmatprep.subr.mxu0 0.0
    %4311 = vmatpush1.msra.mxu0 0.0
    %4312 = vmatprep.subr.mxu0 0.0
    %4313 = vmatpush1.msra.mxu0 0.0
    %4314 = vmatprep.subr.mxu0 0.0
    %4315 = vmatpush1.msra.mxu0 %v4279
    %4316 = vmatprep.subr.mxu0 0.0
    %4317 = vmatpush2.msra.mxu0 0.0
    %4318 = vmatprep.subr.mxu0 0.0
    %4319 = vmatpush2.msra.mxu0 0.0
    %4320 = vmatprep.subr.mxu0 0.0
    %4321 = vmatpush2.msra.mxu0 0.0
    %4322 = vmatprep.subr.mxu0 0.0
    %4323 = vmatpush2.msra.mxu0 0.0
    %4324 = vmatprep.subr.mxu0 0.0
    %4325 = vmatpush2.msra.mxu0 0.0
    %4326 = vmatprep.subr.mxu0 0.0
    %4327 = vmatpush2.msra.mxu0 0.0
    %4328 = vmatprep.subr.mxu0 0.0
    %4329 = vmatpush2.msra.mxu0 0.0
    %4330 = vmatprep.subr.mxu0 0.0
    %4331 = vmatpush2.msra.mxu0 0.0
    %4332 = vmatprep.subr.mxu0 0.0
    %4333 = vmatpush2.msra.mxu0 0.0
    %4334 = vmatprep.subr.mxu0 0.0
    %4335 = vmatpush2.msra.mxu0 0.0
    %4336 = vmatprep.subr.mxu0 0.0
    %4337 = vmatpush2.msra.mxu0 0.0
    %4338 = vmatprep.subr.mxu0 0.0
    %4339 = vmatpush2.msra.mxu0 0.0
    %4340 = vmatprep.subr.mxu0 0.0
    %4341 = vmatpush2.msra.mxu0 0.0
    %4342 = vmatprep.subr.mxu0 0.0
    %4343 = vmatpush2.msra.mxu0 0.0
    %4344 = vmatprep.subr.mxu0 0.0
    %4345 = vmatpush2.msra.mxu0 0.0
    %4346 = vmatprep.subr.mxu0 0.0
    %4347 = vmatpush2.msra.mxu0 0.0
    %4348 = vmatprep.mubr.f32.mxu0 0.0
    %4349 = vmatmul.mubr.f32.gmra.mxu0 %v4282
    %v4350 = vpop.f32.mrf.mxu0
    %v4351 = vadd.f32 0.0, %v4350
    %v4352 = vpop.f32.mrf.mxu0
    %4353 = vdwg.mxu0
    %4354 = vrot.lane.b32.xlu0 %v3763, 56
    %v4355 = vpop.permute.xlu0 %4354
    %v4358 = vsel %vm67, %v4277, 0
    %4360 = vmatprep.subr.mxu0 0.0
    %4361 = vmatpush1.msra.mxu0 0.0
    %4362 = vmatprep.subr.mxu0 0.0
    %4363 = vmatpush1.msra.mxu0 0.0
    %4364 = vmatprep.subr.mxu0 0.0
    %4365 = vmatpush1.msra.mxu0 0.0
    %4366 = vmatprep.subr.mxu0 0.0
    %4367 = vmatpush1.msra.mxu0 0.0
    %4368 = vmatprep.subr.mxu0 0.0
    %4369 = vmatpush1.msra.mxu0 0.0
    %4370 = vmatprep.subr.mxu0 0.0
    %4371 = vmatpush1.msra.mxu0 0.0
    %4372 = vmatprep.subr.mxu0 0.0
    %4373 = vmatpush1.msra.mxu0 0.0
    %4374 = vmatprep.subr.mxu0 0.0
    %4375 = vmatpush1.msra.mxu0 0.0
    %4376 = vmatprep.subr.mxu0 0.0
    %4377 = vmatpush1.msra.mxu0 0.0
    %4378 = vmatprep.subr.mxu0 0.0
    %4379 = vmatpush1.msra.mxu0 0.0
    %4380 = vmatprep.subr.mxu0 0.0
    %4381 = vmatpush1.msra.mxu0 0.0
    %4382 = vmatprep.subr.mxu0 0.0
    %4383 = vmatpush1.msra.mxu0 0.0
    %4384 = vmatprep.subr.mxu0 0.0
    %4385 = vmatpush1.msra.mxu0 0.0
    %4386 = vmatprep.subr.mxu0 0.0
    %4387 = vmatpush1.msra.mxu0 0.0
    %4388 = vmatprep.subr.mxu0 0.0
    %4389 = vmatpush1.msra.mxu0 0.0
    %4390 = vmatprep.subr.mxu0 0.0
    %4391 = vmatpush1.msra.mxu0 %v4355
    %4392 = vmatprep.subr.mxu0 0.0
    %4393 = vmatpush2.msra.mxu0 0.0
    %4394 = vmatprep.subr.mxu0 0.0
    %4395 = vmatpush2.msra.mxu0 0.0
    %4396 = vmatprep.subr.mxu0 0.0
    %4397 = vmatpush2.msra.mxu0 0.0
    %4398 = vmatprep.subr.mxu0 0.0
    %4399 = vmatpush2.msra.mxu0 0.0
    %4400 = vmatprep.subr.mxu0 0.0
    %4401 = vmatpush2.msra.mxu0 0.0
    %4402 = vmatprep.subr.mxu0 0.0
    %4403 = vmatpush2.msra.mxu0 0.0
    %4404 = vmatprep.subr.mxu0 0.0
    %4405 = vmatpush2.msra.mxu0 0.0
    %4406 = vmatprep.subr.mxu0 0.0
    %4407 = vmatpush2.msra.mxu0 0.0
    %4408 = vmatprep.subr.mxu0 0.0
    %4409 = vmatpush2.msra.mxu0 0.0
    %4410 = vmatprep.subr.mxu0 0.0
    %4411 = vmatpush2.msra.mxu0 0.0
    %4412 = vmatprep.subr.mxu0 0.0
    %4413 = vmatpush2.msra.mxu0 0.0
    %4414 = vmatprep.subr.mxu0 0.0
    %4415 = vmatpush2.msra.mxu0 0.0
    %4416 = vmatprep.subr.mxu0 0.0
    %4417 = vmatpush2.msra.mxu0 0.0
    %4418 = vmatprep.subr.mxu0 0.0
    %4419 = vmatpush2.msra.mxu0 0.0
    %4420 = vmatprep.subr.mxu0 0.0
    %4421 = vmatpush2.msra.mxu0 0.0
    %4422 = vmatprep.subr.mxu0 0.0
    %4423 = vmatpush2.msra.mxu0 0.0
    %4424 = vmatprep.mubr.f32.mxu0 0.0
    %4425 = vmatmul.mubr.f32.gmra.mxu0 %v4358
    %v4426 = vpop.f32.mrf.mxu0
    %v4427 = vadd.f32 0.0, %v4426
    %v4428 = vpop.f32.mrf.mxu0
    %4429 = vdwg.mxu0
    %s4430 = scalar_lea.vmem %s5, 40
    %v4431 = vld [vmem:[%s4430] sm:$0xff]
    %v4433 = vsel %vm67, %v4351, 0
    %v4436 = vsel %vm67, %v4427, 0
    %4438 = vmatprep.subr.mxu0 0.0
    %4439 = vmatpush1.msra.mxu0 0.0
    %4440 = vmatprep.subr.mxu0 0.0
    %4441 = vmatpush1.msra.mxu0 0.0
    %4442 = vmatprep.subr.mxu0 0.0
    %4443 = vmatpush1.msra.mxu0 0.0
    %4444 = vmatprep.subr.mxu0 0.0
    %4445 = vmatpush1.msra.mxu0 0.0
    %4446 = vmatprep.subr.mxu0 0.0
    %4447 = vmatpush1.msra.mxu0 0.0
    %4448 = vmatprep.subr.mxu0 0.0
    %4449 = vmatpush1.msra.mxu0 0.0
    %4450 = vmatprep.subr.mxu0 0.0
    %4451 = vmatpush1.msra.mxu0 0.0
    %4452 = vmatprep.subr.mxu0 0.0
    %4453 = vmatpush1.msra.mxu0 0.0
    %4454 = vmatprep.subr.mxu0 0.0
    %4455 = vmatpush1.msra.mxu0 0.0
    %4456 = vmatprep.subr.mxu0 0.0
    %4457 = vmatpush1.msra.mxu0 0.0
    %4458 = vmatprep.subr.mxu0 0.0
    %4459 = vmatpush1.msra.mxu0 0.0
    %4460 = vmatprep.subr.mxu0 0.0
    %4461 = vmatpush1.msra.mxu0 0.0
    %4462 = vmatprep.subr.mxu0 0.0
    %4463 = vmatpush1.msra.mxu0 0.0
    %4464 = vmatprep.subr.mxu0 0.0
    %4465 = vmatpush1.msra.mxu0 0.0
    %4466 = vmatprep.subr.mxu0 0.0
    %4467 = vmatpush1.msra.mxu0 0.0
    %4468 = vmatprep.subr.mxu0 0.0
    %4469 = vmatpush1.msra.mxu0 %v4431
    %4470 = vmatprep.subr.mxu0 0.0
    %4471 = vmatpush2.msra.mxu0 0.0
    %4472 = vmatprep.subr.mxu0 0.0
    %4473 = vmatpush2.msra.mxu0 0.0
    %4474 = vmatprep.subr.mxu0 0.0
    %4475 = vmatpush2.msra.mxu0 0.0
    %4476 = vmatprep.subr.mxu0 0.0
    %4477 = vmatpush2.msra.mxu0 0.0
    %4478 = vmatprep.subr.mxu0 0.0
    %4479 = vmatpush2.msra.mxu0 0.0
    %4480 = vmatprep.subr.mxu0 0.0
    %4481 = vmatpush2.msra.mxu0 0.0
    %4482 = vmatprep.subr.mxu0 0.0
    %4483 = vmatpush2.msra.mxu0 0.0
    %4484 = vmatprep.subr.mxu0 0.0
    %4485 = vmatpush2.msra.mxu0 0.0
    %4486 = vmatprep.subr.mxu0 0.0
    %4487 = vmatpush2.msra.mxu0 0.0
    %4488 = vmatprep.subr.mxu0 0.0
    %4489 = vmatpush2.msra.mxu0 0.0
    %4490 = vmatprep.subr.mxu0 0.0
    %4491 = vmatpush2.msra.mxu0 0.0
    %4492 = vmatprep.subr.mxu0 0.0
    %4493 = vmatpush2.msra.mxu0 0.0
    %4494 = vmatprep.subr.mxu0 0.0
    %4495 = vmatpush2.msra.mxu0 0.0
    %4496 = vmatprep.subr.mxu0 0.0
    %4497 = vmatpush2.msra.mxu0 0.0
    %4498 = vmatprep.subr.mxu0 0.0
    %4499 = vmatpush2.msra.mxu0 0.0
    %4500 = vmatprep.subr.mxu0 0.0
    %4501 = vmatpush2.msra.mxu0 0.0
    %4502 = vmatprep.mubr.f32.mxu0 0.0
    %4503 = vmatmul.mubr.f32.gmra.mxu0 %v4433
    %v4504 = vpop.f32.mrf.mxu0
    %v4505 = vadd.f32 0.0, %v4504
    %v4506 = vpop.f32.mrf.mxu0
    %4507 = vmatprep.mubr.f32.mxu0 0.0
    %4508 = vmatmul.mubr.f32.gmra.mxu0 %v4436
    %v4509 = vpop.f32.mrf.mxu0
    %v4510 = vadd.f32 0.0, %v4509
    %v4511 = vpop.f32.mrf.mxu0
    %4512 = vdwg.mxu0
    %v4514 = vsel %vm67, %v4017, 0
    %v4517 = vsel %vm67, %v4093, 0
    %4519 = vmatprep.subr.mxu0 0.0
    %4520 = vmatpush1.msra.mxu0 0.0
    %4521 = vmatprep.subr.mxu0 0.0
    %4522 = vmatpush1.msra.mxu0 0.0
    %4523 = vmatprep.subr.mxu0 0.0
    %4524 = vmatpush1.msra.mxu0 0.0
    %4525 = vmatprep.subr.mxu0 0.0
    %4526 = vmatpush1.msra.mxu0 0.0
    %4527 = vmatprep.subr.mxu0 0.0
    %4528 = vmatpush1.msra.mxu0 0.0
    %4529 = vmatprep.subr.mxu0 0.0
    %4530 = vmatpush1.msra.mxu0 0.0
    %4531 = vmatprep.subr.mxu0 0.0
    %4532 = vmatpush1.msra.mxu0 0.0
    %4533 = vmatprep.subr.mxu0 0.0
    %4534 = vmatpush1.msra.mxu0 0.0
    %4535 = vmatprep.subr.mxu0 0.0
    %4536 = vmatpush1.msra.mxu0 0.0
    %4537 = vmatprep.subr.mxu0 0.0
    %4538 = vmatpush1.msra.mxu0 0.0
    %4539 = vmatprep.subr.mxu0 0.0
    %4540 = vmatpush1.msra.mxu0 0.0
    %4541 = vmatprep.subr.mxu0 0.0
    %4542 = vmatpush1.msra.mxu0 0.0
    %4543 = vmatprep.subr.mxu0 0.0
    %4544 = vmatpush1.msra.mxu0 0.0
    %4545 = vmatprep.subr.mxu0 0.0
    %4546 = vmatpush1.msra.mxu0 0.0
    %4547 = vmatprep.subr.mxu0 0.0
    %4548 = vmatpush1.msra.mxu0 0.0
    %4549 = vmatprep.subr.mxu0 0.0
    %4550 = vmatpush1.msra.mxu0 %v4097
    %4551 = vmatprep.subr.mxu0 0.0
    %4552 = vmatpush2.msra.mxu0 0.0
    %4553 = vmatprep.subr.mxu0 0.0
    %4554 = vmatpush2.msra.mxu0 0.0
    %4555 = vmatprep.subr.mxu0 0.0
    %4556 = vmatpush2.msra.mxu0 0.0
    %4557 = vmatprep.subr.mxu0 0.0
    %4558 = vmatpush2.msra.mxu0 0.0
    %4559 = vmatprep.subr.mxu0 0.0
    %4560 = vmatpush2.msra.mxu0 0.0
    %4561 = vmatprep.subr.mxu0 0.0
    %4562 = vmatpush2.msra.mxu0 0.0
    %4563 = vmatprep.subr.mxu0 0.0
    %4564 = vmatpush2.msra.mxu0 0.0
    %4565 = vmatprep.subr.mxu0 0.0
    %4566 = vmatpush2.msra.mxu0 0.0
    %4567 = vmatprep.subr.mxu0 0.0
    %4568 = vmatpush2.msra.mxu0 0.0
    %4569 = vmatprep.subr.mxu0 0.0
    %4570 = vmatpush2.msra.mxu0 0.0
    %4571 = vmatprep.subr.mxu0 0.0
    %4572 = vmatpush2.msra.mxu0 0.0
    %4573 = vmatprep.subr.mxu0 0.0
    %4574 = vmatpush2.msra.mxu0 0.0
    %4575 = vmatprep.subr.mxu0 0.0
    %4576 = vmatpush2.msra.mxu0 0.0
    %4577 = vmatprep.subr.mxu0 0.0
    %4578 = vmatpush2.msra.mxu0 0.0
    %4579 = vmatprep.subr.mxu0 0.0
    %4580 = vmatpush2.msra.mxu0 0.0
    %4581 = vmatprep.subr.mxu0 0.0
    %4582 = vmatpush2.msra.mxu0 0.0
    %4583 = vmatprep.mubr.f32.mxu0 0.0
    %4584 = vmatmul.mubr.f32.gmra.mxu0 %v4514
    %v4585 = vpop.f32.mrf.mxu0
    %v4586 = vadd.f32 %v4505, %v4585
    %v4587 = vpop.f32.mrf.mxu0
    %4588 = vmatprep.mubr.f32.mxu0 0.0
    %4589 = vmatmul.mubr.f32.gmra.mxu0 %v4517
    %v4590 = vpop.f32.mrf.mxu0
    %v4591 = vadd.f32 %v4510, %v4590
    %v4592 = vpop.f32.mrf.mxu0
    %4593 = vdwg.mxu0
    %4594 = vrot.lane.b32.xlu0 %v3758, 112
    %v4595 = vpop.permute.xlu0 %4594
    %4596 = vrot.lane.b32.xlu0 %v3758, 80
    %v4597 = vpop.permute.xlu0 %4596
    %v4598 = vsel %vm67, %v4595, 0
    %v4600 = vsel %vm67, %v4597, 0
    %4602 = vmatprep.subr.mxu0 0.0
    %4603 = vmatpush1.xpose.msra.mxu0 0.0
    %4604 = vmatprep.subr.mxu0 0.0
    %4605 = vmatpush1.xpose.msra.mxu0 0.0
    %4606 = vmatprep.subr.mxu0 0.0
    %4607 = vmatpush1.xpose.msra.mxu0 0.0
    %4608 = vmatprep.subr.mxu0 0.0
    %4609 = vmatpush1.xpose.msra.mxu0 0.0
    %4610 = vmatprep.subr.mxu0 0.0
    %4611 = vmatpush1.xpose.msra.mxu0 0.0
    %4612 = vmatprep.subr.mxu0 0.0
    %4613 = vmatpush1.xpose.msra.mxu0 0.0
    %4614 = vmatprep.subr.mxu0 0.0
    %4615 = vmatpush1.xpose.msra.mxu0 0.0
    %4616 = vmatprep.subr.mxu0 0.0
    %4617 = vmatpush1.xpose.msra.mxu0 0.0
    %4618 = vmatprep.subr.mxu0 0.0
    %4619 = vmatpush1.xpose.msra.mxu0 0.0
    %4620 = vmatprep.subr.mxu0 0.0
    %4621 = vmatpush1.xpose.msra.mxu0 0.0
    %4622 = vmatprep.subr.mxu0 0.0
    %4623 = vmatpush1.xpose.msra.mxu0 0.0
    %4624 = vmatprep.subr.mxu0 0.0
    %4625 = vmatpush1.xpose.msra.mxu0 0.0
    %4626 = vmatprep.subr.mxu0 0.0
    %4627 = vmatpush1.xpose.msra.mxu0 0.0
    %4628 = vmatprep.subr.mxu0 0.0
    %4629 = vmatpush1.xpose.msra.mxu0 0.0
    %4630 = vmatprep.subr.mxu0 0.0
    %4631 = vmatpush1.xpose.msra.mxu0 0.0
    %4632 = vmatprep.subr.mxu0 0.0
    %4633 = vmatpush1.xpose.msra.mxu0 %v4600
    %4634 = vmatprep.subr.mxu0 0.0
    %4635 = vmatpush2.xpose.msra.mxu0 0.0
    %4636 = vmatprep.subr.mxu0 0.0
    %4637 = vmatpush2.xpose.msra.mxu0 0.0
    %4638 = vmatprep.subr.mxu0 0.0
    %4639 = vmatpush2.xpose.msra.mxu0 0.0
    %4640 = vmatprep.subr.mxu0 0.0
    %4641 = vmatpush2.xpose.msra.mxu0 0.0
    %4642 = vmatprep.subr.mxu0 0.0
    %4643 = vmatpush2.xpose.msra.mxu0 0.0
    %4644 = vmatprep.subr.mxu0 0.0
    %4645 = vmatpush2.xpose.msra.mxu0 0.0
    %4646 = vmatprep.subr.mxu0 0.0
    %4647 = vmatpush2.xpose.msra.mxu0 0.0
    %4648 = vmatprep.subr.mxu0 0.0
    %4649 = vmatpush2.xpose.msra.mxu0 0.0
    %4650 = vmatprep.subr.mxu0 0.0
    %4651 = vmatpush2.xpose.msra.mxu0 0.0
    %4652 = vmatprep.subr.mxu0 0.0
    %4653 = vmatpush2.xpose.msra.mxu0 0.0
    %4654 = vmatprep.subr.mxu0 0.0
    %4655 = vmatpush2.xpose.msra.mxu0 0.0
    %4656 = vmatprep.subr.mxu0 0.0
    %4657 = vmatpush2.xpose.msra.mxu0 0.0
    %4658 = vmatprep.subr.mxu0 0.0
    %4659 = vmatpush2.xpose.msra.mxu0 0.0
    %4660 = vmatprep.subr.mxu0 0.0
    %4661 = vmatpush2.xpose.msra.mxu0 0.0
    %4662 = vmatprep.subr.mxu0 0.0
    %4663 = vmatpush2.xpose.msra.mxu0 0.0
    %4664 = vmatprep.subr.mxu0 0.0
    %4665 = vmatpush2.xpose.msra.mxu0 0.0
    %4666 = vmatprep.mubr.f32.mxu0 0.0
    %4667 = vmatmul.mubr.f32.gmra.mxu0 %v4598
    %v4668 = vpop.f32.mrf.mxu0
    %v4669 = vadd.f32 0.0, %v4668
    %v4670 = vpop.f32.mrf.mxu0
    %4671 = vdwg.mxu0
    %4672 = vrot.lane.b32.xlu0 %v3763, 112
    %v4673 = vpop.permute.xlu0 %4672
    %4674 = vrot.lane.b32.xlu0 %v3763, 80
    %v4675 = vpop.permute.xlu0 %4674
    %v4676 = vsel %vm67, %v4673, 0
    %v4678 = vsel %vm67, %v4675, 0
    %4680 = vmatprep.subr.mxu0 0.0
    %4681 = vmatpush1.xpose.msra.mxu0 0.0
    %4682 = vmatprep.subr.mxu0 0.0
    %4683 = vmatpush1.xpose.msra.mxu0 0.0
    %4684 = vmatprep.subr.mxu0 0.0
    %4685 = vmatpush1.xpose.msra.mxu0 0.0
    %4686 = vmatprep.subr.mxu0 0.0
    %4687 = vmatpush1.xpose.msra.mxu0 0.0
    %4688 = vmatprep.subr.mxu0 0.0
    %4689 = vmatpush1.xpose.msra.mxu0 0.0
    %4690 = vmatprep.subr.mxu0 0.0
    %4691 = vmatpush1.xpose.msra.mxu0 0.0
    %4692 = vmatprep.subr.mxu0 0.0
    %4693 = vmatpush1.xpose.msra.mxu0 0.0
    %4694 = vmatprep.subr.mxu0 0.0
    %4695 = vmatpush1.xpose.msra.mxu0 0.0
    %4696 = vmatprep.subr.mxu0 0.0
    %4697 = vmatpush1.xpose.msra.mxu0 0.0
    %4698 = vmatprep.subr.mxu0 0.0
    %4699 = vmatpush1.xpose.msra.mxu0 0.0
    %4700 = vmatprep.subr.mxu0 0.0
    %4701 = vmatpush1.xpose.msra.mxu0 0.0
    %4702 = vmatprep.subr.mxu0 0.0
    %4703 = vmatpush1.xpose.msra.mxu0 0.0
    %4704 = vmatprep.subr.mxu0 0.0
    %4705 = vmatpush1.xpose.msra.mxu0 0.0
    %4706 = vmatprep.subr.mxu0 0.0
    %4707 = vmatpush1.xpose.msra.mxu0 0.0
    %4708 = vmatprep.subr.mxu0 0.0
    %4709 = vmatpush1.xpose.msra.mxu0 0.0
    %4710 = vmatprep.subr.mxu0 0.0
    %4711 = vmatpush1.xpose.msra.mxu0 %v4678
    %4712 = vmatprep.subr.mxu0 0.0
    %4713 = vmatpush2.xpose.msra.mxu0 0.0
    %4714 = vmatprep.subr.mxu0 0.0
    %4715 = vmatpush2.xpose.msra.mxu0 0.0
    %4716 = vmatprep.subr.mxu0 0.0
    %4717 = vmatpush2.xpose.msra.mxu0 0.0
    %4718 = vmatprep.subr.mxu0 0.0
    %4719 = vmatpush2.xpose.msra.mxu0 0.0
    %4720 = vmatprep.subr.mxu0 0.0
    %4721 = vmatpush2.xpose.msra.mxu0 0.0
    %4722 = vmatprep.subr.mxu0 0.0
    %4723 = vmatpush2.xpose.msra.mxu0 0.0
    %4724 = vmatprep.subr.mxu0 0.0
    %4725 = vmatpush2.xpose.msra.mxu0 0.0
    %4726 = vmatprep.subr.mxu0 0.0
    %4727 = vmatpush2.xpose.msra.mxu0 0.0
    %4728 = vmatprep.subr.mxu0 0.0
    %4729 = vmatpush2.xpose.msra.mxu0 0.0
    %4730 = vmatprep.subr.mxu0 0.0
    %4731 = vmatpush2.xpose.msra.mxu0 0.0
    %4732 = vmatprep.subr.mxu0 0.0
    %4733 = vmatpush2.xpose.msra.mxu0 0.0
    %4734 = vmatprep.subr.mxu0 0.0
    %4735 = vmatpush2.xpose.msra.mxu0 0.0
    %4736 = vmatprep.subr.mxu0 0.0
    %4737 = vmatpush2.xpose.msra.mxu0 0.0
    %4738 = vmatprep.subr.mxu0 0.0
    %4739 = vmatpush2.xpose.msra.mxu0 0.0
    %4740 = vmatprep.subr.mxu0 0.0
    %4741 = vmatpush2.xpose.msra.mxu0 0.0
    %4742 = vmatprep.subr.mxu0 0.0
    %4743 = vmatpush2.xpose.msra.mxu0 0.0
    %4744 = vmatprep.mubr.f32.mxu0 0.0
    %4745 = vmatmul.mubr.f32.gmra.mxu0 %v4676
    %v4746 = vpop.f32.mrf.mxu0
    %v4747 = vadd.f32 0.0, %v4746
    %v4748 = vpop.f32.mrf.mxu0
    %4749 = vdwg.mxu0
    %v4750 = vmul.f32 %v4669, 0.35355338
    %v4751 = vmul.f32 %v4747, 0.35355338
    %v4752 = vsel %vm67, %v4750, -inf
    %4753 = vmax.xlane.f32.xlu0 %v4752
    %v4754 = vpop.xlane.xlu0 %4753
    %v4755 = vsel %vm67, %v4751, -inf
    %4756 = vmax.xlane.f32.xlu0 %v4755
    %v4757 = vpop.xlane.xlu0 %4756
    %v4758 = vsub.f32 %v4750, %v4754
    %v4759 = vsub.f32 %v4751, %v4757
    %v4760 = vmul.f32 %v4758, 1.442695
    %v4761 = vpow.pop %v4760
    %v4762 = vmul.f32 %v4759, 1.442695
    %v4763 = vpow.pop %v4762
    %v4764 = vsel %vm67, %v4761, 0.0
    %4765 = vadd.xlane.f32.xlu0 %v4764
    %v4766 = vpop.xlane.xlu0 %4765
    %v4767 = vsel %vm67, %v4763, 0.0
    %4768 = vadd.xlane.f32.xlu0 %v4767
    %v4769 = vpop.xlane.xlu0 %4768
    %v4770 = vrcp.pop %v4766
    %v4771 = vrcp.pop %v4769
    %v4772 = vmul.f32 %v4761, %v4770
    %v4773 = vmul.f32 %v4763, %v4771
    %4774 = vrot.lane.b32.xlu0 %v3758, 48
    %v4775 = vpop.permute.xlu0 %4774
    %v4778 = vsel %vm67, %v4772, 0
    %4780 = vmatprep.subr.mxu0 0.0
    %4781 = vmatpush1.msra.mxu0 0.0
    %4782 = vmatprep.subr.mxu0 0.0
    %4783 = vmatpush1.msra.mxu0 0.0
    %4784 = vmatprep.subr.mxu0 0.0
    %4785 = vmatpush1.msra.mxu0 0.0
    %4786 = vmatprep.subr.mxu0 0.0
    %4787 = vmatpush1.msra.mxu0 0.0
    %4788 = vmatprep.subr.mxu0 0.0
    %4789 = vmatpush1.msra.mxu0 0.0
    %4790 = vmatprep.subr.mxu0 0.0
    %4791 = vmatpush1.msra.mxu0 0.0
    %4792 = vmatprep.subr.mxu0 0.0
    %4793 = vmatpush1.msra.mxu0 0.0
    %4794 = vmatprep.subr.mxu0 0.0
    %4795 = vmatpush1.msra.mxu0 0.0
    %4796 = vmatprep.subr.mxu0 0.0
    %4797 = vmatpush1.msra.mxu0 0.0
    %4798 = vmatprep.subr.mxu0 0.0
    %4799 = vmatpush1.msra.mxu0 0.0
    %4800 = vmatprep.subr.mxu0 0.0
    %4801 = vmatpush1.msra.mxu0 0.0
    %4802 = vmatprep.subr.mxu0 0.0
    %4803 = vmatpush1.msra.mxu0 0.0
    %4804 = vmatprep.subr.mxu0 0.0
    %4805 = vmatpush1.msra.mxu0 0.0
    %4806 = vmatprep.subr.mxu0 0.0
    %4807 = vmatpush1.msra.mxu0 0.0
    %4808 = vmatprep.subr.mxu0 0.0
    %4809 = vmatpush1.msra.mxu0 0.0
    %4810 = vmatprep.subr.mxu0 0.0
    %4811 = vmatpush1.msra.mxu0 %v4775
    %4812 = vmatprep.subr.mxu0 0.0
    %4813 = vmatpush2.msra.mxu0 0.0
    %4814 = vmatprep.subr.mxu0 0.0
    %4815 = vmatpush2.msra.mxu0 0.0
    %4816 = vmatprep.subr.mxu0 0.0
    %4817 = vmatpush2.msra.mxu0 0.0
    %4818 = vmatprep.subr.mxu0 0.0
    %4819 = vmatpush2.msra.mxu0 0.0
    %4820 = vmatprep.subr.mxu0 0.0
    %4821 = vmatpush2.msra.mxu0 0.0
    %4822 = vmatprep.subr.mxu0 0.0
    %4823 = vmatpush2.msra.mxu0 0.0
    %4824 = vmatprep.subr.mxu0 0.0
    %4825 = vmatpush2.msra.mxu0 0.0
    %4826 = vmatprep.subr.mxu0 0.0
    %4827 = vmatpush2.msra.mxu0 0.0
    %4828 = vmatprep.subr.mxu0 0.0
    %4829 = vmatpush2.msra.mxu0 0.0
    %4830 = vmatprep.subr.mxu0 0.0
    %4831 = vmatpush2.msra.mxu0 0.0
    %4832 = vmatprep.subr.mxu0 0.0
    %4833 = vmatpush2.msra.mxu0 0.0
    %4834 = vmatprep.subr.mxu0 0.0
    %4835 = vmatpush2.msra.mxu0 0.0
    %4836 = vmatprep.subr.mxu0 0.0
    %4837 = vmatpush2.msra.mxu0 0.0
    %4838 = vmatprep.subr.mxu0 0.0
    %4839 = vmatpush2.msra.mxu0 0.0
    %4840 = vmatprep.subr.mxu0 0.0
    %4841 = vmatpush2.msra.mxu0 0.0
    %4842 = vmatprep.subr.mxu0 0.0
    %4843 = vmatpush2.msra.mxu0 0.0
    %4844 = vmatprep.mubr.f32.mxu0 0.0
    %4845 = vmatmul.mubr.f32.gmra.mxu0 %v4778
    %v4846 = vpop.f32.mrf.mxu0
    %v4847 = vadd.f32 0.0, %v4846
    %v4848 = vpop.f32.mrf.mxu0
    %4849 = vdwg.mxu0
    %4850 = vrot.lane.b32.xlu0 %v3763, 48
    %v4851 = vpop.permute.xlu0 %4850
    %v4854 = vsel %vm67, %v4773, 0
    %4856 = vmatprep.subr.mxu0 0.0
    %4857 = vmatpush1.msra.mxu0 0.0
    %4858 = vmatprep.subr.mxu0 0.0
    %4859 = vmatpush1.msra.mxu0 0.0
    %4860 = vmatprep.subr.mxu0 0.0
    %4861 = vmatpush1.msra.mxu0 0.0
    %4862 = vmatprep.subr.mxu0 0.0
    %4863 = vmatpush1.msra.mxu0 0.0
    %4864 = vmatprep.subr.mxu0 0.0
    %4865 = vmatpush1.msra.mxu0 0.0
    %4866 = vmatprep.subr.mxu0 0.0
    %4867 = vmatpush1.msra.mxu0 0.0
    %4868 = vmatprep.subr.mxu0 0.0
    %4869 = vmatpush1.msra.mxu0 0.0
    %4870 = vmatprep.subr.mxu0 0.0
    %4871 = vmatpush1.msra.mxu0 0.0
    %4872 = vmatprep.subr.mxu0 0.0
    %4873 = vmatpush1.msra.mxu0 0.0
    %4874 = vmatprep.subr.mxu0 0.0
    %4875 = vmatpush1.msra.mxu0 0.0
    %4876 = vmatprep.subr.mxu0 0.0
    %4877 = vmatpush1.msra.mxu0 0.0
    %4878 = vmatprep.subr.mxu0 0.0
    %4879 = vmatpush1.msra.mxu0 0.0
    %4880 = vmatprep.subr.mxu0 0.0
    %4881 = vmatpush1.msra.mxu0 0.0
    %4882 = vmatprep.subr.mxu0 0.0
    %4883 = vmatpush1.msra.mxu0 0.0
    %4884 = vmatprep.subr.mxu0 0.0
    %4885 = vmatpush1.msra.mxu0 0.0
    %4886 = vmatprep.subr.mxu0 0.0
    %4887 = vmatpush1.msra.mxu0 %v4851
    %4888 = vmatprep.subr.mxu0 0.0
    %4889 = vmatpush2.msra.mxu0 0.0
    %4890 = vmatprep.subr.mxu0 0.0
    %4891 = vmatpush2.msra.mxu0 0.0
    %4892 = vmatprep.subr.mxu0 0.0
    %4893 = vmatpush2.msra.mxu0 0.0
    %4894 = vmatprep.subr.mxu0 0.0
    %4895 = vmatpush2.msra.mxu0 0.0
    %4896 = vmatprep.subr.mxu0 0.0
    %4897 = vmatpush2.msra.mxu0 0.0
    %4898 = vmatprep.subr.mxu0 0.0
    %4899 = vmatpush2.msra.mxu0 0.0
    %4900 = vmatprep.subr.mxu0 0.0
    %4901 = vmatpush2.msra.mxu0 0.0
    %4902 = vmatprep.subr.mxu0 0.0
    %4903 = vmatpush2.msra.mxu0 0.0
    %4904 = vmatprep.subr.mxu0 0.0
    %4905 = vmatpush2.msra.mxu0 0.0
    %4906 = vmatprep.subr.mxu0 0.0
    %4907 = vmatpush2.msra.mxu0 0.0
    %4908 = vmatprep.subr.mxu0 0.0
    %4909 = vmatpush2.msra.mxu0 0.0
    %4910 = vmatprep.subr.mxu0 0.0
    %4911 = vmatpush2.msra.mxu0 0.0
    %4912 = vmatprep.subr.mxu0 0.0
    %4913 = vmatpush2.msra.mxu0 0.0
    %4914 = vmatprep.subr.mxu0 0.0
    %4915 = vmatpush2.msra.mxu0 0.0
    %4916 = vmatprep.subr.mxu0 0.0
    %4917 = vmatpush2.msra.mxu0 0.0
    %4918 = vmatprep.subr.mxu0 0.0
    %4919 = vmatpush2.msra.mxu0 0.0
    %4920 = vmatprep.mubr.f32.mxu0 0.0
    %4921 = vmatmul.mubr.f32.gmra.mxu0 %v4854
    %v4922 = vpop.f32.mrf.mxu0
    %v4923 = vadd.f32 0.0, %v4922
    %v4924 = vpop.f32.mrf.mxu0
    %4925 = vdwg.mxu0
    %s4926 = scalar_lea.vmem %s5, 48
    %v4927 = vld [vmem:[%s4926] sm:$0xff]
    %v4929 = vsel %vm67, %v4847, 0
    %v4932 = vsel %vm67, %v4923, 0
    %4934 = vmatprep.subr.mxu0 0.0
    %4935 = vmatpush1.msra.mxu0 0.0
    %4936 = vmatprep.subr.mxu0 0.0
    %4937 = vmatpush1.msra.mxu0 0.0
    %4938 = vmatprep.subr.mxu0 0.0
    %4939 = vmatpush1.msra.mxu0 0.0
    %4940 = vmatprep.subr.mxu0 0.0
    %4941 = vmatpush1.msra.mxu0 0.0
    %4942 = vmatprep.subr.mxu0 0.0
    %4943 = vmatpush1.msra.mxu0 0.0
    %4944 = vmatprep.subr.mxu0 0.0
    %4945 = vmatpush1.msra.mxu0 0.0
    %4946 = vmatprep.subr.mxu0 0.0
    %4947 = vmatpush1.msra.mxu0 0.0
    %4948 = vmatprep.subr.mxu0 0.0
    %4949 = vmatpush1.msra.mxu0 0.0
    %4950 = vmatprep.subr.mxu0 0.0
    %4951 = vmatpush1.msra.mxu0 0.0
    %4952 = vmatprep.subr.mxu0 0.0
    %4953 = vmatpush1.msra.mxu0 0.0
    %4954 = vmatprep.subr.mxu0 0.0
    %4955 = vmatpush1.msra.mxu0 0.0
    %4956 = vmatprep.subr.mxu0 0.0
    %4957 = vmatpush1.msra.mxu0 0.0
    %4958 = vmatprep.subr.mxu0 0.0
    %4959 = vmatpush1.msra.mxu0 0.0
    %4960 = vmatprep.subr.mxu0 0.0
    %4961 = vmatpush1.msra.mxu0 0.0
    %4962 = vmatprep.subr.mxu0 0.0
    %4963 = vmatpush1.msra.mxu0 0.0
    %4964 = vmatprep.subr.mxu0 0.0
    %4965 = vmatpush1.msra.mxu0 %v4927
    %4966 = vmatprep.subr.mxu0 0.0
    %4967 = vmatpush2.msra.mxu0 0.0
    %4968 = vmatprep.subr.mxu0 0.0
    %4969 = vmatpush2.msra.mxu0 0.0
    %4970 = vmatprep.subr.mxu0 0.0
    %4971 = vmatpush2.msra.mxu0 0.0
    %4972 = vmatprep.subr.mxu0 0.0
    %4973 = vmatpush2.msra.mxu0 0.0
    %4974 = vmatprep.subr.mxu0 0.0
    %4975 = vmatpush2.msra.mxu0 0.0
    %4976 = vmatprep.subr.mxu0 0.0
    %4977 = vmatpush2.msra.mxu0 0.0
    %4978 = vmatprep.subr.mxu0 0.0
    %4979 = vmatpush2.msra.mxu0 0.0
    %4980 = vmatprep.subr.mxu0 0.0
    %4981 = vmatpush2.msra.mxu0 0.0
    %4982 = vmatprep.subr.mxu0 0.0
    %4983 = vmatpush2.msra.mxu0 0.0
    %4984 = vmatprep.subr.mxu0 0.0
    %4985 = vmatpush2.msra.mxu0 0.0
    %4986 = vmatprep.subr.mxu0 0.0
    %4987 = vmatpush2.msra.mxu0 0.0
    %4988 = vmatprep.subr.mxu0 0.0
    %4989 = vmatpush2.msra.mxu0 0.0
    %4990 = vmatprep.subr.mxu0 0.0
    %4991 = vmatpush2.msra.mxu0 0.0
    %4992 = vmatprep.subr.mxu0 0.0
    %4993 = vmatpush2.msra.mxu0 0.0
    %4994 = vmatprep.subr.mxu0 0.0
    %4995 = vmatpush2.msra.mxu0 0.0
    %4996 = vmatprep.subr.mxu0 0.0
    %4997 = vmatpush2.msra.mxu0 0.0
    %4998 = vmatprep.mubr.f32.mxu0 0.0
    %4999 = vmatmul.mubr.f32.gmra.mxu0 %v4929
    %v5000 = vpop.f32.mrf.mxu0
    %v5001 = vadd.f32 0.0, %v5000
    %v5002 = vpop.f32.mrf.mxu0
    %5003 = vmatprep.mubr.f32.mxu0 0.0
    %5004 = vmatmul.mubr.f32.gmra.mxu0 %v4932
    %v5005 = vpop.f32.mrf.mxu0
    %v5006 = vadd.f32 0.0, %v5005
    %v5007 = vpop.f32.mrf.mxu0
    %5008 = vdwg.mxu0
    %v5009 = vadd.f32 %v4586, %v5001
    %v5010 = vadd.f32 %v4591, %v5006
    %5011 = vrot.lane.b32.xlu0 %v3758, 104
    %v5012 = vpop.permute.xlu0 %5011
    %5013 = vrot.lane.b32.xlu0 %v3758, 72
    %v5014 = vpop.permute.xlu0 %5013
    %v5015 = vsel %vm67, %v5012, 0
    %v5017 = vsel %vm67, %v5014, 0
    %5019 = vmatprep.subr.mxu0 0.0
    %5020 = vmatpush1.xpose.msra.mxu0 0.0
    %5021 = vmatprep.subr.mxu0 0.0
    %5022 = vmatpush1.xpose.msra.mxu0 0.0
    %5023 = vmatprep.subr.mxu0 0.0
    %5024 = vmatpush1.xpose.msra.mxu0 0.0
    %5025 = vmatprep.subr.mxu0 0.0
    %5026 = vmatpush1.xpose.msra.mxu0 0.0
    %5027 = vmatprep.subr.mxu0 0.0
    %5028 = vmatpush1.xpose.msra.mxu0 0.0
    %5029 = vmatprep.subr.mxu0 0.0
    %5030 = vmatpush1.xpose.msra.mxu0 0.0
    %5031 = vmatprep.subr.mxu0 0.0
    %5032 = vmatpush1.xpose.msra.mxu0 0.0
    %5033 = vmatprep.subr.mxu0 0.0
    %5034 = vmatpush1.xpose.msra.mxu0 0.0
    %5035 = vmatprep.subr.mxu0 0.0
    %5036 = vmatpush1.xpose.msra.mxu0 0.0
    %5037 = vmatprep.subr.mxu0 0.0
    %5038 = vmatpush1.xpose.msra.mxu0 0.0
    %5039 = vmatprep.subr.mxu0 0.0
    %5040 = vmatpush1.xpose.msra.mxu0 0.0
    %5041 = vmatprep.subr.mxu0 0.0
    %5042 = vmatpush1.xpose.msra.mxu0 0.0
    %5043 = vmatprep.subr.mxu0 0.0
    %5044 = vmatpush1.xpose.msra.mxu0 0.0
    %5045 = vmatprep.subr.mxu0 0.0
    %5046 = vmatpush1.xpose.msra.mxu0 0.0
    %5047 = vmatprep.subr.mxu0 0.0
    %5048 = vmatpush1.xpose.msra.mxu0 0.0
    %5049 = vmatprep.subr.mxu0 0.0
    %5050 = vmatpush1.xpose.msra.mxu0 %v5017
    %5051 = vmatprep.subr.mxu0 0.0
    %5052 = vmatpush2.xpose.msra.mxu0 0.0
    %5053 = vmatprep.subr.mxu0 0.0
    %5054 = vmatpush2.xpose.msra.mxu0 0.0
    %5055 = vmatprep.subr.mxu0 0.0
    %5056 = vmatpush2.xpose.msra.mxu0 0.0
    %5057 = vmatprep.subr.mxu0 0.0
    %5058 = vmatpush2.xpose.msra.mxu0 0.0
    %5059 = vmatprep.subr.mxu0 0.0
    %5060 = vmatpush2.xpose.msra.mxu0 0.0
    %5061 = vmatprep.subr.mxu0 0.0
    %5062 = vmatpush2.xpose.msra.mxu0 0.0
    %5063 = vmatprep.subr.mxu0 0.0
    %5064 = vmatpush2.xpose.msra.mxu0 0.0
    %5065 = vmatprep.subr.mxu0 0.0
    %5066 = vmatpush2.xpose.msra.mxu0 0.0
    %5067 = vmatprep.subr.mxu0 0.0
    %5068 = vmatpush2.xpose.msra.mxu0 0.0
    %5069 = vmatprep.subr.mxu0 0.0
    %5070 = vmatpush2.xpose.msra.mxu0 0.0
    %5071 = vmatprep.subr.mxu0 0.0
    %5072 = vmatpush2.xpose.msra.mxu0 0.0
    %5073 = vmatprep.subr.mxu0 0.0
    %5074 = vmatpush2.xpose.msra.mxu0 0.0
    %5075 = vmatprep.subr.mxu0 0.0
    %5076 = vmatpush2.xpose.msra.mxu0 0.0
    %5077 = vmatprep.subr.mxu0 0.0
    %5078 = vmatpush2.xpose.msra.mxu0 0.0
    %5079 = vmatprep.subr.mxu0 0.0
    %5080 = vmatpush2.xpose.msra.mxu0 0.0
    %5081 = vmatprep.subr.mxu0 0.0
    %5082 = vmatpush2.xpose.msra.mxu0 0.0
    %5083 = vmatprep.mubr.f32.mxu0 0.0
    %5084 = vmatmul.mubr.f32.gmra.mxu0 %v5015
    %v5085 = vpop.f32.mrf.mxu0
    %v5086 = vadd.f32 0.0, %v5085
    %v5087 = vpop.f32.mrf.mxu0
    %5088 = vdwg.mxu0
    %5089 = vrot.lane.b32.xlu0 %v3763, 104
    %v5090 = vpop.permute.xlu0 %5089
    %5091 = vrot.lane.b32.xlu0 %v3763, 72
    %v5092 = vpop.permute.xlu0 %5091
    %v5093 = vsel %vm67, %v5090, 0
    %v5095 = vsel %vm67, %v5092, 0
    %5097 = vmatprep.subr.mxu0 0.0
    %5098 = vmatpush1.xpose.msra.mxu0 0.0
    %5099 = vmatprep.subr.mxu0 0.0
    %5100 = vmatpush1.xpose.msra.mxu0 0.0
    %5101 = vmatprep.subr.mxu0 0.0
    %5102 = vmatpush1.xpose.msra.mxu0 0.0
    %5103 = vmatprep.subr.mxu0 0.0
    %5104 = vmatpush1.xpose.msra.mxu0 0.0
    %5105 = vmatprep.subr.mxu0 0.0
    %5106 = vmatpush1.xpose.msra.mxu0 0.0
    %5107 = vmatprep.subr.mxu0 0.0
    %5108 = vmatpush1.xpose.msra.mxu0 0.0
    %5109 = vmatprep.subr.mxu0 0.0
    %5110 = vmatpush1.xpose.msra.mxu0 0.0
    %5111 = vmatprep.subr.mxu0 0.0
    %5112 = vmatpush1.xpose.msra.mxu0 0.0
    %5113 = vmatprep.subr.mxu0 0.0
    %5114 = vmatpush1.xpose.msra.mxu0 0.0
    %5115 = vmatprep.subr.mxu0 0.0
    %5116 = vmatpush1.xpose.msra.mxu0 0.0
    %5117 = vmatprep.subr.mxu0 0.0
    %5118 = vmatpush1.xpose.msra.mxu0 0.0
    %5119 = vmatprep.subr.mxu0 0.0
    %5120 = vmatpush1.xpose.msra.mxu0 0.0
    %5121 = vmatprep.subr.mxu0 0.0
    %5122 = vmatpush1.xpose.msra.mxu0 0.0
    %5123 = vmatprep.subr.mxu0 0.0
    %5124 = vmatpush1.xpose.msra.mxu0 0.0
    %5125 = vmatprep.subr.mxu0 0.0
    %5126 = vmatpush1.xpose.msra.mxu0 0.0
    %5127 = vmatprep.subr.mxu0 0.0
    %5128 = vmatpush1.xpose.msra.mxu0 %v5095
    %5129 = vmatprep.subr.mxu0 0.0
    %5130 = vmatpush2.xpose.msra.mxu0 0.0
    %5131 = vmatprep.subr.mxu0 0.0
    %5132 = vmatpush2.xpose.msra.mxu0 0.0
    %5133 = vmatprep.subr.mxu0 0.0
    %5134 = vmatpush2.xpose.msra.mxu0 0.0
    %5135 = vmatprep.subr.mxu0 0.0
    %5136 = vmatpush2.xpose.msra.mxu0 0.0
    %5137 = vmatprep.subr.mxu0 0.0
    %5138 = vmatpush2.xpose.msra.mxu0 0.0
    %5139 = vmatprep.subr.mxu0 0.0
    %5140 = vmatpush2.xpose.msra.mxu0 0.0
    %5141 = vmatprep.subr.mxu0 0.0
    %5142 = vmatpush2.xpose.msra.mxu0 0.0
    %5143 = vmatprep.subr.mxu0 0.0
    %5144 = vmatpush2.xpose.msra.mxu0 0.0
    %5145 = vmatprep.subr.mxu0 0.0
    %5146 = vmatpush2.xpose.msra.mxu0 0.0
    %5147 = vmatprep.subr.mxu0 0.0
    %5148 = vmatpush2.xpose.msra.mxu0 0.0
    %5149 = vmatprep.subr.mxu0 0.0
    %5150 = vmatpush2.xpose.msra.mxu0 0.0
    %5151 = vmatprep.subr.mxu0 0.0
    %5152 = vmatpush2.xpose.msra.mxu0 0.0
    %5153 = vmatprep.subr.mxu0 0.0
    %5154 = vmatpush2.xpose.msra.mxu0 0.0
    %5155 = vmatprep.subr.mxu0 0.0
    %5156 = vmatpush2.xpose.msra.mxu0 0.0
    %5157 = vmatprep.subr.mxu0 0.0
    %5158 = vmatpush2.xpose.msra.mxu0 0.0
    %5159 = vmatprep.subr.mxu0 0.0
    %5160 = vmatpush2.xpose.msra.mxu0 0.0
    %5161 = vmatprep.mubr.f32.mxu0 0.0
    %5162 = vmatmul.mubr.f32.gmra.mxu0 %v5093
    %v5163 = vpop.f32.mrf.mxu0
    %v5164 = vadd.f32 0.0, %v5163
    %v5165 = vpop.f32.mrf.mxu0
    %5166 = vdwg.mxu0
    %v5167 = vmul.f32 %v5086, 0.35355338
    %v5168 = vmul.f32 %v5164, 0.35355338
    %v5169 = vsel %vm67, %v5167, -inf
    %5170 = vmax.xlane.f32.xlu0 %v5169
    %v5171 = vpop.xlane.xlu0 %5170
    %v5172 = vsel %vm67, %v5168, -inf
    %5173 = vmax.xlane.f32.xlu0 %v5172
    %v5174 = vpop.xlane.xlu0 %5173
    %v5175 = vsub.f32 %v5167, %v5171
    %v5176 = vsub.f32 %v5168, %v5174
    %v5177 = vmul.f32 %v5175, 1.442695
    %v5178 = vpow.pop %v5177
    %v5179 = vmul.f32 %v5176, 1.442695
    %v5180 = vpow.pop %v5179
    %v5181 = vsel %vm67, %v5178, 0.0
    %5182 = vadd.xlane.f32.xlu0 %v5181
    %v5183 = vpop.xlane.xlu0 %5182
    %v5184 = vsel %vm67, %v5180, 0.0
    %5185 = vadd.xlane.f32.xlu0 %v5184
    %v5186 = vpop.xlane.xlu0 %5185
    %v5187 = vrcp.pop %v5183
    %v5188 = vrcp.pop %v5186
    %v5189 = vmul.f32 %v5178, %v5187
    %v5190 = vmul.f32 %v5180, %v5188
    %5191 = vrot.lane.b32.xlu0 %v3758, 40
    %v5192 = vpop.permute.xlu0 %5191
    %v5195 = vsel %vm67, %v5189, 0
    %5197 = vmatprep.subr.mxu0 0.0
    %5198 = vmatpush1.msra.mxu0 0.0
    %5199 = vmatprep.subr.mxu0 0.0
    %5200 = vmatpush1.msra.mxu0 0.0
    %5201 = vmatprep.subr.mxu0 0.0
    %5202 = vmatpush1.msra.mxu0 0.0
    %5203 = vmatprep.subr.mxu0 0.0
    %5204 = vmatpush1.msra.mxu0 0.0
    %5205 = vmatprep.subr.mxu0 0.0
    %5206 = vmatpush1.msra.mxu0 0.0
    %5207 = vmatprep.subr.mxu0 0.0
    %5208 = vmatpush1.msra.mxu0 0.0
    %5209 = vmatprep.subr.mxu0 0.0
    %5210 = vmatpush1.msra.mxu0 0.0
    %5211 = vmatprep.subr.mxu0 0.0
    %5212 = vmatpush1.msra.mxu0 0.0
    %5213 = vmatprep.subr.mxu0 0.0
    %5214 = vmatpush1.msra.mxu0 0.0
    %5215 = vmatprep.subr.mxu0 0.0
    %5216 = vmatpush1.msra.mxu0 0.0
    %5217 = vmatprep.subr.mxu0 0.0
    %5218 = vmatpush1.msra.mxu0 0.0
    %5219 = vmatprep.subr.mxu0 0.0
    %5220 = vmatpush1.msra.mxu0 0.0
    %5221 = vmatprep.subr.mxu0 0.0
    %5222 = vmatpush1.msra.mxu0 0.0
    %5223 = vmatprep.subr.mxu0 0.0
    %5224 = vmatpush1.msra.mxu0 0.0
    %5225 = vmatprep.subr.mxu0 0.0
    %5226 = vmatpush1.msra.mxu0 0.0
    %5227 = vmatprep.subr.mxu0 0.0
    %5228 = vmatpush1.msra.mxu0 %v5192
    %5229 = vmatprep.subr.mxu0 0.0
    %5230 = vmatpush2.msra.mxu0 0.0
    %5231 = vmatprep.subr.mxu0 0.0
    %5232 = vmatpush2.msra.mxu0 0.0
    %5233 = vmatprep.subr.mxu0 0.0
    %5234 = vmatpush2.msra.mxu0 0.0
    %5235 = vmatprep.subr.mxu0 0.0
    %5236 = vmatpush2.msra.mxu0 0.0
    %5237 = vmatprep.subr.mxu0 0.0
    %5238 = vmatpush2.msra.mxu0 0.0
    %5239 = vmatprep.subr.mxu0 0.0
    %5240 = vmatpush2.msra.mxu0 0.0
    %5241 = vmatprep.subr.mxu0 0.0
    %5242 = vmatpush2.msra.mxu0 0.0
    %5243 = vmatprep.subr.mxu0 0.0
    %5244 = vmatpush2.msra.mxu0 0.0
    %5245 = vmatprep.subr.mxu0 0.0
    %5246 = vmatpush2.msra.mxu0 0.0
    %5247 = vmatprep.subr.mxu0 0.0
    %5248 = vmatpush2.msra.mxu0 0.0
    %5249 = vmatprep.subr.mxu0 0.0
    %5250 = vmatpush2.msra.mxu0 0.0
    %5251 = vmatprep.subr.mxu0 0.0
    %5252 = vmatpush2.msra.mxu0 0.0
    %5253 = vmatprep.subr.mxu0 0.0
    %5254 = vmatpush2.msra.mxu0 0.0
    %5255 = vmatprep.subr.mxu0 0.0
    %5256 = vmatpush2.msra.mxu0 0.0
    %5257 = vmatprep.subr.mxu0 0.0
    %5258 = vmatpush2.msra.mxu0 0.0
    %5259 = vmatprep.subr.mxu0 0.0
    %5260 = vmatpush2.msra.mxu0 0.0
    %5261 = vmatprep.mubr.f32.mxu0 0.0
    %5262 = vmatmul.mubr.f32.gmra.mxu0 %v5195
    %v5263 = vpop.f32.mrf.mxu0
    %v5264 = vadd.f32 0.0, %v5263
    %v5265 = vpop.f32.mrf.mxu0
    %5266 = vdwg.mxu0
    %5267 = vrot.lane.b32.xlu0 %v3763, 40
    %v5268 = vpop.permute.xlu0 %5267
    %v5271 = vsel %vm67, %v5190, 0
    %5273 = vmatprep.subr.mxu0 0.0
    %5274 = vmatpush1.msra.mxu0 0.0
    %5275 = vmatprep.subr.mxu0 0.0
    %5276 = vmatpush1.msra.mxu0 0.0
    %5277 = vmatprep.subr.mxu0 0.0
    %5278 = vmatpush1.msra.mxu0 0.0
    %5279 = vmatprep.subr.mxu0 0.0
    %5280 = vmatpush1.msra.mxu0 0.0
    %5281 = vmatprep.subr.mxu0 0.0
    %5282 = vmatpush1.msra.mxu0 0.0
    %5283 = vmatprep.subr.mxu0 0.0
    %5284 = vmatpush1.msra.mxu0 0.0
    %5285 = vmatprep.subr.mxu0 0.0
    %5286 = vmatpush1.msra.mxu0 0.0
    %5287 = vmatprep.subr.mxu0 0.0
    %5288 = vmatpush1.msra.mxu0 0.0
    %5289 = vmatprep.subr.mxu0 0.0
    %5290 = vmatpush1.msra.mxu0 0.0
    %5291 = vmatprep.subr.mxu0 0.0
    %5292 = vmatpush1.msra.mxu0 0.0
    %5293 = vmatprep.subr.mxu0 0.0
    %5294 = vmatpush1.msra.mxu0 0.0
    %5295 = vmatprep.subr.mxu0 0.0
    %5296 = vmatpush1.msra.mxu0 0.0
    %5297 = vmatprep.subr.mxu0 0.0
    %5298 = vmatpush1.msra.mxu0 0.0
    %5299 = vmatprep.subr.mxu0 0.0
    %5300 = vmatpush1.msra.mxu0 0.0
    %5301 = vmatprep.subr.mxu0 0.0
    %5302 = vmatpush1.msra.mxu0 0.0
    %5303 = vmatprep.subr.mxu0 0.0
    %5304 = vmatpush1.msra.mxu0 %v5268
    %5305 = vmatprep.subr.mxu0 0.0
    %5306 = vmatpush2.msra.mxu0 0.0
    %5307 = vmatprep.subr.mxu0 0.0
    %5308 = vmatpush2.msra.mxu0 0.0
    %5309 = vmatprep.subr.mxu0 0.0
    %5310 = vmatpush2.msra.mxu0 0.0
    %5311 = vmatprep.subr.mxu0 0.0
    %5312 = vmatpush2.msra.mxu0 0.0
    %5313 = vmatprep.subr.mxu0 0.0
    %5314 = vmatpush2.msra.mxu0 0.0
    %5315 = vmatprep.subr.mxu0 0.0
    %5316 = vmatpush2.msra.mxu0 0.0
    %5317 = vmatprep.subr.mxu0 0.0
    %5318 = vmatpush2.msra.mxu0 0.0
    %5319 = vmatprep.subr.mxu0 0.0
    %5320 = vmatpush2.msra.mxu0 0.0
    %5321 = vmatprep.subr.mxu0 0.0
    %5322 = vmatpush2.msra.mxu0 0.0
    %5323 = vmatprep.subr.mxu0 0.0
    %5324 = vmatpush2.msra.mxu0 0.0
    %5325 = vmatprep.subr.mxu0 0.0
    %5326 = vmatpush2.msra.mxu0 0.0
    %5327 = vmatprep.subr.mxu0 0.0
    %5328 = vmatpush2.msra.mxu0 0.0
    %5329 = vmatprep.subr.mxu0 0.0
    %5330 = vmatpush2.msra.mxu0 0.0
    %5331 = vmatprep.subr.mxu0 0.0
    %5332 = vmatpush2.msra.mxu0 0.0
    %5333 = vmatprep.subr.mxu0 0.0
    %5334 = vmatpush2.msra.mxu0 0.0
    %5335 = vmatprep.subr.mxu0 0.0
    %5336 = vmatpush2.msra.mxu0 0.0
    %5337 = vmatprep.mubr.f32.mxu0 0.0
    %5338 = vmatmul.mubr.f32.gmra.mxu0 %v5271
    %v5339 = vpop.f32.mrf.mxu0
    %v5340 = vadd.f32 0.0, %v5339
    %v5341 = vpop.f32.mrf.mxu0
    %5342 = vdwg.mxu0
    %s5343 = scalar_lea.vmem %s5, 56
    %v5344 = vld [vmem:[%s5343] sm:$0xff]
    %v5346 = vsel %vm67, %v5264, 0
    %v5349 = vsel %vm67, %v5340, 0
    %5351 = vmatprep.subr.mxu0 0.0
    %5352 = vmatpush1.msra.mxu0 0.0
    %5353 = vmatprep.subr.mxu0 0.0
    %5354 = vmatpush1.msra.mxu0 0.0
    %5355 = vmatprep.subr.mxu0 0.0
    %5356 = vmatpush1.msra.mxu0 0.0
    %5357 = vmatprep.subr.mxu0 0.0
    %5358 = vmatpush1.msra.mxu0 0.0
    %5359 = vmatprep.subr.mxu0 0.0
    %5360 = vmatpush1.msra.mxu0 0.0
    %5361 = vmatprep.subr.mxu0 0.0
    %5362 = vmatpush1.msra.mxu0 0.0
    %5363 = vmatprep.subr.mxu0 0.0
    %5364 = vmatpush1.msra.mxu0 0.0
    %5365 = vmatprep.subr.mxu0 0.0
    %5366 = vmatpush1.msra.mxu0 0.0
    %5367 = vmatprep.subr.mxu0 0.0
    %5368 = vmatpush1.msra.mxu0 0.0
    %5369 = vmatprep.subr.mxu0 0.0
    %5370 = vmatpush1.msra.mxu0 0.0
    %5371 = vmatprep.subr.mxu0 0.0
    %5372 = vmatpush1.msra.mxu0 0.0
    %5373 = vmatprep.subr.mxu0 0.0
    %5374 = vmatpush1.msra.mxu0 0.0
    %5375 = vmatprep.subr.mxu0 0.0
    %5376 = vmatpush1.msra.mxu0 0.0
    %5377 = vmatprep.subr.mxu0 0.0
    %5378 = vmatpush1.msra.mxu0 0.0
    %5379 = vmatprep.subr.mxu0 0.0
    %5380 = vmatpush1.msra.mxu0 0.0
    %5381 = vmatprep.subr.mxu0 0.0
    %5382 = vmatpush1.msra.mxu0 %v5344
    %5383 = vmatprep.subr.mxu0 0.0
    %5384 = vmatpush2.msra.mxu0 0.0
    %5385 = vmatprep.subr.mxu0 0.0
    %5386 = vmatpush2.msra.mxu0 0.0
    %5387 = vmatprep.subr.mxu0 0.0
    %5388 = vmatpush2.msra.mxu0 0.0
    %5389 = vmatprep.subr.mxu0 0.0
    %5390 = vmatpush2.msra.mxu0 0.0
    %5391 = vmatprep.subr.mxu0 0.0
    %5392 = vmatpush2.msra.mxu0 0.0
    %5393 = vmatprep.subr.mxu0 0.0
    %5394 = vmatpush2.msra.mxu0 0.0
    %5395 = vmatprep.subr.mxu0 0.0
    %5396 = vmatpush2.msra.mxu0 0.0
    %5397 = vmatprep.subr.mxu0 0.0
    %5398 = vmatpush2.msra.mxu0 0.0
    %5399 = vmatprep.subr.mxu0 0.0
    %5400 = vmatpush2.msra.mxu0 0.0
    %5401 = vmatprep.subr.mxu0 0.0
    %5402 = vmatpush2.msra.mxu0 0.0
    %5403 = vmatprep.subr.mxu0 0.0
    %5404 = vmatpush2.msra.mxu0 0.0
    %5405 = vmatprep.subr.mxu0 0.0
    %5406 = vmatpush2.msra.mxu0 0.0
    %5407 = vmatprep.subr.mxu0 0.0
    %5408 = vmatpush2.msra.mxu0 0.0
    %5409 = vmatprep.subr.mxu0 0.0
    %5410 = vmatpush2.msra.mxu0 0.0
    %5411 = vmatprep.subr.mxu0 0.0
    %5412 = vmatpush2.msra.mxu0 0.0
    %5413 = vmatprep.subr.mxu0 0.0
    %5414 = vmatpush2.msra.mxu0 0.0
    %5415 = vmatprep.mubr.f32.mxu0 0.0
    %5416 = vmatmul.mubr.f32.gmra.mxu0 %v5346
    %v5417 = vpop.f32.mrf.mxu0
    %v5418 = vadd.f32 0.0, %v5417
    %v5419 = vpop.f32.mrf.mxu0
    %5420 = vmatprep.mubr.f32.mxu0 0.0
    %5421 = vmatmul.mubr.f32.gmra.mxu0 %v5349
    %v5422 = vpop.f32.mrf.mxu0
    %v5423 = vadd.f32 0.0, %v5422
    %v5424 = vpop.f32.mrf.mxu0
    %5425 = vdwg.mxu0
    %v5426 = vadd.f32 %v5009, %v5418
    %v5427 = vadd.f32 %v5010, %v5423
    %s5428 = scalar_lea.vmem %s6, 1
    %v5429 = vld [vmem:[%s5428] sm:$0x1]
    %v5431 = vlaneseq
    %v5432 = vshrl.u32 %v5431, 7
    %v5433 = vsub.s32 0, %v5432
    %v5434 = vrot.slane %v5429, %v5433
    %v5436 = vadd.f32 %v5426, %v5434
    %v5437 = vadd.f32 %v5427, %v5434
    %v5438 = vadd.f32 %v3670, %v5436
    %v5439 = vadd.f32 %v3671, %v5437
    %s5440 = scalar_lea.vmem %s11, 1
    %v5441 = vld [vmem:[%s5440] sm:$0x1]
    %s5442 = scalar_lea.vmem %s12, 1
    %v5443 = vld [vmem:[%s5442] sm:$0x1]
    %v5444 = vsel %vm162, %v5438, 0.0
    %5445 = vadd.xlane.f32.xlu0 %v5444
    %v5446 = vpop.xlane.xlu0 %5445
    %v5447 = vsel %vm162, %v5439, 0.0
    %5448 = vadd.xlane.f32.xlu0 %v5447
    %v5449 = vpop.xlane.xlu0 %5448
    %v5450 = vmul.f32 %v5446, %v1924
    %v5451 = vmul.f32 %v5449, %v1924
    %v5452 = vsub.f32 %v5438, %v5450
    %v5453 = vsub.f32 %v5439, %v5451
    %v5454 = vmul.f32 %v5452, %v5452
    %v5455 = vmul.f32 %v5453, %v5453
    %v5456 = vsel %vm162, %v5454, 0.0
    %5457 = vadd.xlane.f32.xlu0 %v5456
    %v5458 = vpop.xlane.xlu0 %5457
    %v5459 = vsel %vm162, %v5455, 0.0
    %5460 = vadd.xlane.f32.xlu0 %v5459
    %v5461 = vpop.xlane.xlu0 %5460
    %v5462 = vmul.f32 %v5458, %v1924
    %v5463 = vmul.f32 %v5461, %v1924
    %v5464 = vadd.f32 %v5462, 1e-05
    %v5465 = vadd.f32 %v5463, 1e-05
    %v5466 = vrsqrt.pop %v5464
    %v5467 = vrsqrt.pop %v5465
    %v5468 = vmul.f32 %v5452, %v5466
    %v5469 = vmul.f32 %v5453, %v5467
    %v5471 = vlaneseq
    %v5472 = vshrl.u32 %v5471, 7
    %v5473 = vsub.s32 0, %v5472
    %v5474 = vrot.slane %v5441, %v5473
    %v5476 = vmul.f32 %v5468, %v5474
    %v5477 = vmul.f32 %v5469, %v5474
    %v5479 = vlaneseq
    %v5480 = vshrl.u32 %v5479, 7
    %v5481 = vsub.s32 0, %v5480
    %v5482 = vrot.slane %v5443, %v5481
    %v5484 = vadd.f32 %v5476, %v5482
    %v5485 = vadd.f32 %v5477, %v5482
    %s5486 = scalar_lea.vmem %s7, 512
    %v5487 = vld [vmem:[%s5486] sm:$0xff]
    %v5488 = vld [vmem:[%s5486 + $0x8] sm:$0xff]
    %v5489 = vld [vmem:[%s5486 + $0x10] sm:$0xff]
    %v5490 = vld [vmem:[%s5486 + $0x18] sm:$0xff]
    %v5491 = vld [vmem:[%s5486 + $0x20] sm:$0xff]
    %v5492 = vld [vmem:[%s5486 + $0x28] sm:$0xff]
    %v5493 = vld [vmem:[%s5486 + $0x30] sm:$0xff]
    %v5494 = vld [vmem:[%s5486 + $0x38] sm:$0xff]
    %v5495 = vld [vmem:[%s5486 + $0x40] sm:$0xff]
    %v5496 = vld [vmem:[%s5486 + $0x48] sm:$0xff]
    %v5497 = vld [vmem:[%s5486 + $0x50] sm:$0xff]
    %v5498 = vld [vmem:[%s5486 + $0x58] sm:$0xff]
    %v5499 = vld [vmem:[%s5486 + $0x60] sm:$0xff]
    %v5500 = vld [vmem:[%s5486 + $0x68] sm:$0xff]
    %v5501 = vld [vmem:[%s5486 + $0x70] sm:$0xff]
    %v5502 = vld [vmem:[%s5486 + $0x78] sm:$0xff]
    %v5503 = vld [vmem:[%s5486 + $0x80] sm:$0xff]
    %v5504 = vld [vmem:[%s5486 + $0x88] sm:$0xff]
    %v5505 = vld [vmem:[%s5486 + $0x90] sm:$0xff]
    %v5506 = vld [vmem:[%s5486 + $0x98] sm:$0xff]
    %v5507 = vld [vmem:[%s5486 + $0xa0] sm:$0xff]
    %v5508 = vld [vmem:[%s5486 + $0xa8] sm:$0xff]
    %v5509 = vld [vmem:[%s5486 + $0xb0] sm:$0xff]
    %v5510 = vld [vmem:[%s5486 + $0xb8] sm:$0xff]
    %v5511 = vld [vmem:[%s5486 + $0xc0] sm:$0xff]
    %v5512 = vld [vmem:[%s5486 + $0xc8] sm:$0xff]
    %v5513 = vld [vmem:[%s5486 + $0xd0] sm:$0xff]
    %v5514 = vld [vmem:[%s5486 + $0xd8] sm:$0xff]
    %v5515 = vld [vmem:[%s5486 + $0xe0] sm:$0xff]
    %v5516 = vld [vmem:[%s5486 + $0xe8] sm:$0xff]
    %v5517 = vld [vmem:[%s5486 + $0xf0] sm:$0xff]
    %v5518 = vld [vmem:[%s5486 + $0xf8] sm:$0xff]
    %v5519 = vld [vmem:[%s5486 + $0x100] sm:$0xff]
    %v5520 = vld [vmem:[%s5486 + $0x108] sm:$0xff]
    %v5521 = vld [vmem:[%s5486 + $0x110] sm:$0xff]
    %v5522 = vld [vmem:[%s5486 + $0x118] sm:$0xff]
    %v5523 = vld [vmem:[%s5486 + $0x120] sm:$0xff]
    %v5524 = vld [vmem:[%s5486 + $0x128] sm:$0xff]
    %v5525 = vld [vmem:[%s5486 + $0x130] sm:$0xff]
    %v5526 = vld [vmem:[%s5486 + $0x138] sm:$0xff]
    %v5527 = vld [vmem:[%s5486 + $0x140] sm:$0xff]
    %v5528 = vld [vmem:[%s5486 + $0x148] sm:$0xff]
    %v5529 = vld [vmem:[%s5486 + $0x150] sm:$0xff]
    %v5530 = vld [vmem:[%s5486 + $0x158] sm:$0xff]
    %v5531 = vld [vmem:[%s5486 + $0x160] sm:$0xff]
    %v5532 = vld [vmem:[%s5486 + $0x168] sm:$0xff]
    %v5533 = vld [vmem:[%s5486 + $0x170] sm:$0xff]
    %v5534 = vld [vmem:[%s5486 + $0x178] sm:$0xff]
    %v5535 = vld [vmem:[%s5486 + $0x180] sm:$0xff]
    %v5536 = vld [vmem:[%s5486 + $0x188] sm:$0xff]
    %v5537 = vld [vmem:[%s5486 + $0x190] sm:$0xff]
    %v5538 = vld [vmem:[%s5486 + $0x198] sm:$0xff]
    %v5539 = vld [vmem:[%s5486 + $0x1a0] sm:$0xff]
    %v5540 = vld [vmem:[%s5486 + $0x1a8] sm:$0xff]
    %v5541 = vld [vmem:[%s5486 + $0x1b0] sm:$0xff]
    %v5542 = vld [vmem:[%s5486 + $0x1b8] sm:$0xff]
    %v5543 = vld [vmem:[%s5486 + $0x1c0] sm:$0xff]
    %v5544 = vld [vmem:[%s5486 + $0x1c8] sm:$0xff]
    %v5545 = vld [vmem:[%s5486 + $0x1d0] sm:$0xff]
    %v5546 = vld [vmem:[%s5486 + $0x1d8] sm:$0xff]
    %v5547 = vld [vmem:[%s5486 + $0x1e0] sm:$0xff]
    %v5548 = vld [vmem:[%s5486 + $0x1e8] sm:$0xff]
    %v5549 = vld [vmem:[%s5486 + $0x1f0] sm:$0xff]
    %v5550 = vld [vmem:[%s5486 + $0x1f8] sm:$0xff]
    %s5551 = scalar_lea.vmem %s8, 16
    %v5552 = vld [vmem:[%s5551] sm:$0xff]
    %v5553 = vld [vmem:[%s5551 + $0x8] sm:$0xff]
    %v5556 = vlaneseq
    %v5557 = vshrl.u32 %v5556, 7
    %v5558 = vsub.s32 0, %v5557
    %v5559 = vrot.slane %v5552, %v5558
    %v5560 = vlaneseq
    %v5561 = vshrl.u32 %v5560, 7
    %v5562 = vsub.s32 1, %v5561
    %v5563 = vrot.slane %v5552, %v5562
    %v5564 = vlaneseq
    %v5565 = vshrl.u32 %v5564, 7
    %v5566 = vsub.s32 2, %v5565
    %v5567 = vrot.slane %v5552, %v5566
    %v5568 = vlaneseq
    %v5569 = vshrl.u32 %v5568, 7
    %v5570 = vsub.s32 3, %v5569
    %v5571 = vrot.slane %v5552, %v5570
    %v5572 = vlaneseq
    %v5573 = vshrl.u32 %v5572, 7
    %v5574 = vsub.s32 4, %v5573
    %v5575 = vrot.slane %v5552, %v5574
    %v5576 = vlaneseq
    %v5577 = vshrl.u32 %v5576, 7
    %v5578 = vsub.s32 5, %v5577
    %v5579 = vrot.slane %v5552, %v5578
    %v5580 = vlaneseq
    %v5581 = vshrl.u32 %v5580, 7
    %v5582 = vsub.s32 6, %v5581
    %v5583 = vrot.slane %v5552, %v5582
    %v5584 = vlaneseq
    %v5585 = vshrl.u32 %v5584, 7
    %v5586 = vsub.s32 7, %v5585
    %v5587 = vrot.slane %v5552, %v5586
    %v5588 = vlaneseq
    %v5589 = vshrl.u32 %v5588, 7
    %v5590 = vsub.s32 0, %v5589
    %v5591 = vrot.slane %v5553, %v5590
    %v5592 = vlaneseq
    %v5593 = vshrl.u32 %v5592, 7
    %v5594 = vsub.s32 1, %v5593
    %v5595 = vrot.slane %v5553, %v5594
    %v5596 = vlaneseq
    %v5597 = vshrl.u32 %v5596, 7
    %v5598 = vsub.s32 2, %v5597
    %v5599 = vrot.slane %v5553, %v5598
    %v5600 = vlaneseq
    %v5601 = vshrl.u32 %v5600, 7
    %v5602 = vsub.s32 3, %v5601
    %v5603 = vrot.slane %v5553, %v5602
    %v5604 = vlaneseq
    %v5605 = vshrl.u32 %v5604, 7
    %v5606 = vsub.s32 4, %v5605
    %v5607 = vrot.slane %v5553, %v5606
    %v5608 = vlaneseq
    %v5609 = vshrl.u32 %v5608, 7
    %v5610 = vsub.s32 5, %v5609
    %v5611 = vrot.slane %v5553, %v5610
    %v5612 = vlaneseq
    %v5613 = vshrl.u32 %v5612, 7
    %v5614 = vsub.s32 6, %v5613
    %v5615 = vrot.slane %v5553, %v5614
    %v5616 = vlaneseq
    %v5617 = vshrl.u32 %v5616, 7
    %v5618 = vsub.s32 7, %v5617
    %v5619 = vrot.slane %v5553, %v5618
    %v5637 = vsel %vm162, %v5484, 0
    %v5640 = vsel %vm162, %v5485, 0
    %5642 = vmatprep.subr.mxu0 0.0
    %5643 = vmatpush1.msra.mxu0 0.0
    %5644 = vmatprep.subr.mxu0 0.0
    %5645 = vmatpush1.msra.mxu0 0.0
    %5646 = vmatprep.subr.mxu0 0.0
    %5647 = vmatpush1.msra.mxu0 0.0
    %5648 = vmatprep.subr.mxu0 0.0
    %5649 = vmatpush1.msra.mxu0 0.0
    %5650 = vmatprep.subr.mxu0 0.0
    %5651 = vmatpush1.msra.mxu0 0.0
    %5652 = vmatprep.subr.mxu0 0.0
    %5653 = vmatpush1.msra.mxu0 0.0
    %5654 = vmatprep.subr.mxu0 0.0
    %5655 = vmatpush1.msra.mxu0 0.0
    %5656 = vmatprep.subr.mxu0 0.0
    %5657 = vmatpush1.msra.mxu0 0.0
    %5658 = vmatprep.subr.mxu0 0.0
    %5659 = vmatpush1.msra.mxu0 0.0
    %5660 = vmatprep.subr.mxu0 0.0
    %5661 = vmatpush1.msra.mxu0 0.0
    %5662 = vmatprep.subr.mxu0 0.0
    %5663 = vmatpush1.msra.mxu0 0.0
    %5664 = vmatprep.subr.mxu0 0.0
    %5665 = vmatpush1.msra.mxu0 0.0
    %5666 = vmatprep.subr.mxu0 %v5536
    %5667 = vmatpush1.msra.mxu0 %v5535
    %5668 = vmatprep.subr.mxu0 %v5520
    %5669 = vmatpush1.msra.mxu0 %v5519
    %5670 = vmatprep.subr.mxu0 %v5504
    %5671 = vmatpush1.msra.mxu0 %v5503
    %5672 = vmatprep.subr.mxu0 %v5488
    %5673 = vmatpush1.msra.mxu0 %v5487
    %5674 = vmatprep.subr.mxu0 0.0
    %5675 = vmatpush2.msra.mxu0 0.0
    %5676 = vmatprep.subr.mxu0 0.0
    %5677 = vmatpush2.msra.mxu0 0.0
    %5678 = vmatprep.subr.mxu0 0.0
    %5679 = vmatpush2.msra.mxu0 0.0
    %5680 = vmatprep.subr.mxu0 0.0
    %5681 = vmatpush2.msra.mxu0 0.0
    %5682 = vmatprep.subr.mxu0 0.0
    %5683 = vmatpush2.msra.mxu0 0.0
    %5684 = vmatprep.subr.mxu0 0.0
    %5685 = vmatpush2.msra.mxu0 0.0
    %5686 = vmatprep.subr.mxu0 0.0
    %5687 = vmatpush2.msra.mxu0 0.0
    %5688 = vmatprep.subr.mxu0 0.0
    %5689 = vmatpush2.msra.mxu0 0.0
    %5690 = vmatprep.subr.mxu0 0.0
    %5691 = vmatpush2.msra.mxu0 0.0
    %5692 = vmatprep.subr.mxu0 0.0
    %5693 = vmatpush2.msra.mxu0 0.0
    %5694 = vmatprep.subr.mxu0 0.0
    %5695 = vmatpush2.msra.mxu0 0.0
    %5696 = vmatprep.subr.mxu0 0.0
    %5697 = vmatpush2.msra.mxu0 0.0
    %5698 = vmatprep.subr.mxu0 0.0
    %5699 = vmatpush2.msra.mxu0 0.0
    %5700 = vmatprep.subr.mxu0 0.0
    %5701 = vmatpush2.msra.mxu0 0.0
    %5702 = vmatprep.subr.mxu0 0.0
    %5703 = vmatpush2.msra.mxu0 0.0
    %5704 = vmatprep.subr.mxu0 0.0
    %5705 = vmatpush2.msra.mxu0 0.0
    %5706 = vmatprep.mubr.f32.mxu0 0.0
    %5707 = vmatmul.mubr.f32.gmra.mxu0 %v5637
    %v5708 = vpop.f32.mrf.mxu0
    %v5709 = vadd.f32 %v5559, %v5708
    %v5710 = vpop.f32.mrf.mxu0
    %v5711 = vadd.f32 %v5563, %v5710
    %5712 = vmatprep.mubr.f32.mxu0 0.0
    %5713 = vmatmul.mubr.f32.gmra.mxu0 %v5640
    %v5714 = vpop.f32.mrf.mxu0
    %v5715 = vadd.f32 %v5559, %v5714
    %v5716 = vpop.f32.mrf.mxu0
    %v5717 = vadd.f32 %v5563, %v5716
    %5718 = vdwg.mxu0
    %5719 = vmatprep.subr.mxu0 0.0
    %5720 = vmatpush1.msra.mxu0 0.0
    %5721 = vmatprep.subr.mxu0 0.0
    %5722 = vmatpush1.msra.mxu0 0.0
    %5723 = vmatprep.subr.mxu0 0.0
    %5724 = vmatpush1.msra.mxu0 0.0
    %5725 = vmatprep.subr.mxu0 0.0
    %5726 = vmatpush1.msra.mxu0 0.0
    %5727 = vmatprep.subr.mxu0 0.0
    %5728 = vmatpush1.msra.mxu0 0.0
    %5729 = vmatprep.subr.mxu0 0.0
    %5730 = vmatpush1.msra.mxu0 0.0
    %5731 = vmatprep.subr.mxu0 0.0
    %5732 = vmatpush1.msra.mxu0 0.0
    %5733 = vmatprep.subr.mxu0 0.0
    %5734 = vmatpush1.msra.mxu0 0.0
    %5735 = vmatprep.subr.mxu0 0.0
    %5736 = vmatpush1.msra.mxu0 0.0
    %5737 = vmatprep.subr.mxu0 0.0
    %5738 = vmatpush1.msra.mxu0 0.0
    %5739 = vmatprep.subr.mxu0 0.0
    %5740 = vmatpush1.msra.mxu0 0.0
    %5741 = vmatprep.subr.mxu0 0.0
    %5742 = vmatpush1.msra.mxu0 0.0
    %5743 = vmatprep.subr.mxu0 %v5538
    %5744 = vmatpush1.msra.mxu0 %v5537
    %5745 = vmatprep.subr.mxu0 %v5522
    %5746 = vmatpush1.msra.mxu0 %v5521
    %5747 = vmatprep.subr.mxu0 %v5506
    %5748 = vmatpush1.msra.mxu0 %v5505
    %5749 = vmatprep.subr.mxu0 %v5490
    %5750 = vmatpush1.msra.mxu0 %v5489
    %5751 = vmatprep.subr.mxu0 0.0
    %5752 = vmatpush2.msra.mxu0 0.0
    %5753 = vmatprep.subr.mxu0 0.0
    %5754 = vmatpush2.msra.mxu0 0.0
    %5755 = vmatprep.subr.mxu0 0.0
    %5756 = vmatpush2.msra.mxu0 0.0
    %5757 = vmatprep.subr.mxu0 0.0
    %5758 = vmatpush2.msra.mxu0 0.0
    %5759 = vmatprep.subr.mxu0 0.0
    %5760 = vmatpush2.msra.mxu0 0.0
    %5761 = vmatprep.subr.mxu0 0.0
    %5762 = vmatpush2.msra.mxu0 0.0
    %5763 = vmatprep.subr.mxu0 0.0
    %5764 = vmatpush2.msra.mxu0 0.0
    %5765 = vmatprep.subr.mxu0 0.0
    %5766 = vmatpush2.msra.mxu0 0.0
    %5767 = vmatprep.subr.mxu0 0.0
    %5768 = vmatpush2.msra.mxu0 0.0
    %5769 = vmatprep.subr.mxu0 0.0
    %5770 = vmatpush2.msra.mxu0 0.0
    %5771 = vmatprep.subr.mxu0 0.0
    %5772 = vmatpush2.msra.mxu0 0.0
    %5773 = vmatprep.subr.mxu0 0.0
    %5774 = vmatpush2.msra.mxu0 0.0
    %5775 = vmatprep.subr.mxu0 0.0
    %5776 = vmatpush2.msra.mxu0 0.0
    %5777 = vmatprep.subr.mxu0 0.0
    %5778 = vmatpush2.msra.mxu0 0.0
    %5779 = vmatprep.subr.mxu0 0.0
    %5780 = vmatpush2.msra.mxu0 0.0
    %5781 = vmatprep.subr.mxu0 0.0
    %5782 = vmatpush2.msra.mxu0 0.0
    %5783 = vmatprep.mubr.f32.mxu0 0.0
    %5784 = vmatmul.mubr.f32.gmra.mxu0 %v5637
    %v5785 = vpop.f32.mrf.mxu0
    %v5786 = vadd.f32 %v5567, %v5785
    %v5787 = vpop.f32.mrf.mxu0
    %v5788 = vadd.f32 %v5571, %v5787
    %5789 = vmatprep.mubr.f32.mxu0 0.0
    %5790 = vmatmul.mubr.f32.gmra.mxu0 %v5640
    %v5791 = vpop.f32.mrf.mxu0
    %v5792 = vadd.f32 %v5567, %v5791
    %v5793 = vpop.f32.mrf.mxu0
    %v5794 = vadd.f32 %v5571, %v5793
    %5795 = vdwg.mxu0
    %5796 = vmatprep.subr.mxu0 0.0
    %5797 = vmatpush1.msra.mxu0 0.0
    %5798 = vmatprep.subr.mxu0 0.0
    %5799 = vmatpush1.msra.mxu0 0.0
    %5800 = vmatprep.subr.mxu0 0.0
    %5801 = vmatpush1.msra.mxu0 0.0
    %5802 = vmatprep.subr.mxu0 0.0
    %5803 = vmatpush1.msra.mxu0 0.0
    %5804 = vmatprep.subr.mxu0 0.0
    %5805 = vmatpush1.msra.mxu0 0.0
    %5806 = vmatprep.subr.mxu0 0.0
    %5807 = vmatpush1.msra.mxu0 0.0
    %5808 = vmatprep.subr.mxu0 0.0
    %5809 = vmatpush1.msra.mxu0 0.0
    %5810 = vmatprep.subr.mxu0 0.0
    %5811 = vmatpush1.msra.mxu0 0.0
    %5812 = vmatprep.subr.mxu0 0.0
    %5813 = vmatpush1.msra.mxu0 0.0
    %5814 = vmatprep.subr.mxu0 0.0
    %5815 = vmatpush1.msra.mxu0 0.0
    %5816 = vmatprep.subr.mxu0 0.0
    %5817 = vmatpush1.msra.mxu0 0.0
    %5818 = vmatprep.subr.mxu0 0.0
    %5819 = vmatpush1.msra.mxu0 0.0
    %5820 = vmatprep.subr.mxu0 %v5540
    %5821 = vmatpush1.msra.mxu0 %v5539
    %5822 = vmatprep.subr.mxu0 %v5524
    %5823 = vmatpush1.msra.mxu0 %v5523
    %5824 = vmatprep.subr.mxu0 %v5508
    %5825 = vmatpush1.msra.mxu0 %v5507
    %5826 = vmatprep.subr.mxu0 %v5492
    %5827 = vmatpush1.msra.mxu0 %v5491
    %5828 = vmatprep.subr.mxu0 0.0
    %5829 = vmatpush2.msra.mxu0 0.0
    %5830 = vmatprep.subr.mxu0 0.0
    %5831 = vmatpush2.msra.mxu0 0.0
    %5832 = vmatprep.subr.mxu0 0.0
    %5833 = vmatpush2.msra.mxu0 0.0
    %5834 = vmatprep.subr.mxu0 0.0
    %5835 = vmatpush2.msra.mxu0 0.0
    %5836 = vmatprep.subr.mxu0 0.0
    %5837 = vmatpush2.msra.mxu0 0.0
    %5838 = vmatprep.subr.mxu0 0.0
    %5839 = vmatpush2.msra.mxu0 0.0
    %5840 = vmatprep.subr.mxu0 0.0
    %5841 = vmatpush2.msra.mxu0 0.0
    %5842 = vmatprep.subr.mxu0 0.0
    %5843 = vmatpush2.msra.mxu0 0.0
    %5844 = vmatprep.subr.mxu0 0.0
    %5845 = vmatpush2.msra.mxu0 0.0
    %5846 = vmatprep.subr.mxu0 0.0
    %5847 = vmatpush2.msra.mxu0 0.0
    %5848 = vmatprep.subr.mxu0 0.0
    %5849 = vmatpush2.msra.mxu0 0.0
    %5850 = vmatprep.subr.mxu0 0.0
    %5851 = vmatpush2.msra.mxu0 0.0
    %5852 = vmatprep.subr.mxu0 0.0
    %5853 = vmatpush2.msra.mxu0 0.0
    %5854 = vmatprep.subr.mxu0 0.0
    %5855 = vmatpush2.msra.mxu0 0.0
    %5856 = vmatprep.subr.mxu0 0.0
    %5857 = vmatpush2.msra.mxu0 0.0
    %5858 = vmatprep.subr.mxu0 0.0
    %5859 = vmatpush2.msra.mxu0 0.0
    %5860 = vmatprep.mubr.f32.mxu0 0.0
    %5861 = vmatmul.mubr.f32.gmra.mxu0 %v5637
    %v5862 = vpop.f32.mrf.mxu0
    %v5863 = vadd.f32 %v5575, %v5862
    %v5864 = vpop.f32.mrf.mxu0
    %v5865 = vadd.f32 %v5579, %v5864
    %5866 = vmatprep.mubr.f32.mxu0 0.0
    %5867 = vmatmul.mubr.f32.gmra.mxu0 %v5640
    %v5868 = vpop.f32.mrf.mxu0
    %v5869 = vadd.f32 %v5575, %v5868
    %v5870 = vpop.f32.mrf.mxu0
    %v5871 = vadd.f32 %v5579, %v5870
    %5872 = vdwg.mxu0
    %5873 = vmatprep.subr.mxu0 0.0
    %5874 = vmatpush1.msra.mxu0 0.0
    %5875 = vmatprep.subr.mxu0 0.0
    %5876 = vmatpush1.msra.mxu0 0.0
    %5877 = vmatprep.subr.mxu0 0.0
    %5878 = vmatpush1.msra.mxu0 0.0
    %5879 = vmatprep.subr.mxu0 0.0
    %5880 = vmatpush1.msra.mxu0 0.0
    %5881 = vmatprep.subr.mxu0 0.0
    %5882 = vmatpush1.msra.mxu0 0.0
    %5883 = vmatprep.subr.mxu0 0.0
    %5884 = vmatpush1.msra.mxu0 0.0
    %5885 = vmatprep.subr.mxu0 0.0
    %5886 = vmatpush1.msra.mxu0 0.0
    %5887 = vmatprep.subr.mxu0 0.0
    %5888 = vmatpush1.msra.mxu0 0.0
    %5889 = vmatprep.subr.mxu0 0.0
    %5890 = vmatpush1.msra.mxu0 0.0
    %5891 = vmatprep.subr.mxu0 0.0
    %5892 = vmatpush1.msra.mxu0 0.0
    %5893 = vmatprep.subr.mxu0 0.0
    %5894 = vmatpush1.msra.mxu0 0.0
    %5895 = vmatprep.subr.mxu0 0.0
    %5896 = vmatpush1.msra.mxu0 0.0
    %5897 = vmatprep.subr.mxu0 %v5542
    %5898 = vmatpush1.msra.mxu0 %v5541
    %5899 = vmatprep.subr.mxu0 %v5526
    %5900 = vmatpush1.msra.mxu0 %v5525
    %5901 = vmatprep.subr.mxu0 %v5510
    %5902 = vmatpush1.msra.mxu0 %v5509
    %5903 = vmatprep.subr.mxu0 %v5494
    %5904 = vmatpush1.msra.mxu0 %v5493
    %5905 = vmatprep.subr.mxu0 0.0
    %5906 = vmatpush2.msra.mxu0 0.0
    %5907 = vmatprep.subr.mxu0 0.0
    %5908 = vmatpush2.msra.mxu0 0.0
    %5909 = vmatprep.subr.mxu0 0.0
    %5910 = vmatpush2.msra.mxu0 0.0
    %5911 = vmatprep.subr.mxu0 0.0
    %5912 = vmatpush2.msra.mxu0 0.0
    %5913 = vmatprep.subr.mxu0 0.0
    %5914 = vmatpush2.msra.mxu0 0.0
    %5915 = vmatprep.subr.mxu0 0.0
    %5916 = vmatpush2.msra.mxu0 0.0
    %5917 = vmatprep.subr.mxu0 0.0
    %5918 = vmatpush2.msra.mxu0 0.0
    %5919 = vmatprep.subr.mxu0 0.0
    %5920 = vmatpush2.msra.mxu0 0.0
    %5921 = vmatprep.subr.mxu0 0.0
    %5922 = vmatpush2.msra.mxu0 0.0
    %5923 = vmatprep.subr.mxu0 0.0
    %5924 = vmatpush2.msra.mxu0 0.0
    %5925 = vmatprep.subr.mxu0 0.0
    %5926 = vmatpush2.msra.mxu0 0.0
    %5927 = vmatprep.subr.mxu0 0.0
    %5928 = vmatpush2.msra.mxu0 0.0
    %5929 = vmatprep.subr.mxu0 0.0
    %5930 = vmatpush2.msra.mxu0 0.0
    %5931 = vmatprep.subr.mxu0 0.0
    %5932 = vmatpush2.msra.mxu0 0.0
    %5933 = vmatprep.subr.mxu0 0.0
    %5934 = vmatpush2.msra.mxu0 0.0
    %5935 = vmatprep.subr.mxu0 0.0
    %5936 = vmatpush2.msra.mxu0 0.0
    %5937 = vmatprep.mubr.f32.mxu0 0.0
    %5938 = vmatmul.mubr.f32.gmra.mxu0 %v5637
    %v5939 = vpop.f32.mrf.mxu0
    %v5940 = vadd.f32 %v5583, %v5939
    %v5941 = vpop.f32.mrf.mxu0
    %v5942 = vadd.f32 %v5587, %v5941
    %5943 = vmatprep.mubr.f32.mxu0 0.0
    %5944 = vmatmul.mubr.f32.gmra.mxu0 %v5640
    %v5945 = vpop.f32.mrf.mxu0
    %v5946 = vadd.f32 %v5583, %v5945
    %v5947 = vpop.f32.mrf.mxu0
    %v5948 = vadd.f32 %v5587, %v5947
    %5949 = vdwg.mxu0
    %5950 = vmatprep.subr.mxu0 0.0
    %5951 = vmatpush1.msra.mxu0 0.0
    %5952 = vmatprep.subr.mxu0 0.0
    %5953 = vmatpush1.msra.mxu0 0.0
    %5954 = vmatprep.subr.mxu0 0.0
    %5955 = vmatpush1.msra.mxu0 0.0
    %5956 = vmatprep.subr.mxu0 0.0
    %5957 = vmatpush1.msra.mxu0 0.0
    %5958 = vmatprep.subr.mxu0 0.0
    %5959 = vmatpush1.msra.mxu0 0.0
    %5960 = vmatprep.subr.mxu0 0.0
    %5961 = vmatpush1.msra.mxu0 0.0
    %5962 = vmatprep.subr.mxu0 0.0
    %5963 = vmatpush1.msra.mxu0 0.0
    %5964 = vmatprep.subr.mxu0 0.0
    %5965 = vmatpush1.msra.mxu0 0.0
    %5966 = vmatprep.subr.mxu0 0.0
    %5967 = vmatpush1.msra.mxu0 0.0
    %5968 = vmatprep.subr.mxu0 0.0
    %5969 = vmatpush1.msra.mxu0 0.0
    %5970 = vmatprep.subr.mxu0 0.0
    %5971 = vmatpush1.msra.mxu0 0.0
    %5972 = vmatprep.subr.mxu0 0.0
    %5973 = vmatpush1.msra.mxu0 0.0
    %5974 = vmatprep.subr.mxu0 %v5544
    %5975 = vmatpush1.msra.mxu0 %v5543
    %5976 = vmatprep.subr.mxu0 %v5528
    %5977 = vmatpush1.msra.mxu0 %v5527
    %5978 = vmatprep.subr.mxu0 %v5512
    %5979 = vmatpush1.msra.mxu0 %v5511
    %5980 = vmatprep.subr.mxu0 %v5496
    %5981 = vmatpush1.msra.mxu0 %v5495
    %5982 = vmatprep.subr.mxu0 0.0
    %5983 = vmatpush2.msra.mxu0 0.0
    %5984 = vmatprep.subr.mxu0 0.0
    %5985 = vmatpush2.msra.mxu0 0.0
    %5986 = vmatprep.subr.mxu0 0.0
    %5987 = vmatpush2.msra.mxu0 0.0
    %5988 = vmatprep.subr.mxu0 0.0
    %5989 = vmatpush2.msra.mxu0 0.0
    %5990 = vmatprep.subr.mxu0 0.0
    %5991 = vmatpush2.msra.mxu0 0.0
    %5992 = vmatprep.subr.mxu0 0.0
    %5993 = vmatpush2.msra.mxu0 0.0
    %5994 = vmatprep.subr.mxu0 0.0
    %5995 = vmatpush2.msra.mxu0 0.0
    %5996 = vmatprep.subr.mxu0 0.0
    %5997 = vmatpush2.msra.mxu0 0.0
    %5998 = vmatprep.subr.mxu0 0.0
    %5999 = vmatpush2.msra.mxu0 0.0
    %6000 = vmatprep.subr.mxu0 0.0
    %6001 = vmatpush2.msra.mxu0 0.0
    %6002 = vmatprep.subr.mxu0 0.0
    %6003 = vmatpush2.msra.mxu0 0.0
    %6004 = vmatprep.subr.mxu0 0.0
    %6005 = vmatpush2.msra.mxu0 0.0
    %6006 = vmatprep.subr.mxu0 0.0
    %6007 = vmatpush2.msra.mxu0 0.0
    %6008 = vmatprep.subr.mxu0 0.0
    %6009 = vmatpush2.msra.mxu0 0.0
    %6010 = vmatprep.subr.mxu0 0.0
    %6011 = vmatpush2.msra.mxu0 0.0
    %6012 = vmatprep.subr.mxu0 0.0
    %6013 = vmatpush2.msra.mxu0 0.0
    %6014 = vmatprep.mubr.f32.mxu0 0.0
    %6015 = vmatmul.mubr.f32.gmra.mxu0 %v5637
    %v6016 = vpop.f32.mrf.mxu0
    %v6017 = vadd.f32 %v5591, %v6016
    %v6018 = vpop.f32.mrf.mxu0
    %v6019 = vadd.f32 %v5595, %v6018
    %6020 = vmatprep.mubr.f32.mxu0 0.0
    %6021 = vmatmul.mubr.f32.gmra.mxu0 %v5640
    %v6022 = vpop.f32.mrf.mxu0
    %v6023 = vadd.f32 %v5591, %v6022
    %v6024 = vpop.f32.mrf.mxu0
    %v6025 = vadd.f32 %v5595, %v6024
    %6026 = vdwg.mxu0
    %6027 = vmatprep.subr.mxu0 0.0
    %6028 = vmatpush1.msra.mxu0 0.0
    %6029 = vmatprep.subr.mxu0 0.0
    %6030 = vmatpush1.msra.mxu0 0.0
    %6031 = vmatprep.subr.mxu0 0.0
    %6032 = vmatpush1.msra.mxu0 0.0
    %6033 = vmatprep.subr.mxu0 0.0
    %6034 = vmatpush1.msra.mxu0 0.0
    %6035 = vmatprep.subr.mxu0 0.0
    %6036 = vmatpush1.msra.mxu0 0.0
    %6037 = vmatprep.subr.mxu0 0.0
    %6038 = vmatpush1.msra.mxu0 0.0
    %6039 = vmatprep.subr.mxu0 0.0
    %6040 = vmatpush1.msra.mxu0 0.0
    %6041 = vmatprep.subr.mxu0 0.0
    %6042 = vmatpush1.msra.mxu0 0.0
    %6043 = vmatprep.subr.mxu0 0.0
    %6044 = vmatpush1.msra.mxu0 0.0
    %6045 = vmatprep.subr.mxu0 0.0
    %6046 = vmatpush1.msra.mxu0 0.0
    %6047 = vmatprep.subr.mxu0 0.0
    %6048 = vmatpush1.msra.mxu0 0.0
    %6049 = vmatprep.subr.mxu0 0.0
    %6050 = vmatpush1.msra.mxu0 0.0
    %6051 = vmatprep.subr.mxu0 %v5546
    %6052 = vmatpush1.msra.mxu0 %v5545
    %6053 = vmatprep.subr.mxu0 %v5530
    %6054 = vmatpush1.msra.mxu0 %v5529
    %6055 = vmatprep.subr.mxu0 %v5514
    %6056 = vmatpush1.msra.mxu0 %v5513
    %6057 = vmatprep.subr.mxu0 %v5498
    %6058 = vmatpush1.msra.mxu0 %v5497
    %6059 = vmatprep.subr.mxu0 0.0
    %6060 = vmatpush2.msra.mxu0 0.0
    %6061 = vmatprep.subr.mxu0 0.0
    %6062 = vmatpush2.msra.mxu0 0.0
    %6063 = vmatprep.subr.mxu0 0.0
    %6064 = vmatpush2.msra.mxu0 0.0
    %6065 = vmatprep.subr.mxu0 0.0
    %6066 = vmatpush2.msra.mxu0 0.0
    %6067 = vmatprep.subr.mxu0 0.0
    %6068 = vmatpush2.msra.mxu0 0.0
    %6069 = vmatprep.subr.mxu0 0.0
    %6070 = vmatpush2.msra.mxu0 0.0
    %6071 = vmatprep.subr.mxu0 0.0
    %6072 = vmatpush2.msra.mxu0 0.0
    %6073 = vmatprep.subr.mxu0 0.0
    %6074 = vmatpush2.msra.mxu0 0.0
    %6075 = vmatprep.subr.mxu0 0.0
    %6076 = vmatpush2.msra.mxu0 0.0
    %6077 = vmatprep.subr.mxu0 0.0
    %6078 = vmatpush2.msra.mxu0 0.0
    %6079 = vmatprep.subr.mxu0 0.0
    %6080 = vmatpush2.msra.mxu0 0.0
    %6081 = vmatprep.subr.mxu0 0.0
    %6082 = vmatpush2.msra.mxu0 0.0
    %6083 = vmatprep.subr.mxu0 0.0
    %6084 = vmatpush2.msra.mxu0 0.0
    %6085 = vmatprep.subr.mxu0 0.0
    %6086 = vmatpush2.msra.mxu0 0.0
    %6087 = vmatprep.subr.mxu0 0.0
    %6088 = vmatpush2.msra.mxu0 0.0
    %6089 = vmatprep.subr.mxu0 0.0
    %6090 = vmatpush2.msra.mxu0 0.0
    %6091 = vmatprep.mubr.f32.mxu0 0.0
    %6092 = vmatmul.mubr.f32.gmra.mxu0 %v5637
    %v6093 = vpop.f32.mrf.mxu0
    %v6094 = vadd.f32 %v5599, %v6093
    %v6095 = vpop.f32.mrf.mxu0
    %v6096 = vadd.f32 %v5603, %v6095
    %6097 = vmatprep.mubr.f32.mxu0 0.0
    %6098 = vmatmul.mubr.f32.gmra.mxu0 %v5640
    %v6099 = vpop.f32.mrf.mxu0
    %v6100 = vadd.f32 %v5599, %v6099
    %v6101 = vpop.f32.mrf.mxu0
    %v6102 = vadd.f32 %v5603, %v6101
    %6103 = vdwg.mxu0
    %6104 = vmatprep.subr.mxu0 0.0
    %6105 = vmatpush1.msra.mxu0 0.0
    %6106 = vmatprep.subr.mxu0 0.0
    %6107 = vmatpush1.msra.mxu0 0.0
    %6108 = vmatprep.subr.mxu0 0.0
    %6109 = vmatpush1.msra.mxu0 0.0
    %6110 = vmatprep.subr.mxu0 0.0
    %6111 = vmatpush1.msra.mxu0 0.0
    %6112 = vmatprep.subr.mxu0 0.0
    %6113 = vmatpush1.msra.mxu0 0.0
    %6114 = vmatprep.subr.mxu0 0.0
    %6115 = vmatpush1.msra.mxu0 0.0
    %6116 = vmatprep.subr.mxu0 0.0
    %6117 = vmatpush1.msra.mxu0 0.0
    %6118 = vmatprep.subr.mxu0 0.0
    %6119 = vmatpush1.msra.mxu0 0.0
    %6120 = vmatprep.subr.mxu0 0.0
    %6121 = vmatpush1.msra.mxu0 0.0
    %6122 = vmatprep.subr.mxu0 0.0
    %6123 = vmatpush1.msra.mxu0 0.0
    %6124 = vmatprep.subr.mxu0 0.0
    %6125 = vmatpush1.msra.mxu0 0.0
    %6126 = vmatprep.subr.mxu0 0.0
    %6127 = vmatpush1.msra.mxu0 0.0
    %6128 = vmatprep.subr.mxu0 %v5548
    %6129 = vmatpush1.msra.mxu0 %v5547
    %6130 = vmatprep.subr.mxu0 %v5532
    %6131 = vmatpush1.msra.mxu0 %v5531
    %6132 = vmatprep.subr.mxu0 %v5516
    %6133 = vmatpush1.msra.mxu0 %v5515
    %6134 = vmatprep.subr.mxu0 %v5500
    %6135 = vmatpush1.msra.mxu0 %v5499
    %6136 = vmatprep.subr.mxu0 0.0
    %6137 = vmatpush2.msra.mxu0 0.0
    %6138 = vmatprep.subr.mxu0 0.0
    %6139 = vmatpush2.msra.mxu0 0.0
    %6140 = vmatprep.subr.mxu0 0.0
    %6141 = vmatpush2.msra.mxu0 0.0
    %6142 = vmatprep.subr.mxu0 0.0
    %6143 = vmatpush2.msra.mxu0 0.0
    %6144 = vmatprep.subr.mxu0 0.0
    %6145 = vmatpush2.msra.mxu0 0.0
    %6146 = vmatprep.subr.mxu0 0.0
    %6147 = vmatpush2.msra.mxu0 0.0
    %6148 = vmatprep.subr.mxu0 0.0
    %6149 = vmatpush2.msra.mxu0 0.0
    %6150 = vmatprep.subr.mxu0 0.0
    %6151 = vmatpush2.msra.mxu0 0.0
    %6152 = vmatprep.subr.mxu0 0.0
    %6153 = vmatpush2.msra.mxu0 0.0
    %6154 = vmatprep.subr.mxu0 0.0
    %6155 = vmatpush2.msra.mxu0 0.0
    %6156 = vmatprep.subr.mxu0 0.0
    %6157 = vmatpush2.msra.mxu0 0.0
    %6158 = vmatprep.subr.mxu0 0.0
    %6159 = vmatpush2.msra.mxu0 0.0
    %6160 = vmatprep.subr.mxu0 0.0
    %6161 = vmatpush2.msra.mxu0 0.0
    %6162 = vmatprep.subr.mxu0 0.0
    %6163 = vmatpush2.msra.mxu0 0.0
    %6164 = vmatprep.subr.mxu0 0.0
    %6165 = vmatpush2.msra.mxu0 0.0
    %6166 = vmatprep.subr.mxu0 0.0
    %6167 = vmatpush2.msra.mxu0 0.0
    %6168 = vmatprep.mubr.f32.mxu0 0.0
    %6169 = vmatmul.mubr.f32.gmra.mxu0 %v5637
    %v6170 = vpop.f32.mrf.mxu0
    %v6171 = vadd.f32 %v5607, %v6170
    %v6172 = vpop.f32.mrf.mxu0
    %v6173 = vadd.f32 %v5611, %v6172
    %6174 = vmatprep.mubr.f32.mxu0 0.0
    %6175 = vmatmul.mubr.f32.gmra.mxu0 %v5640
    %v6176 = vpop.f32.mrf.mxu0
    %v6177 = vadd.f32 %v5607, %v6176
    %v6178 = vpop.f32.mrf.mxu0
    %v6179 = vadd.f32 %v5611, %v6178
    %6180 = vdwg.mxu0
    %6181 = vmatprep.subr.mxu0 0.0
    %6182 = vmatpush1.msra.mxu0 0.0
    %6183 = vmatprep.subr.mxu0 0.0
    %6184 = vmatpush1.msra.mxu0 0.0
    %6185 = vmatprep.subr.mxu0 0.0
    %6186 = vmatpush1.msra.mxu0 0.0
    %6187 = vmatprep.subr.mxu0 0.0
    %6188 = vmatpush1.msra.mxu0 0.0
    %6189 = vmatprep.subr.mxu0 0.0
    %6190 = vmatpush1.msra.mxu0 0.0
    %6191 = vmatprep.subr.mxu0 0.0
    %6192 = vmatpush1.msra.mxu0 0.0
    %6193 = vmatprep.subr.mxu0 0.0
    %6194 = vmatpush1.msra.mxu0 0.0
    %6195 = vmatprep.subr.mxu0 0.0
    %6196 = vmatpush1.msra.mxu0 0.0
    %6197 = vmatprep.subr.mxu0 0.0
    %6198 = vmatpush1.msra.mxu0 0.0
    %6199 = vmatprep.subr.mxu0 0.0
    %6200 = vmatpush1.msra.mxu0 0.0
    %6201 = vmatprep.subr.mxu0 0.0
    %6202 = vmatpush1.msra.mxu0 0.0
    %6203 = vmatprep.subr.mxu0 0.0
    %6204 = vmatpush1.msra.mxu0 0.0
    %6205 = vmatprep.subr.mxu0 %v5550
    %6206 = vmatpush1.msra.mxu0 %v5549
    %6207 = vmatprep.subr.mxu0 %v5534
    %6208 = vmatpush1.msra.mxu0 %v5533
    %6209 = vmatprep.subr.mxu0 %v5518
    %6210 = vmatpush1.msra.mxu0 %v5517
    %6211 = vmatprep.subr.mxu0 %v5502
    %6212 = vmatpush1.msra.mxu0 %v5501
    %6213 = vmatprep.subr.mxu0 0.0
    %6214 = vmatpush2.msra.mxu0 0.0
    %6215 = vmatprep.subr.mxu0 0.0
    %6216 = vmatpush2.msra.mxu0 0.0
    %6217 = vmatprep.subr.mxu0 0.0
    %6218 = vmatpush2.msra.mxu0 0.0
    %6219 = vmatprep.subr.mxu0 0.0
    %6220 = vmatpush2.msra.mxu0 0.0
    %6221 = vmatprep.subr.mxu0 0.0
    %6222 = vmatpush2.msra.mxu0 0.0
    %6223 = vmatprep.subr.mxu0 0.0
    %6224 = vmatpush2.msra.mxu0 0.0
    %6225 = vmatprep.subr.mxu0 0.0
    %6226 = vmatpush2.msra.mxu0 0.0
    %6227 = vmatprep.subr.mxu0 0.0
    %6228 = vmatpush2.msra.mxu0 0.0
    %6229 = vmatprep.subr.mxu0 0.0
    %6230 = vmatpush2.msra.mxu0 0.0
    %6231 = vmatprep.subr.mxu0 0.0
    %6232 = vmatpush2.msra.mxu0 0.0
    %6233 = vmatprep.subr.mxu0 0.0
    %6234 = vmatpush2.msra.mxu0 0.0
    %6235 = vmatprep.subr.mxu0 0.0
    %6236 = vmatpush2.msra.mxu0 0.0
    %6237 = vmatprep.subr.mxu0 0.0
    %6238 = vmatpush2.msra.mxu0 0.0
    %6239 = vmatprep.subr.mxu0 0.0
    %6240 = vmatpush2.msra.mxu0 0.0
    %6241 = vmatprep.subr.mxu0 0.0
    %6242 = vmatpush2.msra.mxu0 0.0
    %6243 = vmatprep.subr.mxu0 0.0
    %6244 = vmatpush2.msra.mxu0 0.0
    %6245 = vmatprep.mubr.f32.mxu0 0.0
    %6246 = vmatmul.mubr.f32.gmra.mxu0 %v5637
    %v6247 = vpop.f32.mrf.mxu0
    %v6248 = vadd.f32 %v5615, %v6247
    %v6249 = vpop.f32.mrf.mxu0
    %v6250 = vadd.f32 %v5619, %v6249
    %6251 = vmatprep.mubr.f32.mxu0 0.0
    %6252 = vmatmul.mubr.f32.gmra.mxu0 %v5640
    %v6253 = vpop.f32.mrf.mxu0
    %v6254 = vadd.f32 %v5615, %v6253
    %v6255 = vpop.f32.mrf.mxu0
    %v6256 = vadd.f32 %v5619, %v6255
    %6257 = vdwg.mxu0
    %v6258 = vmax.f32 %v5709, 0.0
    %v6259 = vmax.f32 %v5711, 0.0
    %v6260 = vmax.f32 %v5786, 0.0
    %v6261 = vmax.f32 %v5788, 0.0
    %v6262 = vmax.f32 %v5863, 0.0
    %v6263 = vmax.f32 %v5865, 0.0
    %v6264 = vmax.f32 %v5940, 0.0
    %v6265 = vmax.f32 %v5942, 0.0
    %v6266 = vmax.f32 %v6017, 0.0
    %v6267 = vmax.f32 %v6019, 0.0
    %v6268 = vmax.f32 %v6094, 0.0
    %v6269 = vmax.f32 %v6096, 0.0
    %v6270 = vmax.f32 %v6171, 0.0
    %v6271 = vmax.f32 %v6173, 0.0
    %v6272 = vmax.f32 %v6248, 0.0
    %v6273 = vmax.f32 %v6250, 0.0
    %v6274 = vmax.f32 %v5715, 0.0
    %v6275 = vmax.f32 %v5717, 0.0
    %v6276 = vmax.f32 %v5792, 0.0
    %v6277 = vmax.f32 %v5794, 0.0
    %v6278 = vmax.f32 %v5869, 0.0
    %v6279 = vmax.f32 %v5871, 0.0
    %v6280 = vmax.f32 %v5946, 0.0
    %v6281 = vmax.f32 %v5948, 0.0
    %v6282 = vmax.f32 %v6023, 0.0
    %v6283 = vmax.f32 %v6025, 0.0
    %v6284 = vmax.f32 %v6100, 0.0
    %v6285 = vmax.f32 %v6102, 0.0
    %v6286 = vmax.f32 %v6177, 0.0
    %v6287 = vmax.f32 %v6179, 0.0
    %v6288 = vmax.f32 %v6254, 0.0
    %v6289 = vmax.f32 %v6256, 0.0
    %s6290 = scalar_lea.vmem %s9, 2048
    %v6291 = vld [vmem:[%s6290] sm:$0xff]
    %v6292 = vld [vmem:[%s6290 + $0x8] sm:$0xff]
    %v6293 = vld [vmem:[%s6290 + $0x10] sm:$0xff]
    %v6294 = vld [vmem:[%s6290 + $0x18] sm:$0xff]
    %v6295 = vld [vmem:[%s6290 + $0x20] sm:$0xff]
    %v6296 = vld [vmem:[%s6290 + $0x28] sm:$0xff]
    %v6297 = vld [vmem:[%s6290 + $0x30] sm:$0xff]
    %v6298 = vld [vmem:[%s6290 + $0x38] sm:$0xff]
    %v6299 = vld [vmem:[%s6290 + $0x40] sm:$0xff]
    %v6300 = vld [vmem:[%s6290 + $0x48] sm:$0xff]
    %v6301 = vld [vmem:[%s6290 + $0x50] sm:$0xff]
    %v6302 = vld [vmem:[%s6290 + $0x58] sm:$0xff]
    %v6303 = vld [vmem:[%s6290 + $0x60] sm:$0xff]
    %v6304 = vld [vmem:[%s6290 + $0x68] sm:$0xff]
    %v6305 = vld [vmem:[%s6290 + $0x70] sm:$0xff]
    %v6306 = vld [vmem:[%s6290 + $0x78] sm:$0xff]
    %v6307 = vld [vmem:[%s6290 + $0x80] sm:$0xff]
    %v6308 = vld [vmem:[%s6290 + $0x88] sm:$0xff]
    %v6309 = vld [vmem:[%s6290 + $0x90] sm:$0xff]
    %v6310 = vld [vmem:[%s6290 + $0x98] sm:$0xff]
    %v6311 = vld [vmem:[%s6290 + $0xa0] sm:$0xff]
    %v6312 = vld [vmem:[%s6290 + $0xa8] sm:$0xff]
    %v6313 = vld [vmem:[%s6290 + $0xb0] sm:$0xff]
    %v6314 = vld [vmem:[%s6290 + $0xb8] sm:$0xff]
    %v6315 = vld [vmem:[%s6290 + $0xc0] sm:$0xff]
    %v6316 = vld [vmem:[%s6290 + $0xc8] sm:$0xff]
    %v6317 = vld [vmem:[%s6290 + $0xd0] sm:$0xff]
    %v6318 = vld [vmem:[%s6290 + $0xd8] sm:$0xff]
    %v6319 = vld [vmem:[%s6290 + $0xe0] sm:$0xff]
    %v6320 = vld [vmem:[%s6290 + $0xe8] sm:$0xff]
    %v6321 = vld [vmem:[%s6290 + $0xf0] sm:$0xff]
    %v6322 = vld [vmem:[%s6290 + $0xf8] sm:$0xff]
    %v6323 = vld [vmem:[%s6290 + $0x100] sm:$0xff]
    %v6324 = vld [vmem:[%s6290 + $0x108] sm:$0xff]
    %v6325 = vld [vmem:[%s6290 + $0x110] sm:$0xff]
    %v6326 = vld [vmem:[%s6290 + $0x118] sm:$0xff]
    %v6327 = vld [vmem:[%s6290 + $0x120] sm:$0xff]
    %v6328 = vld [vmem:[%s6290 + $0x128] sm:$0xff]
    %v6329 = vld [vmem:[%s6290 + $0x130] sm:$0xff]
    %v6330 = vld [vmem:[%s6290 + $0x138] sm:$0xff]
    %v6331 = vld [vmem:[%s6290 + $0x140] sm:$0xff]
    %v6332 = vld [vmem:[%s6290 + $0x148] sm:$0xff]
    %v6333 = vld [vmem:[%s6290 + $0x150] sm:$0xff]
    %v6334 = vld [vmem:[%s6290 + $0x158] sm:$0xff]
    %v6335 = vld [vmem:[%s6290 + $0x160] sm:$0xff]
    %v6336 = vld [vmem:[%s6290 + $0x168] sm:$0xff]
    %v6337 = vld [vmem:[%s6290 + $0x170] sm:$0xff]
    %v6338 = vld [vmem:[%s6290 + $0x178] sm:$0xff]
    %v6339 = vld [vmem:[%s6290 + $0x180] sm:$0xff]
    %v6340 = vld [vmem:[%s6290 + $0x188] sm:$0xff]
    %v6341 = vld [vmem:[%s6290 + $0x190] sm:$0xff]
    %v6342 = vld [vmem:[%s6290 + $0x198] sm:$0xff]
    %v6343 = vld [vmem:[%s6290 + $0x1a0] sm:$0xff]
    %v6344 = vld [vmem:[%s6290 + $0x1a8] sm:$0xff]
    %v6345 = vld [vmem:[%s6290 + $0x1b0] sm:$0xff]
    %v6346 = vld [vmem:[%s6290 + $0x1b8] sm:$0xff]
    %v6347 = vld [vmem:[%s6290 + $0x1c0] sm:$0xff]
    %v6348 = vld [vmem:[%s6290 + $0x1c8] sm:$0xff]
    %v6349 = vld [vmem:[%s6290 + $0x1d0] sm:$0xff]
    %v6350 = vld [vmem:[%s6290 + $0x1d8] sm:$0xff]
    %v6351 = vld [vmem:[%s6290 + $0x1e0] sm:$0xff]
    %v6352 = vld [vmem:[%s6290 + $0x1e8] sm:$0xff]
    %v6353 = vld [vmem:[%s6290 + $0x1f0] sm:$0xff]
    %v6354 = vld [vmem:[%s6290 + $0x1f8] sm:$0xff]
    %v6355 = vld [vmem:[%s6290 + $0x200] sm:$0xff]
    %v6356 = vld [vmem:[%s6290 + $0x208] sm:$0xff]
    %v6357 = vld [vmem:[%s6290 + $0x210] sm:$0xff]
    %v6358 = vld [vmem:[%s6290 + $0x218] sm:$0xff]
    %v6359 = vld [vmem:[%s6290 + $0x220] sm:$0xff]
    %v6360 = vld [vmem:[%s6290 + $0x228] sm:$0xff]
    %v6361 = vld [vmem:[%s6290 + $0x230] sm:$0xff]
    %v6362 = vld [vmem:[%s6290 + $0x238] sm:$0xff]
    %v6363 = vld [vmem:[%s6290 + $0x240] sm:$0xff]
    %v6364 = vld [vmem:[%s6290 + $0x248] sm:$0xff]
    %v6365 = vld [vmem:[%s6290 + $0x250] sm:$0xff]
    %v6366 = vld [vmem:[%s6290 + $0x258] sm:$0xff]
    %v6367 = vld [vmem:[%s6290 + $0x260] sm:$0xff]
    %v6368 = vld [vmem:[%s6290 + $0x268] sm:$0xff]
    %v6369 = vld [vmem:[%s6290 + $0x270] sm:$0xff]
    %v6370 = vld [vmem:[%s6290 + $0x278] sm:$0xff]
    %v6371 = vld [vmem:[%s6290 + $0x280] sm:$0xff]
    %v6372 = vld [vmem:[%s6290 + $0x288] sm:$0xff]
    %v6373 = vld [vmem:[%s6290 + $0x290] sm:$0xff]
    %v6374 = vld [vmem:[%s6290 + $0x298] sm:$0xff]
    %v6375 = vld [vmem:[%s6290 + $0x2a0] sm:$0xff]
    %v6376 = vld [vmem:[%s6290 + $0x2a8] sm:$0xff]
    %v6377 = vld [vmem:[%s6290 + $0x2b0] sm:$0xff]
    %v6378 = vld [vmem:[%s6290 + $0x2b8] sm:$0xff]
    %v6379 = vld [vmem:[%s6290 + $0x2c0] sm:$0xff]
    %v6380 = vld [vmem:[%s6290 + $0x2c8] sm:$0xff]
    %v6381 = vld [vmem:[%s6290 + $0x2d0] sm:$0xff]
    %v6382 = vld [vmem:[%s6290 + $0x2d8] sm:$0xff]
    %v6383 = vld [vmem:[%s6290 + $0x2e0] sm:$0xff]
    %v6384 = vld [vmem:[%s6290 + $0x2e8] sm:$0xff]
    %v6385 = vld [vmem:[%s6290 + $0x2f0] sm:$0xff]
    %v6386 = vld [vmem:[%s6290 + $0x2f8] sm:$0xff]
    %v6387 = vld [vmem:[%s6290 + $0x300] sm:$0xff]
    %v6388 = vld [vmem:[%s6290 + $0x308] sm:$0xff]
    %v6389 = vld [vmem:[%s6290 + $0x310] sm:$0xff]
    %v6390 = vld [vmem:[%s6290 + $0x318] sm:$0xff]
    %v6391 = vld [vmem:[%s6290 + $0x320] sm:$0xff]
    %v6392 = vld [vmem:[%s6290 + $0x328] sm:$0xff]
    %v6393 = vld [vmem:[%s6290 + $0x330] sm:$0xff]
    %v6394 = vld [vmem:[%s6290 + $0x338] sm:$0xff]
    %v6395 = vld [vmem:[%s6290 + $0x340] sm:$0xff]
    %v6396 = vld [vmem:[%s6290 + $0x348] sm:$0xff]
    %v6397 = vld [vmem:[%s6290 + $0x350] sm:$0xff]
    %v6398 = vld [vmem:[%s6290 + $0x358] sm:$0xff]
    %v6399 = vld [vmem:[%s6290 + $0x360] sm:$0xff]
    %v6400 = vld [vmem:[%s6290 + $0x368] sm:$0xff]
    %v6401 = vld [vmem:[%s6290 + $0x370] sm:$0xff]
    %v6402 = vld [vmem:[%s6290 + $0x378] sm:$0xff]
    %v6403 = vld [vmem:[%s6290 + $0x380] sm:$0xff]
    %v6404 = vld [vmem:[%s6290 + $0x388] sm:$0xff]
    %v6405 = vld [vmem:[%s6290 + $0x390] sm:$0xff]
    %v6406 = vld [vmem:[%s6290 + $0x398] sm:$0xff]
    %v6407 = vld [vmem:[%s6290 + $0x3a0] sm:$0xff]
    %v6408 = vld [vmem:[%s6290 + $0x3a8] sm:$0xff]
    %v6409 = vld [vmem:[%s6290 + $0x3b0] sm:$0xff]
    %v6410 = vld [vmem:[%s6290 + $0x3b8] sm:$0xff]
    %v6411 = vld [vmem:[%s6290 + $0x3c0] sm:$0xff]
    %v6412 = vld [vmem:[%s6290 + $0x3c8] sm:$0xff]
    %v6413 = vld [vmem:[%s6290 + $0x3d0] sm:$0xff]
    %v6414 = vld [vmem:[%s6290 + $0x3d8] sm:$0xff]
    %v6415 = vld [vmem:[%s6290 + $0x3e0] sm:$0xff]
    %v6416 = vld [vmem:[%s6290 + $0x3e8] sm:$0xff]
    %v6417 = vld [vmem:[%s6290 + $0x3f0] sm:$0xff]
    %v6418 = vld [vmem:[%s6290 + $0x3f8] sm:$0xff]
    %v6419 = vld [vmem:[%s6290 + $0x400] sm:$0xff]
    %v6420 = vld [vmem:[%s6290 + $0x408] sm:$0xff]
    %v6421 = vld [vmem:[%s6290 + $0x410] sm:$0xff]
    %v6422 = vld [vmem:[%s6290 + $0x418] sm:$0xff]
    %v6423 = vld [vmem:[%s6290 + $0x420] sm:$0xff]
    %v6424 = vld [vmem:[%s6290 + $0x428] sm:$0xff]
    %v6425 = vld [vmem:[%s6290 + $0x430] sm:$0xff]
    %v6426 = vld [vmem:[%s6290 + $0x438] sm:$0xff]
    %v6427 = vld [vmem:[%s6290 + $0x440] sm:$0xff]
    %v6428 = vld [vmem:[%s6290 + $0x448] sm:$0xff]
    %v6429 = vld [vmem:[%s6290 + $0x450] sm:$0xff]
    %v6430 = vld [vmem:[%s6290 + $0x458] sm:$0xff]
    %v6431 = vld [vmem:[%s6290 + $0x460] sm:$0xff]
    %v6432 = vld [vmem:[%s6290 + $0x468] sm:$0xff]
    %v6433 = vld [vmem:[%s6290 + $0x470] sm:$0xff]
    %v6434 = vld [vmem:[%s6290 + $0x478] sm:$0xff]
    %v6435 = vld [vmem:[%s6290 + $0x480] sm:$0xff]
    %v6436 = vld [vmem:[%s6290 + $0x488] sm:$0xff]
    %v6437 = vld [vmem:[%s6290 + $0x490] sm:$0xff]
    %v6438 = vld [vmem:[%s6290 + $0x498] sm:$0xff]
    %v6439 = vld [vmem:[%s6290 + $0x4a0] sm:$0xff]
    %v6440 = vld [vmem:[%s6290 + $0x4a8] sm:$0xff]
    %v6441 = vld [vmem:[%s6290 + $0x4b0] sm:$0xff]
    %v6442 = vld [vmem:[%s6290 + $0x4b8] sm:$0xff]
    %v6443 = vld [vmem:[%s6290 + $0x4c0] sm:$0xff]
    %v6444 = vld [vmem:[%s6290 + $0x4c8] sm:$0xff]
    %v6445 = vld [vmem:[%s6290 + $0x4d0] sm:$0xff]
    %v6446 = vld [vmem:[%s6290 + $0x4d8] sm:$0xff]
    %v6447 = vld [vmem:[%s6290 + $0x4e0] sm:$0xff]
    %v6448 = vld [vmem:[%s6290 + $0x4e8] sm:$0xff]
    %v6449 = vld [vmem:[%s6290 + $0x4f0] sm:$0xff]
    %v6450 = vld [vmem:[%s6290 + $0x4f8] sm:$0xff]
    %v6451 = vld [vmem:[%s6290 + $0x500] sm:$0xff]
    %v6452 = vld [vmem:[%s6290 + $0x508] sm:$0xff]
    %v6453 = vld [vmem:[%s6290 + $0x510] sm:$0xff]
    %v6454 = vld [vmem:[%s6290 + $0x518] sm:$0xff]
    %v6455 = vld [vmem:[%s6290 + $0x520] sm:$0xff]
    %v6456 = vld [vmem:[%s6290 + $0x528] sm:$0xff]
    %v6457 = vld [vmem:[%s6290 + $0x530] sm:$0xff]
    %v6458 = vld [vmem:[%s6290 + $0x538] sm:$0xff]
    %v6459 = vld [vmem:[%s6290 + $0x540] sm:$0xff]
    %v6460 = vld [vmem:[%s6290 + $0x548] sm:$0xff]
    %v6461 = vld [vmem:[%s6290 + $0x550] sm:$0xff]
    %v6462 = vld [vmem:[%s6290 + $0x558] sm:$0xff]
    %v6463 = vld [vmem:[%s6290 + $0x560] sm:$0xff]
    %v6464 = vld [vmem:[%s6290 + $0x568] sm:$0xff]
    %v6465 = vld [vmem:[%s6290 + $0x570] sm:$0xff]
    %v6466 = vld [vmem:[%s6290 + $0x578] sm:$0xff]
    %v6467 = vld [vmem:[%s6290 + $0x580] sm:$0xff]
    %v6468 = vld [vmem:[%s6290 + $0x588] sm:$0xff]
    %v6469 = vld [vmem:[%s6290 + $0x590] sm:$0xff]
    %v6470 = vld [vmem:[%s6290 + $0x598] sm:$0xff]
    %v6471 = vld [vmem:[%s6290 + $0x5a0] sm:$0xff]
    %v6472 = vld [vmem:[%s6290 + $0x5a8] sm:$0xff]
    %v6473 = vld [vmem:[%s6290 + $0x5b0] sm:$0xff]
    %v6474 = vld [vmem:[%s6290 + $0x5b8] sm:$0xff]
    %v6475 = vld [vmem:[%s6290 + $0x5c0] sm:$0xff]
    %v6476 = vld [vmem:[%s6290 + $0x5c8] sm:$0xff]
    %v6477 = vld [vmem:[%s6290 + $0x5d0] sm:$0xff]
    %v6478 = vld [vmem:[%s6290 + $0x5d8] sm:$0xff]
    %v6479 = vld [vmem:[%s6290 + $0x5e0] sm:$0xff]
    %v6480 = vld [vmem:[%s6290 + $0x5e8] sm:$0xff]
    %v6481 = vld [vmem:[%s6290 + $0x5f0] sm:$0xff]
    %v6482 = vld [vmem:[%s6290 + $0x5f8] sm:$0xff]
    %v6483 = vld [vmem:[%s6290 + $0x600] sm:$0xff]
    %v6484 = vld [vmem:[%s6290 + $0x608] sm:$0xff]
    %v6485 = vld [vmem:[%s6290 + $0x610] sm:$0xff]
    %v6486 = vld [vmem:[%s6290 + $0x618] sm:$0xff]
    %v6487 = vld [vmem:[%s6290 + $0x620] sm:$0xff]
    %v6488 = vld [vmem:[%s6290 + $0x628] sm:$0xff]
    %v6489 = vld [vmem:[%s6290 + $0x630] sm:$0xff]
    %v6490 = vld [vmem:[%s6290 + $0x638] sm:$0xff]
    %v6491 = vld [vmem:[%s6290 + $0x640] sm:$0xff]
    %v6492 = vld [vmem:[%s6290 + $0x648] sm:$0xff]
    %v6493 = vld [vmem:[%s6290 + $0x650] sm:$0xff]
    %v6494 = vld [vmem:[%s6290 + $0x658] sm:$0xff]
    %v6495 = vld [vmem:[%s6290 + $0x660] sm:$0xff]
    %v6496 = vld [vmem:[%s6290 + $0x668] sm:$0xff]
    %v6497 = vld [vmem:[%s6290 + $0x670] sm:$0xff]
    %v6498 = vld [vmem:[%s6290 + $0x678] sm:$0xff]
    %v6499 = vld [vmem:[%s6290 + $0x680] sm:$0xff]
    %v6500 = vld [vmem:[%s6290 + $0x688] sm:$0xff]
    %v6501 = vld [vmem:[%s6290 + $0x690] sm:$0xff]
    %v6502 = vld [vmem:[%s6290 + $0x698] sm:$0xff]
    %v6503 = vld [vmem:[%s6290 + $0x6a0] sm:$0xff]
    %v6504 = vld [vmem:[%s6290 + $0x6a8] sm:$0xff]
    %v6505 = vld [vmem:[%s6290 + $0x6b0] sm:$0xff]
    %v6506 = vld [vmem:[%s6290 + $0x6b8] sm:$0xff]
    %v6507 = vld [vmem:[%s6290 + $0x6c0] sm:$0xff]
    %v6508 = vld [vmem:[%s6290 + $0x6c8] sm:$0xff]
    %v6509 = vld [vmem:[%s6290 + $0x6d0] sm:$0xff]
    %v6510 = vld [vmem:[%s6290 + $0x6d8] sm:$0xff]
    %v6511 = vld [vmem:[%s6290 + $0x6e0] sm:$0xff]
    %v6512 = vld [vmem:[%s6290 + $0x6e8] sm:$0xff]
    %v6513 = vld [vmem:[%s6290 + $0x6f0] sm:$0xff]
    %v6514 = vld [vmem:[%s6290 + $0x6f8] sm:$0xff]
    %v6515 = vld [vmem:[%s6290 + $0x700] sm:$0xff]
    %v6516 = vld [vmem:[%s6290 + $0x708] sm:$0xff]
    %v6517 = vld [vmem:[%s6290 + $0x710] sm:$0xff]
    %v6518 = vld [vmem:[%s6290 + $0x718] sm:$0xff]
    %v6519 = vld [vmem:[%s6290 + $0x720] sm:$0xff]
    %v6520 = vld [vmem:[%s6290 + $0x728] sm:$0xff]
    %v6521 = vld [vmem:[%s6290 + $0x730] sm:$0xff]
    %v6522 = vld [vmem:[%s6290 + $0x738] sm:$0xff]
    %v6523 = vld [vmem:[%s6290 + $0x740] sm:$0xff]
    %v6524 = vld [vmem:[%s6290 + $0x748] sm:$0xff]
    %v6525 = vld [vmem:[%s6290 + $0x750] sm:$0xff]
    %v6526 = vld [vmem:[%s6290 + $0x758] sm:$0xff]
    %v6527 = vld [vmem:[%s6290 + $0x760] sm:$0xff]
    %v6528 = vld [vmem:[%s6290 + $0x768] sm:$0xff]
    %v6529 = vld [vmem:[%s6290 + $0x770] sm:$0xff]
    %v6530 = vld [vmem:[%s6290 + $0x778] sm:$0xff]
    %v6531 = vld [vmem:[%s6290 + $0x780] sm:$0xff]
    %v6532 = vld [vmem:[%s6290 + $0x788] sm:$0xff]
    %v6533 = vld [vmem:[%s6290 + $0x790] sm:$0xff]
    %v6534 = vld [vmem:[%s6290 + $0x798] sm:$0xff]
    %v6535 = vld [vmem:[%s6290 + $0x7a0] sm:$0xff]
    %v6536 = vld [vmem:[%s6290 + $0x7a8] sm:$0xff]
    %v6537 = vld [vmem:[%s6290 + $0x7b0] sm:$0xff]
    %v6538 = vld [vmem:[%s6290 + $0x7b8] sm:$0xff]
    %v6539 = vld [vmem:[%s6290 + $0x7c0] sm:$0xff]
    %v6540 = vld [vmem:[%s6290 + $0x7c8] sm:$0xff]
    %v6541 = vld [vmem:[%s6290 + $0x7d0] sm:$0xff]
    %v6542 = vld [vmem:[%s6290 + $0x7d8] sm:$0xff]
    %v6543 = vld [vmem:[%s6290 + $0x7e0] sm:$0xff]
    %v6544 = vld [vmem:[%s6290 + $0x7e8] sm:$0xff]
    %v6545 = vld [vmem:[%s6290 + $0x7f0] sm:$0xff]
    %v6546 = vld [vmem:[%s6290 + $0x7f8] sm:$0xff]
    %s6547 = scalar_lea.vmem %s10, 1
    %v6548 = vld [vmem:[%s6547] sm:$0x1]
    %v6550 = vlaneseq
    %v6551 = vshrl.u32 %v6550, 7
    %v6552 = vsub.s32 0, %v6551
    %v6553 = vrot.slane %v6548, %v6552
    %6555 = vmatprep.subr.mxu0 0.0
    %6556 = vmatpush1.msra.mxu0 %v6306
    %6557 = vmatprep.subr.mxu0 0.0
    %6558 = vmatpush1.msra.mxu0 %v6305
    %6559 = vmatprep.subr.mxu0 0.0
    %6560 = vmatpush1.msra.mxu0 %v6304
    %6561 = vmatprep.subr.mxu0 0.0
    %6562 = vmatpush1.msra.mxu0 %v6303
    %6563 = vmatprep.subr.mxu0 0.0
    %6564 = vmatpush1.msra.mxu0 %v6302
    %6565 = vmatprep.subr.mxu0 0.0
    %6566 = vmatpush1.msra.mxu0 %v6301
    %6567 = vmatprep.subr.mxu0 0.0
    %6568 = vmatpush1.msra.mxu0 %v6300
    %6569 = vmatprep.subr.mxu0 0.0
    %6570 = vmatpush1.msra.mxu0 %v6299
    %6571 = vmatprep.subr.mxu0 0.0
    %6572 = vmatpush1.msra.mxu0 %v6298
    %6573 = vmatprep.subr.mxu0 0.0
    %6574 = vmatpush1.msra.mxu0 %v6297
    %6575 = vmatprep.subr.mxu0 0.0
    %6576 = vmatpush1.msra.mxu0 %v6296
    %6577 = vmatprep.subr.mxu0 0.0
    %6578 = vmatpush1.msra.mxu0 %v6295
    %6579 = vmatprep.subr.mxu0 0.0
    %6580 = vmatpush1.msra.mxu0 %v6294
    %6581 = vmatprep.subr.mxu0 0.0
    %6582 = vmatpush1.msra.mxu0 %v6293
    %6583 = vmatprep.subr.mxu0 0.0
    %6584 = vmatpush1.msra.mxu0 %v6292
    %6585 = vmatprep.subr.mxu0 0.0
    %6586 = vmatpush1.msra.mxu0 %v6291
    %6587 = vmatprep.subr.mxu0 0.0
    %6588 = vmatpush2.msra.mxu0 %v6322
    %6589 = vmatprep.subr.mxu0 0.0
    %6590 = vmatpush2.msra.mxu0 %v6321
    %6591 = vmatprep.subr.mxu0 0.0
    %6592 = vmatpush2.msra.mxu0 %v6320
    %6593 = vmatprep.subr.mxu0 0.0
    %6594 = vmatpush2.msra.mxu0 %v6319
    %6595 = vmatprep.subr.mxu0 0.0
    %6596 = vmatpush2.msra.mxu0 %v6318
    %6597 = vmatprep.subr.mxu0 0.0
    %6598 = vmatpush2.msra.mxu0 %v6317
    %6599 = vmatprep.subr.mxu0 0.0
    %6600 = vmatpush2.msra.mxu0 %v6316
    %6601 = vmatprep.subr.mxu0 0.0
    %6602 = vmatpush2.msra.mxu0 %v6315
    %6603 = vmatprep.subr.mxu0 0.0
    %6604 = vmatpush2.msra.mxu0 %v6314
    %6605 = vmatprep.subr.mxu0 0.0
    %6606 = vmatpush2.msra.mxu0 %v6313
    %6607 = vmatprep.subr.mxu0 0.0
    %6608 = vmatpush2.msra.mxu0 %v6312
    %6609 = vmatprep.subr.mxu0 0.0
    %6610 = vmatpush2.msra.mxu0 %v6311
    %6611 = vmatprep.subr.mxu0 0.0
    %6612 = vmatpush2.msra.mxu0 %v6310
    %6613 = vmatprep.subr.mxu0 0.0
    %6614 = vmatpush2.msra.mxu0 %v6309
    %6615 = vmatprep.subr.mxu0 0.0
    %6616 = vmatpush2.msra.mxu0 %v6308
    %6617 = vmatprep.subr.mxu0 0.0
    %6618 = vmatpush2.msra.mxu0 %v6307
    %6619 = vmatprep.mubr.f32.mxu0 %v6259
    %6620 = vmatmul.mubr.f32.gmra.mxu0 %v6258
    %v6621 = vpop.f32.mrf.mxu0
    %v6622 = vadd.f32 %v6553, %v6621
    %v6623 = vpop.f32.mrf.mxu0
    %6624 = vmatprep.mubr.f32.mxu0 %v6275
    %6625 = vmatmul.mubr.f32.gmra.mxu0 %v6274
    %v6626 = vpop.f32.mrf.mxu0
    %v6627 = vadd.f32 %v6553, %v6626
    %v6628 = vpop.f32.mrf.mxu0
    %6629 = vdwg.mxu0
    %6630 = vmatprep.subr.mxu0 0.0
    %6631 = vmatpush1.msra.mxu0 %v6338
    %6632 = vmatprep.subr.mxu0 0.0
    %6633 = vmatpush1.msra.mxu0 %v6337
    %6634 = vmatprep.subr.mxu0 0.0
    %6635 = vmatpush1.msra.mxu0 %v6336
    %6636 = vmatprep.subr.mxu0 0.0
    %6637 = vmatpush1.msra.mxu0 %v6335
    %6638 = vmatprep.subr.mxu0 0.0
    %6639 = vmatpush1.msra.mxu0 %v6334
    %6640 = vmatprep.subr.mxu0 0.0
    %6641 = vmatpush1.msra.mxu0 %v6333
    %6642 = vmatprep.subr.mxu0 0.0
    %6643 = vmatpush1.msra.mxu0 %v6332
    %6644 = vmatprep.subr.mxu0 0.0
    %6645 = vmatpush1.msra.mxu0 %v6331
    %6646 = vmatprep.subr.mxu0 0.0
    %6647 = vmatpush1.msra.mxu0 %v6330
    %6648 = vmatprep.subr.mxu0 0.0
    %6649 = vmatpush1.msra.mxu0 %v6329
    %6650 = vmatprep.subr.mxu0 0.0
    %6651 = vmatpush1.msra.mxu0 %v6328
    %6652 = vmatprep.subr.mxu0 0.0
    %6653 = vmatpush1.msra.mxu0 %v6327
    %6654 = vmatprep.subr.mxu0 0.0
    %6655 = vmatpush1.msra.mxu0 %v6326
    %6656 = vmatprep.subr.mxu0 0.0
    %6657 = vmatpush1.msra.mxu0 %v6325
    %6658 = vmatprep.subr.mxu0 0.0
    %6659 = vmatpush1.msra.mxu0 %v6324
    %6660 = vmatprep.subr.mxu0 0.0
    %6661 = vmatpush1.msra.mxu0 %v6323
    %6662 = vmatprep.subr.mxu0 0.0
    %6663 = vmatpush2.msra.mxu0 %v6354
    %6664 = vmatprep.subr.mxu0 0.0
    %6665 = vmatpush2.msra.mxu0 %v6353
    %6666 = vmatprep.subr.mxu0 0.0
    %6667 = vmatpush2.msra.mxu0 %v6352
    %6668 = vmatprep.subr.mxu0 0.0
    %6669 = vmatpush2.msra.mxu0 %v6351
    %6670 = vmatprep.subr.mxu0 0.0
    %6671 = vmatpush2.msra.mxu0 %v6350
    %6672 = vmatprep.subr.mxu0 0.0
    %6673 = vmatpush2.msra.mxu0 %v6349
    %6674 = vmatprep.subr.mxu0 0.0
    %6675 = vmatpush2.msra.mxu0 %v6348
    %6676 = vmatprep.subr.mxu0 0.0
    %6677 = vmatpush2.msra.mxu0 %v6347
    %6678 = vmatprep.subr.mxu0 0.0
    %6679 = vmatpush2.msra.mxu0 %v6346
    %6680 = vmatprep.subr.mxu0 0.0
    %6681 = vmatpush2.msra.mxu0 %v6345
    %6682 = vmatprep.subr.mxu0 0.0
    %6683 = vmatpush2.msra.mxu0 %v6344
    %6684 = vmatprep.subr.mxu0 0.0
    %6685 = vmatpush2.msra.mxu0 %v6343
    %6686 = vmatprep.subr.mxu0 0.0
    %6687 = vmatpush2.msra.mxu0 %v6342
    %6688 = vmatprep.subr.mxu0 0.0
    %6689 = vmatpush2.msra.mxu0 %v6341
    %6690 = vmatprep.subr.mxu0 0.0
    %6691 = vmatpush2.msra.mxu0 %v6340
    %6692 = vmatprep.subr.mxu0 0.0
    %6693 = vmatpush2.msra.mxu0 %v6339
    %6694 = vmatprep.mubr.f32.mxu0 %v6261
    %6695 = vmatmul.mubr.f32.gmra.mxu0 %v6260
    %v6696 = vpop.f32.mrf.mxu0
    %v6697 = vadd.f32 %v6622, %v6696
    %v6698 = vpop.f32.mrf.mxu0
    %6699 = vmatprep.mubr.f32.mxu0 %v6277
    %6700 = vmatmul.mubr.f32.gmra.mxu0 %v6276
    %v6701 = vpop.f32.mrf.mxu0
    %v6702 = vadd.f32 %v6627, %v6701
    %v6703 = vpop.f32.mrf.mxu0
    %6704 = vdwg.mxu0
    %6705 = vmatprep.subr.mxu0 0.0
    %6706 = vmatpush1.msra.mxu0 %v6370
    %6707 = vmatprep.subr.mxu0 0.0
    %6708 = vmatpush1.msra.mxu0 %v6369
    %6709 = vmatprep.subr.mxu0 0.0
    %6710 = vmatpush1.msra.mxu0 %v6368
    %6711 = vmatprep.subr.mxu0 0.0
    %6712 = vmatpush1.msra.mxu0 %v6367
    %6713 = vmatprep.subr.mxu0 0.0
    %6714 = vmatpush1.msra.mxu0 %v6366
    %6715 = vmatprep.subr.mxu0 0.0
    %6716 = vmatpush1.msra.mxu0 %v6365
    %6717 = vmatprep.subr.mxu0 0.0
    %6718 = vmatpush1.msra.mxu0 %v6364
    %6719 = vmatprep.subr.mxu0 0.0
    %6720 = vmatpush1.msra.mxu0 %v6363
    %6721 = vmatprep.subr.mxu0 0.0
    %6722 = vmatpush1.msra.mxu0 %v6362
    %6723 = vmatprep.subr.mxu0 0.0
    %6724 = vmatpush1.msra.mxu0 %v6361
    %6725 = vmatprep.subr.mxu0 0.0
    %6726 = vmatpush1.msra.mxu0 %v6360
    %6727 = vmatprep.subr.mxu0 0.0
    %6728 = vmatpush1.msra.mxu0 %v6359
    %6729 = vmatprep.subr.mxu0 0.0
    %6730 = vmatpush1.msra.mxu0 %v6358
    %6731 = vmatprep.subr.mxu0 0.0
    %6732 = vmatpush1.msra.mxu0 %v6357
    %6733 = vmatprep.subr.mxu0 0.0
    %6734 = vmatpush1.msra.mxu0 %v6356
    %6735 = vmatprep.subr.mxu0 0.0
    %6736 = vmatpush1.msra.mxu0 %v6355
    %6737 = vmatprep.subr.mxu0 0.0
    %6738 = vmatpush2.msra.mxu0 %v6386
    %6739 = vmatprep.subr.mxu0 0.0
    %6740 = vmatpush2.msra.mxu0 %v6385
    %6741 = vmatprep.subr.mxu0 0.0
    %6742 = vmatpush2.msra.mxu0 %v6384
    %6743 = vmatprep.subr.mxu0 0.0
    %6744 = vmatpush2.msra.mxu0 %v6383
    %6745 = vmatprep.subr.mxu0 0.0
    %6746 = vmatpush2.msra.mxu0 %v6382
    %6747 = vmatprep.subr.mxu0 0.0
    %6748 = vmatpush2.msra.mxu0 %v6381
    %6749 = vmatprep.subr.mxu0 0.0
    %6750 = vmatpush2.msra.mxu0 %v6380
    %6751 = vmatprep.subr.mxu0 0.0
    %6752 = vmatpush2.msra.mxu0 %v6379
    %6753 = vmatprep.subr.mxu0 0.0
    %6754 = vmatpush2.msra.mxu0 %v6378
    %6755 = vmatprep.subr.mxu0 0.0
    %6756 = vmatpush2.msra.mxu0 %v6377
    %6757 = vmatprep.subr.mxu0 0.0
    %6758 = vmatpush2.msra.mxu0 %v6376
    %6759 = vmatprep.subr.mxu0 0.0
    %6760 = vmatpush2.msra.mxu0 %v6375
    %6761 = vmatprep.subr.mxu0 0.0
    %6762 = vmatpush2.msra.mxu0 %v6374
    %6763 = vmatprep.subr.mxu0 0.0
    %6764 = vmatpush2.msra.mxu0 %v6373
    %6765 = vmatprep.subr.mxu0 0.0
    %6766 = vmatpush2.msra.mxu0 %v6372
    %6767 = vmatprep.subr.mxu0 0.0
    %6768 = vmatpush2.msra.mxu0 %v6371
    %6769 = vmatprep.mubr.f32.mxu0 %v6263
    %6770 = vmatmul.mubr.f32.gmra.mxu0 %v6262
    %v6771 = vpop.f32.mrf.mxu0
    %v6772 = vadd.f32 %v6697, %v6771
    %v6773 = vpop.f32.mrf.mxu0
    %6774 = vmatprep.mubr.f32.mxu0 %v6279
    %6775 = vmatmul.mubr.f32.gmra.mxu0 %v6278
    %v6776 = vpop.f32.mrf.mxu0
    %v6777 = vadd.f32 %v6702, %v6776
    %v6778 = vpop.f32.mrf.mxu0
    %6779 = vdwg.mxu0
    %6780 = vmatprep.subr.mxu0 0.0
    %6781 = vmatpush1.msra.mxu0 %v6402
    %6782 = vmatprep.subr.mxu0 0.0
    %6783 = vmatpush1.msra.mxu0 %v6401
    %6784 = vmatprep.subr.mxu0 0.0
    %6785 = vmatpush1.msra.mxu0 %v6400
    %6786 = vmatprep.subr.mxu0 0.0
    %6787 = vmatpush1.msra.mxu0 %v6399
    %6788 = vmatprep.subr.mxu0 0.0
    %6789 = vmatpush1.msra.mxu0 %v6398
    %6790 = vmatprep.subr.mxu0 0.0
    %6791 = vmatpush1.msra.mxu0 %v6397
    %6792 = vmatprep.subr.mxu0 0.0
    %6793 = vmatpush1.msra.mxu0 %v6396
    %6794 = vmatprep.subr.mxu0 0.0
    %6795 = vmatpush1.msra.mxu0 %v6395
    %6796 = vmatprep.subr.mxu0 0.0
    %6797 = vmatpush1.msra.mxu0 %v6394
    %6798 = vmatprep.subr.mxu0 0.0
    %6799 = vmatpush1.msra.mxu0 %v6393
    %6800 = vmatprep.subr.mxu0 0.0
    %6801 = vmatpush1.msra.mxu0 %v6392
    %6802 = vmatprep.subr.mxu0 0.0
    %6803 = vmatpush1.msra.mxu0 %v6391
    %6804 = vmatprep.subr.mxu0 0.0
    %6805 = vmatpush1.msra.mxu0 %v6390
    %6806 = vmatprep.subr.mxu0 0.0
    %6807 = vmatpush1.msra.mxu0 %v6389
    %6808 = vmatprep.subr.mxu0 0.0
    %6809 = vmatpush1.msra.mxu0 %v6388
    %6810 = vmatprep.subr.mxu0 0.0
    %6811 = vmatpush1.msra.mxu0 %v6387
    %6812 = vmatprep.subr.mxu0 0.0
    %6813 = vmatpush2.msra.mxu0 %v6418
    %6814 = vmatprep.subr.mxu0 0.0
    %6815 = vmatpush2.msra.mxu0 %v6417
    %6816 = vmatprep.subr.mxu0 0.0
    %6817 = vmatpush2.msra.mxu0 %v6416
    %6818 = vmatprep.subr.mxu0 0.0
    %6819 = vmatpush2.msra.mxu0 %v6415
    %6820 = vmatprep.subr.mxu0 0.0
    %6821 = vmatpush2.msra.mxu0 %v6414
    %6822 = vmatprep.subr.mxu0 0.0
    %6823 = vmatpush2.msra.mxu0 %v6413
    %6824 = vmatprep.subr.mxu0 0.0
    %6825 = vmatpush2.msra.mxu0 %v6412
    %6826 = vmatprep.subr.mxu0 0.0
    %6827 = vmatpush2.msra.mxu0 %v6411
    %6828 = vmatprep.subr.mxu0 0.0
    %6829 = vmatpush2.msra.mxu0 %v6410
    %6830 = vmatprep.subr.mxu0 0.0
    %6831 = vmatpush2.msra.mxu0 %v6409
    %6832 = vmatprep.subr.mxu0 0.0
    %6833 = vmatpush2.msra.mxu0 %v6408
    %6834 = vmatprep.subr.mxu0 0.0
    %6835 = vmatpush2.msra.mxu0 %v6407
    %6836 = vmatprep.subr.mxu0 0.0
    %6837 = vmatpush2.msra.mxu0 %v6406
    %6838 = vmatprep.subr.mxu0 0.0
    %6839 = vmatpush2.msra.mxu0 %v6405
    %6840 = vmatprep.subr.mxu0 0.0
    %6841 = vmatpush2.msra.mxu0 %v6404
    %6842 = vmatprep.subr.mxu0 0.0
    %6843 = vmatpush2.msra.mxu0 %v6403
    %6844 = vmatprep.mubr.f32.mxu0 %v6265
    %6845 = vmatmul.mubr.f32.gmra.mxu0 %v6264
    %v6846 = vpop.f32.mrf.mxu0
    %v6847 = vadd.f32 %v6772, %v6846
    %v6848 = vpop.f32.mrf.mxu0
    %6849 = vmatprep.mubr.f32.mxu0 %v6281
    %6850 = vmatmul.mubr.f32.gmra.mxu0 %v6280
    %v6851 = vpop.f32.mrf.mxu0
    %v6852 = vadd.f32 %v6777, %v6851
    %v6853 = vpop.f32.mrf.mxu0
    %6854 = vdwg.mxu0
    %6855 = vmatprep.subr.mxu0 0.0
    %6856 = vmatpush1.msra.mxu0 %v6434
    %6857 = vmatprep.subr.mxu0 0.0
    %6858 = vmatpush1.msra.mxu0 %v6433
    %6859 = vmatprep.subr.mxu0 0.0
    %6860 = vmatpush1.msra.mxu0 %v6432
    %6861 = vmatprep.subr.mxu0 0.0
    %6862 = vmatpush1.msra.mxu0 %v6431
    %6863 = vmatprep.subr.mxu0 0.0
    %6864 = vmatpush1.msra.mxu0 %v6430
    %6865 = vmatprep.subr.mxu0 0.0
    %6866 = vmatpush1.msra.mxu0 %v6429
    %6867 = vmatprep.subr.mxu0 0.0
    %6868 = vmatpush1.msra.mxu0 %v6428
    %6869 = vmatprep.subr.mxu0 0.0
    %6870 = vmatpush1.msra.mxu0 %v6427
    %6871 = vmatprep.subr.mxu0 0.0
    %6872 = vmatpush1.msra.mxu0 %v6426
    %6873 = vmatprep.subr.mxu0 0.0
    %6874 = vmatpush1.msra.mxu0 %v6425
    %6875 = vmatprep.subr.mxu0 0.0
    %6876 = vmatpush1.msra.mxu0 %v6424
    %6877 = vmatprep.subr.mxu0 0.0
    %6878 = vmatpush1.msra.mxu0 %v6423
    %6879 = vmatprep.subr.mxu0 0.0
    %6880 = vmatpush1.msra.mxu0 %v6422
    %6881 = vmatprep.subr.mxu0 0.0
    %6882 = vmatpush1.msra.mxu0 %v6421
    %6883 = vmatprep.subr.mxu0 0.0
    %6884 = vmatpush1.msra.mxu0 %v6420
    %6885 = vmatprep.subr.mxu0 0.0
    %6886 = vmatpush1.msra.mxu0 %v6419
    %6887 = vmatprep.subr.mxu0 0.0
    %6888 = vmatpush2.msra.mxu0 %v6450
    %6889 = vmatprep.subr.mxu0 0.0
    %6890 = vmatpush2.msra.mxu0 %v6449
    %6891 = vmatprep.subr.mxu0 0.0
    %6892 = vmatpush2.msra.mxu0 %v6448
    %6893 = vmatprep.subr.mxu0 0.0
    %6894 = vmatpush2.msra.mxu0 %v6447
    %6895 = vmatprep.subr.mxu0 0.0
    %6896 = vmatpush2.msra.mxu0 %v6446
    %6897 = vmatprep.subr.mxu0 0.0
    %6898 = vmatpush2.msra.mxu0 %v6445
    %6899 = vmatprep.subr.mxu0 0.0
    %6900 = vmatpush2.msra.mxu0 %v6444
    %6901 = vmatprep.subr.mxu0 0.0
    %6902 = vmatpush2.msra.mxu0 %v6443
    %6903 = vmatprep.subr.mxu0 0.0
    %6904 = vmatpush2.msra.mxu0 %v6442
    %6905 = vmatprep.subr.mxu0 0.0
    %6906 = vmatpush2.msra.mxu0 %v6441
    %6907 = vmatprep.subr.mxu0 0.0
    %6908 = vmatpush2.msra.mxu0 %v6440
    %6909 = vmatprep.subr.mxu0 0.0
    %6910 = vmatpush2.msra.mxu0 %v6439
    %6911 = vmatprep.subr.mxu0 0.0
    %6912 = vmatpush2.msra.mxu0 %v6438
    %6913 = vmatprep.subr.mxu0 0.0
    %6914 = vmatpush2.msra.mxu0 %v6437
    %6915 = vmatprep.subr.mxu0 0.0
    %6916 = vmatpush2.msra.mxu0 %v6436
    %6917 = vmatprep.subr.mxu0 0.0
    %6918 = vmatpush2.msra.mxu0 %v6435
    %6919 = vmatprep.mubr.f32.mxu0 %v6267
    %6920 = vmatmul.mubr.f32.gmra.mxu0 %v6266
    %v6921 = vpop.f32.mrf.mxu0
    %v6922 = vadd.f32 %v6847, %v6921
    %v6923 = vpop.f32.mrf.mxu0
    %6924 = vmatprep.mubr.f32.mxu0 %v6283
    %6925 = vmatmul.mubr.f32.gmra.mxu0 %v6282
    %v6926 = vpop.f32.mrf.mxu0
    %v6927 = vadd.f32 %v6852, %v6926
    %v6928 = vpop.f32.mrf.mxu0
    %6929 = vdwg.mxu0
    %6930 = vmatprep.subr.mxu0 0.0
    %6931 = vmatpush1.msra.mxu0 %v6466
    %6932 = vmatprep.subr.mxu0 0.0
    %6933 = vmatpush1.msra.mxu0 %v6465
    %6934 = vmatprep.subr.mxu0 0.0
    %6935 = vmatpush1.msra.mxu0 %v6464
    %6936 = vmatprep.subr.mxu0 0.0
    %6937 = vmatpush1.msra.mxu0 %v6463
    %6938 = vmatprep.subr.mxu0 0.0
    %6939 = vmatpush1.msra.mxu0 %v6462
    %6940 = vmatprep.subr.mxu0 0.0
    %6941 = vmatpush1.msra.mxu0 %v6461
    %6942 = vmatprep.subr.mxu0 0.0
    %6943 = vmatpush1.msra.mxu0 %v6460
    %6944 = vmatprep.subr.mxu0 0.0
    %6945 = vmatpush1.msra.mxu0 %v6459
    %6946 = vmatprep.subr.mxu0 0.0
    %6947 = vmatpush1.msra.mxu0 %v6458
    %6948 = vmatprep.subr.mxu0 0.0
    %6949 = vmatpush1.msra.mxu0 %v6457
    %6950 = vmatprep.subr.mxu0 0.0
    %6951 = vmatpush1.msra.mxu0 %v6456
    %6952 = vmatprep.subr.mxu0 0.0
    %6953 = vmatpush1.msra.mxu0 %v6455
    %6954 = vmatprep.subr.mxu0 0.0
    %6955 = vmatpush1.msra.mxu0 %v6454
    %6956 = vmatprep.subr.mxu0 0.0
    %6957 = vmatpush1.msra.mxu0 %v6453
    %6958 = vmatprep.subr.mxu0 0.0
    %6959 = vmatpush1.msra.mxu0 %v6452
    %6960 = vmatprep.subr.mxu0 0.0
    %6961 = vmatpush1.msra.mxu0 %v6451
    %6962 = vmatprep.subr.mxu0 0.0
    %6963 = vmatpush2.msra.mxu0 %v6482
    %6964 = vmatprep.subr.mxu0 0.0
    %6965 = vmatpush2.msra.mxu0 %v6481
    %6966 = vmatprep.subr.mxu0 0.0
    %6967 = vmatpush2.msra.mxu0 %v6480
    %6968 = vmatprep.subr.mxu0 0.0
    %6969 = vmatpush2.msra.mxu0 %v6479
    %6970 = vmatprep.subr.mxu0 0.0
    %6971 = vmatpush2.msra.mxu0 %v6478
    %6972 = vmatprep.subr.mxu0 0.0
    %6973 = vmatpush2.msra.mxu0 %v6477
    %6974 = vmatprep.subr.mxu0 0.0
    %6975 = vmatpush2.msra.mxu0 %v6476
    %6976 = vmatprep.subr.mxu0 0.0
    %6977 = vmatpush2.msra.mxu0 %v6475
    %6978 = vmatprep.subr.mxu0 0.0
    %6979 = vmatpush2.msra.mxu0 %v6474
    %6980 = vmatprep.subr.mxu0 0.0
    %6981 = vmatpush2.msra.mxu0 %v6473
    %6982 = vmatprep.subr.mxu0 0.0
    %6983 = vmatpush2.msra.mxu0 %v6472
    %6984 = vmatprep.subr.mxu0 0.0
    %6985 = vmatpush2.msra.mxu0 %v6471
    %6986 = vmatprep.subr.mxu0 0.0
    %6987 = vmatpush2.msra.mxu0 %v6470
    %6988 = vmatprep.subr.mxu0 0.0
    %6989 = vmatpush2.msra.mxu0 %v6469
    %6990 = vmatprep.subr.mxu0 0.0
    %6991 = vmatpush2.msra.mxu0 %v6468
    %6992 = vmatprep.subr.mxu0 0.0
    %6993 = vmatpush2.msra.mxu0 %v6467
    %6994 = vmatprep.mubr.f32.mxu0 %v6269
    %6995 = vmatmul.mubr.f32.gmra.mxu0 %v6268
    %v6996 = vpop.f32.mrf.mxu0
    %v6997 = vadd.f32 %v6922, %v6996
    %v6998 = vpop.f32.mrf.mxu0
    %6999 = vmatprep.mubr.f32.mxu0 %v6285
    %7000 = vmatmul.mubr.f32.gmra.mxu0 %v6284
    %v7001 = vpop.f32.mrf.mxu0
    %v7002 = vadd.f32 %v6927, %v7001
    %v7003 = vpop.f32.mrf.mxu0
    %7004 = vdwg.mxu0
    %7005 = vmatprep.subr.mxu0 0.0
    %7006 = vmatpush1.msra.mxu0 %v6498
    %7007 = vmatprep.subr.mxu0 0.0
    %7008 = vmatpush1.msra.mxu0 %v6497
    %7009 = vmatprep.subr.mxu0 0.0
    %7010 = vmatpush1.msra.mxu0 %v6496
    %7011 = vmatprep.subr.mxu0 0.0
    %7012 = vmatpush1.msra.mxu0 %v6495
    %7013 = vmatprep.subr.mxu0 0.0
    %7014 = vmatpush1.msra.mxu0 %v6494
    %7015 = vmatprep.subr.mxu0 0.0
    %7016 = vmatpush1.msra.mxu0 %v6493
    %7017 = vmatprep.subr.mxu0 0.0
    %7018 = vmatpush1.msra.mxu0 %v6492
    %7019 = vmatprep.subr.mxu0 0.0
    %7020 = vmatpush1.msra.mxu0 %v6491
    %7021 = vmatprep.subr.mxu0 0.0
    %7022 = vmatpush1.msra.mxu0 %v6490
    %7023 = vmatprep.subr.mxu0 0.0
    %7024 = vmatpush1.msra.mxu0 %v6489
    %7025 = vmatprep.subr.mxu0 0.0
    %7026 = vmatpush1.msra.mxu0 %v6488
    %7027 = vmatprep.subr.mxu0 0.0
    %7028 = vmatpush1.msra.mxu0 %v6487
    %7029 = vmatprep.subr.mxu0 0.0
    %7030 = vmatpush1.msra.mxu0 %v6486
    %7031 = vmatprep.subr.mxu0 0.0
    %7032 = vmatpush1.msra.mxu0 %v6485
    %7033 = vmatprep.subr.mxu0 0.0
    %7034 = vmatpush1.msra.mxu0 %v6484
    %7035 = vmatprep.subr.mxu0 0.0
    %7036 = vmatpush1.msra.mxu0 %v6483
    %7037 = vmatprep.subr.mxu0 0.0
    %7038 = vmatpush2.msra.mxu0 %v6514
    %7039 = vmatprep.subr.mxu0 0.0
    %7040 = vmatpush2.msra.mxu0 %v6513
    %7041 = vmatprep.subr.mxu0 0.0
    %7042 = vmatpush2.msra.mxu0 %v6512
    %7043 = vmatprep.subr.mxu0 0.0
    %7044 = vmatpush2.msra.mxu0 %v6511
    %7045 = vmatprep.subr.mxu0 0.0
    %7046 = vmatpush2.msra.mxu0 %v6510
    %7047 = vmatprep.subr.mxu0 0.0
    %7048 = vmatpush2.msra.mxu0 %v6509
    %7049 = vmatprep.subr.mxu0 0.0
    %7050 = vmatpush2.msra.mxu0 %v6508
    %7051 = vmatprep.subr.mxu0 0.0
    %7052 = vmatpush2.msra.mxu0 %v6507
    %7053 = vmatprep.subr.mxu0 0.0
    %7054 = vmatpush2.msra.mxu0 %v6506
    %7055 = vmatprep.subr.mxu0 0.0
    %7056 = vmatpush2.msra.mxu0 %v6505
    %7057 = vmatprep.subr.mxu0 0.0
    %7058 = vmatpush2.msra.mxu0 %v6504
    %7059 = vmatprep.subr.mxu0 0.0
    %7060 = vmatpush2.msra.mxu0 %v6503
    %7061 = vmatprep.subr.mxu0 0.0
    %7062 = vmatpush2.msra.mxu0 %v6502
    %7063 = vmatprep.subr.mxu0 0.0
    %7064 = vmatpush2.msra.mxu0 %v6501
    %7065 = vmatprep.subr.mxu0 0.0
    %7066 = vmatpush2.msra.mxu0 %v6500
    %7067 = vmatprep.subr.mxu0 0.0
    %7068 = vmatpush2.msra.mxu0 %v6499
    %7069 = vmatprep.mubr.f32.mxu0 %v6271
    %7070 = vmatmul.mubr.f32.gmra.mxu0 %v6270
    %v7071 = vpop.f32.mrf.mxu0
    %v7072 = vadd.f32 %v6997, %v7071
    %v7073 = vpop.f32.mrf.mxu0
    %7074 = vmatprep.mubr.f32.mxu0 %v6287
    %7075 = vmatmul.mubr.f32.gmra.mxu0 %v6286
    %v7076 = vpop.f32.mrf.mxu0
    %v7077 = vadd.f32 %v7002, %v7076
    %v7078 = vpop.f32.mrf.mxu0
    %7079 = vdwg.mxu0
    %7080 = vmatprep.subr.mxu0 0.0
    %7081 = vmatpush1.msra.mxu0 %v6530
    %7082 = vmatprep.subr.mxu0 0.0
    %7083 = vmatpush1.msra.mxu0 %v6529
    %7084 = vmatprep.subr.mxu0 0.0
    %7085 = vmatpush1.msra.mxu0 %v6528
    %7086 = vmatprep.subr.mxu0 0.0
    %7087 = vmatpush1.msra.mxu0 %v6527
    %7088 = vmatprep.subr.mxu0 0.0
    %7089 = vmatpush1.msra.mxu0 %v6526
    %7090 = vmatprep.subr.mxu0 0.0
    %7091 = vmatpush1.msra.mxu0 %v6525
    %7092 = vmatprep.subr.mxu0 0.0
    %7093 = vmatpush1.msra.mxu0 %v6524
    %7094 = vmatprep.subr.mxu0 0.0
    %7095 = vmatpush1.msra.mxu0 %v6523
    %7096 = vmatprep.subr.mxu0 0.0
    %7097 = vmatpush1.msra.mxu0 %v6522
    %7098 = vmatprep.subr.mxu0 0.0
    %7099 = vmatpush1.msra.mxu0 %v6521
    %7100 = vmatprep.subr.mxu0 0.0
    %7101 = vmatpush1.msra.mxu0 %v6520
    %7102 = vmatprep.subr.mxu0 0.0
    %7103 = vmatpush1.msra.mxu0 %v6519
    %7104 = vmatprep.subr.mxu0 0.0
    %7105 = vmatpush1.msra.mxu0 %v6518
    %7106 = vmatprep.subr.mxu0 0.0
    %7107 = vmatpush1.msra.mxu0 %v6517
    %7108 = vmatprep.subr.mxu0 0.0
    %7109 = vmatpush1.msra.mxu0 %v6516
    %7110 = vmatprep.subr.mxu0 0.0
    %7111 = vmatpush1.msra.mxu0 %v6515
    %7112 = vmatprep.subr.mxu0 0.0
    %7113 = vmatpush2.msra.mxu0 %v6546
    %7114 = vmatprep.subr.mxu0 0.0
    %7115 = vmatpush2.msra.mxu0 %v6545
    %7116 = vmatprep.subr.mxu0 0.0
    %7117 = vmatpush2.msra.mxu0 %v6544
    %7118 = vmatprep.subr.mxu0 0.0
    %7119 = vmatpush2.msra.mxu0 %v6543
    %7120 = vmatprep.subr.mxu0 0.0
    %7121 = vmatpush2.msra.mxu0 %v6542
    %7122 = vmatprep.subr.mxu0 0.0
    %7123 = vmatpush2.msra.mxu0 %v6541
    %7124 = vmatprep.subr.mxu0 0.0
    %7125 = vmatpush2.msra.mxu0 %v6540
    %7126 = vmatprep.subr.mxu0 0.0
    %7127 = vmatpush2.msra.mxu0 %v6539
    %7128 = vmatprep.subr.mxu0 0.0
    %7129 = vmatpush2.msra.mxu0 %v6538
    %7130 = vmatprep.subr.mxu0 0.0
    %7131 = vmatpush2.msra.mxu0 %v6537
    %7132 = vmatprep.subr.mxu0 0.0
    %7133 = vmatpush2.msra.mxu0 %v6536
    %7134 = vmatprep.subr.mxu0 0.0
    %7135 = vmatpush2.msra.mxu0 %v6535
    %7136 = vmatprep.subr.mxu0 0.0
    %7137 = vmatpush2.msra.mxu0 %v6534
    %7138 = vmatprep.subr.mxu0 0.0
    %7139 = vmatpush2.msra.mxu0 %v6533
    %7140 = vmatprep.subr.mxu0 0.0
    %7141 = vmatpush2.msra.mxu0 %v6532
    %7142 = vmatprep.subr.mxu0 0.0
    %7143 = vmatpush2.msra.mxu0 %v6531
    %7144 = vmatprep.mubr.f32.mxu0 %v6273
    %7145 = vmatmul.mubr.f32.gmra.mxu0 %v6272
    %v7146 = vpop.f32.mrf.mxu0
    %v7147 = vadd.f32 %v7072, %v7146
    %v7148 = vpop.f32.mrf.mxu0
    %7149 = vmatprep.mubr.f32.mxu0 %v6289
    %7150 = vmatmul.mubr.f32.gmra.mxu0 %v6288
    %v7151 = vpop.f32.mrf.mxu0
    %v7152 = vadd.f32 %v7077, %v7151
    %v7153 = vpop.f32.mrf.mxu0
    %7154 = vdwg.mxu0
    %v7155 = vadd.f32 %v5484, %v7147
    %v7156 = vadd.f32 %v5485, %v7152
    %s7157 = scalar_lea.vmem %s13, 1
    %v7158 = vld [vmem:[%s7157] sm:$0x1]
    %s7159 = scalar_lea.vmem %s14, 1
    %v7160 = vld [vmem:[%s7159] sm:$0x1]
    %v7161 = vsel %vm162, %v7155, 0.0
    %7162 = vadd.xlane.f32.xlu0 %v7161
    %v7163 = vpop.xlane.xlu0 %7162
    %v7164 = vsel %vm162, %v7156, 0.0
    %7165 = vadd.xlane.f32.xlu0 %v7164
    %v7166 = vpop.xlane.xlu0 %7165
    %v7167 = vmul.f32 %v7163, %v1924
    %v7168 = vmul.f32 %v7166, %v1924
    %v7169 = vsub.f32 %v7155, %v7167
    %v7170 = vsub.f32 %v7156, %v7168
    %v7171 = vmul.f32 %v7169, %v7169
    %v7172 = vmul.f32 %v7170, %v7170
    %v7173 = vsel %vm162, %v7171, 0.0
    %7174 = vadd.xlane.f32.xlu0 %v7173
    %v7175 = vpop.xlane.xlu0 %7174
    %v7176 = vsel %vm162, %v7172, 0.0
    %7177 = vadd.xlane.f32.xlu0 %v7176
    %v7178 = vpop.xlane.xlu0 %7177
    %v7179 = vmul.f32 %v7175, %v1924
    %v7180 = vmul.f32 %v7178, %v1924
    %v7181 = vadd.f32 %v7179, 1e-05
    %v7182 = vadd.f32 %v7180, 1e-05
    %v7183 = vrsqrt.pop %v7181
    %v7184 = vrsqrt.pop %v7182
    %v7185 = vmul.f32 %v7169, %v7183
    %v7186 = vmul.f32 %v7170, %v7184
    %v7188 = vlaneseq
    %v7189 = vshrl.u32 %v7188, 7
    %v7190 = vsub.s32 0, %v7189
    %v7191 = vrot.slane %v7158, %v7190
    %v7193 = vmul.f32 %v7185, %v7191
    %v7194 = vmul.f32 %v7186, %v7191
    %v7196 = vlaneseq
    %v7197 = vshrl.u32 %v7196, 7
    %v7198 = vsub.s32 0, %v7197
    %v7199 = vrot.slane %v7160, %v7198
    %v7201 = vadd.f32 %v7193, %v7199
    %v7202 = vadd.f32 %v7194, %v7199
    %v7203 = vld [vmem:[%s15] sm:$0xff]
    %v7204 = vld [vmem:[%s15 + $0x8] sm:$0xff]
    %v7205 = vld [vmem:[%s15 + $0x10] sm:$0xff]
    %v7206 = vld [vmem:[%s15 + $0x18] sm:$0xff]
    %v7207 = vld [vmem:[%s16] sm:$0x1]
    %v7209 = vlaneseq
    %v7210 = vshrl.u32 %v7209, 7
    %v7211 = vsub.s32 0, %v7210
    %v7212 = vrot.slane %v7207, %v7211
    %v7215 = vsel %vm162, %v7201, 0
    %v7218 = vsel %vm162, %v7202, 0
    %7220 = vmatprep.subr.mxu0 0.0
    %7221 = vmatpush1.msra.mxu0 0.0
    %7222 = vmatprep.subr.mxu0 0.0
    %7223 = vmatpush1.msra.mxu0 0.0
    %7224 = vmatprep.subr.mxu0 0.0
    %7225 = vmatpush1.msra.mxu0 0.0
    %7226 = vmatprep.subr.mxu0 0.0
    %7227 = vmatpush1.msra.mxu0 0.0
    %7228 = vmatprep.subr.mxu0 0.0
    %7229 = vmatpush1.msra.mxu0 0.0
    %7230 = vmatprep.subr.mxu0 0.0
    %7231 = vmatpush1.msra.mxu0 0.0
    %7232 = vmatprep.subr.mxu0 0.0
    %7233 = vmatpush1.msra.mxu0 0.0
    %7234 = vmatprep.subr.mxu0 0.0
    %7235 = vmatpush1.msra.mxu0 0.0
    %7236 = vmatprep.subr.mxu0 0.0
    %7237 = vmatpush1.msra.mxu0 0.0
    %7238 = vmatprep.subr.mxu0 0.0
    %7239 = vmatpush1.msra.mxu0 0.0
    %7240 = vmatprep.subr.mxu0 0.0
    %7241 = vmatpush1.msra.mxu0 0.0
    %7242 = vmatprep.subr.mxu0 0.0
    %7243 = vmatpush1.msra.mxu0 0.0
    %7244 = vmatprep.subr.mxu0 0.0
    %7245 = vmatpush1.msra.mxu0 %v7206
    %7246 = vmatprep.subr.mxu0 0.0
    %7247 = vmatpush1.msra.mxu0 %v7205
    %7248 = vmatprep.subr.mxu0 0.0
    %7249 = vmatpush1.msra.mxu0 %v7204
    %7250 = vmatprep.subr.mxu0 0.0
    %7251 = vmatpush1.msra.mxu0 %v7203
    %7252 = vmatprep.subr.mxu0 0.0
    %7253 = vmatpush2.msra.mxu0 0.0
    %7254 = vmatprep.subr.mxu0 0.0
    %7255 = vmatpush2.msra.mxu0 0.0
    %7256 = vmatprep.subr.mxu0 0.0
    %7257 = vmatpush2.msra.mxu0 0.0
    %7258 = vmatprep.subr.mxu0 0.0
    %7259 = vmatpush2.msra.mxu0 0.0
    %7260 = vmatprep.subr.mxu0 0.0
    %7261 = vmatpush2.msra.mxu0 0.0
    %7262 = vmatprep.subr.mxu0 0.0
    %7263 = vmatpush2.msra.mxu0 0.0
    %7264 = vmatprep.subr.mxu0 0.0
    %7265 = vmatpush2.msra.mxu0 0.0
    %7266 = vmatprep.subr.mxu0 0.0
    %7267 = vmatpush2.msra.mxu0 0.0
    %7268 = vmatprep.subr.mxu0 0.0
    %7269 = vmatpush2.msra.mxu0 0.0
    %7270 = vmatprep.subr.mxu0 0.0
    %7271 = vmatpush2.msra.mxu0 0.0
    %7272 = vmatprep.subr.mxu0 0.0
    %7273 = vmatpush2.msra.mxu0 0.0
    %7274 = vmatprep.subr.mxu0 0.0
    %7275 = vmatpush2.msra.mxu0 0.0
    %7276 = vmatprep.subr.mxu0 0.0
    %7277 = vmatpush2.msra.mxu0 0.0
    %7278 = vmatprep.subr.mxu0 0.0
    %7279 = vmatpush2.msra.mxu0 0.0
    %7280 = vmatprep.subr.mxu0 0.0
    %7281 = vmatpush2.msra.mxu0 0.0
    %7282 = vmatprep.subr.mxu0 0.0
    %7283 = vmatpush2.msra.mxu0 0.0
    %7284 = vmatprep.mubr.f32.mxu0 0.0
    %7285 = vmatmul.mubr.f32.gmra.mxu0 %v7215
    %v7286 = vpop.f32.mrf.mxu0
    %v7287 = vadd.f32 %v7212, %v7286
    %v7288 = vpop.f32.mrf.mxu0
    %7289 = vmatprep.mubr.f32.mxu0 0.0
    %7290 = vmatmul.mubr.f32.gmra.mxu0 %v7218
    %v7291 = vpop.f32.mrf.mxu0
    %v7292 = vadd.f32 %v7212, %v7291
    %v7293 = vpop.f32.mrf.mxu0
    %7294 = vdwg.mxu0
    %7295 = vst [vmem:[#allocation2] sm:$0xff] %v7287
    %7296 = vst [vmem:[#allocation2 + $0x8] sm:$0xff] %v7292
    // Predicated region
    $region70: #{tpu_custom_call.1} parent=1 // pred_check
      _
    $region71: #{tpu_custom_call.1} parent=1 // pred_check_branch
      %7298 = sbr.rel (0) target = $region73
    $region72: #{tpu_custom_call.1} parent=1 // pred_region
      %s7300 = ssub.s32 256, 256
      %7301 = vsyncadd [#allocation3], %s7300
      %s7302 = sshll.u32 [#allocation2], 4
      %s7303 = int_to_ptr.vmem [resolvable:$true] %s7302
      %7308 = dma.vmem_to_hbm [thread:$0]  %s7303, 256, %s17, [#allocation3], 128, 128, 8
    $region73: #{tpu_custom_call.1} parent=1 // pred_fallthru
      _
    // Predicated region
    $region74: #{tpu_custom_call.1} parent=1 // pred_check
      _
    $region75: #{tpu_custom_call.1} parent=1 // pred_check_branch
      %7310 = sbr.rel (0) target = $region77
    $region76: #{tpu_custom_call.1} parent=1 // pred_region
      %7311 = dma.done [#allocation3], 256
    $region77: #{tpu_custom_call.1} parent=1 // pred_fallthru
      _
    %7312 = vsyncpa [#allocation3], 1

</llo_original>
